<compile_context>
chip_gen: v7x
topology: tpu7x:2x2x1
jax: 0.10.0
libtpu: 0.0.40
codegen_flags: <defaults>
</compile_context>

<pallas_src>
import math
import functools

import jax
import jax.numpy as jnp
from jax import lax
from jax.experimental import pallas as pl
from jax.experimental.pallas import tpu as pltpu

# ---------------- hyper-parameters (small, consistent with the module) -------------
D_MODEL = 64          # module default is 768; kept small
NHEAD = 8             # matches nn.TransformerEncoderLayer(nhead=8)
HEAD_DIM = D_MODEL // NHEAD
D_FF = 128            # PyTorch default dim_feedforward=2048; kept small
VOCAB = 32
INPUT_LEN = 8
OUTPUT_LEN = 5
BATCH = 2
NUM_ENC_LAYERS = 8
NUM_DEC_LAYERS = 8
MAX_LEN = 300
SOS_IDX = 0
EPS = 1e-5
NEG_INF = -1e30


def _add_ln(x, res, g, b):
    """LayerNorm(x + res) with PyTorch semantics (biased var, eps inside sqrt)."""
    y = x + res
    mu = jnp.mean(y, axis=-1, keepdims=True)
    yc = y - mu
    var = jnp.mean(yc * yc, axis=-1, keepdims=True)
    return yc * lax.rsqrt(var + EPS) * g + b


# ============================ fused whole-model kernel ==============================
@functools.lru_cache(maxsize=None)
def _make_model(B, S, Lt):
    """One pallas_call: encoder (S tokens) -> greedy decode loop (Lt steps)."""
    D, F, V = D_MODEL, D_FF, VOCAB
    Ms, Mt = B * S, B * Lt
    NE, ND = NUM_ENC_LAYERS, NUM_DEC_LAYERS
    scale = 1.0 / math.sqrt(HEAD_DIM)

    def attention(q, k, v, Lq, Lk, bias=None):
        """Multi-head attention on batch-major rows; bf16 MXU inputs, f32 math.

        The key-length `bias` (0 / -1e30) is built once per call-site (not per
        head).  Heads stay as a static loop: at dh=8 Mosaic would unroll a
        batched-head dot_general into the same number of MXU pushes anyway.
        """
        q3 = q.reshape(B, Lq, D)
        k3 = k.reshape(B, Lk, D)
        v3 = v.reshape(B, Lk, D)
        outs = []
        for h in range(NHEAD):
            sl = slice(h * HEAD_DIM, (h + 1) * HEAD_DIM)
            qh = q3[:, :, sl].astype(jnp.bfloat16)
            kh = k3[:, :, sl].astype(jnp.bfloat16)
            vh = v3[:, :, sl].astype(jnp.bfloat16)
            s = lax.dot_general(qh, kh, (((2,), (2,)), ((0,), (0,))),
                                preferred_element_type=jnp.float32) * scale
            if bias is not None:
                s = s + bias
            s = s - jnp.max(s, axis=-1, keepdims=True)
            p = jnp.exp(s)
            p = p * pl.reciprocal(jnp.sum(p, axis=-1, keepdims=True), approx=False)
            o = lax.dot_general(p.astype(jnp.bfloat16), vh, (((2,), (1,)), ((0,), (0,))),
                                preferred_element_type=jnp.float32)
            outs.append(o)
        return jnp.concatenate(outs, axis=-1).reshape(B * Lq, D)

    def kernel(x_ref, tok0_ref, pe_ref, emb_ref, predw_ref, predb_ref,
               e_wqkv, e_bqkv, e_wo, e_bo, e_g1, e_be1, e_w1, e_bf1,
               e_w2, e_bf2, e_g2, e_be2,
               d_saw, d_sab, d_sow, d_sob, d_g1, d_be1,
               d_cqw, d_cqb, d_ckvw, d_ckvb, d_cow, d_cob, d_g2, d_be2,
               d_w1, d_bf1, d_w2, d_bf2, d_g3, d_be3,
               o_ref, kv_ref):
        # ------------------ encoder: 8 layers, weights resident in VMEM -------------
        def enc_layer(l, x):
            xb = x.astype(jnp.bfloat16)
            qkv = jnp.dot(xb, e_wqkv[l], preferred_element_type=jnp.float32) + e_bqkv[l]
            a = attention(qkv[:, :D], qkv[:, D:2 * D], qkv[:, 2 * D:], S, S)
            a = jnp.dot(a.astype(jnp.bfloat16), e_wo[l],
                        preferred_element_type=jnp.float32) + e_bo[l]
            x = _add_ln(a, x, e_g1[l], e_be1[l])
            h = jnp.maximum(jnp.dot(x.astype(jnp.bfloat16), e_w1[l],
                                    preferred_element_type=jnp.float32) + e_bf1[l], 0.0)
            f = jnp.dot(h.astype(jnp.bfloat16), e_w2[l],
                        preferred_element_type=jnp.float32) + e_bf2[l]
            return _add_ln(f, x, e_g2[l], e_be2[l])

        mem = lax.fori_loop(0, NE, enc_layer, x_ref[...])       # (B*S, D) f32
        mem_bf = mem.astype(jnp.bfloat16)

        # ---- cross-attention K/V cache: computed ONCE per layer, reused every step ----
        for l in range(ND):
            kv_ref[l] = jnp.dot(mem_bf, d_ckvw[l],
                                preferred_element_type=jnp.float32) + d_ckvb[l]

        pe = pe_ref[...]                                        # (B*Lt, D) f32
        emb = emb_ref[...]                                      # (V, D) f32
        predw = predw_ref[...]                                  # (D, V) bf16
        predb = predb_ref[...]                                  # (1, V) f32

        # ----------------------- fused greedy decode loop ------------------------
        def step(t, carry):
            tok, _ = carry                                      # tok: (B*Lt, V) one-hot

            # exact embedding lookup (one-hot matmul, f32) + positional encoding
            tgt = jnp.dot(tok, emb, preferred_element_type=jnp.float32) + pe

            # key-length mask: keys at positions > t are invalid (built once per step)
            kidx = lax.broadcasted_iota(jnp.int32, (1, 1, Lt), 2)
            bias = jnp.where(kidx <= t, 0.0, NEG_INF)

            def dec_layer(l, x):
                xb = x.astype(jnp.bfloat16)
                # self-attention (no causal mask in the original; only length mask)
                qkv = jnp.dot(xb, d_saw[l], preferred_element_type=jnp.float32) + d_sab[l]
                a = attention(qkv[:, :D], qkv[:, D:2 * D], qkv[:, 2 * D:], Lt, Lt, bias)
                a = jnp.dot(a.astype(jnp.bfloat16), d_sow[l],
                            preferred_element_type=jnp.float32) + d_sob[l]
                x = _add_ln(a, x, d_g1[l], d_be1[l])
                # cross-attention over the cached memory K/V
                qc = jnp.dot(x.astype(jnp.bfloat16), d_cqw[l],
                             preferred_element_type=jnp.float32) + d_cqb[l]
                kv = kv_ref[l]
                c = attention(qc, kv[:, :D], kv[:, D:], Lt, S)
                c = jnp.dot(c.astype(jnp.bfloat16), d_cow[l],
                            preferred_element_type=jnp.float32) + d_cob[l]
                x = _add_ln(c, x, d_g2[l], d_be2[l])
                # feed-forward (relu)
                h = jnp.maximum(jnp.dot(x.astype(jnp.bfloat16), d_w1[l],
                                        preferred_element_type=jnp.float32) + d_bf1[l],
                                0.0)
                f = jnp.dot(h.astype(jnp.bfloat16), d_w2[l],
                            preferred_element_type=jnp.float32) + d_bf2[l]
                return _add_ln(f, x, d_g3[l], d_be3[l])

            x = lax.fori_loop(0, ND, dec_layer, tgt)            # (B*Lt, D)

            # prediction only for the consumed row (== decoder_output[-1], row t)
            ridx = lax.broadcasted_iota(jnp.int32, (B, Lt, D), 1)
            xt = jnp.sum(jnp.where(ridx == t, x.reshape(B, Lt, D), 0.0), axis=1)  # (B, D)
            pred = jnp.dot(xt.astype(jnp.bfloat16), predw,
                           preferred_element_type=jnp.float32) + predb            # (B, V)

            # greedy argmax -> one-hot of the first maximum (torch.argmax semantics)
            vidx = lax.broadcasted_iota(jnp.int32, (B, V), 1).astype(jnp.float32)
            mx = jnp.max(pred, axis=-1, keepdims=True)
            first = jnp.min(jnp.where(pred >= mx, vidx, float(V)),
                            axis=-1, keepdims=True)
            onehot = (vidx == first).astype(jnp.float32)                           # (B, V)

            # feed token t+1 back into the (one-hot) target buffer
            # (at the last step t+1 == Lt matches no position -> no-op, as intended)
            pidx = lax.broadcasted_iota(jnp.int32, (B, Lt, V), 1)
            tok = jnp.where(pidx == t + 1, onehot[:, None, :],
                            tok.reshape(B, Lt, V)).reshape(Mt, V)
            return tok, x

        _, x_last = lax.fori_loop(
            0, Lt, step, (tok0_ref[...], jnp.zeros((Mt, D), jnp.float32)))
        o_ref[...] = x_last                                     # single HBM writeback

    return pl.pallas_call(
        kernel,
        out_shape=jax.ShapeDtypeStruct((Mt, D), jnp.float32),
        scratch_shapes=[pltpu.VMEM((ND, Ms, 2 * D), jnp.float32)],   # memory K/V cache
    )


# ================================ full forward ======================================
def _forward(x, params):
    """x: (B, input_len, d_model) -> (B, output_len-1, d_model)."""
    B, S, D = x.shape
    Lt = OUTPUT_LEN - 1
    ep, dp = params['enc'], params['dec']

    # positional encoding rows, replicated per batch (dropout = identity / eval)
    pe_rep = jnp.tile(params['pe'][:Lt, 0, :], (B, 1))              # (B*Lt, D)
    # initial one-hot token buffer: position 0 of every batch = SOS
    tok0 = jnp.zeros((B, Lt, VOCAB), jnp.float32)
    tok0 = tok0.at[:, 0, SOS_IDX].set(1.0).reshape(B * Lt, VOCAB)

    dec = _make_model(B, S, Lt)(
        x.reshape(B * S, D), tok0, pe_rep, params['emb'],
        params['pred_w'], params['pred_b'],
        ep['wqkv'], ep['bqkv'], ep['wo'], ep['bo'], ep['ln1_g'], ep['ln1_b'],
        ep['w1'], ep['b1'], ep['w2'], ep['b2'], ep['ln2_g'], ep['ln2_b'],
        dp['sa_wqkv'], dp['sa_bqkv'], dp['sa_wo'], dp['sa_bo'], dp['ln1_g'], dp['ln1_b'],
        dp['ca_wq'], dp['ca_bq'], dp['ca_wkv'], dp['ca_bkv'], dp['ca_wo'], dp['ca_bo'],
        dp['ln2_g'], dp['ln2_b'],
        dp['w1'], dp['b1'], dp['w2'], dp['b2'], dp['ln3_g'], dp['ln3_b'])
    # TODO(synk): probHead / self.soft and the `predictions` buffer are defined in the
    # module but never used for the returned value — intentionally not materialized.
    # TODO(synk): dropout layers (p=0.1) are implemented with eval/identity semantics.
    return dec.reshape(B, Lt, D)                                    # batch-major already


comment_encoded_to_skills_forward = jax.jit(_forward)


# =============================== parameter init =====================================
def _make_pe():
    position = jnp.arange(MAX_LEN, dtype=jnp.float32)[:, None]
    div_term = jnp.exp(jnp.arange(0, D_MODEL, 2, dtype=jnp.float32)
                       * (-math.log(10000.0) / D_MODEL))
    pe = jnp.zeros((MAX_LEN, D_MODEL), dtype=jnp.float32)
    pe = pe.at[:, 0::2].set(jnp.sin(position * div_term))
    pe = pe.at[:, 1::2].set(jnp.cos(position * div_term))
    return pe[:, None, :]                              # (max_len, 1, D)


def init_params(key):
    keys = iter(jax.random.split(key, 64))

    def w(shape, scale=0.05, dtype=jnp.bfloat16):
        # matmul weights stored bf16 (MXU inputs); everything else stays f32
        return (jax.random.normal(next(keys), shape, jnp.float32) * scale).astype(dtype)

    def zeros(shape):
        return jnp.zeros(shape, jnp.float32)

    def ones(shape):
        return jnp.ones(shape, jnp.float32)

    D, F = D_MODEL, D_FF
    NE, ND = NUM_ENC_LAYERS, NUM_DEC_LAYERS

    enc = dict(
        wqkv=w((NE, D, 3 * D)), bqkv=zeros((NE, 1, 3 * D)),
        wo=w((NE, D, D)),       bo=zeros((NE, 1, D)),
        ln1_g=ones((NE, 1, D)), ln1_b=zeros((NE, 1, D)),
        w1=w((NE, D, F)),       b1=zeros((NE, 1, F)),
        w2=w((NE, F, D)),       b2=zeros((NE, 1, D)),
        ln2_g=ones((NE, 1, D)), ln2_b=zeros((NE, 1, D)),
    )
    dec = dict(
        sa_wqkv=w((ND, D, 3 * D)), sa_bqkv=zeros((ND, 1, 3 * D)),
        sa_wo=w((ND, D, D)),       sa_bo=zeros((ND, 1, D)),
        ln1_g=ones((ND, 1, D)),    ln1_b=zeros((ND, 1, D)),
        ca_wq=w((ND, D, D)),       ca_bq=zeros((ND, 1, D)),
        ca_wkv=w((ND, D, 2 * D)),  ca_bkv=zeros((ND, 1, 2 * D)),
        ca_wo=w((ND, D, D)),       ca_bo=zeros((ND, 1, D)),
        ln2_g=ones((ND, 1, D)),    ln2_b=zeros((ND, 1, D)),
        w1=w((ND, D, F)),          b1=zeros((ND, 1, F)),
        w2=w((ND, F, D)),          b2=zeros((ND, 1, D)),
        ln3_g=ones((ND, 1, D)),    ln3_b=zeros((ND, 1, D)),
    )
    return dict(enc=enc, dec=dec,
                emb=w((VOCAB, D), 1.0, jnp.float32),
                pred_w=w((D, VOCAB)),
                pred_b=zeros((1, VOCAB)),
                pe=_make_pe())


# ==================================== main ==========================================
if __name__ == "__main__":
    key = jax.random.PRNGKey(0)
    kx, kp = jax.random.split(key)
    params = init_params(kp)
    x = jax.random.normal(kx, (BATCH, INPUT_LEN, D_MODEL), jnp.float32)

    out = comment_encoded_to_skills_forward(x, params)
    out = jax.block_until_ready(out)
    assert out.shape == (BATCH, OUTPUT_LEN - 1, D_MODEL), out.shape
    assert bool(jnp.all(jnp.isfinite(out)))
    print("KERNEL_OK")
</pallas_src>

<mosaic_0001>
module attributes {stable_mosaic.version = 11 : i64} {
  func.func @kernel(%arg0: memref<16x64xf32, #tpu.memory_space<vmem>>, %arg1: memref<8x32xf32, #tpu.memory_space<vmem>>, %arg2: memref<8x64xf32, #tpu.memory_space<vmem>>, %arg3: memref<32x64xf32, #tpu.memory_space<vmem>>, %arg4: memref<64x32xbf16, #tpu.memory_space<vmem>>, %arg5: memref<1x32xf32, #tpu.memory_space<vmem>>, %arg6: memref<8x64x192xbf16, #tpu.memory_space<vmem>>, %arg7: memref<8x1x192xf32, #tpu.memory_space<vmem>>, %arg8: memref<8x64x64xbf16, #tpu.memory_space<vmem>>, %arg9: memref<8x1x64xf32, #tpu.memory_space<vmem>>, %arg10: memref<8x1x64xf32, #tpu.memory_space<vmem>>, %arg11: memref<8x1x64xf32, #tpu.memory_space<vmem>>, %arg12: memref<8x64x128xbf16, #tpu.memory_space<vmem>>, %arg13: memref<8x1x128xf32, #tpu.memory_space<vmem>>, %arg14: memref<8x128x64xbf16, #tpu.memory_space<vmem>>, %arg15: memref<8x1x64xf32, #tpu.memory_space<vmem>>, %arg16: memref<8x1x64xf32, #tpu.memory_space<vmem>>, %arg17: memref<8x1x64xf32, #tpu.memory_space<vmem>>, %arg18: memref<8x64x192xbf16, #tpu.memory_space<vmem>>, %arg19: memref<8x1x192xf32, #tpu.memory_space<vmem>>, %arg20: memref<8x64x64xbf16, #tpu.memory_space<vmem>>, %arg21: memref<8x1x64xf32, #tpu.memory_space<vmem>>, %arg22: memref<8x1x64xf32, #tpu.memory_space<vmem>>, %arg23: memref<8x1x64xf32, #tpu.memory_space<vmem>>, %arg24: memref<8x64x64xbf16, #tpu.memory_space<vmem>>, %arg25: memref<8x1x64xf32, #tpu.memory_space<vmem>>, %arg26: memref<8x64x128xbf16, #tpu.memory_space<vmem>>, %arg27: memref<8x1x128xf32, #tpu.memory_space<vmem>>, %arg28: memref<8x64x64xbf16, #tpu.memory_space<vmem>>, %arg29: memref<8x1x64xf32, #tpu.memory_space<vmem>>, %arg30: memref<8x1x64xf32, #tpu.memory_space<vmem>>, %arg31: memref<8x1x64xf32, #tpu.memory_space<vmem>>, %arg32: memref<8x64x128xbf16, #tpu.memory_space<vmem>>, %arg33: memref<8x1x128xf32, #tpu.memory_space<vmem>>, %arg34: memref<8x128x64xbf16, #tpu.memory_space<vmem>>, %arg35: memref<8x1x64xf32, #tpu.memory_space<vmem>>, %arg36: memref<8x1x64xf32, #tpu.memory_space<vmem>>, %arg37: memref<8x1x64xf32, #tpu.memory_space<vmem>>, %arg38: memref<8x64xf32, #tpu.memory_space<vmem>>, %arg39: memref<8x16x128xf32, #tpu.memory_space<vmem>>) attributes {dimension_semantics = [], scalar_prefetch = 0 : i64, scratch_operands = 1 : i64, tpu.core_type = #tpu.core_type<tc>} {
    %c0 = arith.constant 0 : index
    %c0_0 = arith.constant 0 : index
    %0 = vector.load %arg0[%c0, %c0_0] : memref<16x64xf32, #tpu.memory_space<vmem>>, vector<16x64xf32>
    %c0_i32 = arith.constant 0 : i32
    %c8_i32 = arith.constant 8 : i32
    %1 = arith.addi %c0_i32, %c8_i32 : i32
    %c1_i32 = arith.constant 1 : i32
    %2 = scf.for %arg40 = %c0_i32 to %1 step %c1_i32 iter_args(%arg41 = %0) -> (vector<16x64xf32>)  : i32 {
      %93 = arith.truncf %arg41 : vector<16x64xf32> to vector<16x64xbf16>
      %94 = arith.index_cast %arg40 : i32 to index
      %c0_90 = arith.constant 0 : index
      %c0_91 = arith.constant 0 : index
      %95 = vector.load %arg6[%94, %c0_90, %c0_91] : memref<8x64x192xbf16, #tpu.memory_space<vmem>>, vector<1x64x192xbf16>
      %96 = vector.shape_cast %95 : vector<1x64x192xbf16> to vector<64x192xbf16>
      %cst_92 = arith.constant dense<0.000000e+00> : vector<16x192xf32>
      %97 = tpu.matmul %93, %96, %cst_92 {dimension_numbers = #tpu.dot_dimension_numbers<[1], [0], [0], [1], [0, 0, 1, 1], [], []>} : vector<16x64xbf16>, vector<64x192xbf16>, vector<16x192xf32> -> vector<16x192xf32>
      %98 = arith.index_cast %arg40 : i32 to index
      %c0_93 = arith.constant 0 : index
      %c0_94 = arith.constant 0 : index
      %99 = vector.load %arg7[%98, %c0_93, %c0_94] : memref<8x1x192xf32, #tpu.memory_space<vmem>>, vector<1x1x192xf32>
      %100 = vector.shape_cast %99 : vector<1x1x192xf32> to vector<1x192xf32>
      %101 = vector.broadcast %100 : vector<1x192xf32> to vector<16x192xf32>
      %102 = arith.addf %97, %101 : vector<16x192xf32>
      %103 = vector.extract_strided_slice %102 {offsets = [0, 0], sizes = [16, 64], strides = [1, 1]} : vector<16x192xf32> to vector<16x64xf32>
      %104 = vector.extract_strided_slice %102 {offsets = [0, 64], sizes = [16, 64], strides = [1, 1]} : vector<16x192xf32> to vector<16x64xf32>
      %105 = vector.extract_strided_slice %102 {offsets = [0, 128], sizes = [16, 64], strides = [1, 1]} : vector<16x192xf32> to vector<16x64xf32>
      %106 = vector.shape_cast %103 : vector<16x64xf32> to vector<2x8x64xf32>
      %107 = vector.shape_cast %104 : vector<16x64xf32> to vector<2x8x64xf32>
      %108 = vector.shape_cast %105 : vector<16x64xf32> to vector<2x8x64xf32>
      %109 = vector.extract_strided_slice %106 {offsets = [0, 0, 0], sizes = [2, 8, 8], strides = [1, 1, 1]} : vector<2x8x64xf32> to vector<2x8x8xf32>
      %110 = arith.truncf %109 : vector<2x8x8xf32> to vector<2x8x8xbf16>
      %111 = vector.extract_strided_slice %107 {offsets = [0, 0, 0], sizes = [2, 8, 8], strides = [1, 1, 1]} : vector<2x8x64xf32> to vector<2x8x8xf32>
      %112 = arith.truncf %111 : vector<2x8x8xf32> to vector<2x8x8xbf16>
      %113 = vector.extract_strided_slice %108 {offsets = [0, 0, 0], sizes = [2, 8, 8], strides = [1, 1, 1]} : vector<2x8x64xf32> to vector<2x8x8xf32>
      %114 = arith.truncf %113 : vector<2x8x8xf32> to vector<2x8x8xbf16>
      %cst_95 = arith.constant dense<0.000000e+00> : vector<2x8x8xf32>
      %115 = tpu.matmul %110, %112, %cst_95 {dimension_numbers = #tpu.dot_dimension_numbers<[2], [2], [1], [1], [0, 0, 0, 1, 1, 1], [0], [0]>} : vector<2x8x8xbf16>, vector<2x8x8xbf16>, vector<2x8x8xf32> -> vector<2x8x8xf32>
      %cst_96 = arith.constant 0.353553385 : f32
      %116 = vector.broadcast %cst_96 : f32 to vector<2x8x8xf32>
      %117 = arith.mulf %115, %116 : vector<2x8x8xf32>
      %cst_97 = arith.constant dense<0xFF800000> : vector<2x8xf32>
      %118 = vector.multi_reduction <maximumf>, %117, %cst_97 [2] : vector<2x8x8xf32> to vector<2x8xf32>
      %119 = vector.shape_cast %118 : vector<2x8xf32> to vector<2x8x1xf32>
      %120 = vector.broadcast %119 : vector<2x8x1xf32> to vector<2x8x8xf32>
      %121 = arith.subf %117, %120 : vector<2x8x8xf32>
      %122 = math.exp %121 : vector<2x8x8xf32>
      %cst_98 = arith.constant dense<0.000000e+00> : vector<2x8xf32>
      %123 = vector.multi_reduction <add>, %122, %cst_98 [2] : vector<2x8x8xf32> to vector<2x8xf32>
      %124 = vector.shape_cast %123 : vector<2x8xf32> to vector<2x8x1xf32>
      %125 = tpu.reciprocal %124 : vector<2x8x1xf32> -> vector<2x8x1xf32>
      %126 = vector.broadcast %125 : vector<2x8x1xf32> to vector<2x8x8xf32>
      %127 = arith.mulf %122, %126 : vector<2x8x8xf32>
      %128 = arith.truncf %127 : vector<2x8x8xf32> to vector<2x8x8xbf16>
      %cst_99 = arith.constant dense<0.000000e+00> : vector<2x8x8xf32>
      %129 = tpu.matmul %128, %114, %cst_99 {dimension_numbers = #tpu.dot_dimension_numbers<[2], [1], [1], [2], [0, 0, 0, 1, 1, 2], [0], [0]>} : vector<2x8x8xbf16>, vector<2x8x8xbf16>, vector<2x8x8xf32> -> vector<2x8x8xf32>
      %130 = vector.extract_strided_slice %106 {offsets = [0, 0, 8], sizes = [2, 8, 8], strides = [1, 1, 1]} : vector<2x8x64xf32> to vector<2x8x8xf32>
      %131 = arith.truncf %130 : vector<2x8x8xf32> to vector<2x8x8xbf16>
      %132 = vector.extract_strided_slice %107 {offsets = [0, 0, 8], sizes = [2, 8, 8], strides = [1, 1, 1]} : vector<2x8x64xf32> to vector<2x8x8xf32>
      %133 = arith.truncf %132 : vector<2x8x8xf32> to vector<2x8x8xbf16>
      %134 = vector.extract_strided_slice %108 {offsets = [0, 0, 8], sizes = [2, 8, 8], strides = [1, 1, 1]} : vector<2x8x64xf32> to vector<2x8x8xf32>
      %135 = arith.truncf %134 : vector<2x8x8xf32> to vector<2x8x8xbf16>
      %cst_100 = arith.constant dense<0.000000e+00> : vector<2x8x8xf32>
      %136 = tpu.matmul %131, %133, %cst_100 {dimension_numbers = #tpu.dot_dimension_numbers<[2], [2], [1], [1], [0, 0, 0, 1, 1, 1], [0], [0]>} : vector<2x8x8xbf16>, vector<2x8x8xbf16>, vector<2x8x8xf32> -> vector<2x8x8xf32>
      %cst_101 = arith.constant 0.353553385 : f32
      %137 = vector.broadcast %cst_101 : f32 to vector<2x8x8xf32>
      %138 = arith.mulf %136, %137 : vector<2x8x8xf32>
      %cst_102 = arith.constant dense<0xFF800000> : vector<2x8xf32>
      %139 = vector.multi_reduction <maximumf>, %138, %cst_102 [2] : vector<2x8x8xf32> to vector<2x8xf32>
      %140 = vector.shape_cast %139 : vector<2x8xf32> to vector<2x8x1xf32>
      %141 = vector.broadcast %140 : vector<2x8x1xf32> to vector<2x8x8xf32>
      %142 = arith.subf %138, %141 : vector<2x8x8xf32>
      %143 = math.exp %142 : vector<2x8x8xf32>
      %cst_103 = arith.constant dense<0.000000e+00> : vector<2x8xf32>
      %144 = vector.multi_reduction <add>, %143, %cst_103 [2] : vector<2x8x8xf32> to vector<2x8xf32>
      %145 = vector.shape_cast %144 : vector<2x8xf32> to vector<2x8x1xf32>
      %146 = tpu.reciprocal %145 : vector<2x8x1xf32> -> vector<2x8x1xf32>
      %147 = vector.broadcast %146 : vector<2x8x1xf32> to vector<2x8x8xf32>
      %148 = arith.mulf %143, %147 : vector<2x8x8xf32>
      %149 = arith.truncf %148 : vector<2x8x8xf32> to vector<2x8x8xbf16>
      %cst_104 = arith.constant dense<0.000000e+00> : vector<2x8x8xf32>
      %150 = tpu.matmul %149, %135, %cst_104 {dimension_numbers = #tpu.dot_dimension_numbers<[2], [1], [1], [2], [0, 0, 0, 1, 1, 2], [0], [0]>} : vector<2x8x8xbf16>, vector<2x8x8xbf16>, vector<2x8x8xf32> -> vector<2x8x8xf32>
      %151 = vector.extract_strided_slice %106 {offsets = [0, 0, 16], sizes = [2, 8, 8], strides = [1, 1, 1]} : vector<2x8x64xf32> to vector<2x8x8xf32>
      %152 = arith.truncf %151 : vector<2x8x8xf32> to vector<2x8x8xbf16>
      %153 = vector.extract_strided_slice %107 {offsets = [0, 0, 16], sizes = [2, 8, 8], strides = [1, 1, 1]} : vector<2x8x64xf32> to vector<2x8x8xf32>
      %154 = arith.truncf %153 : vector<2x8x8xf32> to vector<2x8x8xbf16>
      %155 = vector.extract_strided_slice %108 {offsets = [0, 0, 16], sizes = [2, 8, 8], strides = [1, 1, 1]} : vector<2x8x64xf32> to vector<2x8x8xf32>
      %156 = arith.truncf %155 : vector<2x8x8xf32> to vector<2x8x8xbf16>
      %cst_105 = arith.constant dense<0.000000e+00> : vector<2x8x8xf32>
      %157 = tpu.matmul %152, %154, %cst_105 {dimension_numbers = #tpu.dot_dimension_numbers<[2], [2], [1], [1], [0, 0, 0, 1, 1, 1], [0], [0]>} : vector<2x8x8xbf16>, vector<2x8x8xbf16>, vector<2x8x8xf32> -> vector<2x8x8xf32>
      %cst_106 = arith.constant 0.353553385 : f32
      %158 = vector.broadcast %cst_106 : f32 to vector<2x8x8xf32>
      %159 = arith.mulf %157, %158 : vector<2x8x8xf32>
      %cst_107 = arith.constant dense<0xFF800000> : vector<2x8xf32>
      %160 = vector.multi_reduction <maximumf>, %159, %cst_107 [2] : vector<2x8x8xf32> to vector<2x8xf32>
      %161 = vector.shape_cast %160 : vector<2x8xf32> to vector<2x8x1xf32>
      %162 = vector.broadcast %161 : vector<2x8x1xf32> to vector<2x8x8xf32>
      %163 = arith.subf %159, %162 : vector<2x8x8xf32>
      %164 = math.exp %163 : vector<2x8x8xf32>
      %cst_108 = arith.constant dense<0.000000e+00> : vector<2x8xf32>
      %165 = vector.multi_reduction <add>, %164, %cst_108 [2] : vector<2x8x8xf32> to vector<2x8xf32>
      %166 = vector.shape_cast %165 : vector<2x8xf32> to vector<2x8x1xf32>
      %167 = tpu.reciprocal %166 : vector<2x8x1xf32> -> vector<2x8x1xf32>
      %168 = vector.broadcast %167 : vector<2x8x1xf32> to vector<2x8x8xf32>
      %169 = arith.mulf %164, %168 : vector<2x8x8xf32>
      %170 = arith.truncf %169 : vector<2x8x8xf32> to vector<2x8x8xbf16>
      %cst_109 = arith.constant dense<0.000000e+00> : vector<2x8x8xf32>
      %171 = tpu.matmul %170, %156, %cst_109 {dimension_numbers = #tpu.dot_dimension_numbers<[2], [1], [1], [2], [0, 0, 0, 1, 1, 2], [0], [0]>} : vector<2x8x8xbf16>, vector<2x8x8xbf16>, vector<2x8x8xf32> -> vector<2x8x8xf32>
      %172 = vector.extract_strided_slice %106 {offsets = [0, 0, 24], sizes = [2, 8, 8], strides = [1, 1, 1]} : vector<2x8x64xf32> to vector<2x8x8xf32>
      %173 = arith.truncf %172 : vector<2x8x8xf32> to vector<2x8x8xbf16>
      %174 = vector.extract_strided_slice %107 {offsets = [0, 0, 24], sizes = [2, 8, 8], strides = [1, 1, 1]} : vector<2x8x64xf32> to vector<2x8x8xf32>
      %175 = arith.truncf %174 : vector<2x8x8xf32> to vector<2x8x8xbf16>
      %176 = vector.extract_strided_slice %108 {offsets = [0, 0, 24], sizes = [2, 8, 8], strides = [1, 1, 1]} : vector<2x8x64xf32> to vector<2x8x8xf32>
      %177 = arith.truncf %176 : vector<2x8x8xf32> to vector<2x8x8xbf16>
      %cst_110 = arith.constant dense<0.000000e+00> : vector<2x8x8xf32>
      %178 = tpu.matmul %173, %175, %cst_110 {dimension_numbers = #tpu.dot_dimension_numbers<[2], [2], [1], [1], [0, 0, 0, 1, 1, 1], [0], [0]>} : vector<2x8x8xbf16>, vector<2x8x8xbf16>, vector<2x8x8xf32> -> vector<2x8x8xf32>
      %cst_111 = arith.constant 0.353553385 : f32
      %179 = vector.broadcast %cst_111 : f32 to vector<2x8x8xf32>
      %180 = arith.mulf %178, %179 : vector<2x8x8xf32>
      %cst_112 = arith.constant dense<0xFF800000> : vector<2x8xf32>
      %181 = vector.multi_reduction <maximumf>, %180, %cst_112 [2] : vector<2x8x8xf32> to vector<2x8xf32>
      %182 = vector.shape_cast %181 : vector<2x8xf32> to vector<2x8x1xf32>
      %183 = vector.broadcast %182 : vector<2x8x1xf32> to vector<2x8x8xf32>
      %184 = arith.subf %180, %183 : vector<2x8x8xf32>
      %185 = math.exp %184 : vector<2x8x8xf32>
      %cst_113 = arith.constant dense<0.000000e+00> : vector<2x8xf32>
      %186 = vector.multi_reduction <add>, %185, %cst_113 [2] : vector<2x8x8xf32> to vector<2x8xf32>
      %187 = vector.shape_cast %186 : vector<2x8xf32> to vector<2x8x1xf32>
      %188 = tpu.reciprocal %187 : vector<2x8x1xf32> -> vector<2x8x1xf32>
      %189 = vector.broadcast %188 : vector<2x8x1xf32> to vector<2x8x8xf32>
      %190 = arith.mulf %185, %189 : vector<2x8x8xf32>
      %191 = arith.truncf %190 : vector<2x8x8xf32> to vector<2x8x8xbf16>
      %cst_114 = arith.constant dense<0.000000e+00> : vector<2x8x8xf32>
      %192 = tpu.matmul %191, %177, %cst_114 {dimension_numbers = #tpu.dot_dimension_numbers<[2], [1], [1], [2], [0, 0, 0, 1, 1, 2], [0], [0]>} : vector<2x8x8xbf16>, vector<2x8x8xbf16>, vector<2x8x8xf32> -> vector<2x8x8xf32>
      %193 = vector.extract_strided_slice %106 {offsets = [0, 0, 32], sizes = [2, 8, 8], strides = [1, 1, 1]} : vector<2x8x64xf32> to vector<2x8x8xf32>
      %194 = arith.truncf %193 : vector<2x8x8xf32> to vector<2x8x8xbf16>
      %195 = vector.extract_strided_slice %107 {offsets = [0, 0, 32], sizes = [2, 8, 8], strides = [1, 1, 1]} : vector<2x8x64xf32> to vector<2x8x8xf32>
      %196 = arith.truncf %195 : vector<2x8x8xf32> to vector<2x8x8xbf16>
      %197 = vector.extract_strided_slice %108 {offsets = [0, 0, 32], sizes = [2, 8, 8], strides = [1, 1, 1]} : vector<2x8x64xf32> to vector<2x8x8xf32>
      %198 = arith.truncf %197 : vector<2x8x8xf32> to vector<2x8x8xbf16>
      %cst_115 = arith.constant dense<0.000000e+00> : vector<2x8x8xf32>
      %199 = tpu.matmul %194, %196, %cst_115 {dimension_numbers = #tpu.dot_dimension_numbers<[2], [2], [1], [1], [0, 0, 0, 1, 1, 1], [0], [0]>} : vector<2x8x8xbf16>, vector<2x8x8xbf16>, vector<2x8x8xf32> -> vector<2x8x8xf32>
      %cst_116 = arith.constant 0.353553385 : f32
      %200 = vector.broadcast %cst_116 : f32 to vector<2x8x8xf32>
      %201 = arith.mulf %199, %200 : vector<2x8x8xf32>
      %cst_117 = arith.constant dense<0xFF800000> : vector<2x8xf32>
      %202 = vector.multi_reduction <maximumf>, %201, %cst_117 [2] : vector<2x8x8xf32> to vector<2x8xf32>
      %203 = vector.shape_cast %202 : vector<2x8xf32> to vector<2x8x1xf32>
      %204 = vector.broadcast %203 : vector<2x8x1xf32> to vector<2x8x8xf32>
      %205 = arith.subf %201, %204 : vector<2x8x8xf32>
      %206 = math.exp %205 : vector<2x8x8xf32>
      %cst_118 = arith.constant dense<0.000000e+00> : vector<2x8xf32>
      %207 = vector.multi_reduction <add>, %206, %cst_118 [2] : vector<2x8x8xf32> to vector<2x8xf32>
      %208 = vector.shape_cast %207 : vector<2x8xf32> to vector<2x8x1xf32>
      %209 = tpu.reciprocal %208 : vector<2x8x1xf32> -> vector<2x8x1xf32>
      %210 = vector.broadcast %209 : vector<2x8x1xf32> to vector<2x8x8xf32>
      %211 = arith.mulf %206, %210 : vector<2x8x8xf32>
      %212 = arith.truncf %211 : vector<2x8x8xf32> to vector<2x8x8xbf16>
      %cst_119 = arith.constant dense<0.000000e+00> : vector<2x8x8xf32>
      %213 = tpu.matmul %212, %198, %cst_119 {dimension_numbers = #tpu.dot_dimension_numbers<[2], [1], [1], [2], [0, 0, 0, 1, 1, 2], [0], [0]>} : vector<2x8x8xbf16>, vector<2x8x8xbf16>, vector<2x8x8xf32> -> vector<2x8x8xf32>
      %214 = vector.extract_strided_slice %106 {offsets = [0, 0, 40], sizes = [2, 8, 8], strides = [1, 1, 1]} : vector<2x8x64xf32> to vector<2x8x8xf32>
      %215 = arith.truncf %214 : vector<2x8x8xf32> to vector<2x8x8xbf16>
      %216 = vector.extract_strided_slice %107 {offsets = [0, 0, 40], sizes = [2, 8, 8], strides = [1, 1, 1]} : vector<2x8x64xf32> to vector<2x8x8xf32>
      %217 = arith.truncf %216 : vector<2x8x8xf32> to vector<2x8x8xbf16>
      %218 = vector.extract_strided_slice %108 {offsets = [0, 0, 40], sizes = [2, 8, 8], strides = [1, 1, 1]} : vector<2x8x64xf32> to vector<2x8x8xf32>
      %219 = arith.truncf %218 : vector<2x8x8xf32> to vector<2x8x8xbf16>
      %cst_120 = arith.constant dense<0.000000e+00> : vector<2x8x8xf32>
      %220 = tpu.matmul %215, %217, %cst_120 {dimension_numbers = #tpu.dot_dimension_numbers<[2], [2], [1], [1], [0, 0, 0, 1, 1, 1], [0], [0]>} : vector<2x8x8xbf16>, vector<2x8x8xbf16>, vector<2x8x8xf32> -> vector<2x8x8xf32>
      %cst_121 = arith.constant 0.353553385 : f32
      %221 = vector.broadcast %cst_121 : f32 to vector<2x8x8xf32>
      %222 = arith.mulf %220, %221 : vector<2x8x8xf32>
      %cst_122 = arith.constant dense<0xFF800000> : vector<2x8xf32>
      %223 = vector.multi_reduction <maximumf>, %222, %cst_122 [2] : vector<2x8x8xf32> to vector<2x8xf32>
      %224 = vector.shape_cast %223 : vector<2x8xf32> to vector<2x8x1xf32>
      %225 = vector.broadcast %224 : vector<2x8x1xf32> to vector<2x8x8xf32>
      %226 = arith.subf %222, %225 : vector<2x8x8xf32>
      %227 = math.exp %226 : vector<2x8x8xf32>
      %cst_123 = arith.constant dense<0.000000e+00> : vector<2x8xf32>
      %228 = vector.multi_reduction <add>, %227, %cst_123 [2] : vector<2x8x8xf32> to vector<2x8xf32>
      %229 = vector.shape_cast %228 : vector<2x8xf32> to vector<2x8x1xf32>
      %230 = tpu.reciprocal %229 : vector<2x8x1xf32> -> vector<2x8x1xf32>
      %231 = vector.broadcast %230 : vector<2x8x1xf32> to vector<2x8x8xf32>
      %232 = arith.mulf %227, %231 : vector<2x8x8xf32>
      %233 = arith.truncf %232 : vector<2x8x8xf32> to vector<2x8x8xbf16>
      %cst_124 = arith.constant dense<0.000000e+00> : vector<2x8x8xf32>
      %234 = tpu.matmul %233, %219, %cst_124 {dimension_numbers = #tpu.dot_dimension_numbers<[2], [1], [1], [2], [0, 0, 0, 1, 1, 2], [0], [0]>} : vector<2x8x8xbf16>, vector<2x8x8xbf16>, vector<2x8x8xf32> -> vector<2x8x8xf32>
      %235 = vector.extract_strided_slice %106 {offsets = [0, 0, 48], sizes = [2, 8, 8], strides = [1, 1, 1]} : vector<2x8x64xf32> to vector<2x8x8xf32>
      %236 = arith.truncf %235 : vector<2x8x8xf32> to vector<2x8x8xbf16>
      %237 = vector.extract_strided_slice %107 {offsets = [0, 0, 48], sizes = [2, 8, 8], strides = [1, 1, 1]} : vector<2x8x64xf32> to vector<2x8x8xf32>
      %238 = arith.truncf %237 : vector<2x8x8xf32> to vector<2x8x8xbf16>
      %239 = vector.extract_strided_slice %108 {offsets = [0, 0, 48], sizes = [2, 8, 8], strides = [1, 1, 1]} : vector<2x8x64xf32> to vector<2x8x8xf32>
      %240 = arith.truncf %239 : vector<2x8x8xf32> to vector<2x8x8xbf16>
      %cst_125 = arith.constant dense<0.000000e+00> : vector<2x8x8xf32>
      %241 = tpu.matmul %236, %238, %cst_125 {dimension_numbers = #tpu.dot_dimension_numbers<[2], [2], [1], [1], [0, 0, 0, 1, 1, 1], [0], [0]>} : vector<2x8x8xbf16>, vector<2x8x8xbf16>, vector<2x8x8xf32> -> vector<2x8x8xf32>
      %cst_126 = arith.constant 0.353553385 : f32
      %242 = vector.broadcast %cst_126 : f32 to vector<2x8x8xf32>
      %243 = arith.mulf %241, %242 : vector<2x8x8xf32>
      %cst_127 = arith.constant dense<0xFF800000> : vector<2x8xf32>
      %244 = vector.multi_reduction <maximumf>, %243, %cst_127 [2] : vector<2x8x8xf32> to vector<2x8xf32>
      %245 = vector.shape_cast %244 : vector<2x8xf32> to vector<2x8x1xf32>
      %246 = vector.broadcast %245 : vector<2x8x1xf32> to vector<2x8x8xf32>
      %247 = arith.subf %243, %246 : vector<2x8x8xf32>
      %248 = math.exp %247 : vector<2x8x8xf32>
      %cst_128 = arith.constant dense<0.000000e+00> : vector<2x8xf32>
      %249 = vector.multi_reduction <add>, %248, %cst_128 [2] : vector<2x8x8xf32> to vector<2x8xf32>
      %250 = vector.shape_cast %249 : vector<2x8xf32> to vector<2x8x1xf32>
      %251 = tpu.reciprocal %250 : vector<2x8x1xf32> -> vector<2x8x1xf32>
      %252 = vector.broadcast %251 : vector<2x8x1xf32> to vector<2x8x8xf32>
      %253 = arith.mulf %248, %252 : vector<2x8x8xf32>
      %254 = arith.truncf %253 : vector<2x8x8xf32> to vector<2x8x8xbf16>
      %cst_129 = arith.constant dense<0.000000e+00> : vector<2x8x8xf32>
      %255 = tpu.matmul %254, %240, %cst_129 {dimension_numbers = #tpu.dot_dimension_numbers<[2], [1], [1], [2], [0, 0, 0, 1, 1, 2], [0], [0]>} : vector<2x8x8xbf16>, vector<2x8x8xbf16>, vector<2x8x8xf32> -> vector<2x8x8xf32>
      %256 = vector.extract_strided_slice %106 {offsets = [0, 0, 56], sizes = [2, 8, 8], strides = [1, 1, 1]} : vector<2x8x64xf32> to vector<2x8x8xf32>
      %257 = arith.truncf %256 : vector<2x8x8xf32> to vector<2x8x8xbf16>
      %258 = vector.extract_strided_slice %107 {offsets = [0, 0, 56], sizes = [2, 8, 8], strides = [1, 1, 1]} : vector<2x8x64xf32> to vector<2x8x8xf32>
      %259 = arith.truncf %258 : vector<2x8x8xf32> to vector<2x8x8xbf16>
      %260 = vector.extract_strided_slice %108 {offsets = [0, 0, 56], sizes = [2, 8, 8], strides = [1, 1, 1]} : vector<2x8x64xf32> to vector<2x8x8xf32>
      %261 = arith.truncf %260 : vector<2x8x8xf32> to vector<2x8x8xbf16>
      %cst_130 = arith.constant dense<0.000000e+00> : vector<2x8x8xf32>
      %262 = tpu.matmul %257, %259, %cst_130 {dimension_numbers = #tpu.dot_dimension_numbers<[2], [2], [1], [1], [0, 0, 0, 1, 1, 1], [0], [0]>} : vector<2x8x8xbf16>, vector<2x8x8xbf16>, vector<2x8x8xf32> -> vector<2x8x8xf32>
      %cst_131 = arith.constant 0.353553385 : f32
      %263 = vector.broadcast %cst_131 : f32 to vector<2x8x8xf32>
      %264 = arith.mulf %262, %263 : vector<2x8x8xf32>
      %cst_132 = arith.constant dense<0xFF800000> : vector<2x8xf32>
      %265 = vector.multi_reduction <maximumf>, %264, %cst_132 [2] : vector<2x8x8xf32> to vector<2x8xf32>
      %266 = vector.shape_cast %265 : vector<2x8xf32> to vector<2x8x1xf32>
      %267 = vector.broadcast %266 : vector<2x8x1xf32> to vector<2x8x8xf32>
      %268 = arith.subf %264, %267 : vector<2x8x8xf32>
      %269 = math.exp %268 : vector<2x8x8xf32>
      %cst_133 = arith.constant dense<0.000000e+00> : vector<2x8xf32>
      %270 = vector.multi_reduction <add>, %269, %cst_133 [2] : vector<2x8x8xf32> to vector<2x8xf32>
      %271 = vector.shape_cast %270 : vector<2x8xf32> to vector<2x8x1xf32>
      %272 = tpu.reciprocal %271 : vector<2x8x1xf32> -> vector<2x8x1xf32>
      %273 = vector.broadcast %272 : vector<2x8x1xf32> to vector<2x8x8xf32>
      %274 = arith.mulf %269, %273 : vector<2x8x8xf32>
      %275 = arith.truncf %274 : vector<2x8x8xf32> to vector<2x8x8xbf16>
      %cst_134 = arith.constant dense<0.000000e+00> : vector<2x8x8xf32>
      %276 = tpu.matmul %275, %261, %cst_134 {dimension_numbers = #tpu.dot_dimension_numbers<[2], [1], [1], [2], [0, 0, 0, 1, 1, 2], [0], [0]>} : vector<2x8x8xbf16>, vector<2x8x8xbf16>, vector<2x8x8xf32> -> vector<2x8x8xf32>
      %277 = tpu.concatenate %129, %150, %171, %192, %213, %234, %255, %276 in 2 : vector<2x8x8xf32>, vector<2x8x8xf32>, vector<2x8x8xf32>, vector<2x8x8xf32>, vector<2x8x8xf32>, vector<2x8x8xf32>, vector<2x8x8xf32>, vector<2x8x8xf32> -> vector<2x8x64xf32>
      %278 = vector.shape_cast %277 : vector<2x8x64xf32> to vector<16x64xf32>
      %279 = arith.truncf %278 : vector<16x64xf32> to vector<16x64xbf16>
      %280 = arith.index_cast %arg40 : i32 to index
      %c0_135 = arith.constant 0 : index
      %c0_136 = arith.constant 0 : index
      %281 = vector.load %arg8[%280, %c0_135, %c0_136] : memref<8x64x64xbf16, #tpu.memory_space<vmem>>, vector<1x64x64xbf16>
      %282 = vector.shape_cast %281 : vector<1x64x64xbf16> to vector<64x64xbf16>
      %cst_137 = arith.constant dense<0.000000e+00> : vector<16x64xf32>
      %283 = tpu.matmul %279, %282, %cst_137 {dimension_numbers = #tpu.dot_dimension_numbers<[1], [0], [0], [1], [0, 0, 1, 1], [], []>} : vector<16x64xbf16>, vector<64x64xbf16>, vector<16x64xf32> -> vector<16x64xf32>
      %284 = arith.index_cast %arg40 : i32 to index
      %c0_138 = arith.constant 0 : index
      %c0_139 = arith.constant 0 : index
      %285 = vector.load %arg9[%284, %c0_138, %c0_139] : memref<8x1x64xf32, #tpu.memory_space<vmem>>, vector<1x1x64xf32>
      %286 = vector.shape_cast %285 : vector<1x1x64xf32> to vector<1x64xf32>
      %287 = vector.broadcast %286 : vector<1x64xf32> to vector<16x64xf32>
      %288 = arith.addf %283, %287 : vector<16x64xf32>
      %289 = arith.index_cast %arg40 : i32 to index
      %c0_140 = arith.constant 0 : index
      %c0_141 = arith.constant 0 : index
      %290 = vector.load %arg10[%289, %c0_140, %c0_141] : memref<8x1x64xf32, #tpu.memory_space<vmem>>, vector<1x1x64xf32>
      %291 = vector.shape_cast %290 : vector<1x1x64xf32> to vector<1x64xf32>
      %292 = arith.index_cast %arg40 : i32 to index
      %c0_142 = arith.constant 0 : index
      %c0_143 = arith.constant 0 : index
      %293 = vector.load %arg11[%292, %c0_142, %c0_143] : memref<8x1x64xf32, #tpu.memory_space<vmem>>, vector<1x1x64xf32>
      %294 = vector.shape_cast %293 : vector<1x1x64xf32> to vector<1x64xf32>
      %295 = arith.addf %288, %arg41 : vector<16x64xf32>
      %cst_144 = arith.constant dense<0.000000e+00> : vector<16xf32>
      %296 = vector.multi_reduction <add>, %295, %cst_144 [1] : vector<16x64xf32> to vector<16xf32>
      %297 = vector.shape_cast %296 : vector<16xf32> to vector<16x1xf32>
      %cst_145 = arith.constant 6.400000e+01 : f32
      %298 = vector.broadcast %cst_145 : f32 to vector<16x1xf32>
      %299 = arith.divf %297, %298 : vector<16x1xf32>
      %300 = vector.broadcast %299 : vector<16x1xf32> to vector<16x64xf32>
      %301 = arith.subf %295, %300 : vector<16x64xf32>
      %302 = arith.mulf %301, %301 : vector<16x64xf32>
      %cst_146 = arith.constant dense<0.000000e+00> : vector<16xf32>
      %303 = vector.multi_reduction <add>, %302, %cst_146 [1] : vector<16x64xf32> to vector<16xf32>
      %304 = vector.shape_cast %303 : vector<16xf32> to vector<16x1xf32>
      %cst_147 = arith.constant 6.400000e+01 : f32
      %305 = vector.broadcast %cst_147 : f32 to vector<16x1xf32>
      %306 = arith.divf %304, %305 : vector<16x1xf32>
      %cst_148 = arith.constant 9.99999974E-6 : f32
      %307 = vector.broadcast %cst_148 : f32 to vector<16x1xf32>
      %308 = arith.addf %306, %307 : vector<16x1xf32>
      %309 = math.rsqrt %308 : vector<16x1xf32>
      %310 = vector.broadcast %309 : vector<16x1xf32> to vector<16x64xf32>
      %311 = arith.mulf %301, %310 : vector<16x64xf32>
      %312 = vector.broadcast %291 : vector<1x64xf32> to vector<16x64xf32>
      %313 = arith.mulf %311, %312 : vector<16x64xf32>
      %314 = vector.broadcast %294 : vector<1x64xf32> to vector<16x64xf32>
      %315 = arith.addf %313, %314 : vector<16x64xf32>
      %316 = arith.truncf %315 : vector<16x64xf32> to vector<16x64xbf16>
      %317 = arith.index_cast %arg40 : i32 to index
      %c0_149 = arith.constant 0 : index
      %c0_150 = arith.constant 0 : index
      %318 = vector.load %arg12[%317, %c0_149, %c0_150] : memref<8x64x128xbf16, #tpu.memory_space<vmem>>, vector<1x64x128xbf16>
      %319 = vector.shape_cast %318 : vector<1x64x128xbf16> to vector<64x128xbf16>
      %cst_151 = arith.constant dense<0.000000e+00> : vector<16x128xf32>
      %320 = tpu.matmul %316, %319, %cst_151 {dimension_numbers = #tpu.dot_dimension_numbers<[1], [0], [0], [1], [0, 0, 1, 1], [], []>} : vector<16x64xbf16>, vector<64x128xbf16>, vector<16x128xf32> -> vector<16x128xf32>
      %321 = arith.index_cast %arg40 : i32 to index
      %c0_152 = arith.constant 0 : index
      %c0_153 = arith.constant 0 : index
      %322 = vector.load %arg13[%321, %c0_152, %c0_153] : memref<8x1x128xf32, #tpu.memory_space<vmem>>, vector<1x1x128xf32>
      %323 = vector.shape_cast %322 : vector<1x1x128xf32> to vector<1x128xf32>
      %324 = vector.broadcast %323 : vector<1x128xf32> to vector<16x128xf32>
      %325 = arith.addf %320, %324 : vector<16x128xf32>
      %cst_154 = arith.constant 0.000000e+00 : f32
      %326 = vector.broadcast %cst_154 : f32 to vector<16x128xf32>
      %327 = arith.maximumf %325, %326 : vector<16x128xf32>
      %328 = arith.truncf %327 : vector<16x128xf32> to vector<16x128xbf16>
      %329 = arith.index_cast %arg40 : i32 to index
      %c0_155 = arith.constant 0 : index
      %c0_156 = arith.constant 0 : index
      %330 = vector.load %arg14[%329, %c0_155, %c0_156] : memref<8x128x64xbf16, #tpu.memory_space<vmem>>, vector<1x128x64xbf16>
      %331 = vector.shape_cast %330 : vector<1x128x64xbf16> to vector<128x64xbf16>
      %cst_157 = arith.constant dense<0.000000e+00> : vector<16x64xf32>
      %332 = tpu.matmul %328, %331, %cst_157 {dimension_numbers = #tpu.dot_dimension_numbers<[1], [0], [0], [1], [0, 0, 1, 1], [], []>} : vector<16x128xbf16>, vector<128x64xbf16>, vector<16x64xf32> -> vector<16x64xf32>
      %333 = arith.index_cast %arg40 : i32 to index
      %c0_158 = arith.constant 0 : index
      %c0_159 = arith.constant 0 : index
      %334 = vector.load %arg15[%333, %c0_158, %c0_159] : memref<8x1x64xf32, #tpu.memory_space<vmem>>, vector<1x1x64xf32>
      %335 = vector.shape_cast %334 : vector<1x1x64xf32> to vector<1x64xf32>
      %336 = vector.broadcast %335 : vector<1x64xf32> to vector<16x64xf32>
      %337 = arith.addf %332, %336 : vector<16x64xf32>
      %338 = arith.index_cast %arg40 : i32 to index
      %c0_160 = arith.constant 0 : index
      %c0_161 = arith.constant 0 : index
      %339 = vector.load %arg16[%338, %c0_160, %c0_161] : memref<8x1x64xf32, #tpu.memory_space<vmem>>, vector<1x1x64xf32>
      %340 = vector.shape_cast %339 : vector<1x1x64xf32> to vector<1x64xf32>
      %341 = arith.index_cast %arg40 : i32 to index
      %c0_162 = arith.constant 0 : index
      %c0_163 = arith.constant 0 : index
      %342 = vector.load %arg17[%341, %c0_162, %c0_163] : memref<8x1x64xf32, #tpu.memory_space<vmem>>, vector<1x1x64xf32>
      %343 = vector.shape_cast %342 : vector<1x1x64xf32> to vector<1x64xf32>
      %344 = arith.addf %337, %315 : vector<16x64xf32>
      %cst_164 = arith.constant dense<0.000000e+00> : vector<16xf32>
      %345 = vector.multi_reduction <add>, %344, %cst_164 [1] : vector<16x64xf32> to vector<16xf32>
      %346 = vector.shape_cast %345 : vector<16xf32> to vector<16x1xf32>
      %cst_165 = arith.constant 6.400000e+01 : f32
      %347 = vector.broadcast %cst_165 : f32 to vector<16x1xf32>
      %348 = arith.divf %346, %347 : vector<16x1xf32>
      %349 = vector.broadcast %348 : vector<16x1xf32> to vector<16x64xf32>
      %350 = arith.subf %344, %349 : vector<16x64xf32>
      %351 = arith.mulf %350, %350 : vector<16x64xf32>
      %cst_166 = arith.constant dense<0.000000e+00> : vector<16xf32>
      %352 = vector.multi_reduction <add>, %351, %cst_166 [1] : vector<16x64xf32> to vector<16xf32>
      %353 = vector.shape_cast %352 : vector<16xf32> to vector<16x1xf32>
      %cst_167 = arith.constant 6.400000e+01 : f32
      %354 = vector.broadcast %cst_167 : f32 to vector<16x1xf32>
      %355 = arith.divf %353, %354 : vector<16x1xf32>
      %cst_168 = arith.constant 9.99999974E-6 : f32
      %356 = vector.broadcast %cst_168 : f32 to vector<16x1xf32>
      %357 = arith.addf %355, %356 : vector<16x1xf32>
      %358 = math.rsqrt %357 : vector<16x1xf32>
      %359 = vector.broadcast %358 : vector<16x1xf32> to vector<16x64xf32>
      %360 = arith.mulf %350, %359 : vector<16x64xf32>
      %361 = vector.broadcast %340 : vector<1x64xf32> to vector<16x64xf32>
      %362 = arith.mulf %360, %361 : vector<16x64xf32>
      %363 = vector.broadcast %343 : vector<1x64xf32> to vector<16x64xf32>
      %364 = arith.addf %362, %363 : vector<16x64xf32>
      scf.yield %364 : vector<16x64xf32>
    }
    %c8_i32_1 = arith.constant 8 : i32
    %3 = arith.truncf %2 : vector<16x64xf32> to vector<16x64xbf16>
    %c0_2 = arith.constant 0 : index
    %c0_3 = arith.constant 0 : index
    %c0_4 = arith.constant 0 : index
    %4 = vector.load %arg26[%c0_2, %c0_3, %c0_4] : memref<8x64x128xbf16, #tpu.memory_space<vmem>>, vector<1x64x128xbf16>
    %5 = vector.shape_cast %4 : vector<1x64x128xbf16> to vector<64x128xbf16>
    %cst = arith.constant dense<0.000000e+00> : vector<16x128xf32>
    %6 = tpu.matmul %3, %5, %cst {dimension_numbers = #tpu.dot_dimension_numbers<[1], [0], [0], [1], [0, 0, 1, 1], [], []>} : vector<16x64xbf16>, vector<64x128xbf16>, vector<16x128xf32> -> vector<16x128xf32>
    %c0_5 = arith.constant 0 : index
    %c0_6 = arith.constant 0 : index
    %c0_7 = arith.constant 0 : index
    %7 = vector.load %arg27[%c0_5, %c0_6, %c0_7] : memref<8x1x128xf32, #tpu.memory_space<vmem>>, vector<1x1x128xf32>
    %8 = vector.shape_cast %7 : vector<1x1x128xf32> to vector<1x128xf32>
    %9 = vector.broadcast %8 : vector<1x128xf32> to vector<16x128xf32>
    %10 = arith.addf %6, %9 : vector<16x128xf32>
    %c0_8 = arith.constant 0 : index
    %c0_9 = arith.constant 0 : index
    %c0_10 = arith.constant 0 : index
    %11 = vector.load %arg39[%c0_8, %c0_9, %c0_10] : memref<8x16x128xf32, #tpu.memory_space<vmem>>, vector<1x16x128xf32>
    %12 = vector.shape_cast %11 : vector<1x16x128xf32> to vector<16x128xf32>
    %13 = vector.shape_cast %10 : vector<16x128xf32> to vector<1x16x128xf32>
    tpu.vector_store %arg39[%c0_8, %c0_9, %c0_10], %13 {strides = array<i32>} : memref<8x16x128xf32, #tpu.memory_space<vmem>>, vector<1x16x128xf32>,
    %c1 = arith.constant 1 : index
    %c0_11 = arith.constant 0 : index
    %c0_12 = arith.constant 0 : index
    %14 = vector.load %arg26[%c1, %c0_11, %c0_12] : memref<8x64x128xbf16, #tpu.memory_space<vmem>>, vector<1x64x128xbf16>
    %15 = vector.shape_cast %14 : vector<1x64x128xbf16> to vector<64x128xbf16>
    %cst_13 = arith.constant dense<0.000000e+00> : vector<16x128xf32>
    %16 = tpu.matmul %3, %15, %cst_13 {dimension_numbers = #tpu.dot_dimension_numbers<[1], [0], [0], [1], [0, 0, 1, 1], [], []>} : vector<16x64xbf16>, vector<64x128xbf16>, vector<16x128xf32> -> vector<16x128xf32>
    %c1_14 = arith.constant 1 : index
    %c0_15 = arith.constant 0 : index
    %c0_16 = arith.constant 0 : index
    %17 = vector.load %arg27[%c1_14, %c0_15, %c0_16] : memref<8x1x128xf32, #tpu.memory_space<vmem>>, vector<1x1x128xf32>
    %18 = vector.shape_cast %17 : vector<1x1x128xf32> to vector<1x128xf32>
    %19 = vector.broadcast %18 : vector<1x128xf32> to vector<16x128xf32>
    %20 = arith.addf %16, %19 : vector<16x128xf32>
    %c1_17 = arith.constant 1 : index
    %c0_18 = arith.constant 0 : index
    %c0_19 = arith.constant 0 : index
    %21 = vector.load %arg39[%c1_17, %c0_18, %c0_19] : memref<8x16x128xf32, #tpu.memory_space<vmem>>, vector<1x16x128xf32>
    %22 = vector.shape_cast %21 : vector<1x16x128xf32> to vector<16x128xf32>
    %23 = vector.shape_cast %20 : vector<16x128xf32> to vector<1x16x128xf32>
    tpu.vector_store %arg39[%c1_17, %c0_18, %c0_19], %23 {strides = array<i32>} : memref<8x16x128xf32, #tpu.memory_space<vmem>>, vector<1x16x128xf32>,
    %c2 = arith.constant 2 : index
    %c0_20 = arith.constant 0 : index
    %c0_21 = arith.constant 0 : index
    %24 = vector.load %arg26[%c2, %c0_20, %c0_21] : memref<8x64x128xbf16, #tpu.memory_space<vmem>>, vector<1x64x128xbf16>
    %25 = vector.shape_cast %24 : vector<1x64x128xbf16> to vector<64x128xbf16>
    %cst_22 = arith.constant dense<0.000000e+00> : vector<16x128xf32>
    %26 = tpu.matmul %3, %25, %cst_22 {dimension_numbers = #tpu.dot_dimension_numbers<[1], [0], [0], [1], [0, 0, 1, 1], [], []>} : vector<16x64xbf16>, vector<64x128xbf16>, vector<16x128xf32> -> vector<16x128xf32>
    %c2_23 = arith.constant 2 : index
    %c0_24 = arith.constant 0 : index
    %c0_25 = arith.constant 0 : index
    %27 = vector.load %arg27[%c2_23, %c0_24, %c0_25] : memref<8x1x128xf32, #tpu.memory_space<vmem>>, vector<1x1x128xf32>
    %28 = vector.shape_cast %27 : vector<1x1x128xf32> to vector<1x128xf32>
    %29 = vector.broadcast %28 : vector<1x128xf32> to vector<16x128xf32>
    %30 = arith.addf %26, %29 : vector<16x128xf32>
    %c2_26 = arith.constant 2 : index
    %c0_27 = arith.constant 0 : index
    %c0_28 = arith.constant 0 : index
    %31 = vector.load %arg39[%c2_26, %c0_27, %c0_28] : memref<8x16x128xf32, #tpu.memory_space<vmem>>, vector<1x16x128xf32>
    %32 = vector.shape_cast %31 : vector<1x16x128xf32> to vector<16x128xf32>
    %33 = vector.shape_cast %30 : vector<16x128xf32> to vector<1x16x128xf32>
    tpu.vector_store %arg39[%c2_26, %c0_27, %c0_28], %33 {strides = array<i32>} : memref<8x16x128xf32, #tpu.memory_space<vmem>>, vector<1x16x128xf32>,
    %c3 = arith.constant 3 : index
    %c0_29 = arith.constant 0 : index
    %c0_30 = arith.constant 0 : index
    %34 = vector.load %arg26[%c3, %c0_29, %c0_30] : memref<8x64x128xbf16, #tpu.memory_space<vmem>>, vector<1x64x128xbf16>
    %35 = vector.shape_cast %34 : vector<1x64x128xbf16> to vector<64x128xbf16>
    %cst_31 = arith.constant dense<0.000000e+00> : vector<16x128xf32>
    %36 = tpu.matmul %3, %35, %cst_31 {dimension_numbers = #tpu.dot_dimension_numbers<[1], [0], [0], [1], [0, 0, 1, 1], [], []>} : vector<16x64xbf16>, vector<64x128xbf16>, vector<16x128xf32> -> vector<16x128xf32>
    %c3_32 = arith.constant 3 : index
    %c0_33 = arith.constant 0 : index
    %c0_34 = arith.constant 0 : index
    %37 = vector.load %arg27[%c3_32, %c0_33, %c0_34] : memref<8x1x128xf32, #tpu.memory_space<vmem>>, vector<1x1x128xf32>
    %38 = vector.shape_cast %37 : vector<1x1x128xf32> to vector<1x128xf32>
    %39 = vector.broadcast %38 : vector<1x128xf32> to vector<16x128xf32>
    %40 = arith.addf %36, %39 : vector<16x128xf32>
    %c3_35 = arith.constant 3 : index
    %c0_36 = arith.constant 0 : index
    %c0_37 = arith.constant 0 : index
    %41 = vector.load %arg39[%c3_35, %c0_36, %c0_37] : memref<8x16x128xf32, #tpu.memory_space<vmem>>, vector<1x16x128xf32>
    %42 = vector.shape_cast %41 : vector<1x16x128xf32> to vector<16x128xf32>
    %43 = vector.shape_cast %40 : vector<16x128xf32> to vector<1x16x128xf32>
    tpu.vector_store %arg39[%c3_35, %c0_36, %c0_37], %43 {strides = array<i32>} : memref<8x16x128xf32, #tpu.memory_space<vmem>>, vector<1x16x128xf32>,
    %c4 = arith.constant 4 : index
    %c0_38 = arith.constant 0 : index
    %c0_39 = arith.constant 0 : index
    %44 = vector.load %arg26[%c4, %c0_38, %c0_39] : memref<8x64x128xbf16, #tpu.memory_space<vmem>>, vector<1x64x128xbf16>
    %45 = vector.shape_cast %44 : vector<1x64x128xbf16> to vector<64x128xbf16>
    %cst_40 = arith.constant dense<0.000000e+00> : vector<16x128xf32>
    %46 = tpu.matmul %3, %45, %cst_40 {dimension_numbers = #tpu.dot_dimension_numbers<[1], [0], [0], [1], [0, 0, 1, 1], [], []>} : vector<16x64xbf16>, vector<64x128xbf16>, vector<16x128xf32> -> vector<16x128xf32>
    %c4_41 = arith.constant 4 : index
    %c0_42 = arith.constant 0 : index
    %c0_43 = arith.constant 0 : index
    %47 = vector.load %arg27[%c4_41, %c0_42, %c0_43] : memref<8x1x128xf32, #tpu.memory_space<vmem>>, vector<1x1x128xf32>
    %48 = vector.shape_cast %47 : vector<1x1x128xf32> to vector<1x128xf32>
    %49 = vector.broadcast %48 : vector<1x128xf32> to vector<16x128xf32>
    %50 = arith.addf %46, %49 : vector<16x128xf32>
    %c4_44 = arith.constant 4 : index
    %c0_45 = arith.constant 0 : index
    %c0_46 = arith.constant 0 : index
    %51 = vector.load %arg39[%c4_44, %c0_45, %c0_46] : memref<8x16x128xf32, #tpu.memory_space<vmem>>, vector<1x16x128xf32>
    %52 = vector.shape_cast %51 : vector<1x16x128xf32> to vector<16x128xf32>
    %53 = vector.shape_cast %50 : vector<16x128xf32> to vector<1x16x128xf32>
    tpu.vector_store %arg39[%c4_44, %c0_45, %c0_46], %53 {strides = array<i32>} : memref<8x16x128xf32, #tpu.memory_space<vmem>>, vector<1x16x128xf32>,
    %c5 = arith.constant 5 : index
    %c0_47 = arith.constant 0 : index
    %c0_48 = arith.constant 0 : index
    %54 = vector.load %arg26[%c5, %c0_47, %c0_48] : memref<8x64x128xbf16, #tpu.memory_space<vmem>>, vector<1x64x128xbf16>
    %55 = vector.shape_cast %54 : vector<1x64x128xbf16> to vector<64x128xbf16>
    %cst_49 = arith.constant dense<0.000000e+00> : vector<16x128xf32>
    %56 = tpu.matmul %3, %55, %cst_49 {dimension_numbers = #tpu.dot_dimension_numbers<[1], [0], [0], [1], [0, 0, 1, 1], [], []>} : vector<16x64xbf16>, vector<64x128xbf16>, vector<16x128xf32> -> vector<16x128xf32>
    %c5_50 = arith.constant 5 : index
    %c0_51 = arith.constant 0 : index
    %c0_52 = arith.constant 0 : index
    %57 = vector.load %arg27[%c5_50, %c0_51, %c0_52] : memref<8x1x128xf32, #tpu.memory_space<vmem>>, vector<1x1x128xf32>
    %58 = vector.shape_cast %57 : vector<1x1x128xf32> to vector<1x128xf32>
    %59 = vector.broadcast %58 : vector<1x128xf32> to vector<16x128xf32>
    %60 = arith.addf %56, %59 : vector<16x128xf32>
    %c5_53 = arith.constant 5 : index
    %c0_54 = arith.constant 0 : index
    %c0_55 = arith.constant 0 : index
    %61 = vector.load %arg39[%c5_53, %c0_54, %c0_55] : memref<8x16x128xf32, #tpu.memory_space<vmem>>, vector<1x16x128xf32>
    %62 = vector.shape_cast %61 : vector<1x16x128xf32> to vector<16x128xf32>
    %63 = vector.shape_cast %60 : vector<16x128xf32> to vector<1x16x128xf32>
    tpu.vector_store %arg39[%c5_53, %c0_54, %c0_55], %63 {strides = array<i32>} : memref<8x16x128xf32, #tpu.memory_space<vmem>>, vector<1x16x128xf32>,
    %c6 = arith.constant 6 : index
    %c0_56 = arith.constant 0 : index
    %c0_57 = arith.constant 0 : index
    %64 = vector.load %arg26[%c6, %c0_56, %c0_57] : memref<8x64x128xbf16, #tpu.memory_space<vmem>>, vector<1x64x128xbf16>
    %65 = vector.shape_cast %64 : vector<1x64x128xbf16> to vector<64x128xbf16>
    %cst_58 = arith.constant dense<0.000000e+00> : vector<16x128xf32>
    %66 = tpu.matmul %3, %65, %cst_58 {dimension_numbers = #tpu.dot_dimension_numbers<[1], [0], [0], [1], [0, 0, 1, 1], [], []>} : vector<16x64xbf16>, vector<64x128xbf16>, vector<16x128xf32> -> vector<16x128xf32>
    %c6_59 = arith.constant 6 : index
    %c0_60 = arith.constant 0 : index
    %c0_61 = arith.constant 0 : index
    %67 = vector.load %arg27[%c6_59, %c0_60, %c0_61] : memref<8x1x128xf32, #tpu.memory_space<vmem>>, vector<1x1x128xf32>
    %68 = vector.shape_cast %67 : vector<1x1x128xf32> to vector<1x128xf32>
    %69 = vector.broadcast %68 : vector<1x128xf32> to vector<16x128xf32>
    %70 = arith.addf %66, %69 : vector<16x128xf32>
    %c6_62 = arith.constant 6 : index
    %c0_63 = arith.constant 0 : index
    %c0_64 = arith.constant 0 : index
    %71 = vector.load %arg39[%c6_62, %c0_63, %c0_64] : memref<8x16x128xf32, #tpu.memory_space<vmem>>, vector<1x16x128xf32>
    %72 = vector.shape_cast %71 : vector<1x16x128xf32> to vector<16x128xf32>
    %73 = vector.shape_cast %70 : vector<16x128xf32> to vector<1x16x128xf32>
    tpu.vector_store %arg39[%c6_62, %c0_63, %c0_64], %73 {strides = array<i32>} : memref<8x16x128xf32, #tpu.memory_space<vmem>>, vector<1x16x128xf32>,
    %c7 = arith.constant 7 : index
    %c0_65 = arith.constant 0 : index
    %c0_66 = arith.constant 0 : index
    %74 = vector.load %arg26[%c7, %c0_65, %c0_66] : memref<8x64x128xbf16, #tpu.memory_space<vmem>>, vector<1x64x128xbf16>
    %75 = vector.shape_cast %74 : vector<1x64x128xbf16> to vector<64x128xbf16>
    %cst_67 = arith.constant dense<0.000000e+00> : vector<16x128xf32>
    %76 = tpu.matmul %3, %75, %cst_67 {dimension_numbers = #tpu.dot_dimension_numbers<[1], [0], [0], [1], [0, 0, 1, 1], [], []>} : vector<16x64xbf16>, vector<64x128xbf16>, vector<16x128xf32> -> vector<16x128xf32>
    %c7_68 = arith.constant 7 : index
    %c0_69 = arith.constant 0 : index
    %c0_70 = arith.constant 0 : index
    %77 = vector.load %arg27[%c7_68, %c0_69, %c0_70] : memref<8x1x128xf32, #tpu.memory_space<vmem>>, vector<1x1x128xf32>
    %78 = vector.shape_cast %77 : vector<1x1x128xf32> to vector<1x128xf32>
    %79 = vector.broadcast %78 : vector<1x128xf32> to vector<16x128xf32>
    %80 = arith.addf %76, %79 : vector<16x128xf32>
    %c7_71 = arith.constant 7 : index
    %c0_72 = arith.constant 0 : index
    %c0_73 = arith.constant 0 : index
    %81 = vector.load %arg39[%c7_71, %c0_72, %c0_73] : memref<8x16x128xf32, #tpu.memory_space<vmem>>, vector<1x16x128xf32>
    %82 = vector.shape_cast %81 : vector<1x16x128xf32> to vector<16x128xf32>
    %83 = vector.shape_cast %80 : vector<16x128xf32> to vector<1x16x128xf32>
    tpu.vector_store %arg39[%c7_71, %c0_72, %c0_73], %83 {strides = array<i32>} : memref<8x16x128xf32, #tpu.memory_space<vmem>>, vector<1x16x128xf32>,
    %c0_74 = arith.constant 0 : index
    %c0_75 = arith.constant 0 : index
    %84 = vector.load %arg2[%c0_74, %c0_75] : memref<8x64xf32, #tpu.memory_space<vmem>>, vector<8x64xf32>
    %c0_76 = arith.constant 0 : index
    %c0_77 = arith.constant 0 : index
    %85 = vector.load %arg3[%c0_76, %c0_77] : memref<32x64xf32, #tpu.memory_space<vmem>>, vector<32x64xf32>
    %c0_78 = arith.constant 0 : index
    %c0_79 = arith.constant 0 : index
    %86 = vector.load %arg4[%c0_78, %c0_79] : memref<64x32xbf16, #tpu.memory_space<vmem>>, vector<64x32xbf16>
    %c0_80 = arith.constant 0 : index
    %c0_81 = arith.constant 0 : index
    %87 = vector.load %arg5[%c0_80, %c0_81] : memref<1x32xf32, #tpu.memory_space<vmem>>, vector<1x32xf32>
    %c0_82 = arith.constant 0 : index
    %c0_83 = arith.constant 0 : index
    %88 = vector.load %arg1[%c0_82, %c0_83] : memref<8x32xf32, #tpu.memory_space<vmem>>, vector<8x32xf32>
    %cst_84 = arith.constant 0.000000e+00 : f32
    %89 = vector.broadcast %cst_84 : f32 to vector<8x64xf32>
    %c0_i32_85 = arith.constant 0 : i32
    %c4_i32 = arith.constant 4 : i32
    %90 = arith.addi %c0_i32_85, %c4_i32 : i32
    %c1_i32_86 = arith.constant 1 : i32
    %91:2 = scf.for %arg40 = %c0_i32_85 to %90 step %c1_i32_86 iter_args(%arg41 = %88, %arg42 = %89) -> (vector<8x32xf32>, vector<8x64xf32>)  : i32 {
      %cst_90 = arith.constant dense<0.000000e+00> : vector<8x64xf32>
      %93 = tpu.matmul %arg41, %85, %cst_90 {dimension_numbers = #tpu.dot_dimension_numbers<[1], [0], [0], [1], [0, 0, 1, 1], [], []>} : vector<8x32xf32>, vector<32x64xf32>, vector<8x64xf32> -> vector<8x64xf32>
      %94 = arith.addf %93, %84 : vector<8x64xf32>
      %95 = tpu.iota {dimensions = array<i32: 2>} : vector<1x1x4xi32>
      %96 = vector.broadcast %arg40 : i32 to vector<1x1x4xi32>
      %97 = arith.cmpi sle, %95, %96 : vector<1x1x4xi32>
      %cst_91 = arith.constant 0.000000e+00 : f32
      %cst_92 = arith.constant -1.000000e+30 : f32
      %98 = vector.broadcast %cst_91 : f32 to vector<1x1x4xf32>
      %99 = vector.broadcast %cst_92 : f32 to vector<1x1x4xf32>
      %100 = arith.select %97, %98, %99 : vector<1x1x4xi1>, vector<1x1x4xf32>
      %c0_i32_93 = arith.constant 0 : i32
      %c8_i32_94 = arith.constant 8 : i32
      %101 = arith.addi %c0_i32_93, %c8_i32_94 : i32
      %c1_i32_95 = arith.constant 1 : i32
      %102 = scf.for %arg43 = %c0_i32_93 to %101 step %c1_i32_95 iter_args(%arg44 = %94) -> (vector<8x64xf32>)  : i32 {
        %138 = arith.truncf %arg44 : vector<8x64xf32> to vector<8x64xbf16>
        %139 = arith.index_cast %arg43 : i32 to index
        %c0_104 = arith.constant 0 : index
        %c0_105 = arith.constant 0 : index
        %140 = vector.load %arg18[%139, %c0_104, %c0_105] : memref<8x64x192xbf16, #tpu.memory_space<vmem>>, vector<1x64x192xbf16>
        %141 = vector.shape_cast %140 : vector<1x64x192xbf16> to vector<64x192xbf16>
        %cst_106 = arith.constant dense<0.000000e+00> : vector<8x192xf32>
        %142 = tpu.matmul %138, %141, %cst_106 {dimension_numbers = #tpu.dot_dimension_numbers<[1], [0], [0], [1], [0, 0, 1, 1], [], []>} : vector<8x64xbf16>, vector<64x192xbf16>, vector<8x192xf32> -> vector<8x192xf32>
        %143 = arith.index_cast %arg43 : i32 to index
        %c0_107 = arith.constant 0 : index
        %c0_108 = arith.constant 0 : index
        %144 = vector.load %arg19[%143, %c0_107, %c0_108] : memref<8x1x192xf32, #tpu.memory_space<vmem>>, vector<1x1x192xf32>
        %145 = vector.shape_cast %144 : vector<1x1x192xf32> to vector<1x192xf32>
        %146 = vector.broadcast %145 : vector<1x192xf32> to vector<8x192xf32>
        %147 = arith.addf %142, %146 : vector<8x192xf32>
        %148 = vector.extract_strided_slice %147 {offsets = [0, 0], sizes = [8, 64], strides = [1, 1]} : vector<8x192xf32> to vector<8x64xf32>
        %149 = vector.extract_strided_slice %147 {offsets = [0, 64], sizes = [8, 64], strides = [1, 1]} : vector<8x192xf32> to vector<8x64xf32>
        %150 = vector.extract_strided_slice %147 {offsets = [0, 128], sizes = [8, 64], strides = [1, 1]} : vector<8x192xf32> to vector<8x64xf32>
        %151 = vector.shape_cast %148 : vector<8x64xf32> to vector<2x4x64xf32>
        %152 = vector.shape_cast %149 : vector<8x64xf32> to vector<2x4x64xf32>
        %153 = vector.shape_cast %150 : vector<8x64xf32> to vector<2x4x64xf32>
        %154 = vector.extract_strided_slice %151 {offsets = [0, 0, 0], sizes = [2, 4, 8], strides = [1, 1, 1]} : vector<2x4x64xf32> to vector<2x4x8xf32>
        %155 = arith.truncf %154 : vector<2x4x8xf32> to vector<2x4x8xbf16>
        %156 = vector.extract_strided_slice %152 {offsets = [0, 0, 0], sizes = [2, 4, 8], strides = [1, 1, 1]} : vector<2x4x64xf32> to vector<2x4x8xf32>
        %157 = arith.truncf %156 : vector<2x4x8xf32> to vector<2x4x8xbf16>
        %158 = vector.extract_strided_slice %153 {offsets = [0, 0, 0], sizes = [2, 4, 8], strides = [1, 1, 1]} : vector<2x4x64xf32> to vector<2x4x8xf32>
        %159 = arith.truncf %158 : vector<2x4x8xf32> to vector<2x4x8xbf16>
        %cst_109 = arith.constant dense<0.000000e+00> : vector<2x4x4xf32>
        %160 = tpu.matmul %155, %157, %cst_109 {dimension_numbers = #tpu.dot_dimension_numbers<[2], [2], [1], [1], [0, 0, 0, 1, 1, 1], [0], [0]>} : vector<2x4x8xbf16>, vector<2x4x8xbf16>, vector<2x4x4xf32> -> vector<2x4x4xf32>
        %cst_110 = arith.constant 0.353553385 : f32
        %161 = vector.broadcast %cst_110 : f32 to vector<2x4x4xf32>
        %162 = arith.mulf %160, %161 : vector<2x4x4xf32>
        %163 = vector.broadcast %100 : vector<1x1x4xf32> to vector<2x4x4xf32>
        %164 = arith.addf %162, %163 : vector<2x4x4xf32>
        %cst_111 = arith.constant dense<0xFF800000> : vector<2x4xf32>
        %165 = vector.multi_reduction <maximumf>, %164, %cst_111 [2] : vector<2x4x4xf32> to vector<2x4xf32>
        %166 = vector.shape_cast %165 : vector<2x4xf32> to vector<2x4x1xf32>
        %167 = vector.broadcast %166 : vector<2x4x1xf32> to vector<2x4x4xf32>
        %168 = arith.subf %164, %167 : vector<2x4x4xf32>
        %169 = math.exp %168 : vector<2x4x4xf32>
        %cst_112 = arith.constant dense<0.000000e+00> : vector<2x4xf32>
        %170 = vector.multi_reduction <add>, %169, %cst_112 [2] : vector<2x4x4xf32> to vector<2x4xf32>
        %171 = vector.shape_cast %170 : vector<2x4xf32> to vector<2x4x1xf32>
        %172 = tpu.reciprocal %171 : vector<2x4x1xf32> -> vector<2x4x1xf32>
        %173 = vector.broadcast %172 : vector<2x4x1xf32> to vector<2x4x4xf32>
        %174 = arith.mulf %169, %173 : vector<2x4x4xf32>
        %175 = arith.truncf %174 : vector<2x4x4xf32> to vector<2x4x4xbf16>
        %cst_113 = arith.constant dense<0.000000e+00> : vector<2x4x8xf32>
        %176 = tpu.matmul %175, %159, %cst_113 {dimension_numbers = #tpu.dot_dimension_numbers<[2], [1], [1], [2], [0, 0, 0, 1, 1, 2], [0], [0]>} : vector<2x4x4xbf16>, vector<2x4x8xbf16>, vector<2x4x8xf32> -> vector<2x4x8xf32>
        %177 = vector.extract_strided_slice %151 {offsets = [0, 0, 8], sizes = [2, 4, 8], strides = [1, 1, 1]} : vector<2x4x64xf32> to vector<2x4x8xf32>
        %178 = arith.truncf %177 : vector<2x4x8xf32> to vector<2x4x8xbf16>
        %179 = vector.extract_strided_slice %152 {offsets = [0, 0, 8], sizes = [2, 4, 8], strides = [1, 1, 1]} : vector<2x4x64xf32> to vector<2x4x8xf32>
        %180 = arith.truncf %179 : vector<2x4x8xf32> to vector<2x4x8xbf16>
        %181 = vector.extract_strided_slice %153 {offsets = [0, 0, 8], sizes = [2, 4, 8], strides = [1, 1, 1]} : vector<2x4x64xf32> to vector<2x4x8xf32>
        %182 = arith.truncf %181 : vector<2x4x8xf32> to vector<2x4x8xbf16>
        %cst_114 = arith.constant dense<0.000000e+00> : vector<2x4x4xf32>
        %183 = tpu.matmul %178, %180, %cst_114 {dimension_numbers = #tpu.dot_dimension_numbers<[2], [2], [1], [1], [0, 0, 0, 1, 1, 1], [0], [0]>} : vector<2x4x8xbf16>, vector<2x4x8xbf16>, vector<2x4x4xf32> -> vector<2x4x4xf32>
        %cst_115 = arith.constant 0.353553385 : f32
        %184 = vector.broadcast %cst_115 : f32 to vector<2x4x4xf32>
        %185 = arith.mulf %183, %184 : vector<2x4x4xf32>
        %186 = vector.broadcast %100 : vector<1x1x4xf32> to vector<2x4x4xf32>
        %187 = arith.addf %185, %186 : vector<2x4x4xf32>
        %cst_116 = arith.constant dense<0xFF800000> : vector<2x4xf32>
        %188 = vector.multi_reduction <maximumf>, %187, %cst_116 [2] : vector<2x4x4xf32> to vector<2x4xf32>
        %189 = vector.shape_cast %188 : vector<2x4xf32> to vector<2x4x1xf32>
        %190 = vector.broadcast %189 : vector<2x4x1xf32> to vector<2x4x4xf32>
        %191 = arith.subf %187, %190 : vector<2x4x4xf32>
        %192 = math.exp %191 : vector<2x4x4xf32>
        %cst_117 = arith.constant dense<0.000000e+00> : vector<2x4xf32>
        %193 = vector.multi_reduction <add>, %192, %cst_117 [2] : vector<2x4x4xf32> to vector<2x4xf32>
        %194 = vector.shape_cast %193 : vector<2x4xf32> to vector<2x4x1xf32>
        %195 = tpu.reciprocal %194 : vector<2x4x1xf32> -> vector<2x4x1xf32>
        %196 = vector.broadcast %195 : vector<2x4x1xf32> to vector<2x4x4xf32>
        %197 = arith.mulf %192, %196 : vector<2x4x4xf32>
        %198 = arith.truncf %197 : vector<2x4x4xf32> to vector<2x4x4xbf16>
        %cst_118 = arith.constant dense<0.000000e+00> : vector<2x4x8xf32>
        %199 = tpu.matmul %198, %182, %cst_118 {dimension_numbers = #tpu.dot_dimension_numbers<[2], [1], [1], [2], [0, 0, 0, 1, 1, 2], [0], [0]>} : vector<2x4x4xbf16>, vector<2x4x8xbf16>, vector<2x4x8xf32> -> vector<2x4x8xf32>
        %200 = vector.extract_strided_slice %151 {offsets = [0, 0, 16], sizes = [2, 4, 8], strides = [1, 1, 1]} : vector<2x4x64xf32> to vector<2x4x8xf32>
        %201 = arith.truncf %200 : vector<2x4x8xf32> to vector<2x4x8xbf16>
        %202 = vector.extract_strided_slice %152 {offsets = [0, 0, 16], sizes = [2, 4, 8], strides = [1, 1, 1]} : vector<2x4x64xf32> to vector<2x4x8xf32>
        %203 = arith.truncf %202 : vector<2x4x8xf32> to vector<2x4x8xbf16>
        %204 = vector.extract_strided_slice %153 {offsets = [0, 0, 16], sizes = [2, 4, 8], strides = [1, 1, 1]} : vector<2x4x64xf32> to vector<2x4x8xf32>
        %205 = arith.truncf %204 : vector<2x4x8xf32> to vector<2x4x8xbf16>
        %cst_119 = arith.constant dense<0.000000e+00> : vector<2x4x4xf32>
        %206 = tpu.matmul %201, %203, %cst_119 {dimension_numbers = #tpu.dot_dimension_numbers<[2], [2], [1], [1], [0, 0, 0, 1, 1, 1], [0], [0]>} : vector<2x4x8xbf16>, vector<2x4x8xbf16>, vector<2x4x4xf32> -> vector<2x4x4xf32>
        %cst_120 = arith.constant 0.353553385 : f32
        %207 = vector.broadcast %cst_120 : f32 to vector<2x4x4xf32>
        %208 = arith.mulf %206, %207 : vector<2x4x4xf32>
        %209 = vector.broadcast %100 : vector<1x1x4xf32> to vector<2x4x4xf32>
        %210 = arith.addf %208, %209 : vector<2x4x4xf32>
        %cst_121 = arith.constant dense<0xFF800000> : vector<2x4xf32>
        %211 = vector.multi_reduction <maximumf>, %210, %cst_121 [2] : vector<2x4x4xf32> to vector<2x4xf32>
        %212 = vector.shape_cast %211 : vector<2x4xf32> to vector<2x4x1xf32>
        %213 = vector.broadcast %212 : vector<2x4x1xf32> to vector<2x4x4xf32>
        %214 = arith.subf %210, %213 : vector<2x4x4xf32>
        %215 = math.exp %214 : vector<2x4x4xf32>
        %cst_122 = arith.constant dense<0.000000e+00> : vector<2x4xf32>
        %216 = vector.multi_reduction <add>, %215, %cst_122 [2] : vector<2x4x4xf32> to vector<2x4xf32>
        %217 = vector.shape_cast %216 : vector<2x4xf32> to vector<2x4x1xf32>
        %218 = tpu.reciprocal %217 : vector<2x4x1xf32> -> vector<2x4x1xf32>
        %219 = vector.broadcast %218 : vector<2x4x1xf32> to vector<2x4x4xf32>
        %220 = arith.mulf %215, %219 : vector<2x4x4xf32>
        %221 = arith.truncf %220 : vector<2x4x4xf32> to vector<2x4x4xbf16>
        %cst_123 = arith.constant dense<0.000000e+00> : vector<2x4x8xf32>
        %222 = tpu.matmul %221, %205, %cst_123 {dimension_numbers = #tpu.dot_dimension_numbers<[2], [1], [1], [2], [0, 0, 0, 1, 1, 2], [0], [0]>} : vector<2x4x4xbf16>, vector<2x4x8xbf16>, vector<2x4x8xf32> -> vector<2x4x8xf32>
        %223 = vector.extract_strided_slice %151 {offsets = [0, 0, 24], sizes = [2, 4, 8], strides = [1, 1, 1]} : vector<2x4x64xf32> to vector<2x4x8xf32>
        %224 = arith.truncf %223 : vector<2x4x8xf32> to vector<2x4x8xbf16>
        %225 = vector.extract_strided_slice %152 {offsets = [0, 0, 24], sizes = [2, 4, 8], strides = [1, 1, 1]} : vector<2x4x64xf32> to vector<2x4x8xf32>
        %226 = arith.truncf %225 : vector<2x4x8xf32> to vector<2x4x8xbf16>
        %227 = vector.extract_strided_slice %153 {offsets = [0, 0, 24], sizes = [2, 4, 8], strides = [1, 1, 1]} : vector<2x4x64xf32> to vector<2x4x8xf32>
        %228 = arith.truncf %227 : vector<2x4x8xf32> to vector<2x4x8xbf16>
        %cst_124 = arith.constant dense<0.000000e+00> : vector<2x4x4xf32>
        %229 = tpu.matmul %224, %226, %cst_124 {dimension_numbers = #tpu.dot_dimension_numbers<[2], [2], [1], [1], [0, 0, 0, 1, 1, 1], [0], [0]>} : vector<2x4x8xbf16>, vector<2x4x8xbf16>, vector<2x4x4xf32> -> vector<2x4x4xf32>
        %cst_125 = arith.constant 0.353553385 : f32
        %230 = vector.broadcast %cst_125 : f32 to vector<2x4x4xf32>
        %231 = arith.mulf %229, %230 : vector<2x4x4xf32>
        %232 = vector.broadcast %100 : vector<1x1x4xf32> to vector<2x4x4xf32>
        %233 = arith.addf %231, %232 : vector<2x4x4xf32>
        %cst_126 = arith.constant dense<0xFF800000> : vector<2x4xf32>
        %234 = vector.multi_reduction <maximumf>, %233, %cst_126 [2] : vector<2x4x4xf32> to vector<2x4xf32>
        %235 = vector.shape_cast %234 : vector<2x4xf32> to vector<2x4x1xf32>
        %236 = vector.broadcast %235 : vector<2x4x1xf32> to vector<2x4x4xf32>
        %237 = arith.subf %233, %236 : vector<2x4x4xf32>
        %238 = math.exp %237 : vector<2x4x4xf32>
        %cst_127 = arith.constant dense<0.000000e+00> : vector<2x4xf32>
        %239 = vector.multi_reduction <add>, %238, %cst_127 [2] : vector<2x4x4xf32> to vector<2x4xf32>
        %240 = vector.shape_cast %239 : vector<2x4xf32> to vector<2x4x1xf32>
        %241 = tpu.reciprocal %240 : vector<2x4x1xf32> -> vector<2x4x1xf32>
        %242 = vector.broadcast %241 : vector<2x4x1xf32> to vector<2x4x4xf32>
        %243 = arith.mulf %238, %242 : vector<2x4x4xf32>
        %244 = arith.truncf %243 : vector<2x4x4xf32> to vector<2x4x4xbf16>
        %cst_128 = arith.constant dense<0.000000e+00> : vector<2x4x8xf32>
        %245 = tpu.matmul %244, %228, %cst_128 {dimension_numbers = #tpu.dot_dimension_numbers<[2], [1], [1], [2], [0, 0, 0, 1, 1, 2], [0], [0]>} : vector<2x4x4xbf16>, vector<2x4x8xbf16>, vector<2x4x8xf32> -> vector<2x4x8xf32>
        %246 = vector.extract_strided_slice %151 {offsets = [0, 0, 32], sizes = [2, 4, 8], strides = [1, 1, 1]} : vector<2x4x64xf32> to vector<2x4x8xf32>
        %247 = arith.truncf %246 : vector<2x4x8xf32> to vector<2x4x8xbf16>
        %248 = vector.extract_strided_slice %152 {offsets = [0, 0, 32], sizes = [2, 4, 8], strides = [1, 1, 1]} : vector<2x4x64xf32> to vector<2x4x8xf32>
        %249 = arith.truncf %248 : vector<2x4x8xf32> to vector<2x4x8xbf16>
        %250 = vector.extract_strided_slice %153 {offsets = [0, 0, 32], sizes = [2, 4, 8], strides = [1, 1, 1]} : vector<2x4x64xf32> to vector<2x4x8xf32>
        %251 = arith.truncf %250 : vector<2x4x8xf32> to vector<2x4x8xbf16>
        %cst_129 = arith.constant dense<0.000000e+00> : vector<2x4x4xf32>
        %252 = tpu.matmul %247, %249, %cst_129 {dimension_numbers = #tpu.dot_dimension_numbers<[2], [2], [1], [1], [0, 0, 0, 1, 1, 1], [0], [0]>} : vector<2x4x8xbf16>, vector<2x4x8xbf16>, vector<2x4x4xf32> -> vector<2x4x4xf32>
        %cst_130 = arith.constant 0.353553385 : f32
        %253 = vector.broadcast %cst_130 : f32 to vector<2x4x4xf32>
        %254 = arith.mulf %252, %253 : vector<2x4x4xf32>
        %255 = vector.broadcast %100 : vector<1x1x4xf32> to vector<2x4x4xf32>
        %256 = arith.addf %254, %255 : vector<2x4x4xf32>
        %cst_131 = arith.constant dense<0xFF800000> : vector<2x4xf32>
        %257 = vector.multi_reduction <maximumf>, %256, %cst_131 [2] : vector<2x4x4xf32> to vector<2x4xf32>
        %258 = vector.shape_cast %257 : vector<2x4xf32> to vector<2x4x1xf32>
        %259 = vector.broadcast %258 : vector<2x4x1xf32> to vector<2x4x4xf32>
        %260 = arith.subf %256, %259 : vector<2x4x4xf32>
        %261 = math.exp %260 : vector<2x4x4xf32>
        %cst_132 = arith.constant dense<0.000000e+00> : vector<2x4xf32>
        %262 = vector.multi_reduction <add>, %261, %cst_132 [2] : vector<2x4x4xf32> to vector<2x4xf32>
        %263 = vector.shape_cast %262 : vector<2x4xf32> to vector<2x4x1xf32>
        %264 = tpu.reciprocal %263 : vector<2x4x1xf32> -> vector<2x4x1xf32>
        %265 = vector.broadcast %264 : vector<2x4x1xf32> to vector<2x4x4xf32>
        %266 = arith.mulf %261, %265 : vector<2x4x4xf32>
        %267 = arith.truncf %266 : vector<2x4x4xf32> to vector<2x4x4xbf16>
        %cst_133 = arith.constant dense<0.000000e+00> : vector<2x4x8xf32>
        %268 = tpu.matmul %267, %251, %cst_133 {dimension_numbers = #tpu.dot_dimension_numbers<[2], [1], [1], [2], [0, 0, 0, 1, 1, 2], [0], [0]>} : vector<2x4x4xbf16>, vector<2x4x8xbf16>, vector<2x4x8xf32> -> vector<2x4x8xf32>
        %269 = vector.extract_strided_slice %151 {offsets = [0, 0, 40], sizes = [2, 4, 8], strides = [1, 1, 1]} : vector<2x4x64xf32> to vector<2x4x8xf32>
        %270 = arith.truncf %269 : vector<2x4x8xf32> to vector<2x4x8xbf16>
        %271 = vector.extract_strided_slice %152 {offsets = [0, 0, 40], sizes = [2, 4, 8], strides = [1, 1, 1]} : vector<2x4x64xf32> to vector<2x4x8xf32>
        %272 = arith.truncf %271 : vector<2x4x8xf32> to vector<2x4x8xbf16>
        %273 = vector.extract_strided_slice %153 {offsets = [0, 0, 40], sizes = [2, 4, 8], strides = [1, 1, 1]} : vector<2x4x64xf32> to vector<2x4x8xf32>
        %274 = arith.truncf %273 : vector<2x4x8xf32> to vector<2x4x8xbf16>
        %cst_134 = arith.constant dense<0.000000e+00> : vector<2x4x4xf32>
        %275 = tpu.matmul %270, %272, %cst_134 {dimension_numbers = #tpu.dot_dimension_numbers<[2], [2], [1], [1], [0, 0, 0, 1, 1, 1], [0], [0]>} : vector<2x4x8xbf16>, vector<2x4x8xbf16>, vector<2x4x4xf32> -> vector<2x4x4xf32>
        %cst_135 = arith.constant 0.353553385 : f32
        %276 = vector.broadcast %cst_135 : f32 to vector<2x4x4xf32>
        %277 = arith.mulf %275, %276 : vector<2x4x4xf32>
        %278 = vector.broadcast %100 : vector<1x1x4xf32> to vector<2x4x4xf32>
        %279 = arith.addf %277, %278 : vector<2x4x4xf32>
        %cst_136 = arith.constant dense<0xFF800000> : vector<2x4xf32>
        %280 = vector.multi_reduction <maximumf>, %279, %cst_136 [2] : vector<2x4x4xf32> to vector<2x4xf32>
        %281 = vector.shape_cast %280 : vector<2x4xf32> to vector<2x4x1xf32>
        %282 = vector.broadcast %281 : vector<2x4x1xf32> to vector<2x4x4xf32>
        %283 = arith.subf %279, %282 : vector<2x4x4xf32>
        %284 = math.exp %283 : vector<2x4x4xf32>
        %cst_137 = arith.constant dense<0.000000e+00> : vector<2x4xf32>
        %285 = vector.multi_reduction <add>, %284, %cst_137 [2] : vector<2x4x4xf32> to vector<2x4xf32>
        %286 = vector.shape_cast %285 : vector<2x4xf32> to vector<2x4x1xf32>
        %287 = tpu.reciprocal %286 : vector<2x4x1xf32> -> vector<2x4x1xf32>
        %288 = vector.broadcast %287 : vector<2x4x1xf32> to vector<2x4x4xf32>
        %289 = arith.mulf %284, %288 : vector<2x4x4xf32>
        %290 = arith.truncf %289 : vector<2x4x4xf32> to vector<2x4x4xbf16>
        %cst_138 = arith.constant dense<0.000000e+00> : vector<2x4x8xf32>
        %291 = tpu.matmul %290, %274, %cst_138 {dimension_numbers = #tpu.dot_dimension_numbers<[2], [1], [1], [2], [0, 0, 0, 1, 1, 2], [0], [0]>} : vector<2x4x4xbf16>, vector<2x4x8xbf16>, vector<2x4x8xf32> -> vector<2x4x8xf32>
        %292 = vector.extract_strided_slice %151 {offsets = [0, 0, 48], sizes = [2, 4, 8], strides = [1, 1, 1]} : vector<2x4x64xf32> to vector<2x4x8xf32>
        %293 = arith.truncf %292 : vector<2x4x8xf32> to vector<2x4x8xbf16>
        %294 = vector.extract_strided_slice %152 {offsets = [0, 0, 48], sizes = [2, 4, 8], strides = [1, 1, 1]} : vector<2x4x64xf32> to vector<2x4x8xf32>
        %295 = arith.truncf %294 : vector<2x4x8xf32> to vector<2x4x8xbf16>
        %296 = vector.extract_strided_slice %153 {offsets = [0, 0, 48], sizes = [2, 4, 8], strides = [1, 1, 1]} : vector<2x4x64xf32> to vector<2x4x8xf32>
        %297 = arith.truncf %296 : vector<2x4x8xf32> to vector<2x4x8xbf16>
        %cst_139 = arith.constant dense<0.000000e+00> : vector<2x4x4xf32>
        %298 = tpu.matmul %293, %295, %cst_139 {dimension_numbers = #tpu.dot_dimension_numbers<[2], [2], [1], [1], [0, 0, 0, 1, 1, 1], [0], [0]>} : vector<2x4x8xbf16>, vector<2x4x8xbf16>, vector<2x4x4xf32> -> vector<2x4x4xf32>
        %cst_140 = arith.constant 0.353553385 : f32
        %299 = vector.broadcast %cst_140 : f32 to vector<2x4x4xf32>
        %300 = arith.mulf %298, %299 : vector<2x4x4xf32>
        %301 = vector.broadcast %100 : vector<1x1x4xf32> to vector<2x4x4xf32>
        %302 = arith.addf %300, %301 : vector<2x4x4xf32>
        %cst_141 = arith.constant dense<0xFF800000> : vector<2x4xf32>
        %303 = vector.multi_reduction <maximumf>, %302, %cst_141 [2] : vector<2x4x4xf32> to vector<2x4xf32>
        %304 = vector.shape_cast %303 : vector<2x4xf32> to vector<2x4x1xf32>
        %305 = vector.broadcast %304 : vector<2x4x1xf32> to vector<2x4x4xf32>
        %306 = arith.subf %302, %305 : vector<2x4x4xf32>
        %307 = math.exp %306 : vector<2x4x4xf32>
        %cst_142 = arith.constant dense<0.000000e+00> : vector<2x4xf32>
        %308 = vector.multi_reduction <add>, %307, %cst_142 [2] : vector<2x4x4xf32> to vector<2x4xf32>
        %309 = vector.shape_cast %308 : vector<2x4xf32> to vector<2x4x1xf32>
        %310 = tpu.reciprocal %309 : vector<2x4x1xf32> -> vector<2x4x1xf32>
        %311 = vector.broadcast %310 : vector<2x4x1xf32> to vector<2x4x4xf32>
        %312 = arith.mulf %307, %311 : vector<2x4x4xf32>
        %313 = arith.truncf %312 : vector<2x4x4xf32> to vector<2x4x4xbf16>
        %cst_143 = arith.constant dense<0.000000e+00> : vector<2x4x8xf32>
        %314 = tpu.matmul %313, %297, %cst_143 {dimension_numbers = #tpu.dot_dimension_numbers<[2], [1], [1], [2], [0, 0, 0, 1, 1, 2], [0], [0]>} : vector<2x4x4xbf16>, vector<2x4x8xbf16>, vector<2x4x8xf32> -> vector<2x4x8xf32>
        %315 = vector.extract_strided_slice %151 {offsets = [0, 0, 56], sizes = [2, 4, 8], strides = [1, 1, 1]} : vector<2x4x64xf32> to vector<2x4x8xf32>
        %316 = arith.truncf %315 : vector<2x4x8xf32> to vector<2x4x8xbf16>
        %317 = vector.extract_strided_slice %152 {offsets = [0, 0, 56], sizes = [2, 4, 8], strides = [1, 1, 1]} : vector<2x4x64xf32> to vector<2x4x8xf32>
        %318 = arith.truncf %317 : vector<2x4x8xf32> to vector<2x4x8xbf16>
        %319 = vector.extract_strided_slice %153 {offsets = [0, 0, 56], sizes = [2, 4, 8], strides = [1, 1, 1]} : vector<2x4x64xf32> to vector<2x4x8xf32>
        %320 = arith.truncf %319 : vector<2x4x8xf32> to vector<2x4x8xbf16>
        %cst_144 = arith.constant dense<0.000000e+00> : vector<2x4x4xf32>
        %321 = tpu.matmul %316, %318, %cst_144 {dimension_numbers = #tpu.dot_dimension_numbers<[2], [2], [1], [1], [0, 0, 0, 1, 1, 1], [0], [0]>} : vector<2x4x8xbf16>, vector<2x4x8xbf16>, vector<2x4x4xf32> -> vector<2x4x4xf32>
        %cst_145 = arith.constant 0.353553385 : f32
        %322 = vector.broadcast %cst_145 : f32 to vector<2x4x4xf32>
        %323 = arith.mulf %321, %322 : vector<2x4x4xf32>
        %324 = vector.broadcast %100 : vector<1x1x4xf32> to vector<2x4x4xf32>
        %325 = arith.addf %323, %324 : vector<2x4x4xf32>
        %cst_146 = arith.constant dense<0xFF800000> : vector<2x4xf32>
        %326 = vector.multi_reduction <maximumf>, %325, %cst_146 [2] : vector<2x4x4xf32> to vector<2x4xf32>
        %327 = vector.shape_cast %326 : vector<2x4xf32> to vector<2x4x1xf32>
        %328 = vector.broadcast %327 : vector<2x4x1xf32> to vector<2x4x4xf32>
        %329 = arith.subf %325, %328 : vector<2x4x4xf32>
        %330 = math.exp %329 : vector<2x4x4xf32>
        %cst_147 = arith.constant dense<0.000000e+00> : vector<2x4xf32>
        %331 = vector.multi_reduction <add>, %330, %cst_147 [2] : vector<2x4x4xf32> to vector<2x4xf32>
        %332 = vector.shape_cast %331 : vector<2x4xf32> to vector<2x4x1xf32>
        %333 = tpu.reciprocal %332 : vector<2x4x1xf32> -> vector<2x4x1xf32>
        %334 = vector.broadcast %333 : vector<2x4x1xf32> to vector<2x4x4xf32>
        %335 = arith.mulf %330, %334 : vector<2x4x4xf32>
        %336 = arith.truncf %335 : vector<2x4x4xf32> to vector<2x4x4xbf16>
        %cst_148 = arith.constant dense<0.000000e+00> : vector<2x4x8xf32>
        %337 = tpu.matmul %336, %320, %cst_148 {dimension_numbers = #tpu.dot_dimension_numbers<[2], [1], [1], [2], [0, 0, 0, 1, 1, 2], [0], [0]>} : vector<2x4x4xbf16>, vector<2x4x8xbf16>, vector<2x4x8xf32> -> vector<2x4x8xf32>
        %338 = tpu.concatenate %176, %199, %222, %245, %268, %291, %314, %337 in 2 : vector<2x4x8xf32>, vector<2x4x8xf32>, vector<2x4x8xf32>, vector<2x4x8xf32>, vector<2x4x8xf32>, vector<2x4x8xf32>, vector<2x4x8xf32>, vector<2x4x8xf32> -> vector<2x4x64xf32>
        %339 = vector.shape_cast %338 : vector<2x4x64xf32> to vector<8x64xf32>
        %340 = arith.truncf %339 : vector<8x64xf32> to vector<8x64xbf16>
        %341 = arith.index_cast %arg43 : i32 to index
        %c0_149 = arith.constant 0 : index
        %c0_150 = arith.constant 0 : index
        %342 = vector.load %arg20[%341, %c0_149, %c0_150] : memref<8x64x64xbf16, #tpu.memory_space<vmem>>, vector<1x64x64xbf16>
        %343 = vector.shape_cast %342 : vector<1x64x64xbf16> to vector<64x64xbf16>
        %cst_151 = arith.constant dense<0.000000e+00> : vector<8x64xf32>
        %344 = tpu.matmul %340, %343, %cst_151 {dimension_numbers = #tpu.dot_dimension_numbers<[1], [0], [0], [1], [0, 0, 1, 1], [], []>} : vector<8x64xbf16>, vector<64x64xbf16>, vector<8x64xf32> -> vector<8x64xf32>
        %345 = arith.index_cast %arg43 : i32 to index
        %c0_152 = arith.constant 0 : index
        %c0_153 = arith.constant 0 : index
        %346 = vector.load %arg21[%345, %c0_152, %c0_153] : memref<8x1x64xf32, #tpu.memory_space<vmem>>, vector<1x1x64xf32>
        %347 = vector.shape_cast %346 : vector<1x1x64xf32> to vector<1x64xf32>
        %348 = vector.broadcast %347 : vector<1x64xf32> to vector<8x64xf32>
        %349 = arith.addf %344, %348 : vector<8x64xf32>
        %350 = arith.index_cast %arg43 : i32 to index
        %c0_154 = arith.constant 0 : index
        %c0_155 = arith.constant 0 : index
        %351 = vector.load %arg22[%350, %c0_154, %c0_155] : memref<8x1x64xf32, #tpu.memory_space<vmem>>, vector<1x1x64xf32>
        %352 = vector.shape_cast %351 : vector<1x1x64xf32> to vector<1x64xf32>
        %353 = arith.index_cast %arg43 : i32 to index
        %c0_156 = arith.constant 0 : index
        %c0_157 = arith.constant 0 : index
        %354 = vector.load %arg23[%353, %c0_156, %c0_157] : memref<8x1x64xf32, #tpu.memory_space<vmem>>, vector<1x1x64xf32>
        %355 = vector.shape_cast %354 : vector<1x1x64xf32> to vector<1x64xf32>
        %356 = arith.addf %349, %arg44 : vector<8x64xf32>
        %cst_158 = arith.constant dense<0.000000e+00> : vector<8xf32>
        %357 = vector.multi_reduction <add>, %356, %cst_158 [1] : vector<8x64xf32> to vector<8xf32>
        %358 = vector.shape_cast %357 : vector<8xf32> to vector<8x1xf32>
        %cst_159 = arith.constant 6.400000e+01 : f32
        %359 = vector.broadcast %cst_159 : f32 to vector<8x1xf32>
        %360 = arith.divf %358, %359 : vector<8x1xf32>
        %361 = vector.broadcast %360 : vector<8x1xf32> to vector<8x64xf32>
        %362 = arith.subf %356, %361 : vector<8x64xf32>
        %363 = arith.mulf %362, %362 : vector<8x64xf32>
        %cst_160 = arith.constant dense<0.000000e+00> : vector<8xf32>
        %364 = vector.multi_reduction <add>, %363, %cst_160 [1] : vector<8x64xf32> to vector<8xf32>
        %365 = vector.shape_cast %364 : vector<8xf32> to vector<8x1xf32>
        %cst_161 = arith.constant 6.400000e+01 : f32
        %366 = vector.broadcast %cst_161 : f32 to vector<8x1xf32>
        %367 = arith.divf %365, %366 : vector<8x1xf32>
        %cst_162 = arith.constant 9.99999974E-6 : f32
        %368 = vector.broadcast %cst_162 : f32 to vector<8x1xf32>
        %369 = arith.addf %367, %368 : vector<8x1xf32>
        %370 = math.rsqrt %369 : vector<8x1xf32>
        %371 = vector.broadcast %370 : vector<8x1xf32> to vector<8x64xf32>
        %372 = arith.mulf %362, %371 : vector<8x64xf32>
        %373 = vector.broadcast %352 : vector<1x64xf32> to vector<8x64xf32>
        %374 = arith.mulf %372, %373 : vector<8x64xf32>
        %375 = vector.broadcast %355 : vector<1x64xf32> to vector<8x64xf32>
        %376 = arith.addf %374, %375 : vector<8x64xf32>
        %377 = arith.truncf %376 : vector<8x64xf32> to vector<8x64xbf16>
        %378 = arith.index_cast %arg43 : i32 to index
        %c0_163 = arith.constant 0 : index
        %c0_164 = arith.constant 0 : index
        %379 = vector.load %arg24[%378, %c0_163, %c0_164] : memref<8x64x64xbf16, #tpu.memory_space<vmem>>, vector<1x64x64xbf16>
        %380 = vector.shape_cast %379 : vector<1x64x64xbf16> to vector<64x64xbf16>
        %cst_165 = arith.constant dense<0.000000e+00> : vector<8x64xf32>
        %381 = tpu.matmul %377, %380, %cst_165 {dimension_numbers = #tpu.dot_dimension_numbers<[1], [0], [0], [1], [0, 0, 1, 1], [], []>} : vector<8x64xbf16>, vector<64x64xbf16>, vector<8x64xf32> -> vector<8x64xf32>
        %382 = arith.index_cast %arg43 : i32 to index
        %c0_166 = arith.constant 0 : index
        %c0_167 = arith.constant 0 : index
        %383 = vector.load %arg25[%382, %c0_166, %c0_167] : memref<8x1x64xf32, #tpu.memory_space<vmem>>, vector<1x1x64xf32>
        %384 = vector.shape_cast %383 : vector<1x1x64xf32> to vector<1x64xf32>
        %385 = vector.broadcast %384 : vector<1x64xf32> to vector<8x64xf32>
        %386 = arith.addf %381, %385 : vector<8x64xf32>
        %387 = arith.index_cast %arg43 : i32 to index
        %c0_168 = arith.constant 0 : index
        %c0_169 = arith.constant 0 : index
        %388 = vector.load %arg39[%387, %c0_168, %c0_169] : memref<8x16x128xf32, #tpu.memory_space<vmem>>, vector<1x16x128xf32>
        %389 = vector.shape_cast %388 : vector<1x16x128xf32> to vector<16x128xf32>
        %390 = vector.extract_strided_slice %389 {offsets = [0, 0], sizes = [16, 64], strides = [1, 1]} : vector<16x128xf32> to vector<16x64xf32>
        %391 = vector.extract_strided_slice %389 {offsets = [0, 64], sizes = [16, 64], strides = [1, 1]} : vector<16x128xf32> to vector<16x64xf32>
        %392 = vector.shape_cast %386 : vector<8x64xf32> to vector<2x4x64xf32>
        %393 = vector.shape_cast %390 : vector<16x64xf32> to vector<2x8x64xf32>
        %394 = vector.shape_cast %391 : vector<16x64xf32> to vector<2x8x64xf32>
        %395 = vector.extract_strided_slice %392 {offsets = [0, 0, 0], sizes = [2, 4, 8], strides = [1, 1, 1]} : vector<2x4x64xf32> to vector<2x4x8xf32>
        %396 = arith.truncf %395 : vector<2x4x8xf32> to vector<2x4x8xbf16>
        %397 = vector.extract_strided_slice %393 {offsets = [0, 0, 0], sizes = [2, 8, 8], strides = [1, 1, 1]} : vector<2x8x64xf32> to vector<2x8x8xf32>
        %398 = arith.truncf %397 : vector<2x8x8xf32> to vector<2x8x8xbf16>
        %399 = vector.extract_strided_slice %394 {offsets = [0, 0, 0], sizes = [2, 8, 8], strides = [1, 1, 1]} : vector<2x8x64xf32> to vector<2x8x8xf32>
        %400 = arith.truncf %399 : vector<2x8x8xf32> to vector<2x8x8xbf16>
        %cst_170 = arith.constant dense<0.000000e+00> : vector<2x4x8xf32>
        %401 = tpu.matmul %396, %398, %cst_170 {dimension_numbers = #tpu.dot_dimension_numbers<[2], [2], [1], [1], [0, 0, 0, 1, 1, 1], [0], [0]>} : vector<2x4x8xbf16>, vector<2x8x8xbf16>, vector<2x4x8xf32> -> vector<2x4x8xf32>
        %cst_171 = arith.constant 0.353553385 : f32
        %402 = vector.broadcast %cst_171 : f32 to vector<2x4x8xf32>
        %403 = arith.mulf %401, %402 : vector<2x4x8xf32>
        %cst_172 = arith.constant dense<0xFF800000> : vector<2x4xf32>
        %404 = vector.multi_reduction <maximumf>, %403, %cst_172 [2] : vector<2x4x8xf32> to vector<2x4xf32>
        %405 = vector.shape_cast %404 : vector<2x4xf32> to vector<2x4x1xf32>
        %406 = vector.broadcast %405 : vector<2x4x1xf32> to vector<2x4x8xf32>
        %407 = arith.subf %403, %406 : vector<2x4x8xf32>
        %408 = math.exp %407 : vector<2x4x8xf32>
        %cst_173 = arith.constant dense<0.000000e+00> : vector<2x4xf32>
        %409 = vector.multi_reduction <add>, %408, %cst_173 [2] : vector<2x4x8xf32> to vector<2x4xf32>
        %410 = vector.shape_cast %409 : vector<2x4xf32> to vector<2x4x1xf32>
        %411 = tpu.reciprocal %410 : vector<2x4x1xf32> -> vector<2x4x1xf32>
        %412 = vector.broadcast %411 : vector<2x4x1xf32> to vector<2x4x8xf32>
        %413 = arith.mulf %408, %412 : vector<2x4x8xf32>
        %414 = arith.truncf %413 : vector<2x4x8xf32> to vector<2x4x8xbf16>
        %cst_174 = arith.constant dense<0.000000e+00> : vector<2x4x8xf32>
        %415 = tpu.matmul %414, %400, %cst_174 {dimension_numbers = #tpu.dot_dimension_numbers<[2], [1], [1], [2], [0, 0, 0, 1, 1, 2], [0], [0]>} : vector<2x4x8xbf16>, vector<2x8x8xbf16>, vector<2x4x8xf32> -> vector<2x4x8xf32>
        %416 = vector.extract_strided_slice %392 {offsets = [0, 0, 8], sizes = [2, 4, 8], strides = [1, 1, 1]} : vector<2x4x64xf32> to vector<2x4x8xf32>
        %417 = arith.truncf %416 : vector<2x4x8xf32> to vector<2x4x8xbf16>
        %418 = vector.extract_strided_slice %393 {offsets = [0, 0, 8], sizes = [2, 8, 8], strides = [1, 1, 1]} : vector<2x8x64xf32> to vector<2x8x8xf32>
        %419 = arith.truncf %418 : vector<2x8x8xf32> to vector<2x8x8xbf16>
        %420 = vector.extract_strided_slice %394 {offsets = [0, 0, 8], sizes = [2, 8, 8], strides = [1, 1, 1]} : vector<2x8x64xf32> to vector<2x8x8xf32>
        %421 = arith.truncf %420 : vector<2x8x8xf32> to vector<2x8x8xbf16>
        %cst_175 = arith.constant dense<0.000000e+00> : vector<2x4x8xf32>
        %422 = tpu.matmul %417, %419, %cst_175 {dimension_numbers = #tpu.dot_dimension_numbers<[2], [2], [1], [1], [0, 0, 0, 1, 1, 1], [0], [0]>} : vector<2x4x8xbf16>, vector<2x8x8xbf16>, vector<2x4x8xf32> -> vector<2x4x8xf32>
        %cst_176 = arith.constant 0.353553385 : f32
        %423 = vector.broadcast %cst_176 : f32 to vector<2x4x8xf32>
        %424 = arith.mulf %422, %423 : vector<2x4x8xf32>
        %cst_177 = arith.constant dense<0xFF800000> : vector<2x4xf32>
        %425 = vector.multi_reduction <maximumf>, %424, %cst_177 [2] : vector<2x4x8xf32> to vector<2x4xf32>
        %426 = vector.shape_cast %425 : vector<2x4xf32> to vector<2x4x1xf32>
        %427 = vector.broadcast %426 : vector<2x4x1xf32> to vector<2x4x8xf32>
        %428 = arith.subf %424, %427 : vector<2x4x8xf32>
        %429 = math.exp %428 : vector<2x4x8xf32>
        %cst_178 = arith.constant dense<0.000000e+00> : vector<2x4xf32>
        %430 = vector.multi_reduction <add>, %429, %cst_178 [2] : vector<2x4x8xf32> to vector<2x4xf32>
        %431 = vector.shape_cast %430 : vector<2x4xf32> to vector<2x4x1xf32>
        %432 = tpu.reciprocal %431 : vector<2x4x1xf32> -> vector<2x4x1xf32>
        %433 = vector.broadcast %432 : vector<2x4x1xf32> to vector<2x4x8xf32>
        %434 = arith.mulf %429, %433 : vector<2x4x8xf32>
        %435 = arith.truncf %434 : vector<2x4x8xf32> to vector<2x4x8xbf16>
        %cst_179 = arith.constant dense<0.000000e+00> : vector<2x4x8xf32>
        %436 = tpu.matmul %435, %421, %cst_179 {dimension_numbers = #tpu.dot_dimension_numbers<[2], [1], [1], [2], [0, 0, 0, 1, 1, 2], [0], [0]>} : vector<2x4x8xbf16>, vector<2x8x8xbf16>, vector<2x4x8xf32> -> vector<2x4x8xf32>
        %437 = vector.extract_strided_slice %392 {offsets = [0, 0, 16], sizes = [2, 4, 8], strides = [1, 1, 1]} : vector<2x4x64xf32> to vector<2x4x8xf32>
        %438 = arith.truncf %437 : vector<2x4x8xf32> to vector<2x4x8xbf16>
        %439 = vector.extract_strided_slice %393 {offsets = [0, 0, 16], sizes = [2, 8, 8], strides = [1, 1, 1]} : vector<2x8x64xf32> to vector<2x8x8xf32>
        %440 = arith.truncf %439 : vector<2x8x8xf32> to vector<2x8x8xbf16>
        %441 = vector.extract_strided_slice %394 {offsets = [0, 0, 16], sizes = [2, 8, 8], strides = [1, 1, 1]} : vector<2x8x64xf32> to vector<2x8x8xf32>
        %442 = arith.truncf %441 : vector<2x8x8xf32> to vector<2x8x8xbf16>
        %cst_180 = arith.constant dense<0.000000e+00> : vector<2x4x8xf32>
        %443 = tpu.matmul %438, %440, %cst_180 {dimension_numbers = #tpu.dot_dimension_numbers<[2], [2], [1], [1], [0, 0, 0, 1, 1, 1], [0], [0]>} : vector<2x4x8xbf16>, vector<2x8x8xbf16>, vector<2x4x8xf32> -> vector<2x4x8xf32>
        %cst_181 = arith.constant 0.353553385 : f32
        %444 = vector.broadcast %cst_181 : f32 to vector<2x4x8xf32>
        %445 = arith.mulf %443, %444 : vector<2x4x8xf32>
        %cst_182 = arith.constant dense<0xFF800000> : vector<2x4xf32>
        %446 = vector.multi_reduction <maximumf>, %445, %cst_182 [2] : vector<2x4x8xf32> to vector<2x4xf32>
        %447 = vector.shape_cast %446 : vector<2x4xf32> to vector<2x4x1xf32>
        %448 = vector.broadcast %447 : vector<2x4x1xf32> to vector<2x4x8xf32>
        %449 = arith.subf %445, %448 : vector<2x4x8xf32>
        %450 = math.exp %449 : vector<2x4x8xf32>
        %cst_183 = arith.constant dense<0.000000e+00> : vector<2x4xf32>
        %451 = vector.multi_reduction <add>, %450, %cst_183 [2] : vector<2x4x8xf32> to vector<2x4xf32>
        %452 = vector.shape_cast %451 : vector<2x4xf32> to vector<2x4x1xf32>
        %453 = tpu.reciprocal %452 : vector<2x4x1xf32> -> vector<2x4x1xf32>
        %454 = vector.broadcast %453 : vector<2x4x1xf32> to vector<2x4x8xf32>
        %455 = arith.mulf %450, %454 : vector<2x4x8xf32>
        %456 = arith.truncf %455 : vector<2x4x8xf32> to vector<2x4x8xbf16>
        %cst_184 = arith.constant dense<0.000000e+00> : vector<2x4x8xf32>
        %457 = tpu.matmul %456, %442, %cst_184 {dimension_numbers = #tpu.dot_dimension_numbers<[2], [1], [1], [2], [0, 0, 0, 1, 1, 2], [0], [0]>} : vector<2x4x8xbf16>, vector<2x8x8xbf16>, vector<2x4x8xf32> -> vector<2x4x8xf32>
        %458 = vector.extract_strided_slice %392 {offsets = [0, 0, 24], sizes = [2, 4, 8], strides = [1, 1, 1]} : vector<2x4x64xf32> to vector<2x4x8xf32>
        %459 = arith.truncf %458 : vector<2x4x8xf32> to vector<2x4x8xbf16>
        %460 = vector.extract_strided_slice %393 {offsets = [0, 0, 24], sizes = [2, 8, 8], strides = [1, 1, 1]} : vector<2x8x64xf32> to vector<2x8x8xf32>
        %461 = arith.truncf %460 : vector<2x8x8xf32> to vector<2x8x8xbf16>
        %462 = vector.extract_strided_slice %394 {offsets = [0, 0, 24], sizes = [2, 8, 8], strides = [1, 1, 1]} : vector<2x8x64xf32> to vector<2x8x8xf32>
        %463 = arith.truncf %462 : vector<2x8x8xf32> to vector<2x8x8xbf16>
        %cst_185 = arith.constant dense<0.000000e+00> : vector<2x4x8xf32>
        %464 = tpu.matmul %459, %461, %cst_185 {dimension_numbers = #tpu.dot_dimension_numbers<[2], [2], [1], [1], [0, 0, 0, 1, 1, 1], [0], [0]>} : vector<2x4x8xbf16>, vector<2x8x8xbf16>, vector<2x4x8xf32> -> vector<2x4x8xf32>
        %cst_186 = arith.constant 0.353553385 : f32
        %465 = vector.broadcast %cst_186 : f32 to vector<2x4x8xf32>
        %466 = arith.mulf %464, %465 : vector<2x4x8xf32>
        %cst_187 = arith.constant dense<0xFF800000> : vector<2x4xf32>
        %467 = vector.multi_reduction <maximumf>, %466, %cst_187 [2] : vector<2x4x8xf32> to vector<2x4xf32>
        %468 = vector.shape_cast %467 : vector<2x4xf32> to vector<2x4x1xf32>
        %469 = vector.broadcast %468 : vector<2x4x1xf32> to vector<2x4x8xf32>
        %470 = arith.subf %466, %469 : vector<2x4x8xf32>
        %471 = math.exp %470 : vector<2x4x8xf32>
        %cst_188 = arith.constant dense<0.000000e+00> : vector<2x4xf32>
        %472 = vector.multi_reduction <add>, %471, %cst_188 [2] : vector<2x4x8xf32> to vector<2x4xf32>
        %473 = vector.shape_cast %472 : vector<2x4xf32> to vector<2x4x1xf32>
        %474 = tpu.reciprocal %473 : vector<2x4x1xf32> -> vector<2x4x1xf32>
        %475 = vector.broadcast %474 : vector<2x4x1xf32> to vector<2x4x8xf32>
        %476 = arith.mulf %471, %475 : vector<2x4x8xf32>
        %477 = arith.truncf %476 : vector<2x4x8xf32> to vector<2x4x8xbf16>
        %cst_189 = arith.constant dense<0.000000e+00> : vector<2x4x8xf32>
        %478 = tpu.matmul %477, %463, %cst_189 {dimension_numbers = #tpu.dot_dimension_numbers<[2], [1], [1], [2], [0, 0, 0, 1, 1, 2], [0], [0]>} : vector<2x4x8xbf16>, vector<2x8x8xbf16>, vector<2x4x8xf32> -> vector<2x4x8xf32>
        %479 = vector.extract_strided_slice %392 {offsets = [0, 0, 32], sizes = [2, 4, 8], strides = [1, 1, 1]} : vector<2x4x64xf32> to vector<2x4x8xf32>
        %480 = arith.truncf %479 : vector<2x4x8xf32> to vector<2x4x8xbf16>
        %481 = vector.extract_strided_slice %393 {offsets = [0, 0, 32], sizes = [2, 8, 8], strides = [1, 1, 1]} : vector<2x8x64xf32> to vector<2x8x8xf32>
        %482 = arith.truncf %481 : vector<2x8x8xf32> to vector<2x8x8xbf16>
        %483 = vector.extract_strided_slice %394 {offsets = [0, 0, 32], sizes = [2, 8, 8], strides = [1, 1, 1]} : vector<2x8x64xf32> to vector<2x8x8xf32>
        %484 = arith.truncf %483 : vector<2x8x8xf32> to vector<2x8x8xbf16>
        %cst_190 = arith.constant dense<0.000000e+00> : vector<2x4x8xf32>
        %485 = tpu.matmul %480, %482, %cst_190 {dimension_numbers = #tpu.dot_dimension_numbers<[2], [2], [1], [1], [0, 0, 0, 1, 1, 1], [0], [0]>} : vector<2x4x8xbf16>, vector<2x8x8xbf16>, vector<2x4x8xf32> -> vector<2x4x8xf32>
        %cst_191 = arith.constant 0.353553385 : f32
        %486 = vector.broadcast %cst_191 : f32 to vector<2x4x8xf32>
        %487 = arith.mulf %485, %486 : vector<2x4x8xf32>
        %cst_192 = arith.constant dense<0xFF800000> : vector<2x4xf32>
        %488 = vector.multi_reduction <maximumf>, %487, %cst_192 [2] : vector<2x4x8xf32> to vector<2x4xf32>
        %489 = vector.shape_cast %488 : vector<2x4xf32> to vector<2x4x1xf32>
        %490 = vector.broadcast %489 : vector<2x4x1xf32> to vector<2x4x8xf32>
        %491 = arith.subf %487, %490 : vector<2x4x8xf32>
        %492 = math.exp %491 : vector<2x4x8xf32>
        %cst_193 = arith.constant dense<0.000000e+00> : vector<2x4xf32>
        %493 = vector.multi_reduction <add>, %492, %cst_193 [2] : vector<2x4x8xf32> to vector<2x4xf32>
        %494 = vector.shape_cast %493 : vector<2x4xf32> to vector<2x4x1xf32>
        %495 = tpu.reciprocal %494 : vector<2x4x1xf32> -> vector<2x4x1xf32>
        %496 = vector.broadcast %495 : vector<2x4x1xf32> to vector<2x4x8xf32>
        %497 = arith.mulf %492, %496 : vector<2x4x8xf32>
        %498 = arith.truncf %497 : vector<2x4x8xf32> to vector<2x4x8xbf16>
        %cst_194 = arith.constant dense<0.000000e+00> : vector<2x4x8xf32>
        %499 = tpu.matmul %498, %484, %cst_194 {dimension_numbers = #tpu.dot_dimension_numbers<[2], [1], [1], [2], [0, 0, 0, 1, 1, 2], [0], [0]>} : vector<2x4x8xbf16>, vector<2x8x8xbf16>, vector<2x4x8xf32> -> vector<2x4x8xf32>
        %500 = vector.extract_strided_slice %392 {offsets = [0, 0, 40], sizes = [2, 4, 8], strides = [1, 1, 1]} : vector<2x4x64xf32> to vector<2x4x8xf32>
        %501 = arith.truncf %500 : vector<2x4x8xf32> to vector<2x4x8xbf16>
        %502 = vector.extract_strided_slice %393 {offsets = [0, 0, 40], sizes = [2, 8, 8], strides = [1, 1, 1]} : vector<2x8x64xf32> to vector<2x8x8xf32>
        %503 = arith.truncf %502 : vector<2x8x8xf32> to vector<2x8x8xbf16>
        %504 = vector.extract_strided_slice %394 {offsets = [0, 0, 40], sizes = [2, 8, 8], strides = [1, 1, 1]} : vector<2x8x64xf32> to vector<2x8x8xf32>
        %505 = arith.truncf %504 : vector<2x8x8xf32> to vector<2x8x8xbf16>
        %cst_195 = arith.constant dense<0.000000e+00> : vector<2x4x8xf32>
        %506 = tpu.matmul %501, %503, %cst_195 {dimension_numbers = #tpu.dot_dimension_numbers<[2], [2], [1], [1], [0, 0, 0, 1, 1, 1], [0], [0]>} : vector<2x4x8xbf16>, vector<2x8x8xbf16>, vector<2x4x8xf32> -> vector<2x4x8xf32>
        %cst_196 = arith.constant 0.353553385 : f32
        %507 = vector.broadcast %cst_196 : f32 to vector<2x4x8xf32>
        %508 = arith.mulf %506, %507 : vector<2x4x8xf32>
        %cst_197 = arith.constant dense<0xFF800000> : vector<2x4xf32>
        %509 = vector.multi_reduction <maximumf>, %508, %cst_197 [2] : vector<2x4x8xf32> to vector<2x4xf32>
        %510 = vector.shape_cast %509 : vector<2x4xf32> to vector<2x4x1xf32>
        %511 = vector.broadcast %510 : vector<2x4x1xf32> to vector<2x4x8xf32>
        %512 = arith.subf %508, %511 : vector<2x4x8xf32>
        %513 = math.exp %512 : vector<2x4x8xf32>
        %cst_198 = arith.constant dense<0.000000e+00> : vector<2x4xf32>
        %514 = vector.multi_reduction <add>, %513, %cst_198 [2] : vector<2x4x8xf32> to vector<2x4xf32>
        %515 = vector.shape_cast %514 : vector<2x4xf32> to vector<2x4x1xf32>
        %516 = tpu.reciprocal %515 : vector<2x4x1xf32> -> vector<2x4x1xf32>
        %517 = vector.broadcast %516 : vector<2x4x1xf32> to vector<2x4x8xf32>
        %518 = arith.mulf %513, %517 : vector<2x4x8xf32>
        %519 = arith.truncf %518 : vector<2x4x8xf32> to vector<2x4x8xbf16>
        %cst_199 = arith.constant dense<0.000000e+00> : vector<2x4x8xf32>
        %520 = tpu.matmul %519, %505, %cst_199 {dimension_numbers = #tpu.dot_dimension_numbers<[2], [1], [1], [2], [0, 0, 0, 1, 1, 2], [0], [0]>} : vector<2x4x8xbf16>, vector<2x8x8xbf16>, vector<2x4x8xf32> -> vector<2x4x8xf32>
        %521 = vector.extract_strided_slice %392 {offsets = [0, 0, 48], sizes = [2, 4, 8], strides = [1, 1, 1]} : vector<2x4x64xf32> to vector<2x4x8xf32>
        %522 = arith.truncf %521 : vector<2x4x8xf32> to vector<2x4x8xbf16>
        %523 = vector.extract_strided_slice %393 {offsets = [0, 0, 48], sizes = [2, 8, 8], strides = [1, 1, 1]} : vector<2x8x64xf32> to vector<2x8x8xf32>
        %524 = arith.truncf %523 : vector<2x8x8xf32> to vector<2x8x8xbf16>
        %525 = vector.extract_strided_slice %394 {offsets = [0, 0, 48], sizes = [2, 8, 8], strides = [1, 1, 1]} : vector<2x8x64xf32> to vector<2x8x8xf32>
        %526 = arith.truncf %525 : vector<2x8x8xf32> to vector<2x8x8xbf16>
        %cst_200 = arith.constant dense<0.000000e+00> : vector<2x4x8xf32>
        %527 = tpu.matmul %522, %524, %cst_200 {dimension_numbers = #tpu.dot_dimension_numbers<[2], [2], [1], [1], [0, 0, 0, 1, 1, 1], [0], [0]>} : vector<2x4x8xbf16>, vector<2x8x8xbf16>, vector<2x4x8xf32> -> vector<2x4x8xf32>
        %cst_201 = arith.constant 0.353553385 : f32
        %528 = vector.broadcast %cst_201 : f32 to vector<2x4x8xf32>
        %529 = arith.mulf %527, %528 : vector<2x4x8xf32>
        %cst_202 = arith.constant dense<0xFF800000> : vector<2x4xf32>
        %530 = vector.multi_reduction <maximumf>, %529, %cst_202 [2] : vector<2x4x8xf32> to vector<2x4xf32>
        %531 = vector.shape_cast %530 : vector<2x4xf32> to vector<2x4x1xf32>
        %532 = vector.broadcast %531 : vector<2x4x1xf32> to vector<2x4x8xf32>
        %533 = arith.subf %529, %532 : vector<2x4x8xf32>
        %534 = math.exp %533 : vector<2x4x8xf32>
        %cst_203 = arith.constant dense<0.000000e+00> : vector<2x4xf32>
        %535 = vector.multi_reduction <add>, %534, %cst_203 [2] : vector<2x4x8xf32> to vector<2x4xf32>
        %536 = vector.shape_cast %535 : vector<2x4xf32> to vector<2x4x1xf32>
        %537 = tpu.reciprocal %536 : vector<2x4x1xf32> -> vector<2x4x1xf32>
        %538 = vector.broadcast %537 : vector<2x4x1xf32> to vector<2x4x8xf32>
        %539 = arith.mulf %534, %538 : vector<2x4x8xf32>
        %540 = arith.truncf %539 : vector<2x4x8xf32> to vector<2x4x8xbf16>
        %cst_204 = arith.constant dense<0.000000e+00> : vector<2x4x8xf32>
        %541 = tpu.matmul %540, %526, %cst_204 {dimension_numbers = #tpu.dot_dimension_numbers<[2], [1], [1], [2], [0, 0, 0, 1, 1, 2], [0], [0]>} : vector<2x4x8xbf16>, vector<2x8x8xbf16>, vector<2x4x8xf32> -> vector<2x4x8xf32>
        %542 = vector.extract_strided_slice %392 {offsets = [0, 0, 56], sizes = [2, 4, 8], strides = [1, 1, 1]} : vector<2x4x64xf32> to vector<2x4x8xf32>
        %543 = arith.truncf %542 : vector<2x4x8xf32> to vector<2x4x8xbf16>
        %544 = vector.extract_strided_slice %393 {offsets = [0, 0, 56], sizes = [2, 8, 8], strides = [1, 1, 1]} : vector<2x8x64xf32> to vector<2x8x8xf32>
        %545 = arith.truncf %544 : vector<2x8x8xf32> to vector<2x8x8xbf16>
        %546 = vector.extract_strided_slice %394 {offsets = [0, 0, 56], sizes = [2, 8, 8], strides = [1, 1, 1]} : vector<2x8x64xf32> to vector<2x8x8xf32>
        %547 = arith.truncf %546 : vector<2x8x8xf32> to vector<2x8x8xbf16>
        %cst_205 = arith.constant dense<0.000000e+00> : vector<2x4x8xf32>
        %548 = tpu.matmul %543, %545, %cst_205 {dimension_numbers = #tpu.dot_dimension_numbers<[2], [2], [1], [1], [0, 0, 0, 1, 1, 1], [0], [0]>} : vector<2x4x8xbf16>, vector<2x8x8xbf16>, vector<2x4x8xf32> -> vector<2x4x8xf32>
        %cst_206 = arith.constant 0.353553385 : f32
        %549 = vector.broadcast %cst_206 : f32 to vector<2x4x8xf32>
        %550 = arith.mulf %548, %549 : vector<2x4x8xf32>
        %cst_207 = arith.constant dense<0xFF800000> : vector<2x4xf32>
        %551 = vector.multi_reduction <maximumf>, %550, %cst_207 [2] : vector<2x4x8xf32> to vector<2x4xf32>
        %552 = vector.shape_cast %551 : vector<2x4xf32> to vector<2x4x1xf32>
        %553 = vector.broadcast %552 : vector<2x4x1xf32> to vector<2x4x8xf32>
        %554 = arith.subf %550, %553 : vector<2x4x8xf32>
        %555 = math.exp %554 : vector<2x4x8xf32>
        %cst_208 = arith.constant dense<0.000000e+00> : vector<2x4xf32>
        %556 = vector.multi_reduction <add>, %555, %cst_208 [2] : vector<2x4x8xf32> to vector<2x4xf32>
        %557 = vector.shape_cast %556 : vector<2x4xf32> to vector<2x4x1xf32>
        %558 = tpu.reciprocal %557 : vector<2x4x1xf32> -> vector<2x4x1xf32>
        %559 = vector.broadcast %558 : vector<2x4x1xf32> to vector<2x4x8xf32>
        %560 = arith.mulf %555, %559 : vector<2x4x8xf32>
        %561 = arith.truncf %560 : vector<2x4x8xf32> to vector<2x4x8xbf16>
        %cst_209 = arith.constant dense<0.000000e+00> : vector<2x4x8xf32>
        %562 = tpu.matmul %561, %547, %cst_209 {dimension_numbers = #tpu.dot_dimension_numbers<[2], [1], [1], [2], [0, 0, 0, 1, 1, 2], [0], [0]>} : vector<2x4x8xbf16>, vector<2x8x8xbf16>, vector<2x4x8xf32> -> vector<2x4x8xf32>
        %563 = tpu.concatenate %415, %436, %457, %478, %499, %520, %541, %562 in 2 : vector<2x4x8xf32>, vector<2x4x8xf32>, vector<2x4x8xf32>, vector<2x4x8xf32>, vector<2x4x8xf32>, vector<2x4x8xf32>, vector<2x4x8xf32>, vector<2x4x8xf32> -> vector<2x4x64xf32>
        %564 = vector.shape_cast %563 : vector<2x4x64xf32> to vector<8x64xf32>
        %565 = arith.truncf %564 : vector<8x64xf32> to vector<8x64xbf16>
        %566 = arith.index_cast %arg43 : i32 to index
        %c0_210 = arith.constant 0 : index
        %c0_211 = arith.constant 0 : index
        %567 = vector.load %arg28[%566, %c0_210, %c0_211] : memref<8x64x64xbf16, #tpu.memory_space<vmem>>, vector<1x64x64xbf16>
        %568 = vector.shape_cast %567 : vector<1x64x64xbf16> to vector<64x64xbf16>
        %cst_212 = arith.constant dense<0.000000e+00> : vector<8x64xf32>
        %569 = tpu.matmul %565, %568, %cst_212 {dimension_numbers = #tpu.dot_dimension_numbers<[1], [0], [0], [1], [0, 0, 1, 1], [], []>} : vector<8x64xbf16>, vector<64x64xbf16>, vector<8x64xf32> -> vector<8x64xf32>
        %570 = arith.index_cast %arg43 : i32 to index
        %c0_213 = arith.constant 0 : index
        %c0_214 = arith.constant 0 : index
        %571 = vector.load %arg29[%570, %c0_213, %c0_214] : memref<8x1x64xf32, #tpu.memory_space<vmem>>, vector<1x1x64xf32>
        %572 = vector.shape_cast %571 : vector<1x1x64xf32> to vector<1x64xf32>
        %573 = vector.broadcast %572 : vector<1x64xf32> to vector<8x64xf32>
        %574 = arith.addf %569, %573 : vector<8x64xf32>
        %575 = arith.index_cast %arg43 : i32 to index
        %c0_215 = arith.constant 0 : index
        %c0_216 = arith.constant 0 : index
        %576 = vector.load %arg30[%575, %c0_215, %c0_216] : memref<8x1x64xf32, #tpu.memory_space<vmem>>, vector<1x1x64xf32>
        %577 = vector.shape_cast %576 : vector<1x1x64xf32> to vector<1x64xf32>
        %578 = arith.index_cast %arg43 : i32 to index
        %c0_217 = arith.constant 0 : index
        %c0_218 = arith.constant 0 : index
        %579 = vector.load %arg31[%578, %c0_217, %c0_218] : memref<8x1x64xf32, #tpu.memory_space<vmem>>, vector<1x1x64xf32>
        %580 = vector.shape_cast %579 : vector<1x1x64xf32> to vector<1x64xf32>
        %581 = arith.addf %574, %376 : vector<8x64xf32>
        %cst_219 = arith.constant dense<0.000000e+00> : vector<8xf32>
        %582 = vector.multi_reduction <add>, %581, %cst_219 [1] : vector<8x64xf32> to vector<8xf32>
        %583 = vector.shape_cast %582 : vector<8xf32> to vector<8x1xf32>
        %cst_220 = arith.constant 6.400000e+01 : f32
        %584 = vector.broadcast %cst_220 : f32 to vector<8x1xf32>
        %585 = arith.divf %583, %584 : vector<8x1xf32>
        %586 = vector.broadcast %585 : vector<8x1xf32> to vector<8x64xf32>
        %587 = arith.subf %581, %586 : vector<8x64xf32>
        %588 = arith.mulf %587, %587 : vector<8x64xf32>
        %cst_221 = arith.constant dense<0.000000e+00> : vector<8xf32>
        %589 = vector.multi_reduction <add>, %588, %cst_221 [1] : vector<8x64xf32> to vector<8xf32>
        %590 = vector.shape_cast %589 : vector<8xf32> to vector<8x1xf32>
        %cst_222 = arith.constant 6.400000e+01 : f32
        %591 = vector.broadcast %cst_222 : f32 to vector<8x1xf32>
        %592 = arith.divf %590, %591 : vector<8x1xf32>
        %cst_223 = arith.constant 9.99999974E-6 : f32
        %593 = vector.broadcast %cst_223 : f32 to vector<8x1xf32>
        %594 = arith.addf %592, %593 : vector<8x1xf32>
        %595 = math.rsqrt %594 : vector<8x1xf32>
        %596 = vector.broadcast %595 : vector<8x1xf32> to vector<8x64xf32>
        %597 = arith.mulf %587, %596 : vector<8x64xf32>
        %598 = vector.broadcast %577 : vector<1x64xf32> to vector<8x64xf32>
        %599 = arith.mulf %597, %598 : vector<8x64xf32>
        %600 = vector.broadcast %580 : vector<1x64xf32> to vector<8x64xf32>
        %601 = arith.addf %599, %600 : vector<8x64xf32>
        %602 = arith.truncf %601 : vector<8x64xf32> to vector<8x64xbf16>
        %603 = arith.index_cast %arg43 : i32 to index
        %c0_224 = arith.constant 0 : index
        %c0_225 = arith.constant 0 : index
        %604 = vector.load %arg32[%603, %c0_224, %c0_225] : memref<8x64x128xbf16, #tpu.memory_space<vmem>>, vector<1x64x128xbf16>
        %605 = vector.shape_cast %604 : vector<1x64x128xbf16> to vector<64x128xbf16>
        %cst_226 = arith.constant dense<0.000000e+00> : vector<8x128xf32>
        %606 = tpu.matmul %602, %605, %cst_226 {dimension_numbers = #tpu.dot_dimension_numbers<[1], [0], [0], [1], [0, 0, 1, 1], [], []>} : vector<8x64xbf16>, vector<64x128xbf16>, vector<8x128xf32> -> vector<8x128xf32>
        %607 = arith.index_cast %arg43 : i32 to index
        %c0_227 = arith.constant 0 : index
        %c0_228 = arith.constant 0 : index
        %608 = vector.load %arg33[%607, %c0_227, %c0_228] : memref<8x1x128xf32, #tpu.memory_space<vmem>>, vector<1x1x128xf32>
        %609 = vector.shape_cast %608 : vector<1x1x128xf32> to vector<1x128xf32>
        %610 = vector.broadcast %609 : vector<1x128xf32> to vector<8x128xf32>
        %611 = arith.addf %606, %610 : vector<8x128xf32>
        %cst_229 = arith.constant 0.000000e+00 : f32
        %612 = vector.broadcast %cst_229 : f32 to vector<8x128xf32>
        %613 = arith.maximumf %611, %612 : vector<8x128xf32>
        %614 = arith.truncf %613 : vector<8x128xf32> to vector<8x128xbf16>
        %615 = arith.index_cast %arg43 : i32 to index
        %c0_230 = arith.constant 0 : index
        %c0_231 = arith.constant 0 : index
        %616 = vector.load %arg34[%615, %c0_230, %c0_231] : memref<8x128x64xbf16, #tpu.memory_space<vmem>>, vector<1x128x64xbf16>
        %617 = vector.shape_cast %616 : vector<1x128x64xbf16> to vector<128x64xbf16>
        %cst_232 = arith.constant dense<0.000000e+00> : vector<8x64xf32>
        %618 = tpu.matmul %614, %617, %cst_232 {dimension_numbers = #tpu.dot_dimension_numbers<[1], [0], [0], [1], [0, 0, 1, 1], [], []>} : vector<8x128xbf16>, vector<128x64xbf16>, vector<8x64xf32> -> vector<8x64xf32>
        %619 = arith.index_cast %arg43 : i32 to index
        %c0_233 = arith.constant 0 : index
        %c0_234 = arith.constant 0 : index
        %620 = vector.load %arg35[%619, %c0_233, %c0_234] : memref<8x1x64xf32, #tpu.memory_space<vmem>>, vector<1x1x64xf32>
        %621 = vector.shape_cast %620 : vector<1x1x64xf32> to vector<1x64xf32>
        %622 = vector.broadcast %621 : vector<1x64xf32> to vector<8x64xf32>
        %623 = arith.addf %618, %622 : vector<8x64xf32>
        %624 = arith.index_cast %arg43 : i32 to index
        %c0_235 = arith.constant 0 : index
        %c0_236 = arith.constant 0 : index
        %625 = vector.load %arg36[%624, %c0_235, %c0_236] : memref<8x1x64xf32, #tpu.memory_space<vmem>>, vector<1x1x64xf32>
        %626 = vector.shape_cast %625 : vector<1x1x64xf32> to vector<1x64xf32>
        %627 = arith.index_cast %arg43 : i32 to index
        %c0_237 = arith.constant 0 : index
        %c0_238 = arith.constant 0 : index
        %628 = vector.load %arg37[%627, %c0_237, %c0_238] : memref<8x1x64xf32, #tpu.memory_space<vmem>>, vector<1x1x64xf32>
        %629 = vector.shape_cast %628 : vector<1x1x64xf32> to vector<1x64xf32>
        %630 = arith.addf %623, %601 : vector<8x64xf32>
        %cst_239 = arith.constant dense<0.000000e+00> : vector<8xf32>
        %631 = vector.multi_reduction <add>, %630, %cst_239 [1] : vector<8x64xf32> to vector<8xf32>
        %632 = vector.shape_cast %631 : vector<8xf32> to vector<8x1xf32>
        %cst_240 = arith.constant 6.400000e+01 : f32
        %633 = vector.broadcast %cst_240 : f32 to vector<8x1xf32>
        %634 = arith.divf %632, %633 : vector<8x1xf32>
        %635 = vector.broadcast %634 : vector<8x1xf32> to vector<8x64xf32>
        %636 = arith.subf %630, %635 : vector<8x64xf32>
        %637 = arith.mulf %636, %636 : vector<8x64xf32>
        %cst_241 = arith.constant dense<0.000000e+00> : vector<8xf32>
        %638 = vector.multi_reduction <add>, %637, %cst_241 [1] : vector<8x64xf32> to vector<8xf32>
        %639 = vector.shape_cast %638 : vector<8xf32> to vector<8x1xf32>
        %cst_242 = arith.constant 6.400000e+01 : f32
        %640 = vector.broadcast %cst_242 : f32 to vector<8x1xf32>
        %641 = arith.divf %639, %640 : vector<8x1xf32>
        %cst_243 = arith.constant 9.99999974E-6 : f32
        %642 = vector.broadcast %cst_243 : f32 to vector<8x1xf32>
        %643 = arith.addf %641, %642 : vector<8x1xf32>
        %644 = math.rsqrt %643 : vector<8x1xf32>
        %645 = vector.broadcast %644 : vector<8x1xf32> to vector<8x64xf32>
        %646 = arith.mulf %636, %645 : vector<8x64xf32>
        %647 = vector.broadcast %626 : vector<1x64xf32> to vector<8x64xf32>
        %648 = arith.mulf %646, %647 : vector<8x64xf32>
        %649 = vector.broadcast %629 : vector<1x64xf32> to vector<8x64xf32>
        %650 = arith.addf %648, %649 : vector<8x64xf32>
        scf.yield %650 : vector<8x64xf32>
      }
      %c8_i32_96 = arith.constant 8 : i32
      %103 = tpu.iota {dimensions = array<i32: 1>} : vector<2x4x64xi32>
      %104 = vector.broadcast %arg40 : i32 to vector<2x4x64xi32>
      %105 = arith.cmpi eq, %103, %104 : vector<2x4x64xi32>
      %106 = vector.shape_cast %102 : vector<8x64xf32> to vector<2x4x64xf32>
      %cst_97 = arith.constant 0.000000e+00 : f32
      %107 = vector.broadcast %cst_97 : f32 to vector<2x4x64xf32>
      %108 = arith.select %105, %106, %107 : vector<2x4x64xi1>, vector<2x4x64xf32>
      %cst_98 = arith.constant dense<0.000000e+00> : vector<2x64xf32>
      %109 = vector.multi_reduction <add>, %108, %cst_98 [1] : vector<2x4x64xf32> to vector<2x64xf32>
      %110 = arith.truncf %109 : vector<2x64xf32> to vector<2x64xbf16>
      %cst_99 = arith.constant dense<0.000000e+00> : vector<2x32xf32>
      %111 = tpu.matmul %110, %86, %cst_99 {dimension_numbers = #tpu.dot_dimension_numbers<[1], [0], [0], [1], [0, 0, 1, 1], [], []>} : vector<2x64xbf16>, vector<64x32xbf16>, vector<2x32xf32> -> vector<2x32xf32>
      %112 = vector.broadcast %87 : vector<1x32xf32> to vector<2x32xf32>
      %113 = arith.addf %111, %112 : vector<2x32xf32>
      %114 = tpu.iota {dimensions = array<i32: 1>} : vector<2x32xi32>
      %115 = arith.sitofp %114 : vector<2x32xi32> to vector<2x32xf32>
      %cst_100 = arith.constant dense<0xFF800000> : vector<2xf32>
      %116 = vector.multi_reduction <maximumf>, %113, %cst_100 [1] : vector<2x32xf32> to vector<2xf32>
      %117 = vector.shape_cast %116 : vector<2xf32> to vector<2x1xf32>
      %118 = vector.broadcast %117 : vector<2x1xf32> to vector<2x32xf32>
      %119 = arith.cmpf oge, %113, %118 : vector<2x32xf32>
      %cst_101 = arith.constant 3.200000e+01 : f32
      %120 = vector.broadcast %cst_101 : f32 to vector<2x32xf32>
      %121 = arith.select %119, %115, %120 : vector<2x32xi1>, vector<2x32xf32>
      %cst_102 = arith.constant dense<0x7F800000> : vector<2xf32>
      %122 = vector.multi_reduction <minimumf>, %121, %cst_102 [1] : vector<2x32xf32> to vector<2xf32>
      %123 = vector.shape_cast %122 : vector<2xf32> to vector<2x1xf32>
      %124 = vector.broadcast %123 : vector<2x1xf32> to vector<2x32xf32>
      %125 = arith.cmpf oeq, %115, %124 : vector<2x32xf32>
      %126 = arith.extui %125 : vector<2x32xi1> to vector<2x32xi32>
      %127 = arith.sitofp %126 : vector<2x32xi32> to vector<2x32xf32>
      %128 = tpu.iota {dimensions = array<i32: 1>} : vector<2x4x32xi32>
      %c1_i32_103 = arith.constant 1 : i32
      %129 = arith.addi %arg40, %c1_i32_103 : i32
      %130 = vector.broadcast %129 : i32 to vector<2x4x32xi32>
      %131 = arith.cmpi eq, %128, %130 : vector<2x4x32xi32>
      %132 = vector.shape_cast %127 : vector<2x32xf32> to vector<2x1x32xf32>
      %133 = vector.shape_cast %arg41 : vector<8x32xf32> to vector<2x4x32xf32>
      %134 = vector.shape_cast %132 : vector<2x1x32xf32> to vector<2x1x32xf32>
      %135 = vector.broadcast %134 : vector<2x1x32xf32> to vector<2x4x32xf32>
      %136 = arith.select %131, %135, %133 : vector<2x4x32xi1>, vector<2x4x32xf32>
      %137 = vector.shape_cast %136 : vector<2x4x32xf32> to vector<8x32xf32>
      scf.yield %137, %102 : vector<8x32xf32>, vector<8x64xf32>
    }
    %c4_i32_87 = arith.constant 4 : i32
    %c0_88 = arith.constant 0 : index
    %c0_89 = arith.constant 0 : index
    %92 = vector.load %arg38[%c0_88, %c0_89] : memref<8x64xf32, #tpu.memory_space<vmem>>, vector<8x64xf32>
    tpu.vector_store %arg38[%c0_88, %c0_89], %91#1 {strides = array<i32>} : memref<8x64xf32, #tpu.memory_space<vmem>>, vector<8x64xf32>,
    return
  }
}

</mosaic_0001>

<llo_original>
// kernel: _forward.1
$region0: #{_forward.1}
  #allocation0 [shape = 'u32[]', space=smem, size = 0x4, offset = 0x4, fixed_abs, tag = 'smem constant byte address 0x4 - core index']
  #allocation1 [shape = 'u32[144,128]{1,0:T(1,128)}', space=vmem, size = 0x12000, scoped, tag = 'internal scratch']
  #allocation2 [shape = 'f32[8,16,128]{2,1,0:T(8,128)}', space=vmem, size = 0x10000, scoped, tag = 'scratch operand']
  %s0 = inlined_call_operand.smem [shape: u32[39], index: -1, kind: input, shape index: {}]
  %s1 = sld [smem:[%s0]]
  %s2 = scalar_lea.smem %s0, 1
  %s3 = sld [smem:[%s2]]
  %s4 = scalar_lea.smem %s0, 2
  %s5 = sld [smem:[%s4]]
  %s6 = scalar_lea.smem %s0, 3
  %s7 = sld [smem:[%s6]]
  %s8 = scalar_lea.smem %s0, 4
  %s9 = sld [smem:[%s8]]
  %s10 = scalar_lea.smem %s0, 5
  %s11 = sld [smem:[%s10]]
  %s12 = scalar_lea.smem %s0, 6
  %s13 = sld [smem:[%s12]]
  %s14 = scalar_lea.smem %s0, 7
  %s15 = sld [smem:[%s14]]
  %s16 = scalar_lea.smem %s0, 8
  %s17 = sld [smem:[%s16]]
  %s18 = scalar_lea.smem %s0, 9
  %s19 = sld [smem:[%s18]]
  %s20 = scalar_lea.smem %s0, 10
  %s21 = sld [smem:[%s20]]
  %s22 = scalar_lea.smem %s0, 11
  %s23 = sld [smem:[%s22]]
  %s24 = scalar_lea.smem %s0, 12
  %s25 = sld [smem:[%s24]]
  %s26 = scalar_lea.smem %s0, 13
  %s27 = sld [smem:[%s26]]
  %s28 = scalar_lea.smem %s0, 14
  %s29 = sld [smem:[%s28]]
  %s30 = scalar_lea.smem %s0, 15
  %s31 = sld [smem:[%s30]]
  %s32 = scalar_lea.smem %s0, 16
  %s33 = sld [smem:[%s32]]
  %s34 = scalar_lea.smem %s0, 17
  %s35 = sld [smem:[%s34]]
  %s36 = scalar_lea.smem %s0, 18
  %s37 = sld [smem:[%s36]]
  %s38 = scalar_lea.smem %s0, 19
  %s39 = sld [smem:[%s38]]
  %s40 = scalar_lea.smem %s0, 20
  %s41 = sld [smem:[%s40]]
  %s42 = scalar_lea.smem %s0, 21
  %s43 = sld [smem:[%s42]]
  %s44 = scalar_lea.smem %s0, 22
  %s45 = sld [smem:[%s44]]
  %s46 = scalar_lea.smem %s0, 23
  %s47 = sld [smem:[%s46]]
  %s48 = scalar_lea.smem %s0, 24
  %s49 = sld [smem:[%s48]]
  %s50 = scalar_lea.smem %s0, 25
  %s51 = sld [smem:[%s50]]
  %s52 = scalar_lea.smem %s0, 26
  %s53 = sld [smem:[%s52]]
  %s54 = scalar_lea.smem %s0, 27
  %s55 = sld [smem:[%s54]]
  %s56 = scalar_lea.smem %s0, 28
  %s57 = sld [smem:[%s56]]
  %s58 = scalar_lea.smem %s0, 29
  %s59 = sld [smem:[%s58]]
  %s60 = scalar_lea.smem %s0, 30
  %s61 = sld [smem:[%s60]]
  %s62 = scalar_lea.smem %s0, 31
  %s63 = sld [smem:[%s62]]
  %s64 = scalar_lea.smem %s0, 32
  %s65 = sld [smem:[%s64]]
  %s66 = scalar_lea.smem %s0, 33
  %s67 = sld [smem:[%s66]]
  %s68 = scalar_lea.smem %s0, 34
  %s69 = sld [smem:[%s68]]
  %s70 = scalar_lea.smem %s0, 35
  %s71 = sld [smem:[%s70]]
  %s72 = scalar_lea.smem %s0, 36
  %s73 = sld [smem:[%s72]]
  %s74 = scalar_lea.smem %s0, 37
  %s75 = sld [smem:[%s74]]
  %s76 = scalar_lea.smem %s0, 38
  %s77 = sld [smem:[%s76]]
  %s78 = sld [smem:[#allocation0]]
  $region275: #{_forward.1} parent=0
    _
  %s80 = ssub.s32 1, %s78
  %s81 = scalar_select 0, %s80, %s78
  $region1: #{_forward.1} parent=0
    #allocation3 [shape = 'u8[4096]{0}', space=vmem, size = 0x1000, scoped, tag = 'input window, operand 11, single buffered']
    #allocation4 [shape = 's32[1]{0}', space=sflag, size = 0x4, scoped, tag = 'scoped memory for _forward.1']
    #allocation5 [shape = 's32[1]{0}', space=sflag, size = 0x4, scoped, tag = 'scoped memory for _forward.1']
    #allocation6 [shape = 'u8[131072]{0}', space=vmem, size = 0x20000, scoped, tag = 'input window, operand 12, single buffered']
    #allocation7 [shape = 's32[1]{0}', space=sflag, size = 0x4, scoped, tag = 'scoped memory for _forward.1']
    #allocation8 [shape = 'u8[4096]{0}', space=vmem, size = 0x1000, scoped, tag = 'input window, operand 13, single buffered']
    #allocation9 [shape = 'u8[4096]{0}', space=vmem, size = 0x1000, scoped, tag = 'input window, operand 15, single buffered']
    #allocation10 [shape = 's32[1]{0}', space=sflag, size = 0x4, scoped, tag = 'scoped memory for _forward.1']
    #allocation11 [shape = 'u8[4096]{0}', space=vmem, size = 0x1000, scoped, tag = 'input window, operand 16, single buffered']
    #allocation12 [shape = 'u8[4096]{0}', space=vmem, size = 0x1000, scoped, tag = 'input window, operand 17, single buffered']
    #allocation13 [shape = 's32[1]{0}', space=sflag, size = 0x4, scoped, tag = 'scoped memory for _forward.1']
    #allocation14 [shape = 'u8[131072]{0}', space=vmem, size = 0x20000, scoped, tag = 'input window, operand 20, single buffered']
    #allocation15 [shape = 'u8[4096]{0}', space=vmem, size = 0x1000, scoped, tag = 'input window, operand 21, single buffered']
    #allocation16 [shape = 's32[1]{0}', space=sflag, size = 0x4, scoped, tag = 'scoped memory for _forward.1']
    #allocation17 [shape = 'u8[4096]{0}', space=vmem, size = 0x1000, scoped, tag = 'input window, operand 22, single buffered']
    #allocation18 [shape = 'u8[4096]{0}', space=vmem, size = 0x1000, scoped, tag = 'input window, operand 23, single buffered']
    #allocation19 [shape = 's32[1]{0}', space=sflag, size = 0x4, scoped, tag = 'scoped memory for _forward.1']
    #allocation20 [shape = 'u8[131072]{0}', space=vmem, size = 0x20000, scoped, tag = 'input window, operand 24, single buffered']
    #allocation21 [shape = 'u8[4096]{0}', space=vmem, size = 0x1000, scoped, tag = 'input window, operand 25, single buffered']
    #allocation22 [shape = 's32[1]{0}', space=sflag, size = 0x4, scoped, tag = 'scoped memory for _forward.1']
    #allocation23 [shape = 'u8[131072]{0}', space=vmem, size = 0x20000, scoped, tag = 'input window, operand 26, single buffered']
    #allocation24 [shape = 'u8[4096]{0}', space=vmem, size = 0x1000, scoped, tag = 'input window, operand 27, single buffered']
    #allocation25 [shape = 's32[1]{0}', space=sflag, size = 0x4, scoped, tag = 'scoped memory for _forward.1']
    #allocation26 [shape = 'u8[131072]{0}', space=vmem, size = 0x20000, scoped, tag = 'input window, operand 28, single buffered']
    #allocation27 [shape = 'u8[4096]{0}', space=vmem, size = 0x1000, scoped, tag = 'input window, operand 29, single buffered']
    #allocation28 [shape = 's32[1]{0}', space=sflag, size = 0x4, scoped, tag = 'scoped memory for _forward.1']
    #allocation29 [shape = 'u8[4096]{0}', space=vmem, size = 0x1000, scoped, tag = 'input window, operand 30, single buffered']
    #allocation30 [shape = 'u8[4096]{0}', space=vmem, size = 0x1000, scoped, tag = 'input window, operand 31, single buffered']
    #allocation31 [shape = 's32[1]{0}', space=sflag, size = 0x4, scoped, tag = 'scoped memory for _forward.1']
    #allocation32 [shape = 'u8[131072]{0}', space=vmem, size = 0x20000, scoped, tag = 'input window, operand 32, single buffered']
    #allocation33 [shape = 'u8[4096]{0}', space=vmem, size = 0x1000, scoped, tag = 'input window, operand 33, single buffered']
    #allocation34 [shape = 's32[1]{0}', space=sflag, size = 0x4, scoped, tag = 'scoped memory for _forward.1']
    #allocation35 [shape = 'u8[4096]{0}', space=vmem, size = 0x1000, scoped, tag = 'input window, operand 35, single buffered']
    #allocation36 [shape = 'u8[4096]{0}', space=vmem, size = 0x1000, scoped, tag = 'input window, operand 36, single buffered']
    #allocation37 [shape = 's32[1]{0}', space=sflag, size = 0x4, scoped, tag = 'scoped memory for _forward.1']
    #allocation38 [shape = 'u8[4096]{0}', space=vmem, size = 0x1000, scoped, tag = 'input window, operand 37, single buffered']
    #allocation39 [shape = 'u8[4096]{0}', space=vmem, size = 0x1000, scoped, tag = 'output window, operand 0, single buffered']
    %82 = vsyncpa [#allocation4], 0
    %83 = vsyncpa [#allocation7], 0
    %84 = vsyncpa [#allocation10], 0
    %85 = vsyncpa [#allocation13], 0
    %86 = vsyncpa [#allocation16], 0
    %87 = vsyncpa [#allocation19], 0
    %88 = vsyncpa [#allocation22], 0
    %89 = vsyncpa [#allocation25], 0
    %90 = vsyncpa [#allocation28], 0
    %91 = vsyncpa [#allocation31], 0
    %92 = vsyncpa [#allocation34], 0
    %93 = vsyncpa [#allocation37], 0
    %94 = vsyncpa [#allocation5], 0
    // Predicated region
    $region2: #{_forward.1} parent=1 // pred_check
      _
    $region3: #{_forward.1} parent=1 // pred_check_branch
      %96 = sbr.rel (0) target = $region5
    $region4: #{_forward.1} parent=1 // pred_region
      _
    $region5: #{_forward.1} parent=1 // pred_fallthru
      _
    // Predicated region
    $region6: #{_forward.1} parent=1 // pred_check
      _
    $region7: #{_forward.1} parent=1 // pred_check_branch
      %98 = sbr.rel (0) target = $region9
    $region8: #{_forward.1} parent=1 // pred_region
      _
    $region9: #{_forward.1} parent=1 // pred_fallthru
      _
    // Predicated region
    $region10: #{_forward.1} parent=1 // pred_check
      _
    $region11: #{_forward.1} parent=1 // pred_check_branch
      %100 = sbr.rel (0) target = $region13
    $region12: #{_forward.1} parent=1 // pred_region
      _
    $region13: #{_forward.1} parent=1 // pred_fallthru
      _
    // Predicated region
    $region14: #{_forward.1} parent=1 // pred_check
      _
    $region15: #{_forward.1} parent=1 // pred_check_branch
      %102 = sbr.rel (0) target = $region17
    $region16: #{_forward.1} parent=1 // pred_region
      _
    $region17: #{_forward.1} parent=1 // pred_fallthru
      _
    // Predicated region
    $region18: #{_forward.1} parent=1 // pred_check
      _
    $region19: #{_forward.1} parent=1 // pred_check_branch
      %104 = sbr.rel (0) target = $region21
    $region20: #{_forward.1} parent=1 // pred_region
      _
    $region21: #{_forward.1} parent=1 // pred_fallthru
      _
    // Predicated region
    $region22: #{_forward.1} parent=1 // pred_check
      _
    $region23: #{_forward.1} parent=1 // pred_check_branch
      %106 = sbr.rel (0) target = $region25
    $region24: #{_forward.1} parent=1 // pred_region
      _
    $region25: #{_forward.1} parent=1 // pred_fallthru
      _
    // Predicated region
    $region26: #{_forward.1} parent=1 // pred_check
      _
    $region27: #{_forward.1} parent=1 // pred_check_branch
      %108 = sbr.rel (0) target = $region29
    $region28: #{_forward.1} parent=1 // pred_region
      _
    $region29: #{_forward.1} parent=1 // pred_fallthru
      _
    // Predicated region
    $region30: #{_forward.1} parent=1 // pred_check
      _
    $region31: #{_forward.1} parent=1 // pred_check_branch
      %110 = sbr.rel (0) target = $region33
    $region32: #{_forward.1} parent=1 // pred_region
      _
    $region33: #{_forward.1} parent=1 // pred_fallthru
      _
    // Predicated region
    $region34: #{_forward.1} parent=1 // pred_check
      _
    $region35: #{_forward.1} parent=1 // pred_check_branch
      %112 = sbr.rel (0) target = $region37
    $region36: #{_forward.1} parent=1 // pred_region
      _
    $region37: #{_forward.1} parent=1 // pred_fallthru
      _
    // Predicated region
    $region38: #{_forward.1} parent=1 // pred_check
      _
    $region39: #{_forward.1} parent=1 // pred_check_branch
      %114 = sbr.rel (0) target = $region41
    $region40: #{_forward.1} parent=1 // pred_region
      _
    $region41: #{_forward.1} parent=1 // pred_fallthru
      _
    // Predicated region
    $region42: #{_forward.1} parent=1 // pred_check
      _
    $region43: #{_forward.1} parent=1 // pred_check_branch
      %116 = sbr.rel (0) target = $region45
    $region44: #{_forward.1} parent=1 // pred_region
      _
    $region45: #{_forward.1} parent=1 // pred_fallthru
      _
    // Predicated region
    $region46: #{_forward.1} parent=1 // pred_check
      _
    $region47: #{_forward.1} parent=1 // pred_check_branch
      %118 = sbr.rel (0) target = $region49
    $region48: #{_forward.1} parent=1 // pred_region
      %s120 = ssub.s32 128, 128
      %121 = vsyncadd [#allocation4], %s120
      %s122 = sshll.u32 [#allocation3], 4
      %s123 = int_to_ptr.vmem [resolvable:$true] %s122
      %128 = dma.hbm_to_vmem [thread:$0]  %s23, 128, %s123, [#allocation4], 16, 16, 1
    $region49: #{_forward.1} parent=1 // pred_fallthru
      _
    // Predicated region
    $region50: #{_forward.1} parent=1 // pred_check
      _
    $region51: #{_forward.1} parent=1 // pred_check_branch
      %130 = sbr.rel (0) target = $region53
    $region52: #{_forward.1} parent=1 // pred_region
      %s132 = ssub.s32 4096, 4096
      %133 = vsyncadd [#allocation7], %s132
      %s134 = sshll.u32 [#allocation6], 4
      %s135 = int_to_ptr.vmem [resolvable:$true] %s134
      %140 = dma.hbm_to_vmem [thread:$0]  %s25, 4096, %s135, [#allocation7], 64, 64, 4
    $region53: #{_forward.1} parent=1 // pred_fallthru
      _
    // Predicated region
    $region54: #{_forward.1} parent=1 // pred_check
      _
    $region55: #{_forward.1} parent=1 // pred_check_branch
      %142 = sbr.rel (0) target = $region57
    $region56: #{_forward.1} parent=1 // pred_region
      %s144 = ssub.s32 128, 128
      %145 = vsyncadd [#allocation7], %s144
      %s146 = sshll.u32 [#allocation8], 4
      %s147 = int_to_ptr.vmem [resolvable:$true] %s146
      %152 = dma.hbm_to_vmem [thread:$0]  %s27, 128, %s147, [#allocation7], 16, 16, 1
    $region57: #{_forward.1} parent=1 // pred_fallthru
      _
    // Predicated region
    $region58: #{_forward.1} parent=1 // pred_check
      _
    $region59: #{_forward.1} parent=1 // pred_check_branch
      %154 = sbr.rel (0) target = $region61
    $region60: #{_forward.1} parent=1 // pred_region
      _
    $region61: #{_forward.1} parent=1 // pred_fallthru
      _
    // Predicated region
    $region62: #{_forward.1} parent=1 // pred_check
      _
    $region63: #{_forward.1} parent=1 // pred_check_branch
      %156 = sbr.rel (0) target = $region65
    $region64: #{_forward.1} parent=1 // pred_region
      %s158 = ssub.s32 128, 128
      %159 = vsyncadd [#allocation10], %s158
      %s160 = sshll.u32 [#allocation9], 4
      %s161 = int_to_ptr.vmem [resolvable:$true] %s160
      %166 = dma.hbm_to_vmem [thread:$0]  %s31, 128, %s161, [#allocation10], 16, 16, 1
    $region65: #{_forward.1} parent=1 // pred_fallthru
      _
    // Predicated region
    $region66: #{_forward.1} parent=1 // pred_check
      _
    $region67: #{_forward.1} parent=1 // pred_check_branch
      %168 = sbr.rel (0) target = $region69
    $region68: #{_forward.1} parent=1 // pred_region
      %s170 = ssub.s32 128, 128
      %171 = vsyncadd [#allocation10], %s170
      %s172 = sshll.u32 [#allocation11], 4
      %s173 = int_to_ptr.vmem [resolvable:$true] %s172
      %178 = dma.hbm_to_vmem [thread:$0]  %s33, 128, %s173, [#allocation10], 16, 16, 1
    $region69: #{_forward.1} parent=1 // pred_fallthru
      _
    // Predicated region
    $region70: #{_forward.1} parent=1 // pred_check
      _
    $region71: #{_forward.1} parent=1 // pred_check_branch
      %180 = sbr.rel (0) target = $region73
    $region72: #{_forward.1} parent=1 // pred_region
      %s182 = ssub.s32 128, 128
      %183 = vsyncadd [#allocation13], %s182
      %s184 = sshll.u32 [#allocation12], 4
      %s185 = int_to_ptr.vmem [resolvable:$true] %s184
      %190 = dma.hbm_to_vmem [thread:$0]  %s35, 128, %s185, [#allocation13], 16, 16, 1
    $region73: #{_forward.1} parent=1 // pred_fallthru
      _
    // Predicated region
    $region74: #{_forward.1} parent=1 // pred_check
      _
    $region75: #{_forward.1} parent=1 // pred_check_branch
      %192 = sbr.rel (0) target = $region77
    $region76: #{_forward.1} parent=1 // pred_region
      _
    $region77: #{_forward.1} parent=1 // pred_fallthru
      _
    // Predicated region
    $region78: #{_forward.1} parent=1 // pred_check
      _
    $region79: #{_forward.1} parent=1 // pred_check_branch
      %194 = sbr.rel (0) target = $region81
    $region80: #{_forward.1} parent=1 // pred_region
      _
    $region81: #{_forward.1} parent=1 // pred_fallthru
      _
    // Predicated region
    $region82: #{_forward.1} parent=1 // pred_check
      _
    $region83: #{_forward.1} parent=1 // pred_check_branch
      %196 = sbr.rel (0) target = $region85
    $region84: #{_forward.1} parent=1 // pred_region
      %s198 = ssub.s32 4096, 4096
      %199 = vsyncadd [#allocation13], %s198
      %s200 = sshll.u32 [#allocation14], 4
      %s201 = int_to_ptr.vmem [resolvable:$true] %s200
      %206 = dma.hbm_to_vmem [thread:$0]  %s41, 4096, %s201, [#allocation13], 64, 64, 4
    $region85: #{_forward.1} parent=1 // pred_fallthru
      _
    // Predicated region
    $region86: #{_forward.1} parent=1 // pred_check
      _
    $region87: #{_forward.1} parent=1 // pred_check_branch
      %208 = sbr.rel (0) target = $region89
    $region88: #{_forward.1} parent=1 // pred_region
      %s210 = ssub.s32 128, 128
      %211 = vsyncadd [#allocation16], %s210
      %s212 = sshll.u32 [#allocation15], 4
      %s213 = int_to_ptr.vmem [resolvable:$true] %s212
      %218 = dma.hbm_to_vmem [thread:$0]  %s43, 128, %s213, [#allocation16], 16, 16, 1
    $region89: #{_forward.1} parent=1 // pred_fallthru
      _
    // Predicated region
    $region90: #{_forward.1} parent=1 // pred_check
      _
    $region91: #{_forward.1} parent=1 // pred_check_branch
      %220 = sbr.rel (0) target = $region93
    $region92: #{_forward.1} parent=1 // pred_region
      %s222 = ssub.s32 128, 128
      %223 = vsyncadd [#allocation16], %s222
      %s224 = sshll.u32 [#allocation17], 4
      %s225 = int_to_ptr.vmem [resolvable:$true] %s224
      %230 = dma.hbm_to_vmem [thread:$0]  %s45, 128, %s225, [#allocation16], 16, 16, 1
    $region93: #{_forward.1} parent=1 // pred_fallthru
      _
    // Predicated region
    $region94: #{_forward.1} parent=1 // pred_check
      _
    $region95: #{_forward.1} parent=1 // pred_check_branch
      %232 = sbr.rel (0) target = $region97
    $region96: #{_forward.1} parent=1 // pred_region
      %s234 = ssub.s32 128, 128
      %235 = vsyncadd [#allocation19], %s234
      %s236 = sshll.u32 [#allocation18], 4
      %s237 = int_to_ptr.vmem [resolvable:$true] %s236
      %242 = dma.hbm_to_vmem [thread:$0]  %s47, 128, %s237, [#allocation19], 16, 16, 1
    $region97: #{_forward.1} parent=1 // pred_fallthru
      _
    // Predicated region
    $region98: #{_forward.1} parent=1 // pred_check
      _
    $region99: #{_forward.1} parent=1 // pred_check_branch
      %244 = sbr.rel (0) target = $region101
    $region100: #{_forward.1} parent=1 // pred_region
      %s246 = ssub.s32 4096, 4096
      %247 = vsyncadd [#allocation19], %s246
      %s248 = sshll.u32 [#allocation20], 4
      %s249 = int_to_ptr.vmem [resolvable:$true] %s248
      %254 = dma.hbm_to_vmem [thread:$0]  %s49, 4096, %s249, [#allocation19], 64, 64, 4
    $region101: #{_forward.1} parent=1 // pred_fallthru
      _
    // Predicated region
    $region102: #{_forward.1} parent=1 // pred_check
      _
    $region103: #{_forward.1} parent=1 // pred_check_branch
      %256 = sbr.rel (0) target = $region105
    $region104: #{_forward.1} parent=1 // pred_region
      %s258 = ssub.s32 128, 128
      %259 = vsyncadd [#allocation22], %s258
      %s260 = sshll.u32 [#allocation21], 4
      %s261 = int_to_ptr.vmem [resolvable:$true] %s260
      %266 = dma.hbm_to_vmem [thread:$0]  %s51, 128, %s261, [#allocation22], 16, 16, 1
    $region105: #{_forward.1} parent=1 // pred_fallthru
      _
    // Predicated region
    $region106: #{_forward.1} parent=1 // pred_check
      _
    $region107: #{_forward.1} parent=1 // pred_check_branch
      %268 = sbr.rel (0) target = $region109
    $region108: #{_forward.1} parent=1 // pred_region
      %s270 = ssub.s32 4096, 4096
      %271 = vsyncadd [#allocation22], %s270
      %s272 = sshll.u32 [#allocation23], 4
      %s273 = int_to_ptr.vmem [resolvable:$true] %s272
      %278 = dma.hbm_to_vmem [thread:$0]  %s53, 4096, %s273, [#allocation22], 64, 64, 4
    $region109: #{_forward.1} parent=1 // pred_fallthru
      _
    // Predicated region
    $region110: #{_forward.1} parent=1 // pred_check
      _
    $region111: #{_forward.1} parent=1 // pred_check_branch
      %280 = sbr.rel (0) target = $region113
    $region112: #{_forward.1} parent=1 // pred_region
      %s282 = ssub.s32 128, 128
      %283 = vsyncadd [#allocation25], %s282
      %s284 = sshll.u32 [#allocation24], 4
      %s285 = int_to_ptr.vmem [resolvable:$true] %s284
      %290 = dma.hbm_to_vmem [thread:$0]  %s55, 128, %s285, [#allocation25], 16, 16, 1
    $region113: #{_forward.1} parent=1 // pred_fallthru
      _
    // Predicated region
    $region114: #{_forward.1} parent=1 // pred_check
      _
    $region115: #{_forward.1} parent=1 // pred_check_branch
      %292 = sbr.rel (0) target = $region117
    $region116: #{_forward.1} parent=1 // pred_region
      %s294 = ssub.s32 4096, 4096
      %295 = vsyncadd [#allocation25], %s294
      %s296 = sshll.u32 [#allocation26], 4
      %s297 = int_to_ptr.vmem [resolvable:$true] %s296
      %302 = dma.hbm_to_vmem [thread:$0]  %s57, 4096, %s297, [#allocation25], 64, 64, 4
    $region117: #{_forward.1} parent=1 // pred_fallthru
      _
    // Predicated region
    $region118: #{_forward.1} parent=1 // pred_check
      _
    $region119: #{_forward.1} parent=1 // pred_check_branch
      %304 = sbr.rel (0) target = $region121
    $region120: #{_forward.1} parent=1 // pred_region
      %s306 = ssub.s32 128, 128
      %307 = vsyncadd [#allocation28], %s306
      %s308 = sshll.u32 [#allocation27], 4
      %s309 = int_to_ptr.vmem [resolvable:$true] %s308
      %314 = dma.hbm_to_vmem [thread:$0]  %s59, 128, %s309, [#allocation28], 16, 16, 1
    $region121: #{_forward.1} parent=1 // pred_fallthru
      _
    // Predicated region
    $region122: #{_forward.1} parent=1 // pred_check
      _
    $region123: #{_forward.1} parent=1 // pred_check_branch
      %316 = sbr.rel (0) target = $region125
    $region124: #{_forward.1} parent=1 // pred_region
      %s318 = ssub.s32 128, 128
      %319 = vsyncadd [#allocation28], %s318
      %s320 = sshll.u32 [#allocation29], 4
      %s321 = int_to_ptr.vmem [resolvable:$true] %s320
      %326 = dma.hbm_to_vmem [thread:$0]  %s61, 128, %s321, [#allocation28], 16, 16, 1
    $region125: #{_forward.1} parent=1 // pred_fallthru
      _
    // Predicated region
    $region126: #{_forward.1} parent=1 // pred_check
      _
    $region127: #{_forward.1} parent=1 // pred_check_branch
      %328 = sbr.rel (0) target = $region129
    $region128: #{_forward.1} parent=1 // pred_region
      %s330 = ssub.s32 128, 128
      %331 = vsyncadd [#allocation31], %s330
      %s332 = sshll.u32 [#allocation30], 4
      %s333 = int_to_ptr.vmem [resolvable:$true] %s332
      %338 = dma.hbm_to_vmem [thread:$0]  %s63, 128, %s333, [#allocation31], 16, 16, 1
    $region129: #{_forward.1} parent=1 // pred_fallthru
      _
    // Predicated region
    $region130: #{_forward.1} parent=1 // pred_check
      _
    $region131: #{_forward.1} parent=1 // pred_check_branch
      %340 = sbr.rel (0) target = $region133
    $region132: #{_forward.1} parent=1 // pred_region
      %s342 = ssub.s32 4096, 4096
      %343 = vsyncadd [#allocation31], %s342
      %s344 = sshll.u32 [#allocation32], 4
      %s345 = int_to_ptr.vmem [resolvable:$true] %s344
      %350 = dma.hbm_to_vmem [thread:$0]  %s65, 4096, %s345, [#allocation31], 64, 64, 4
    $region133: #{_forward.1} parent=1 // pred_fallthru
      _
    // Predicated region
    $region134: #{_forward.1} parent=1 // pred_check
      _
    $region135: #{_forward.1} parent=1 // pred_check_branch
      %352 = sbr.rel (0) target = $region137
    $region136: #{_forward.1} parent=1 // pred_region
      %s354 = ssub.s32 128, 128
      %355 = vsyncadd [#allocation34], %s354
      %s356 = sshll.u32 [#allocation33], 4
      %s357 = int_to_ptr.vmem [resolvable:$true] %s356
      %362 = dma.hbm_to_vmem [thread:$0]  %s67, 128, %s357, [#allocation34], 16, 16, 1
    $region137: #{_forward.1} parent=1 // pred_fallthru
      _
    // Predicated region
    $region138: #{_forward.1} parent=1 // pred_check
      _
    $region139: #{_forward.1} parent=1 // pred_check_branch
      %364 = sbr.rel (0) target = $region141
    $region140: #{_forward.1} parent=1 // pred_region
      _
    $region141: #{_forward.1} parent=1 // pred_fallthru
      _
    // Predicated region
    $region142: #{_forward.1} parent=1 // pred_check
      _
    $region143: #{_forward.1} parent=1 // pred_check_branch
      %366 = sbr.rel (0) target = $region145
    $region144: #{_forward.1} parent=1 // pred_region
      %s368 = ssub.s32 128, 128
      %369 = vsyncadd [#allocation34], %s368
      %s370 = sshll.u32 [#allocation35], 4
      %s371 = int_to_ptr.vmem [resolvable:$true] %s370
      %376 = dma.hbm_to_vmem [thread:$0]  %s71, 128, %s371, [#allocation34], 16, 16, 1
    $region145: #{_forward.1} parent=1 // pred_fallthru
      _
    // Predicated region
    $region146: #{_forward.1} parent=1 // pred_check
      _
    $region147: #{_forward.1} parent=1 // pred_check_branch
      %378 = sbr.rel (0) target = $region149
    $region148: #{_forward.1} parent=1 // pred_region
      %s380 = ssub.s32 128, 128
      %381 = vsyncadd [#allocation37], %s380
      %s382 = sshll.u32 [#allocation36], 4
      %s383 = int_to_ptr.vmem [resolvable:$true] %s382
      %388 = dma.hbm_to_vmem [thread:$0]  %s73, 128, %s383, [#allocation37], 16, 16, 1
    $region149: #{_forward.1} parent=1 // pred_fallthru
      _
    // Predicated region
    $region150: #{_forward.1} parent=1 // pred_check
      _
    $region151: #{_forward.1} parent=1 // pred_check_branch
      %390 = sbr.rel (0) target = $region153
    $region152: #{_forward.1} parent=1 // pred_region
      %s392 = ssub.s32 128, 128
      %393 = vsyncadd [#allocation37], %s392
      %s394 = sshll.u32 [#allocation38], 4
      %s395 = int_to_ptr.vmem [resolvable:$true] %s394
      %400 = dma.hbm_to_vmem [thread:$0]  %s75, 128, %s395, [#allocation37], 16, 16, 1
    $region153: #{_forward.1} parent=1 // pred_fallthru
      _
    // Predicated region
    $region154: #{_forward.1} parent=1 // pred_check
      _
    $region155: #{_forward.1} parent=1 // pred_check_branch
      %402 = sbr.rel (0) target = $region157
    $region156: #{_forward.1} parent=1 // pred_region
      %403 = dma.done [#allocation4], 128
    $region157: #{_forward.1} parent=1 // pred_fallthru
      _
    // Predicated region
    $region158: #{_forward.1} parent=1 // pred_check
      _
    $region159: #{_forward.1} parent=1 // pred_check_branch
      %405 = sbr.rel (0) target = $region161
    $region160: #{_forward.1} parent=1 // pred_region
      %406 = dma.done [#allocation7], 4096
    $region161: #{_forward.1} parent=1 // pred_fallthru
      _
    // Predicated region
    $region162: #{_forward.1} parent=1 // pred_check
      _
    $region163: #{_forward.1} parent=1 // pred_check_branch
      %408 = sbr.rel (0) target = $region165
    $region164: #{_forward.1} parent=1 // pred_region
      %409 = dma.done [#allocation7], 128
    $region165: #{_forward.1} parent=1 // pred_fallthru
      _
    // Predicated region
    $region166: #{_forward.1} parent=1 // pred_check
      _
    $region167: #{_forward.1} parent=1 // pred_check_branch
      %411 = sbr.rel (0) target = $region169
    $region168: #{_forward.1} parent=1 // pred_region
      %412 = dma.done [#allocation10], 128
    $region169: #{_forward.1} parent=1 // pred_fallthru
      _
    // Predicated region
    $region170: #{_forward.1} parent=1 // pred_check
      _
    $region171: #{_forward.1} parent=1 // pred_check_branch
      %414 = sbr.rel (0) target = $region173
    $region172: #{_forward.1} parent=1 // pred_region
      %415 = dma.done [#allocation10], 128
    $region173: #{_forward.1} parent=1 // pred_fallthru
      _
    // Predicated region
    $region174: #{_forward.1} parent=1 // pred_check
      _
    $region175: #{_forward.1} parent=1 // pred_check_branch
      %417 = sbr.rel (0) target = $region177
    $region176: #{_forward.1} parent=1 // pred_region
      %418 = dma.done [#allocation13], 128
    $region177: #{_forward.1} parent=1 // pred_fallthru
      _
    // Predicated region
    $region178: #{_forward.1} parent=1 // pred_check
      _
    $region179: #{_forward.1} parent=1 // pred_check_branch
      %420 = sbr.rel (0) target = $region181
    $region180: #{_forward.1} parent=1 // pred_region
      %421 = dma.done [#allocation13], 4096
    $region181: #{_forward.1} parent=1 // pred_fallthru
      _
    // Predicated region
    $region182: #{_forward.1} parent=1 // pred_check
      _
    $region183: #{_forward.1} parent=1 // pred_check_branch
      %423 = sbr.rel (0) target = $region185
    $region184: #{_forward.1} parent=1 // pred_region
      %424 = dma.done [#allocation16], 128
    $region185: #{_forward.1} parent=1 // pred_fallthru
      _
    // Predicated region
    $region186: #{_forward.1} parent=1 // pred_check
      _
    $region187: #{_forward.1} parent=1 // pred_check_branch
      %426 = sbr.rel (0) target = $region189
    $region188: #{_forward.1} parent=1 // pred_region
      %427 = dma.done [#allocation16], 128
    $region189: #{_forward.1} parent=1 // pred_fallthru
      _
    // Predicated region
    $region190: #{_forward.1} parent=1 // pred_check
      _
    $region191: #{_forward.1} parent=1 // pred_check_branch
      %429 = sbr.rel (0) target = $region193
    $region192: #{_forward.1} parent=1 // pred_region
      %430 = dma.done [#allocation19], 128
    $region193: #{_forward.1} parent=1 // pred_fallthru
      _
    // Predicated region
    $region194: #{_forward.1} parent=1 // pred_check
      _
    $region195: #{_forward.1} parent=1 // pred_check_branch
      %432 = sbr.rel (0) target = $region197
    $region196: #{_forward.1} parent=1 // pred_region
      %433 = dma.done [#allocation19], 4096
    $region197: #{_forward.1} parent=1 // pred_fallthru
      _
    // Predicated region
    $region198: #{_forward.1} parent=1 // pred_check
      _
    $region199: #{_forward.1} parent=1 // pred_check_branch
      %435 = sbr.rel (0) target = $region201
    $region200: #{_forward.1} parent=1 // pred_region
      %436 = dma.done [#allocation22], 128
    $region201: #{_forward.1} parent=1 // pred_fallthru
      _
    // Predicated region
    $region202: #{_forward.1} parent=1 // pred_check
      _
    $region203: #{_forward.1} parent=1 // pred_check_branch
      %438 = sbr.rel (0) target = $region205
    $region204: #{_forward.1} parent=1 // pred_region
      %439 = dma.done [#allocation22], 4096
    $region205: #{_forward.1} parent=1 // pred_fallthru
      _
    // Predicated region
    $region206: #{_forward.1} parent=1 // pred_check
      _
    $region207: #{_forward.1} parent=1 // pred_check_branch
      %441 = sbr.rel (0) target = $region209
    $region208: #{_forward.1} parent=1 // pred_region
      %442 = dma.done [#allocation25], 128
    $region209: #{_forward.1} parent=1 // pred_fallthru
      _
    // Predicated region
    $region210: #{_forward.1} parent=1 // pred_check
      _
    $region211: #{_forward.1} parent=1 // pred_check_branch
      %444 = sbr.rel (0) target = $region213
    $region212: #{_forward.1} parent=1 // pred_region
      %445 = dma.done [#allocation25], 4096
    $region213: #{_forward.1} parent=1 // pred_fallthru
      _
    // Predicated region
    $region214: #{_forward.1} parent=1 // pred_check
      _
    $region215: #{_forward.1} parent=1 // pred_check_branch
      %447 = sbr.rel (0) target = $region217
    $region216: #{_forward.1} parent=1 // pred_region
      %448 = dma.done [#allocation28], 128
    $region217: #{_forward.1} parent=1 // pred_fallthru
      _
    // Predicated region
    $region218: #{_forward.1} parent=1 // pred_check
      _
    $region219: #{_forward.1} parent=1 // pred_check_branch
      %450 = sbr.rel (0) target = $region221
    $region220: #{_forward.1} parent=1 // pred_region
      %451 = dma.done [#allocation28], 128
    $region221: #{_forward.1} parent=1 // pred_fallthru
      _
    // Predicated region
    $region222: #{_forward.1} parent=1 // pred_check
      _
    $region223: #{_forward.1} parent=1 // pred_check_branch
      %453 = sbr.rel (0) target = $region225
    $region224: #{_forward.1} parent=1 // pred_region
      %454 = dma.done [#allocation31], 128
    $region225: #{_forward.1} parent=1 // pred_fallthru
      _
    // Predicated region
    $region226: #{_forward.1} parent=1 // pred_check
      _
    $region227: #{_forward.1} parent=1 // pred_check_branch
      %456 = sbr.rel (0) target = $region229
    $region228: #{_forward.1} parent=1 // pred_region
      %457 = dma.done [#allocation31], 4096
    $region229: #{_forward.1} parent=1 // pred_fallthru
      _
    // Predicated region
    $region230: #{_forward.1} parent=1 // pred_check
      _
    $region231: #{_forward.1} parent=1 // pred_check_branch
      %459 = sbr.rel (0) target = $region233
    $region232: #{_forward.1} parent=1 // pred_region
      %460 = dma.done [#allocation34], 128
    $region233: #{_forward.1} parent=1 // pred_fallthru
      _
    // Predicated region
    $region234: #{_forward.1} parent=1 // pred_check
      _
    $region235: #{_forward.1} parent=1 // pred_check_branch
      %462 = sbr.rel (0) target = $region237
    $region236: #{_forward.1} parent=1 // pred_region
      %463 = dma.done [#allocation34], 128
    $region237: #{_forward.1} parent=1 // pred_fallthru
      _
    // Predicated region
    $region238: #{_forward.1} parent=1 // pred_check
      _
    $region239: #{_forward.1} parent=1 // pred_check_branch
      %465 = sbr.rel (0) target = $region241
    $region240: #{_forward.1} parent=1 // pred_region
      %466 = dma.done [#allocation37], 128
    $region241: #{_forward.1} parent=1 // pred_fallthru
      _
    // Predicated region
    $region242: #{_forward.1} parent=1 // pred_check
      _
    $region243: #{_forward.1} parent=1 // pred_check_branch
      %468 = sbr.rel (0) target = $region245
    $region244: #{_forward.1} parent=1 // pred_region
      %469 = dma.done [#allocation37], 128
    $region245: #{_forward.1} parent=1 // pred_fallthru
      _
    %v471 = vld [vmem:[%s1] sm:$0xff]
    %v472 = vld [vmem:[%s1 + $0x8] sm:$0xff]
    loop: start=0, step=1, limit=8
    $region246: #{_forward.1} parent=1 // loop_pre_header
      _
    $region247: #{_forward.1} parent=1 // loop_header
      %s474 = sphi 0, %s478
      %p475 = scmp.ge.s32.totalorder %s474, 8
      %v479 = vphi %v471, %v2836
      %v480 = vphi %v472, %v2837
    $region248: #{_forward.1} parent=1 // loop_header_branch
      %477 = sbr.rel (%p475) target = $region252
    $region249: #{_forward.1} parent=1 // loop_body
      %v481 = vpack.c.bf16 %v480, %v479
      %s482 = smul.u32 %s474, 16
      %s483 = smul.addr %s482, 4
      %s484 = scalar_lea.vmem %s13, %s483
      %v485 = vld [vmem:[%s484] sm:$0xff]
      %v486 = vld [vmem:[%s484 + $0x8] sm:$0xff]
      %v487 = vld [vmem:[%s484 + $0x10] sm:$0xff]
      %v488 = vld [vmem:[%s484 + $0x18] sm:$0xff]
      %v489 = vld [vmem:[%s484 + $0x20] sm:$0xff]
      %v490 = vld [vmem:[%s484 + $0x28] sm:$0xff]
      %v491 = vld [vmem:[%s484 + $0x30] sm:$0xff]
      %v492 = vld [vmem:[%s484 + $0x38] sm:$0xff]
      %s493 = smul.u32 %s474, 2
      %s494 = scalar_lea.vmem %s15, %s493
      %v495 = vld [vmem:[%s494] sm:$0x3]
      %v497 = vlaneseq
      %v498 = vshrl.u32 %v497, 7
      %v499 = vsub.s32 0, %v498
      %v500 = vrot.slane %v495, %v499
      %v501 = vlaneseq
      %v502 = vshrl.u32 %v501, 7
      %v503 = vsub.s32 1, %v502
      %v504 = vrot.slane %v495, %v503
      %v515 = vunpack.c.l.b16 %v485
      %v516 = vunpack.c.h.b16 %v485
      %v517 = vunpack.c.l.b16 %v486
      %v518 = vunpack.c.h.b16 %v486
      %v519 = vunpack.c.l.b16 %v487
      %v520 = vunpack.c.h.b16 %v487
      %v521 = vunpack.c.l.b16 %v488
      %v522 = vunpack.c.h.b16 %v488
      %v523 = vunpack.c.l.b16 %v489
      %v524 = vunpack.c.h.b16 %v489
      %v525 = vunpack.c.l.b16 %v490
      %v526 = vunpack.c.h.b16 %v490
      %v527 = vunpack.c.l.b16 %v491
      %v528 = vunpack.c.h.b16 %v491
      %v529 = vunpack.c.l.b16 %v492
      %v530 = vunpack.c.h.b16 %v492
      %v531 = vpack.c.b16 %v517, %v515
      %v532 = vpack.c.b16 %v518, %v516
      %v533 = vpack.c.b16 %v521, %v519
      %v534 = vpack.c.b16 %v522, %v520
      %v535 = vpack.c.b16 %v525, %v523
      %v536 = vpack.c.b16 %v526, %v524
      %v537 = vpack.c.b16 %v529, %v527
      %v538 = vpack.c.b16 %v530, %v528
      %vm547 = vcmask 523264
      %v549 = vsel %vm547, %v481, 0
      %551 = vmatprep.subr.bf16.mxu0 %v532
      %552 = vmatpush1.bf16.msra.mxu0 %v531
      %553 = vmatprep.subr.bf16.mxu0 %v534
      %554 = vmatpush1.bf16.msra.mxu0 %v533
      %555 = vmatprep.subr.bf16.mxu0 %v536
      %556 = vmatpush1.bf16.msra.mxu0 %v535
      %557 = vmatprep.subr.bf16.mxu0 %v538
      %558 = vmatpush1.bf16.msra.mxu0 %v537
      %559 = vmatprep.subr.bf16.mxu0 0
      %560 = vmatpush1.bf16.msra.mxu0 0
      %561 = vmatprep.subr.bf16.mxu0 0
      %562 = vmatpush1.bf16.msra.mxu0 0
      %563 = vmatprep.subr.bf16.mxu0 0
      %564 = vmatpush1.bf16.msra.mxu0 0
      %565 = vmatprep.subr.bf16.mxu0 0
      %566 = vmatpush1.bf16.msra.mxu0 0
      %567 = vmatprep.subr.bf16.mxu0 0
      %568 = vmatpush1.bf16.msra.mxu0 0
      %569 = vmatprep.subr.bf16.mxu0 0
      %570 = vmatpush1.bf16.msra.mxu0 0
      %571 = vmatprep.subr.bf16.mxu0 0
      %572 = vmatpush1.bf16.msra.mxu0 0
      %573 = vmatprep.subr.bf16.mxu0 0
      %574 = vmatpush1.bf16.msra.mxu0 0
      %575 = vmatprep.subr.bf16.mxu0 0
      %576 = vmatpush1.bf16.msra.mxu0 0
      %577 = vmatprep.subr.bf16.mxu0 0
      %578 = vmatpush1.bf16.msra.mxu0 0
      %579 = vmatprep.subr.bf16.mxu0 0
      %580 = vmatpush1.bf16.msra.mxu0 0
      %581 = vmatprep.subr.bf16.mxu0 0
      %582 = vmatpush1.bf16.msra.mxu0 0
      %583 = vmatprep.mubr.bf16.mxu0 0
      %584 = vmatmul.mubr.bf16.gmra.mrb[0].mxu0 %v549
      %v585 = vpop.f32.mrb[0].mxu0
      %v586 = vadd.f32 %v500, %v585
      %v587 = vpop.f32.mrb[0].mxu0
      %v588 = vadd.f32 %v504, %v587
      %v589 = vpop.f32.mrb[0].mxu0
      %v590 = vadd.f32 %v500, %v589
      %v591 = vpop.f32.mrb[0].mxu0
      %v592 = vadd.f32 %v504, %v591
      %593 = vdwg.mxu0
      %v594 = vpack.c.bf16 %v586, %v586
      %v595 = vpack.c.bf16 %v590, %v590
      %v596 = vpack.c.bf16 %v588, %v588
      %v597 = vpack.c.bf16 %v592, %v592
      %599 = vrot.lane.b32.xlu0 %v594, 64
      %v600 = vpop.permute.xlu0 %599
      %vm601 = vcmask 64512
      %v603 = vsel %vm601, %v594, 0
      %v606 = vsel %vm601, %v600, 0
      %608 = vmatprep.subr.bf16.mxu0 0
      %609 = vmatpush1.bf16.xpose.msra.mxu0 %v606
      %610 = vmatprep.subr.bf16.mxu0 0
      %611 = vmatpush1.bf16.xpose.msra.mxu0 0
      %612 = vmatprep.subr.bf16.mxu0 0
      %613 = vmatpush1.bf16.xpose.msra.mxu0 0
      %614 = vmatprep.subr.bf16.mxu0 0
      %615 = vmatpush1.bf16.xpose.msra.mxu0 0
      %616 = vmatprep.subr.bf16.mxu0 0
      %617 = vmatpush1.bf16.xpose.msra.mxu0 0
      %618 = vmatprep.subr.bf16.mxu0 0
      %619 = vmatpush1.bf16.xpose.msra.mxu0 0
      %620 = vmatprep.subr.bf16.mxu0 0
      %621 = vmatpush1.bf16.xpose.msra.mxu0 0
      %622 = vmatprep.subr.bf16.mxu0 0
      %623 = vmatpush1.bf16.xpose.msra.mxu0 0
      %624 = vmatprep.subr.bf16.mxu0 0
      %625 = vmatpush1.bf16.xpose.msra.mxu0 0
      %626 = vmatprep.subr.bf16.mxu0 0
      %627 = vmatpush1.bf16.xpose.msra.mxu0 0
      %628 = vmatprep.subr.bf16.mxu0 0
      %629 = vmatpush1.bf16.xpose.msra.mxu0 0
      %630 = vmatprep.subr.bf16.mxu0 0
      %631 = vmatpush1.bf16.xpose.msra.mxu0 0
      %632 = vmatprep.subr.bf16.mxu0 0
      %633 = vmatpush1.bf16.xpose.msra.mxu0 0
      %634 = vmatprep.subr.bf16.mxu0 0
      %635 = vmatpush1.bf16.xpose.msra.mxu0 0
      %636 = vmatprep.subr.bf16.mxu0 0
      %637 = vmatpush1.bf16.xpose.msra.mxu0 0
      %638 = vmatprep.subr.bf16.mxu0 0
      %639 = vmatpush1.bf16.xpose.msra.mxu0 0
      %640 = vmatprep.mubr.bf16.mxu0 0
      %641 = vmatmul.mubr.bf16.gmra.mrb[0].mxu0 %v603
      %v642 = vpop.f32.mrb[0].mxu0
      %v643 = vadd.f32 0.0, %v642
      %v644 = vpop.f32.mrb[0].mxu0
      %v645 = vpop.f32.mrb[0].mxu0
      %v646 = vpop.f32.mrb[0].mxu0
      %647 = vdwg.mxu0
      %649 = vrot.lane.b32.xlu0 %v595, 64
      %v650 = vpop.permute.xlu0 %649
      %v652 = vsel %vm601, %v595, 0
      %v655 = vsel %vm601, %v650, 0
      %657 = vmatprep.subr.bf16.mxu0 0
      %658 = vmatpush1.bf16.xpose.msra.mxu0 %v655
      %659 = vmatprep.subr.bf16.mxu0 0
      %660 = vmatpush1.bf16.xpose.msra.mxu0 0
      %661 = vmatprep.subr.bf16.mxu0 0
      %662 = vmatpush1.bf16.xpose.msra.mxu0 0
      %663 = vmatprep.subr.bf16.mxu0 0
      %664 = vmatpush1.bf16.xpose.msra.mxu0 0
      %665 = vmatprep.subr.bf16.mxu0 0
      %666 = vmatpush1.bf16.xpose.msra.mxu0 0
      %667 = vmatprep.subr.bf16.mxu0 0
      %668 = vmatpush1.bf16.xpose.msra.mxu0 0
      %669 = vmatprep.subr.bf16.mxu0 0
      %670 = vmatpush1.bf16.xpose.msra.mxu0 0
      %671 = vmatprep.subr.bf16.mxu0 0
      %672 = vmatpush1.bf16.xpose.msra.mxu0 0
      %673 = vmatprep.subr.bf16.mxu0 0
      %674 = vmatpush1.bf16.xpose.msra.mxu0 0
      %675 = vmatprep.subr.bf16.mxu0 0
      %676 = vmatpush1.bf16.xpose.msra.mxu0 0
      %677 = vmatprep.subr.bf16.mxu0 0
      %678 = vmatpush1.bf16.xpose.msra.mxu0 0
      %679 = vmatprep.subr.bf16.mxu0 0
      %680 = vmatpush1.bf16.xpose.msra.mxu0 0
      %681 = vmatprep.subr.bf16.mxu0 0
      %682 = vmatpush1.bf16.xpose.msra.mxu0 0
      %683 = vmatprep.subr.bf16.mxu0 0
      %684 = vmatpush1.bf16.xpose.msra.mxu0 0
      %685 = vmatprep.subr.bf16.mxu0 0
      %686 = vmatpush1.bf16.xpose.msra.mxu0 0
      %687 = vmatprep.subr.bf16.mxu0 0
      %688 = vmatpush1.bf16.xpose.msra.mxu0 0
      %689 = vmatprep.mubr.bf16.mxu0 0
      %690 = vmatmul.mubr.bf16.gmra.mrb[0].mxu0 %v652
      %v691 = vpop.f32.mrb[0].mxu0
      %v692 = vadd.f32 0.0, %v691
      %v693 = vpop.f32.mrb[0].mxu0
      %v694 = vpop.f32.mrb[0].mxu0
      %v695 = vpop.f32.mrb[0].mxu0
      %696 = vdwg.mxu0
      %v697 = vmul.f32 %v643, 0.35355338
      %v698 = vmul.f32 %v692, 0.35355338
      %v699 = vsel %vm601, %v697, -inf
      %700 = vmax.xlane.f32.xlu0 %v699
      %v701 = vpop.xlane.xlu0 %700
      %v702 = vsel %vm601, %v698, -inf
      %703 = vmax.xlane.f32.xlu0 %v702
      %v704 = vpop.xlane.xlu0 %703
      %v705 = vsub.f32 %v697, %v701
      %v706 = vsub.f32 %v698, %v704
      %v707 = vmul.f32 %v705, 1.442695
      %v708 = vpow.pop %v707
      %v709 = vmul.f32 %v706, 1.442695
      %v710 = vpow.pop %v709
      %v711 = vsel %vm601, %v708, 0.0
      %712 = vadd.xlane.f32.xlu0 %v711
      %v713 = vpop.xlane.xlu0 %712
      %v714 = vsel %vm601, %v710, 0.0
      %715 = vadd.xlane.f32.xlu0 %v714
      %v716 = vpop.xlane.xlu0 %715
      %v717 = vrcp.pop %v713
      %v718 = vrcp.pop %v716
      %v719 = vmul.f32 %v708, %v717
      %v720 = vmul.f32 %v710, %v718
      %v721 = vpack.c.bf16 %v719, %v719
      %v722 = vpack.c.bf16 %v720, %v720
      %v724 = vsel %vm601, %v721, 0
      %vm726 = vcmask 1043456
      %v728 = vsel %vm726, %v596, 0
      %730 = vmatprep.subr.bf16.mxu0 0
      %731 = vmatpush1.bf16.msra.mxu0 %v728
      %732 = vmatprep.subr.bf16.mxu0 0
      %733 = vmatpush1.bf16.msra.mxu0 0
      %734 = vmatprep.subr.bf16.mxu0 0
      %735 = vmatpush1.bf16.msra.mxu0 0
      %736 = vmatprep.subr.bf16.mxu0 0
      %737 = vmatpush1.bf16.msra.mxu0 0
      %738 = vmatprep.subr.bf16.mxu0 0
      %739 = vmatpush1.bf16.msra.mxu0 0
      %740 = vmatprep.subr.bf16.mxu0 0
      %741 = vmatpush1.bf16.msra.mxu0 0
      %742 = vmatprep.subr.bf16.mxu0 0
      %743 = vmatpush1.bf16.msra.mxu0 0
      %744 = vmatprep.subr.bf16.mxu0 0
      %745 = vmatpush1.bf16.msra.mxu0 0
      %746 = vmatprep.subr.bf16.mxu0 0
      %747 = vmatpush1.bf16.msra.mxu0 0
      %748 = vmatprep.subr.bf16.mxu0 0
      %749 = vmatpush1.bf16.msra.mxu0 0
      %750 = vmatprep.subr.bf16.mxu0 0
      %751 = vmatpush1.bf16.msra.mxu0 0
      %752 = vmatprep.subr.bf16.mxu0 0
      %753 = vmatpush1.bf16.msra.mxu0 0
      %754 = vmatprep.subr.bf16.mxu0 0
      %755 = vmatpush1.bf16.msra.mxu0 0
      %756 = vmatprep.subr.bf16.mxu0 0
      %757 = vmatpush1.bf16.msra.mxu0 0
      %758 = vmatprep.subr.bf16.mxu0 0
      %759 = vmatpush1.bf16.msra.mxu0 0
      %760 = vmatprep.subr.bf16.mxu0 0
      %761 = vmatpush1.bf16.msra.mxu0 0
      %762 = vmatprep.mubr.bf16.mxu0 0
      %763 = vmatmul.mubr.bf16.gmra.mrb[0].mxu0 %v724
      %v764 = vpop.f32.mrb[0].mxu0
      %v765 = vadd.f32 0.0, %v764
      %v766 = vpop.f32.mrb[0].mxu0
      %v767 = vpop.f32.mrb[0].mxu0
      %v768 = vpop.f32.mrb[0].mxu0
      %769 = vdwg.mxu0
      %v771 = vsel %vm601, %v722, 0
      %v774 = vsel %vm726, %v597, 0
      %776 = vmatprep.subr.bf16.mxu0 0
      %777 = vmatpush1.bf16.msra.mxu0 %v774
      %778 = vmatprep.subr.bf16.mxu0 0
      %779 = vmatpush1.bf16.msra.mxu0 0
      %780 = vmatprep.subr.bf16.mxu0 0
      %781 = vmatpush1.bf16.msra.mxu0 0
      %782 = vmatprep.subr.bf16.mxu0 0
      %783 = vmatpush1.bf16.msra.mxu0 0
      %784 = vmatprep.subr.bf16.mxu0 0
      %785 = vmatpush1.bf16.msra.mxu0 0
      %786 = vmatprep.subr.bf16.mxu0 0
      %787 = vmatpush1.bf16.msra.mxu0 0
      %788 = vmatprep.subr.bf16.mxu0 0
      %789 = vmatpush1.bf16.msra.mxu0 0
      %790 = vmatprep.subr.bf16.mxu0 0
      %791 = vmatpush1.bf16.msra.mxu0 0
      %792 = vmatprep.subr.bf16.mxu0 0
      %793 = vmatpush1.bf16.msra.mxu0 0
      %794 = vmatprep.subr.bf16.mxu0 0
      %795 = vmatpush1.bf16.msra.mxu0 0
      %796 = vmatprep.subr.bf16.mxu0 0
      %797 = vmatpush1.bf16.msra.mxu0 0
      %798 = vmatprep.subr.bf16.mxu0 0
      %799 = vmatpush1.bf16.msra.mxu0 0
      %800 = vmatprep.subr.bf16.mxu0 0
      %801 = vmatpush1.bf16.msra.mxu0 0
      %802 = vmatprep.subr.bf16.mxu0 0
      %803 = vmatpush1.bf16.msra.mxu0 0
      %804 = vmatprep.subr.bf16.mxu0 0
      %805 = vmatpush1.bf16.msra.mxu0 0
      %806 = vmatprep.subr.bf16.mxu0 0
      %807 = vmatpush1.bf16.msra.mxu0 0
      %808 = vmatprep.mubr.bf16.mxu0 0
      %809 = vmatmul.mubr.bf16.gmra.mrb[0].mxu0 %v771
      %v810 = vpop.f32.mrb[0].mxu0
      %v811 = vadd.f32 0.0, %v810
      %v812 = vpop.f32.mrb[0].mxu0
      %v813 = vpop.f32.mrb[0].mxu0
      %v814 = vpop.f32.mrb[0].mxu0
      %815 = vdwg.mxu0
      %816 = vrot.lane.b32.xlu0 %v594, 120
      %v817 = vpop.permute.xlu0 %816
      %818 = vrot.lane.b32.xlu0 %v594, 56
      %v819 = vpop.permute.xlu0 %818
      %v821 = vsel %vm601, %v817, 0
      %v824 = vsel %vm601, %v819, 0
      %826 = vmatprep.subr.bf16.mxu0 0
      %827 = vmatpush1.bf16.xpose.msra.mxu0 %v824
      %828 = vmatprep.subr.bf16.mxu0 0
      %829 = vmatpush1.bf16.xpose.msra.mxu0 0
      %830 = vmatprep.subr.bf16.mxu0 0
      %831 = vmatpush1.bf16.xpose.msra.mxu0 0
      %832 = vmatprep.subr.bf16.mxu0 0
      %833 = vmatpush1.bf16.xpose.msra.mxu0 0
      %834 = vmatprep.subr.bf16.mxu0 0
      %835 = vmatpush1.bf16.xpose.msra.mxu0 0
      %836 = vmatprep.subr.bf16.mxu0 0
      %837 = vmatpush1.bf16.xpose.msra.mxu0 0
      %838 = vmatprep.subr.bf16.mxu0 0
      %839 = vmatpush1.bf16.xpose.msra.mxu0 0
      %840 = vmatprep.subr.bf16.mxu0 0
      %841 = vmatpush1.bf16.xpose.msra.mxu0 0
      %842 = vmatprep.subr.bf16.mxu0 0
      %843 = vmatpush1.bf16.xpose.msra.mxu0 0
      %844 = vmatprep.subr.bf16.mxu0 0
      %845 = vmatpush1.bf16.xpose.msra.mxu0 0
      %846 = vmatprep.subr.bf16.mxu0 0
      %847 = vmatpush1.bf16.xpose.msra.mxu0 0
      %848 = vmatprep.subr.bf16.mxu0 0
      %849 = vmatpush1.bf16.xpose.msra.mxu0 0
      %850 = vmatprep.subr.bf16.mxu0 0
      %851 = vmatpush1.bf16.xpose.msra.mxu0 0
      %852 = vmatprep.subr.bf16.mxu0 0
      %853 = vmatpush1.bf16.xpose.msra.mxu0 0
      %854 = vmatprep.subr.bf16.mxu0 0
      %855 = vmatpush1.bf16.xpose.msra.mxu0 0
      %856 = vmatprep.subr.bf16.mxu0 0
      %857 = vmatpush1.bf16.xpose.msra.mxu0 0
      %858 = vmatprep.mubr.bf16.mxu0 0
      %859 = vmatmul.mubr.bf16.gmra.mrb[0].mxu0 %v821
      %v860 = vpop.f32.mrb[0].mxu0
      %v861 = vadd.f32 0.0, %v860
      %v862 = vpop.f32.mrb[0].mxu0
      %v863 = vpop.f32.mrb[0].mxu0
      %v864 = vpop.f32.mrb[0].mxu0
      %865 = vdwg.mxu0
      %866 = vrot.lane.b32.xlu0 %v595, 120
      %v867 = vpop.permute.xlu0 %866
      %868 = vrot.lane.b32.xlu0 %v595, 56
      %v869 = vpop.permute.xlu0 %868
      %v871 = vsel %vm601, %v867, 0
      %v874 = vsel %vm601, %v869, 0
      %876 = vmatprep.subr.bf16.mxu0 0
      %877 = vmatpush1.bf16.xpose.msra.mxu0 %v874
      %878 = vmatprep.subr.bf16.mxu0 0
      %879 = vmatpush1.bf16.xpose.msra.mxu0 0
      %880 = vmatprep.subr.bf16.mxu0 0
      %881 = vmatpush1.bf16.xpose.msra.mxu0 0
      %882 = vmatprep.subr.bf16.mxu0 0
      %883 = vmatpush1.bf16.xpose.msra.mxu0 0
      %884 = vmatprep.subr.bf16.mxu0 0
      %885 = vmatpush1.bf16.xpose.msra.mxu0 0
      %886 = vmatprep.subr.bf16.mxu0 0
      %887 = vmatpush1.bf16.xpose.msra.mxu0 0
      %888 = vmatprep.subr.bf16.mxu0 0
      %889 = vmatpush1.bf16.xpose.msra.mxu0 0
      %890 = vmatprep.subr.bf16.mxu0 0
      %891 = vmatpush1.bf16.xpose.msra.mxu0 0
      %892 = vmatprep.subr.bf16.mxu0 0
      %893 = vmatpush1.bf16.xpose.msra.mxu0 0
      %894 = vmatprep.subr.bf16.mxu0 0
      %895 = vmatpush1.bf16.xpose.msra.mxu0 0
      %896 = vmatprep.subr.bf16.mxu0 0
      %897 = vmatpush1.bf16.xpose.msra.mxu0 0
      %898 = vmatprep.subr.bf16.mxu0 0
      %899 = vmatpush1.bf16.xpose.msra.mxu0 0
      %900 = vmatprep.subr.bf16.mxu0 0
      %901 = vmatpush1.bf16.xpose.msra.mxu0 0
      %902 = vmatprep.subr.bf16.mxu0 0
      %903 = vmatpush1.bf16.xpose.msra.mxu0 0
      %904 = vmatprep.subr.bf16.mxu0 0
      %905 = vmatpush1.bf16.xpose.msra.mxu0 0
      %906 = vmatprep.subr.bf16.mxu0 0
      %907 = vmatpush1.bf16.xpose.msra.mxu0 0
      %908 = vmatprep.mubr.bf16.mxu0 0
      %909 = vmatmul.mubr.bf16.gmra.mrb[0].mxu0 %v871
      %v910 = vpop.f32.mrb[0].mxu0
      %v911 = vadd.f32 0.0, %v910
      %v912 = vpop.f32.mrb[0].mxu0
      %v913 = vpop.f32.mrb[0].mxu0
      %v914 = vpop.f32.mrb[0].mxu0
      %915 = vdwg.mxu0
      %v916 = vmul.f32 %v861, 0.35355338
      %v917 = vmul.f32 %v911, 0.35355338
      %v918 = vsel %vm601, %v916, -inf
      %919 = vmax.xlane.f32.xlu0 %v918
      %v920 = vpop.xlane.xlu0 %919
      %v921 = vsel %vm601, %v917, -inf
      %922 = vmax.xlane.f32.xlu0 %v921
      %v923 = vpop.xlane.xlu0 %922
      %v924 = vsub.f32 %v916, %v920
      %v925 = vsub.f32 %v917, %v923
      %v926 = vmul.f32 %v924, 1.442695
      %v927 = vpow.pop %v926
      %v928 = vmul.f32 %v925, 1.442695
      %v929 = vpow.pop %v928
      %v930 = vsel %vm601, %v927, 0.0
      %931 = vadd.xlane.f32.xlu0 %v930
      %v932 = vpop.xlane.xlu0 %931
      %v933 = vsel %vm601, %v929, 0.0
      %934 = vadd.xlane.f32.xlu0 %v933
      %v935 = vpop.xlane.xlu0 %934
      %v936 = vrcp.pop %v932
      %v937 = vrcp.pop %v935
      %v938 = vmul.f32 %v927, %v936
      %v939 = vmul.f32 %v929, %v937
      %v940 = vpack.c.bf16 %v938, %v938
      %v941 = vpack.c.bf16 %v939, %v939
      %943 = vrot.lane.b32.xlu0 %v596, 120
      %v944 = vpop.permute.xlu0 %943
      %v946 = vsel %vm601, %v940, 0
      %v949 = vsel %vm726, %v944, 0
      %951 = vmatprep.subr.bf16.mxu0 0
      %952 = vmatpush1.bf16.msra.mxu0 %v949
      %953 = vmatprep.subr.bf16.mxu0 0
      %954 = vmatpush1.bf16.msra.mxu0 0
      %955 = vmatprep.subr.bf16.mxu0 0
      %956 = vmatpush1.bf16.msra.mxu0 0
      %957 = vmatprep.subr.bf16.mxu0 0
      %958 = vmatpush1.bf16.msra.mxu0 0
      %959 = vmatprep.subr.bf16.mxu0 0
      %960 = vmatpush1.bf16.msra.mxu0 0
      %961 = vmatprep.subr.bf16.mxu0 0
      %962 = vmatpush1.bf16.msra.mxu0 0
      %963 = vmatprep.subr.bf16.mxu0 0
      %964 = vmatpush1.bf16.msra.mxu0 0
      %965 = vmatprep.subr.bf16.mxu0 0
      %966 = vmatpush1.bf16.msra.mxu0 0
      %967 = vmatprep.subr.bf16.mxu0 0
      %968 = vmatpush1.bf16.msra.mxu0 0
      %969 = vmatprep.subr.bf16.mxu0 0
      %970 = vmatpush1.bf16.msra.mxu0 0
      %971 = vmatprep.subr.bf16.mxu0 0
      %972 = vmatpush1.bf16.msra.mxu0 0
      %973 = vmatprep.subr.bf16.mxu0 0
      %974 = vmatpush1.bf16.msra.mxu0 0
      %975 = vmatprep.subr.bf16.mxu0 0
      %976 = vmatpush1.bf16.msra.mxu0 0
      %977 = vmatprep.subr.bf16.mxu0 0
      %978 = vmatpush1.bf16.msra.mxu0 0
      %979 = vmatprep.subr.bf16.mxu0 0
      %980 = vmatpush1.bf16.msra.mxu0 0
      %981 = vmatprep.subr.bf16.mxu0 0
      %982 = vmatpush1.bf16.msra.mxu0 0
      %983 = vmatprep.mubr.bf16.mxu0 0
      %984 = vmatmul.mubr.bf16.gmra.mrb[0].mxu0 %v946
      %v985 = vpop.f32.mrb[0].mxu0
      %v986 = vadd.f32 0.0, %v985
      %v987 = vpop.f32.mrb[0].mxu0
      %v988 = vpop.f32.mrb[0].mxu0
      %v989 = vpop.f32.mrb[0].mxu0
      %990 = vdwg.mxu0
      %992 = vrot.lane.b32.xlu0 %v597, 120
      %v993 = vpop.permute.xlu0 %992
      %v995 = vsel %vm601, %v941, 0
      %v998 = vsel %vm726, %v993, 0
      %1000 = vmatprep.subr.bf16.mxu0 0
      %1001 = vmatpush1.bf16.msra.mxu0 %v998
      %1002 = vmatprep.subr.bf16.mxu0 0
      %1003 = vmatpush1.bf16.msra.mxu0 0
      %1004 = vmatprep.subr.bf16.mxu0 0
      %1005 = vmatpush1.bf16.msra.mxu0 0
      %1006 = vmatprep.subr.bf16.mxu0 0
      %1007 = vmatpush1.bf16.msra.mxu0 0
      %1008 = vmatprep.subr.bf16.mxu0 0
      %1009 = vmatpush1.bf16.msra.mxu0 0
      %1010 = vmatprep.subr.bf16.mxu0 0
      %1011 = vmatpush1.bf16.msra.mxu0 0
      %1012 = vmatprep.subr.bf16.mxu0 0
      %1013 = vmatpush1.bf16.msra.mxu0 0
      %1014 = vmatprep.subr.bf16.mxu0 0
      %1015 = vmatpush1.bf16.msra.mxu0 0
      %1016 = vmatprep.subr.bf16.mxu0 0
      %1017 = vmatpush1.bf16.msra.mxu0 0
      %1018 = vmatprep.subr.bf16.mxu0 0
      %1019 = vmatpush1.bf16.msra.mxu0 0
      %1020 = vmatprep.subr.bf16.mxu0 0
      %1021 = vmatpush1.bf16.msra.mxu0 0
      %1022 = vmatprep.subr.bf16.mxu0 0
      %1023 = vmatpush1.bf16.msra.mxu0 0
      %1024 = vmatprep.subr.bf16.mxu0 0
      %1025 = vmatpush1.bf16.msra.mxu0 0
      %1026 = vmatprep.subr.bf16.mxu0 0
      %1027 = vmatpush1.bf16.msra.mxu0 0
      %1028 = vmatprep.subr.bf16.mxu0 0
      %1029 = vmatpush1.bf16.msra.mxu0 0
      %1030 = vmatprep.subr.bf16.mxu0 0
      %1031 = vmatpush1.bf16.msra.mxu0 0
      %1032 = vmatprep.mubr.bf16.mxu0 0
      %1033 = vmatmul.mubr.bf16.gmra.mrb[0].mxu0 %v995
      %v1034 = vpop.f32.mrb[0].mxu0
      %v1035 = vadd.f32 0.0, %v1034
      %v1036 = vpop.f32.mrb[0].mxu0
      %v1037 = vpop.f32.mrb[0].mxu0
      %v1038 = vpop.f32.mrb[0].mxu0
      %1039 = vdwg.mxu0
      %1040 = vrot.lane.b32.xlu0 %v594, 112
      %v1041 = vpop.permute.xlu0 %1040
      %1042 = vrot.lane.b32.xlu0 %v594, 48
      %v1043 = vpop.permute.xlu0 %1042
      %v1045 = vsel %vm601, %v1041, 0
      %v1048 = vsel %vm601, %v1043, 0
      %1050 = vmatprep.subr.bf16.mxu0 0
      %1051 = vmatpush1.bf16.xpose.msra.mxu0 %v1048
      %1052 = vmatprep.subr.bf16.mxu0 0
      %1053 = vmatpush1.bf16.xpose.msra.mxu0 0
      %1054 = vmatprep.subr.bf16.mxu0 0
      %1055 = vmatpush1.bf16.xpose.msra.mxu0 0
      %1056 = vmatprep.subr.bf16.mxu0 0
      %1057 = vmatpush1.bf16.xpose.msra.mxu0 0
      %1058 = vmatprep.subr.bf16.mxu0 0
      %1059 = vmatpush1.bf16.xpose.msra.mxu0 0
      %1060 = vmatprep.subr.bf16.mxu0 0
      %1061 = vmatpush1.bf16.xpose.msra.mxu0 0
      %1062 = vmatprep.subr.bf16.mxu0 0
      %1063 = vmatpush1.bf16.xpose.msra.mxu0 0
      %1064 = vmatprep.subr.bf16.mxu0 0
      %1065 = vmatpush1.bf16.xpose.msra.mxu0 0
      %1066 = vmatprep.subr.bf16.mxu0 0
      %1067 = vmatpush1.bf16.xpose.msra.mxu0 0
      %1068 = vmatprep.subr.bf16.mxu0 0
      %1069 = vmatpush1.bf16.xpose.msra.mxu0 0
      %1070 = vmatprep.subr.bf16.mxu0 0
      %1071 = vmatpush1.bf16.xpose.msra.mxu0 0
      %1072 = vmatprep.subr.bf16.mxu0 0
      %1073 = vmatpush1.bf16.xpose.msra.mxu0 0
      %1074 = vmatprep.subr.bf16.mxu0 0
      %1075 = vmatpush1.bf16.xpose.msra.mxu0 0
      %1076 = vmatprep.subr.bf16.mxu0 0
      %1077 = vmatpush1.bf16.xpose.msra.mxu0 0
      %1078 = vmatprep.subr.bf16.mxu0 0
      %1079 = vmatpush1.bf16.xpose.msra.mxu0 0
      %1080 = vmatprep.subr.bf16.mxu0 0
      %1081 = vmatpush1.bf16.xpose.msra.mxu0 0
      %1082 = vmatprep.mubr.bf16.mxu0 0
      %1083 = vmatmul.mubr.bf16.gmra.mrb[0].mxu0 %v1045
      %v1084 = vpop.f32.mrb[0].mxu0
      %v1085 = vadd.f32 0.0, %v1084
      %v1086 = vpop.f32.mrb[0].mxu0
      %v1087 = vpop.f32.mrb[0].mxu0
      %v1088 = vpop.f32.mrb[0].mxu0
      %1089 = vdwg.mxu0
      %1090 = vrot.lane.b32.xlu0 %v595, 112
      %v1091 = vpop.permute.xlu0 %1090
      %1092 = vrot.lane.b32.xlu0 %v595, 48
      %v1093 = vpop.permute.xlu0 %1092
      %v1095 = vsel %vm601, %v1091, 0
      %v1098 = vsel %vm601, %v1093, 0
      %1100 = vmatprep.subr.bf16.mxu0 0
      %1101 = vmatpush1.bf16.xpose.msra.mxu0 %v1098
      %1102 = vmatprep.subr.bf16.mxu0 0
      %1103 = vmatpush1.bf16.xpose.msra.mxu0 0
      %1104 = vmatprep.subr.bf16.mxu0 0
      %1105 = vmatpush1.bf16.xpose.msra.mxu0 0
      %1106 = vmatprep.subr.bf16.mxu0 0
      %1107 = vmatpush1.bf16.xpose.msra.mxu0 0
      %1108 = vmatprep.subr.bf16.mxu0 0
      %1109 = vmatpush1.bf16.xpose.msra.mxu0 0
      %1110 = vmatprep.subr.bf16.mxu0 0
      %1111 = vmatpush1.bf16.xpose.msra.mxu0 0
      %1112 = vmatprep.subr.bf16.mxu0 0
      %1113 = vmatpush1.bf16.xpose.msra.mxu0 0
      %1114 = vmatprep.subr.bf16.mxu0 0
      %1115 = vmatpush1.bf16.xpose.msra.mxu0 0
      %1116 = vmatprep.subr.bf16.mxu0 0
      %1117 = vmatpush1.bf16.xpose.msra.mxu0 0
      %1118 = vmatprep.subr.bf16.mxu0 0
      %1119 = vmatpush1.bf16.xpose.msra.mxu0 0
      %1120 = vmatprep.subr.bf16.mxu0 0
      %1121 = vmatpush1.bf16.xpose.msra.mxu0 0
      %1122 = vmatprep.subr.bf16.mxu0 0
      %1123 = vmatpush1.bf16.xpose.msra.mxu0 0
      %1124 = vmatprep.subr.bf16.mxu0 0
      %1125 = vmatpush1.bf16.xpose.msra.mxu0 0
      %1126 = vmatprep.subr.bf16.mxu0 0
      %1127 = vmatpush1.bf16.xpose.msra.mxu0 0
      %1128 = vmatprep.subr.bf16.mxu0 0
      %1129 = vmatpush1.bf16.xpose.msra.mxu0 0
      %1130 = vmatprep.subr.bf16.mxu0 0
      %1131 = vmatpush1.bf16.xpose.msra.mxu0 0
      %1132 = vmatprep.mubr.bf16.mxu0 0
      %1133 = vmatmul.mubr.bf16.gmra.mrb[0].mxu0 %v1095
      %v1134 = vpop.f32.mrb[0].mxu0
      %v1135 = vadd.f32 0.0, %v1134
      %v1136 = vpop.f32.mrb[0].mxu0
      %v1137 = vpop.f32.mrb[0].mxu0
      %v1138 = vpop.f32.mrb[0].mxu0
      %1139 = vdwg.mxu0
      %v1140 = vmul.f32 %v1085, 0.35355338
      %v1141 = vmul.f32 %v1135, 0.35355338
      %v1142 = vsel %vm601, %v1140, -inf
      %1143 = vmax.xlane.f32.xlu0 %v1142
      %v1144 = vpop.xlane.xlu0 %1143
      %v1145 = vsel %vm601, %v1141, -inf
      %1146 = vmax.xlane.f32.xlu0 %v1145
      %v1147 = vpop.xlane.xlu0 %1146
      %v1148 = vsub.f32 %v1140, %v1144
      %v1149 = vsub.f32 %v1141, %v1147
      %v1150 = vmul.f32 %v1148, 1.442695
      %v1151 = vpow.pop %v1150
      %v1152 = vmul.f32 %v1149, 1.442695
      %v1153 = vpow.pop %v1152
      %v1154 = vsel %vm601, %v1151, 0.0
      %1155 = vadd.xlane.f32.xlu0 %v1154
      %v1156 = vpop.xlane.xlu0 %1155
      %v1157 = vsel %vm601, %v1153, 0.0
      %1158 = vadd.xlane.f32.xlu0 %v1157
      %v1159 = vpop.xlane.xlu0 %1158
      %v1160 = vrcp.pop %v1156
      %v1161 = vrcp.pop %v1159
      %v1162 = vmul.f32 %v1151, %v1160
      %v1163 = vmul.f32 %v1153, %v1161
      %v1164 = vpack.c.bf16 %v1162, %v1162
      %v1165 = vpack.c.bf16 %v1163, %v1163
      %1166 = vrot.lane.b32.xlu0 %v596, 112
      %v1167 = vpop.permute.xlu0 %1166
      %v1169 = vsel %vm601, %v1164, 0
      %v1172 = vsel %vm726, %v1167, 0
      %1174 = vmatprep.subr.bf16.mxu0 0
      %1175 = vmatpush1.bf16.msra.mxu0 %v1172
      %1176 = vmatprep.subr.bf16.mxu0 0
      %1177 = vmatpush1.bf16.msra.mxu0 0
      %1178 = vmatprep.subr.bf16.mxu0 0
      %1179 = vmatpush1.bf16.msra.mxu0 0
      %1180 = vmatprep.subr.bf16.mxu0 0
      %1181 = vmatpush1.bf16.msra.mxu0 0
      %1182 = vmatprep.subr.bf16.mxu0 0
      %1183 = vmatpush1.bf16.msra.mxu0 0
      %1184 = vmatprep.subr.bf16.mxu0 0
      %1185 = vmatpush1.bf16.msra.mxu0 0
      %1186 = vmatprep.subr.bf16.mxu0 0
      %1187 = vmatpush1.bf16.msra.mxu0 0
      %1188 = vmatprep.subr.bf16.mxu0 0
      %1189 = vmatpush1.bf16.msra.mxu0 0
      %1190 = vmatprep.subr.bf16.mxu0 0
      %1191 = vmatpush1.bf16.msra.mxu0 0
      %1192 = vmatprep.subr.bf16.mxu0 0
      %1193 = vmatpush1.bf16.msra.mxu0 0
      %1194 = vmatprep.subr.bf16.mxu0 0
      %1195 = vmatpush1.bf16.msra.mxu0 0
      %1196 = vmatprep.subr.bf16.mxu0 0
      %1197 = vmatpush1.bf16.msra.mxu0 0
      %1198 = vmatprep.subr.bf16.mxu0 0
      %1199 = vmatpush1.bf16.msra.mxu0 0
      %1200 = vmatprep.subr.bf16.mxu0 0
      %1201 = vmatpush1.bf16.msra.mxu0 0
      %1202 = vmatprep.subr.bf16.mxu0 0
      %1203 = vmatpush1.bf16.msra.mxu0 0
      %1204 = vmatprep.subr.bf16.mxu0 0
      %1205 = vmatpush1.bf16.msra.mxu0 0
      %1206 = vmatprep.mubr.bf16.mxu0 0
      %1207 = vmatmul.mubr.bf16.gmra.mrb[0].mxu0 %v1169
      %v1208 = vpop.f32.mrb[0].mxu0
      %v1209 = vadd.f32 0.0, %v1208
      %v1210 = vpop.f32.mrb[0].mxu0
      %v1211 = vpop.f32.mrb[0].mxu0
      %v1212 = vpop.f32.mrb[0].mxu0
      %1213 = vdwg.mxu0
      %1214 = vrot.lane.b32.xlu0 %v597, 112
      %v1215 = vpop.permute.xlu0 %1214
      %v1217 = vsel %vm601, %v1165, 0
      %v1220 = vsel %vm726, %v1215, 0
      %1222 = vmatprep.subr.bf16.mxu0 0
      %1223 = vmatpush1.bf16.msra.mxu0 %v1220
      %1224 = vmatprep.subr.bf16.mxu0 0
      %1225 = vmatpush1.bf16.msra.mxu0 0
      %1226 = vmatprep.subr.bf16.mxu0 0
      %1227 = vmatpush1.bf16.msra.mxu0 0
      %1228 = vmatprep.subr.bf16.mxu0 0
      %1229 = vmatpush1.bf16.msra.mxu0 0
      %1230 = vmatprep.subr.bf16.mxu0 0
      %1231 = vmatpush1.bf16.msra.mxu0 0
      %1232 = vmatprep.subr.bf16.mxu0 0
      %1233 = vmatpush1.bf16.msra.mxu0 0
      %1234 = vmatprep.subr.bf16.mxu0 0
      %1235 = vmatpush1.bf16.msra.mxu0 0
      %1236 = vmatprep.subr.bf16.mxu0 0
      %1237 = vmatpush1.bf16.msra.mxu0 0
      %1238 = vmatprep.subr.bf16.mxu0 0
      %1239 = vmatpush1.bf16.msra.mxu0 0
      %1240 = vmatprep.subr.bf16.mxu0 0
      %1241 = vmatpush1.bf16.msra.mxu0 0
      %1242 = vmatprep.subr.bf16.mxu0 0
      %1243 = vmatpush1.bf16.msra.mxu0 0
      %1244 = vmatprep.subr.bf16.mxu0 0
      %1245 = vmatpush1.bf16.msra.mxu0 0
      %1246 = vmatprep.subr.bf16.mxu0 0
      %1247 = vmatpush1.bf16.msra.mxu0 0
      %1248 = vmatprep.subr.bf16.mxu0 0
      %1249 = vmatpush1.bf16.msra.mxu0 0
      %1250 = vmatprep.subr.bf16.mxu0 0
      %1251 = vmatpush1.bf16.msra.mxu0 0
      %1252 = vmatprep.subr.bf16.mxu0 0
      %1253 = vmatpush1.bf16.msra.mxu0 0
      %1254 = vmatprep.mubr.bf16.mxu0 0
      %1255 = vmatmul.mubr.bf16.gmra.mrb[0].mxu0 %v1217
      %v1256 = vpop.f32.mrb[0].mxu0
      %v1257 = vadd.f32 0.0, %v1256
      %v1258 = vpop.f32.mrb[0].mxu0
      %v1259 = vpop.f32.mrb[0].mxu0
      %v1260 = vpop.f32.mrb[0].mxu0
      %1261 = vdwg.mxu0
      %1262 = vrot.lane.b32.xlu0 %v594, 104
      %v1263 = vpop.permute.xlu0 %1262
      %1264 = vrot.lane.b32.xlu0 %v594, 40
      %v1265 = vpop.permute.xlu0 %1264
      %v1267 = vsel %vm601, %v1263, 0
      %v1270 = vsel %vm601, %v1265, 0
      %1272 = vmatprep.subr.bf16.mxu0 0
      %1273 = vmatpush1.bf16.xpose.msra.mxu0 %v1270
      %1274 = vmatprep.subr.bf16.mxu0 0
      %1275 = vmatpush1.bf16.xpose.msra.mxu0 0
      %1276 = vmatprep.subr.bf16.mxu0 0
      %1277 = vmatpush1.bf16.xpose.msra.mxu0 0
      %1278 = vmatprep.subr.bf16.mxu0 0
      %1279 = vmatpush1.bf16.xpose.msra.mxu0 0
      %1280 = vmatprep.subr.bf16.mxu0 0
      %1281 = vmatpush1.bf16.xpose.msra.mxu0 0
      %1282 = vmatprep.subr.bf16.mxu0 0
      %1283 = vmatpush1.bf16.xpose.msra.mxu0 0
      %1284 = vmatprep.subr.bf16.mxu0 0
      %1285 = vmatpush1.bf16.xpose.msra.mxu0 0
      %1286 = vmatprep.subr.bf16.mxu0 0
      %1287 = vmatpush1.bf16.xpose.msra.mxu0 0
      %1288 = vmatprep.subr.bf16.mxu0 0
      %1289 = vmatpush1.bf16.xpose.msra.mxu0 0
      %1290 = vmatprep.subr.bf16.mxu0 0
      %1291 = vmatpush1.bf16.xpose.msra.mxu0 0
      %1292 = vmatprep.subr.bf16.mxu0 0
      %1293 = vmatpush1.bf16.xpose.msra.mxu0 0
      %1294 = vmatprep.subr.bf16.mxu0 0
      %1295 = vmatpush1.bf16.xpose.msra.mxu0 0
      %1296 = vmatprep.subr.bf16.mxu0 0
      %1297 = vmatpush1.bf16.xpose.msra.mxu0 0
      %1298 = vmatprep.subr.bf16.mxu0 0
      %1299 = vmatpush1.bf16.xpose.msra.mxu0 0
      %1300 = vmatprep.subr.bf16.mxu0 0
      %1301 = vmatpush1.bf16.xpose.msra.mxu0 0
      %1302 = vmatprep.subr.bf16.mxu0 0
      %1303 = vmatpush1.bf16.xpose.msra.mxu0 0
      %1304 = vmatprep.mubr.bf16.mxu0 0
      %1305 = vmatmul.mubr.bf16.gmra.mrb[0].mxu0 %v1267
      %v1306 = vpop.f32.mrb[0].mxu0
      %v1307 = vadd.f32 0.0, %v1306
      %v1308 = vpop.f32.mrb[0].mxu0
      %v1309 = vpop.f32.mrb[0].mxu0
      %v1310 = vpop.f32.mrb[0].mxu0
      %1311 = vdwg.mxu0
      %1312 = vrot.lane.b32.xlu0 %v595, 104
      %v1313 = vpop.permute.xlu0 %1312
      %1314 = vrot.lane.b32.xlu0 %v595, 40
      %v1315 = vpop.permute.xlu0 %1314
      %v1317 = vsel %vm601, %v1313, 0
      %v1320 = vsel %vm601, %v1315, 0
      %1322 = vmatprep.subr.bf16.mxu0 0
      %1323 = vmatpush1.bf16.xpose.msra.mxu0 %v1320
      %1324 = vmatprep.subr.bf16.mxu0 0
      %1325 = vmatpush1.bf16.xpose.msra.mxu0 0
      %1326 = vmatprep.subr.bf16.mxu0 0
      %1327 = vmatpush1.bf16.xpose.msra.mxu0 0
      %1328 = vmatprep.subr.bf16.mxu0 0
      %1329 = vmatpush1.bf16.xpose.msra.mxu0 0
      %1330 = vmatprep.subr.bf16.mxu0 0
      %1331 = vmatpush1.bf16.xpose.msra.mxu0 0
      %1332 = vmatprep.subr.bf16.mxu0 0
      %1333 = vmatpush1.bf16.xpose.msra.mxu0 0
      %1334 = vmatprep.subr.bf16.mxu0 0
      %1335 = vmatpush1.bf16.xpose.msra.mxu0 0
      %1336 = vmatprep.subr.bf16.mxu0 0
      %1337 = vmatpush1.bf16.xpose.msra.mxu0 0
      %1338 = vmatprep.subr.bf16.mxu0 0
      %1339 = vmatpush1.bf16.xpose.msra.mxu0 0
      %1340 = vmatprep.subr.bf16.mxu0 0
      %1341 = vmatpush1.bf16.xpose.msra.mxu0 0
      %1342 = vmatprep.subr.bf16.mxu0 0
      %1343 = vmatpush1.bf16.xpose.msra.mxu0 0
      %1344 = vmatprep.subr.bf16.mxu0 0
      %1345 = vmatpush1.bf16.xpose.msra.mxu0 0
      %1346 = vmatprep.subr.bf16.mxu0 0
      %1347 = vmatpush1.bf16.xpose.msra.mxu0 0
      %1348 = vmatprep.subr.bf16.mxu0 0
      %1349 = vmatpush1.bf16.xpose.msra.mxu0 0
      %1350 = vmatprep.subr.bf16.mxu0 0
      %1351 = vmatpush1.bf16.xpose.msra.mxu0 0
      %1352 = vmatprep.subr.bf16.mxu0 0
      %1353 = vmatpush1.bf16.xpose.msra.mxu0 0
      %1354 = vmatprep.mubr.bf16.mxu0 0
      %1355 = vmatmul.mubr.bf16.gmra.mrb[0].mxu0 %v1317
      %v1356 = vpop.f32.mrb[0].mxu0
      %v1357 = vadd.f32 0.0, %v1356
      %v1358 = vpop.f32.mrb[0].mxu0
      %v1359 = vpop.f32.mrb[0].mxu0
      %v1360 = vpop.f32.mrb[0].mxu0
      %1361 = vdwg.mxu0
      %v1362 = vmul.f32 %v1307, 0.35355338
      %v1363 = vmul.f32 %v1357, 0.35355338
      %v1364 = vsel %vm601, %v1362, -inf
      %1365 = vmax.xlane.f32.xlu0 %v1364
      %v1366 = vpop.xlane.xlu0 %1365
      %v1367 = vsel %vm601, %v1363, -inf
      %1368 = vmax.xlane.f32.xlu0 %v1367
      %v1369 = vpop.xlane.xlu0 %1368
      %v1370 = vsub.f32 %v1362, %v1366
      %v1371 = vsub.f32 %v1363, %v1369
      %v1372 = vmul.f32 %v1370, 1.442695
      %v1373 = vpow.pop %v1372
      %v1374 = vmul.f32 %v1371, 1.442695
      %v1375 = vpow.pop %v1374
      %v1376 = vsel %vm601, %v1373, 0.0
      %1377 = vadd.xlane.f32.xlu0 %v1376
      %v1378 = vpop.xlane.xlu0 %1377
      %v1379 = vsel %vm601, %v1375, 0.0
      %1380 = vadd.xlane.f32.xlu0 %v1379
      %v1381 = vpop.xlane.xlu0 %1380
      %v1382 = vrcp.pop %v1378
      %v1383 = vrcp.pop %v1381
      %v1384 = vmul.f32 %v1373, %v1382
      %v1385 = vmul.f32 %v1375, %v1383
      %v1386 = vpack.c.bf16 %v1384, %v1384
      %v1387 = vpack.c.bf16 %v1385, %v1385
      %1388 = vrot.lane.b32.xlu0 %v596, 104
      %v1389 = vpop.permute.xlu0 %1388
      %v1391 = vsel %vm601, %v1386, 0
      %v1394 = vsel %vm726, %v1389, 0
      %1396 = vmatprep.subr.bf16.mxu0 0
      %1397 = vmatpush1.bf16.msra.mxu0 %v1394
      %1398 = vmatprep.subr.bf16.mxu0 0
      %1399 = vmatpush1.bf16.msra.mxu0 0
      %1400 = vmatprep.subr.bf16.mxu0 0
      %1401 = vmatpush1.bf16.msra.mxu0 0
      %1402 = vmatprep.subr.bf16.mxu0 0
      %1403 = vmatpush1.bf16.msra.mxu0 0
      %1404 = vmatprep.subr.bf16.mxu0 0
      %1405 = vmatpush1.bf16.msra.mxu0 0
      %1406 = vmatprep.subr.bf16.mxu0 0
      %1407 = vmatpush1.bf16.msra.mxu0 0
      %1408 = vmatprep.subr.bf16.mxu0 0
      %1409 = vmatpush1.bf16.msra.mxu0 0
      %1410 = vmatprep.subr.bf16.mxu0 0
      %1411 = vmatpush1.bf16.msra.mxu0 0
      %1412 = vmatprep.subr.bf16.mxu0 0
      %1413 = vmatpush1.bf16.msra.mxu0 0
      %1414 = vmatprep.subr.bf16.mxu0 0
      %1415 = vmatpush1.bf16.msra.mxu0 0
      %1416 = vmatprep.subr.bf16.mxu0 0
      %1417 = vmatpush1.bf16.msra.mxu0 0
      %1418 = vmatprep.subr.bf16.mxu0 0
      %1419 = vmatpush1.bf16.msra.mxu0 0
      %1420 = vmatprep.subr.bf16.mxu0 0
      %1421 = vmatpush1.bf16.msra.mxu0 0
      %1422 = vmatprep.subr.bf16.mxu0 0
      %1423 = vmatpush1.bf16.msra.mxu0 0
      %1424 = vmatprep.subr.bf16.mxu0 0
      %1425 = vmatpush1.bf16.msra.mxu0 0
      %1426 = vmatprep.subr.bf16.mxu0 0
      %1427 = vmatpush1.bf16.msra.mxu0 0
      %1428 = vmatprep.mubr.bf16.mxu0 0
      %1429 = vmatmul.mubr.bf16.gmra.mrb[0].mxu0 %v1391
      %v1430 = vpop.f32.mrb[0].mxu0
      %v1431 = vadd.f32 0.0, %v1430
      %v1432 = vpop.f32.mrb[0].mxu0
      %v1433 = vpop.f32.mrb[0].mxu0
      %v1434 = vpop.f32.mrb[0].mxu0
      %1435 = vdwg.mxu0
      %1436 = vrot.lane.b32.xlu0 %v597, 104
      %v1437 = vpop.permute.xlu0 %1436
      %v1439 = vsel %vm601, %v1387, 0
      %v1442 = vsel %vm726, %v1437, 0
      %1444 = vmatprep.subr.bf16.mxu0 0
      %1445 = vmatpush1.bf16.msra.mxu0 %v1442
      %1446 = vmatprep.subr.bf16.mxu0 0
      %1447 = vmatpush1.bf16.msra.mxu0 0
      %1448 = vmatprep.subr.bf16.mxu0 0
      %1449 = vmatpush1.bf16.msra.mxu0 0
      %1450 = vmatprep.subr.bf16.mxu0 0
      %1451 = vmatpush1.bf16.msra.mxu0 0
      %1452 = vmatprep.subr.bf16.mxu0 0
      %1453 = vmatpush1.bf16.msra.mxu0 0
      %1454 = vmatprep.subr.bf16.mxu0 0
      %1455 = vmatpush1.bf16.msra.mxu0 0
      %1456 = vmatprep.subr.bf16.mxu0 0
      %1457 = vmatpush1.bf16.msra.mxu0 0
      %1458 = vmatprep.subr.bf16.mxu0 0
      %1459 = vmatpush1.bf16.msra.mxu0 0
      %1460 = vmatprep.subr.bf16.mxu0 0
      %1461 = vmatpush1.bf16.msra.mxu0 0
      %1462 = vmatprep.subr.bf16.mxu0 0
      %1463 = vmatpush1.bf16.msra.mxu0 0
      %1464 = vmatprep.subr.bf16.mxu0 0
      %1465 = vmatpush1.bf16.msra.mxu0 0
      %1466 = vmatprep.subr.bf16.mxu0 0
      %1467 = vmatpush1.bf16.msra.mxu0 0
      %1468 = vmatprep.subr.bf16.mxu0 0
      %1469 = vmatpush1.bf16.msra.mxu0 0
      %1470 = vmatprep.subr.bf16.mxu0 0
      %1471 = vmatpush1.bf16.msra.mxu0 0
      %1472 = vmatprep.subr.bf16.mxu0 0
      %1473 = vmatpush1.bf16.msra.mxu0 0
      %1474 = vmatprep.subr.bf16.mxu0 0
      %1475 = vmatpush1.bf16.msra.mxu0 0
      %1476 = vmatprep.mubr.bf16.mxu0 0
      %1477 = vmatmul.mubr.bf16.gmra.mrb[0].mxu0 %v1439
      %v1478 = vpop.f32.mrb[0].mxu0
      %v1479 = vadd.f32 0.0, %v1478
      %v1480 = vpop.f32.mrb[0].mxu0
      %v1481 = vpop.f32.mrb[0].mxu0
      %v1482 = vpop.f32.mrb[0].mxu0
      %1483 = vdwg.mxu0
      %1484 = vrot.lane.b32.xlu0 %v594, 96
      %v1485 = vpop.permute.xlu0 %1484
      %1486 = vrot.lane.b32.xlu0 %v594, 32
      %v1487 = vpop.permute.xlu0 %1486
      %v1489 = vsel %vm601, %v1485, 0
      %v1492 = vsel %vm601, %v1487, 0
      %1494 = vmatprep.subr.bf16.mxu0 0
      %1495 = vmatpush1.bf16.xpose.msra.mxu0 %v1492
      %1496 = vmatprep.subr.bf16.mxu0 0
      %1497 = vmatpush1.bf16.xpose.msra.mxu0 0
      %1498 = vmatprep.subr.bf16.mxu0 0
      %1499 = vmatpush1.bf16.xpose.msra.mxu0 0
      %1500 = vmatprep.subr.bf16.mxu0 0
      %1501 = vmatpush1.bf16.xpose.msra.mxu0 0
      %1502 = vmatprep.subr.bf16.mxu0 0
      %1503 = vmatpush1.bf16.xpose.msra.mxu0 0
      %1504 = vmatprep.subr.bf16.mxu0 0
      %1505 = vmatpush1.bf16.xpose.msra.mxu0 0
      %1506 = vmatprep.subr.bf16.mxu0 0
      %1507 = vmatpush1.bf16.xpose.msra.mxu0 0
      %1508 = vmatprep.subr.bf16.mxu0 0
      %1509 = vmatpush1.bf16.xpose.msra.mxu0 0
      %1510 = vmatprep.subr.bf16.mxu0 0
      %1511 = vmatpush1.bf16.xpose.msra.mxu0 0
      %1512 = vmatprep.subr.bf16.mxu0 0
      %1513 = vmatpush1.bf16.xpose.msra.mxu0 0
      %1514 = vmatprep.subr.bf16.mxu0 0
      %1515 = vmatpush1.bf16.xpose.msra.mxu0 0
      %1516 = vmatprep.subr.bf16.mxu0 0
      %1517 = vmatpush1.bf16.xpose.msra.mxu0 0
      %1518 = vmatprep.subr.bf16.mxu0 0
      %1519 = vmatpush1.bf16.xpose.msra.mxu0 0
      %1520 = vmatprep.subr.bf16.mxu0 0
      %1521 = vmatpush1.bf16.xpose.msra.mxu0 0
      %1522 = vmatprep.subr.bf16.mxu0 0
      %1523 = vmatpush1.bf16.xpose.msra.mxu0 0
      %1524 = vmatprep.subr.bf16.mxu0 0
      %1525 = vmatpush1.bf16.xpose.msra.mxu0 0
      %1526 = vmatprep.mubr.bf16.mxu0 0
      %1527 = vmatmul.mubr.bf16.gmra.mrb[0].mxu0 %v1489
      %v1528 = vpop.f32.mrb[0].mxu0
      %v1529 = vadd.f32 0.0, %v1528
      %v1530 = vpop.f32.mrb[0].mxu0
      %v1531 = vpop.f32.mrb[0].mxu0
      %v1532 = vpop.f32.mrb[0].mxu0
      %1533 = vdwg.mxu0
      %1534 = vrot.lane.b32.xlu0 %v595, 96
      %v1535 = vpop.permute.xlu0 %1534
      %1536 = vrot.lane.b32.xlu0 %v595, 32
      %v1537 = vpop.permute.xlu0 %1536
      %v1539 = vsel %vm601, %v1535, 0
      %v1542 = vsel %vm601, %v1537, 0
      %1544 = vmatprep.subr.bf16.mxu0 0
      %1545 = vmatpush1.bf16.xpose.msra.mxu0 %v1542
      %1546 = vmatprep.subr.bf16.mxu0 0
      %1547 = vmatpush1.bf16.xpose.msra.mxu0 0
      %1548 = vmatprep.subr.bf16.mxu0 0
      %1549 = vmatpush1.bf16.xpose.msra.mxu0 0
      %1550 = vmatprep.subr.bf16.mxu0 0
      %1551 = vmatpush1.bf16.xpose.msra.mxu0 0
      %1552 = vmatprep.subr.bf16.mxu0 0
      %1553 = vmatpush1.bf16.xpose.msra.mxu0 0
      %1554 = vmatprep.subr.bf16.mxu0 0
      %1555 = vmatpush1.bf16.xpose.msra.mxu0 0
      %1556 = vmatprep.subr.bf16.mxu0 0
      %1557 = vmatpush1.bf16.xpose.msra.mxu0 0
      %1558 = vmatprep.subr.bf16.mxu0 0
      %1559 = vmatpush1.bf16.xpose.msra.mxu0 0
      %1560 = vmatprep.subr.bf16.mxu0 0
      %1561 = vmatpush1.bf16.xpose.msra.mxu0 0
      %1562 = vmatprep.subr.bf16.mxu0 0
      %1563 = vmatpush1.bf16.xpose.msra.mxu0 0
      %1564 = vmatprep.subr.bf16.mxu0 0
      %1565 = vmatpush1.bf16.xpose.msra.mxu0 0
      %1566 = vmatprep.subr.bf16.mxu0 0
      %1567 = vmatpush1.bf16.xpose.msra.mxu0 0
      %1568 = vmatprep.subr.bf16.mxu0 0
      %1569 = vmatpush1.bf16.xpose.msra.mxu0 0
      %1570 = vmatprep.subr.bf16.mxu0 0
      %1571 = vmatpush1.bf16.xpose.msra.mxu0 0
      %1572 = vmatprep.subr.bf16.mxu0 0
      %1573 = vmatpush1.bf16.xpose.msra.mxu0 0
      %1574 = vmatprep.subr.bf16.mxu0 0
      %1575 = vmatpush1.bf16.xpose.msra.mxu0 0
      %1576 = vmatprep.mubr.bf16.mxu0 0
      %1577 = vmatmul.mubr.bf16.gmra.mrb[0].mxu0 %v1539
      %v1578 = vpop.f32.mrb[0].mxu0
      %v1579 = vadd.f32 0.0, %v1578
      %v1580 = vpop.f32.mrb[0].mxu0
      %v1581 = vpop.f32.mrb[0].mxu0
      %v1582 = vpop.f32.mrb[0].mxu0
      %1583 = vdwg.mxu0
      %v1584 = vmul.f32 %v1529, 0.35355338
      %v1585 = vmul.f32 %v1579, 0.35355338
      %v1586 = vsel %vm601, %v1584, -inf
      %1587 = vmax.xlane.f32.xlu0 %v1586
      %v1588 = vpop.xlane.xlu0 %1587
      %v1589 = vsel %vm601, %v1585, -inf
      %1590 = vmax.xlane.f32.xlu0 %v1589
      %v1591 = vpop.xlane.xlu0 %1590
      %v1592 = vsub.f32 %v1584, %v1588
      %v1593 = vsub.f32 %v1585, %v1591
      %v1594 = vmul.f32 %v1592, 1.442695
      %v1595 = vpow.pop %v1594
      %v1596 = vmul.f32 %v1593, 1.442695
      %v1597 = vpow.pop %v1596
      %v1598 = vsel %vm601, %v1595, 0.0
      %1599 = vadd.xlane.f32.xlu0 %v1598
      %v1600 = vpop.xlane.xlu0 %1599
      %v1601 = vsel %vm601, %v1597, 0.0
      %1602 = vadd.xlane.f32.xlu0 %v1601
      %v1603 = vpop.xlane.xlu0 %1602
      %v1604 = vrcp.pop %v1600
      %v1605 = vrcp.pop %v1603
      %v1606 = vmul.f32 %v1595, %v1604
      %v1607 = vmul.f32 %v1597, %v1605
      %v1608 = vpack.c.bf16 %v1606, %v1606
      %v1609 = vpack.c.bf16 %v1607, %v1607
      %1610 = vrot.lane.b32.xlu0 %v596, 96
      %v1611 = vpop.permute.xlu0 %1610
      %v1613 = vsel %vm601, %v1608, 0
      %v1616 = vsel %vm726, %v1611, 0
      %1618 = vmatprep.subr.bf16.mxu0 0
      %1619 = vmatpush1.bf16.msra.mxu0 %v1616
      %1620 = vmatprep.subr.bf16.mxu0 0
      %1621 = vmatpush1.bf16.msra.mxu0 0
      %1622 = vmatprep.subr.bf16.mxu0 0
      %1623 = vmatpush1.bf16.msra.mxu0 0
      %1624 = vmatprep.subr.bf16.mxu0 0
      %1625 = vmatpush1.bf16.msra.mxu0 0
      %1626 = vmatprep.subr.bf16.mxu0 0
      %1627 = vmatpush1.bf16.msra.mxu0 0
      %1628 = vmatprep.subr.bf16.mxu0 0
      %1629 = vmatpush1.bf16.msra.mxu0 0
      %1630 = vmatprep.subr.bf16.mxu0 0
      %1631 = vmatpush1.bf16.msra.mxu0 0
      %1632 = vmatprep.subr.bf16.mxu0 0
      %1633 = vmatpush1.bf16.msra.mxu0 0
      %1634 = vmatprep.subr.bf16.mxu0 0
      %1635 = vmatpush1.bf16.msra.mxu0 0
      %1636 = vmatprep.subr.bf16.mxu0 0
      %1637 = vmatpush1.bf16.msra.mxu0 0
      %1638 = vmatprep.subr.bf16.mxu0 0
      %1639 = vmatpush1.bf16.msra.mxu0 0
      %1640 = vmatprep.subr.bf16.mxu0 0
      %1641 = vmatpush1.bf16.msra.mxu0 0
      %1642 = vmatprep.subr.bf16.mxu0 0
      %1643 = vmatpush1.bf16.msra.mxu0 0
      %1644 = vmatprep.subr.bf16.mxu0 0
      %1645 = vmatpush1.bf16.msra.mxu0 0
      %1646 = vmatprep.subr.bf16.mxu0 0
      %1647 = vmatpush1.bf16.msra.mxu0 0
      %1648 = vmatprep.subr.bf16.mxu0 0
      %1649 = vmatpush1.bf16.msra.mxu0 0
      %1650 = vmatprep.mubr.bf16.mxu0 0
      %1651 = vmatmul.mubr.bf16.gmra.mrb[0].mxu0 %v1613
      %v1652 = vpop.f32.mrb[0].mxu0
      %v1653 = vadd.f32 0.0, %v1652
      %v1654 = vpop.f32.mrb[0].mxu0
      %v1655 = vpop.f32.mrb[0].mxu0
      %v1656 = vpop.f32.mrb[0].mxu0
      %1657 = vdwg.mxu0
      %1658 = vrot.lane.b32.xlu0 %v597, 96
      %v1659 = vpop.permute.xlu0 %1658
      %v1661 = vsel %vm601, %v1609, 0
      %v1664 = vsel %vm726, %v1659, 0
      %1666 = vmatprep.subr.bf16.mxu0 0
      %1667 = vmatpush1.bf16.msra.mxu0 %v1664
      %1668 = vmatprep.subr.bf16.mxu0 0
      %1669 = vmatpush1.bf16.msra.mxu0 0
      %1670 = vmatprep.subr.bf16.mxu0 0
      %1671 = vmatpush1.bf16.msra.mxu0 0
      %1672 = vmatprep.subr.bf16.mxu0 0
      %1673 = vmatpush1.bf16.msra.mxu0 0
      %1674 = vmatprep.subr.bf16.mxu0 0
      %1675 = vmatpush1.bf16.msra.mxu0 0
      %1676 = vmatprep.subr.bf16.mxu0 0
      %1677 = vmatpush1.bf16.msra.mxu0 0
      %1678 = vmatprep.subr.bf16.mxu0 0
      %1679 = vmatpush1.bf16.msra.mxu0 0
      %1680 = vmatprep.subr.bf16.mxu0 0
      %1681 = vmatpush1.bf16.msra.mxu0 0
      %1682 = vmatprep.subr.bf16.mxu0 0
      %1683 = vmatpush1.bf16.msra.mxu0 0
      %1684 = vmatprep.subr.bf16.mxu0 0
      %1685 = vmatpush1.bf16.msra.mxu0 0
      %1686 = vmatprep.subr.bf16.mxu0 0
      %1687 = vmatpush1.bf16.msra.mxu0 0
      %1688 = vmatprep.subr.bf16.mxu0 0
      %1689 = vmatpush1.bf16.msra.mxu0 0
      %1690 = vmatprep.subr.bf16.mxu0 0
      %1691 = vmatpush1.bf16.msra.mxu0 0
      %1692 = vmatprep.subr.bf16.mxu0 0
      %1693 = vmatpush1.bf16.msra.mxu0 0
      %1694 = vmatprep.subr.bf16.mxu0 0
      %1695 = vmatpush1.bf16.msra.mxu0 0
      %1696 = vmatprep.subr.bf16.mxu0 0
      %1697 = vmatpush1.bf16.msra.mxu0 0
      %1698 = vmatprep.mubr.bf16.mxu0 0
      %1699 = vmatmul.mubr.bf16.gmra.mrb[0].mxu0 %v1661
      %v1700 = vpop.f32.mrb[0].mxu0
      %v1701 = vadd.f32 0.0, %v1700
      %v1702 = vpop.f32.mrb[0].mxu0
      %v1703 = vpop.f32.mrb[0].mxu0
      %v1704 = vpop.f32.mrb[0].mxu0
      %1705 = vdwg.mxu0
      %1706 = vrot.lane.b32.xlu0 %v594, 88
      %v1707 = vpop.permute.xlu0 %1706
      %1708 = vrot.lane.b32.xlu0 %v594, 24
      %v1709 = vpop.permute.xlu0 %1708
      %v1711 = vsel %vm601, %v1707, 0
      %v1714 = vsel %vm601, %v1709, 0
      %1716 = vmatprep.subr.bf16.mxu0 0
      %1717 = vmatpush1.bf16.xpose.msra.mxu0 %v1714
      %1718 = vmatprep.subr.bf16.mxu0 0
      %1719 = vmatpush1.bf16.xpose.msra.mxu0 0
      %1720 = vmatprep.subr.bf16.mxu0 0
      %1721 = vmatpush1.bf16.xpose.msra.mxu0 0
      %1722 = vmatprep.subr.bf16.mxu0 0
      %1723 = vmatpush1.bf16.xpose.msra.mxu0 0
      %1724 = vmatprep.subr.bf16.mxu0 0
      %1725 = vmatpush1.bf16.xpose.msra.mxu0 0
      %1726 = vmatprep.subr.bf16.mxu0 0
      %1727 = vmatpush1.bf16.xpose.msra.mxu0 0
      %1728 = vmatprep.subr.bf16.mxu0 0
      %1729 = vmatpush1.bf16.xpose.msra.mxu0 0
      %1730 = vmatprep.subr.bf16.mxu0 0
      %1731 = vmatpush1.bf16.xpose.msra.mxu0 0
      %1732 = vmatprep.subr.bf16.mxu0 0
      %1733 = vmatpush1.bf16.xpose.msra.mxu0 0
      %1734 = vmatprep.subr.bf16.mxu0 0
      %1735 = vmatpush1.bf16.xpose.msra.mxu0 0
      %1736 = vmatprep.subr.bf16.mxu0 0
      %1737 = vmatpush1.bf16.xpose.msra.mxu0 0
      %1738 = vmatprep.subr.bf16.mxu0 0
      %1739 = vmatpush1.bf16.xpose.msra.mxu0 0
      %1740 = vmatprep.subr.bf16.mxu0 0
      %1741 = vmatpush1.bf16.xpose.msra.mxu0 0
      %1742 = vmatprep.subr.bf16.mxu0 0
      %1743 = vmatpush1.bf16.xpose.msra.mxu0 0
      %1744 = vmatprep.subr.bf16.mxu0 0
      %1745 = vmatpush1.bf16.xpose.msra.mxu0 0
      %1746 = vmatprep.subr.bf16.mxu0 0
      %1747 = vmatpush1.bf16.xpose.msra.mxu0 0
      %1748 = vmatprep.mubr.bf16.mxu0 0
      %1749 = vmatmul.mubr.bf16.gmra.mrb[0].mxu0 %v1711
      %v1750 = vpop.f32.mrb[0].mxu0
      %v1751 = vadd.f32 0.0, %v1750
      %v1752 = vpop.f32.mrb[0].mxu0
      %v1753 = vpop.f32.mrb[0].mxu0
      %v1754 = vpop.f32.mrb[0].mxu0
      %1755 = vdwg.mxu0
      %1756 = vrot.lane.b32.xlu0 %v595, 88
      %v1757 = vpop.permute.xlu0 %1756
      %1758 = vrot.lane.b32.xlu0 %v595, 24
      %v1759 = vpop.permute.xlu0 %1758
      %v1761 = vsel %vm601, %v1757, 0
      %v1764 = vsel %vm601, %v1759, 0
      %1766 = vmatprep.subr.bf16.mxu0 0
      %1767 = vmatpush1.bf16.xpose.msra.mxu0 %v1764
      %1768 = vmatprep.subr.bf16.mxu0 0
      %1769 = vmatpush1.bf16.xpose.msra.mxu0 0
      %1770 = vmatprep.subr.bf16.mxu0 0
      %1771 = vmatpush1.bf16.xpose.msra.mxu0 0
      %1772 = vmatprep.subr.bf16.mxu0 0
      %1773 = vmatpush1.bf16.xpose.msra.mxu0 0
      %1774 = vmatprep.subr.bf16.mxu0 0
      %1775 = vmatpush1.bf16.xpose.msra.mxu0 0
      %1776 = vmatprep.subr.bf16.mxu0 0
      %1777 = vmatpush1.bf16.xpose.msra.mxu0 0
      %1778 = vmatprep.subr.bf16.mxu0 0
      %1779 = vmatpush1.bf16.xpose.msra.mxu0 0
      %1780 = vmatprep.subr.bf16.mxu0 0
      %1781 = vmatpush1.bf16.xpose.msra.mxu0 0
      %1782 = vmatprep.subr.bf16.mxu0 0
      %1783 = vmatpush1.bf16.xpose.msra.mxu0 0
      %1784 = vmatprep.subr.bf16.mxu0 0
      %1785 = vmatpush1.bf16.xpose.msra.mxu0 0
      %1786 = vmatprep.subr.bf16.mxu0 0
      %1787 = vmatpush1.bf16.xpose.msra.mxu0 0
      %1788 = vmatprep.subr.bf16.mxu0 0
      %1789 = vmatpush1.bf16.xpose.msra.mxu0 0
      %1790 = vmatprep.subr.bf16.mxu0 0
      %1791 = vmatpush1.bf16.xpose.msra.mxu0 0
      %1792 = vmatprep.subr.bf16.mxu0 0
      %1793 = vmatpush1.bf16.xpose.msra.mxu0 0
      %1794 = vmatprep.subr.bf16.mxu0 0
      %1795 = vmatpush1.bf16.xpose.msra.mxu0 0
      %1796 = vmatprep.subr.bf16.mxu0 0
      %1797 = vmatpush1.bf16.xpose.msra.mxu0 0
      %1798 = vmatprep.mubr.bf16.mxu0 0
      %1799 = vmatmul.mubr.bf16.gmra.mrb[0].mxu0 %v1761
      %v1800 = vpop.f32.mrb[0].mxu0
      %v1801 = vadd.f32 0.0, %v1800
      %v1802 = vpop.f32.mrb[0].mxu0
      %v1803 = vpop.f32.mrb[0].mxu0
      %v1804 = vpop.f32.mrb[0].mxu0
      %1805 = vdwg.mxu0
      %v1806 = vmul.f32 %v1751, 0.35355338
      %v1807 = vmul.f32 %v1801, 0.35355338
      %v1808 = vsel %vm601, %v1806, -inf
      %1809 = vmax.xlane.f32.xlu0 %v1808
      %v1810 = vpop.xlane.xlu0 %1809
      %v1811 = vsel %vm601, %v1807, -inf
      %1812 = vmax.xlane.f32.xlu0 %v1811
      %v1813 = vpop.xlane.xlu0 %1812
      %v1814 = vsub.f32 %v1806, %v1810
      %v1815 = vsub.f32 %v1807, %v1813
      %v1816 = vmul.f32 %v1814, 1.442695
      %v1817 = vpow.pop %v1816
      %v1818 = vmul.f32 %v1815, 1.442695
      %v1819 = vpow.pop %v1818
      %v1820 = vsel %vm601, %v1817, 0.0
      %1821 = vadd.xlane.f32.xlu0 %v1820
      %v1822 = vpop.xlane.xlu0 %1821
      %v1823 = vsel %vm601, %v1819, 0.0
      %1824 = vadd.xlane.f32.xlu0 %v1823
      %v1825 = vpop.xlane.xlu0 %1824
      %v1826 = vrcp.pop %v1822
      %v1827 = vrcp.pop %v1825
      %v1828 = vmul.f32 %v1817, %v1826
      %v1829 = vmul.f32 %v1819, %v1827
      %v1830 = vpack.c.bf16 %v1828, %v1828
      %v1831 = vpack.c.bf16 %v1829, %v1829
      %1832 = vrot.lane.b32.xlu0 %v596, 88
      %v1833 = vpop.permute.xlu0 %1832
      %v1835 = vsel %vm601, %v1830, 0
      %v1838 = vsel %vm726, %v1833, 0
      %1840 = vmatprep.subr.bf16.mxu0 0
      %1841 = vmatpush1.bf16.msra.mxu0 %v1838
      %1842 = vmatprep.subr.bf16.mxu0 0
      %1843 = vmatpush1.bf16.msra.mxu0 0
      %1844 = vmatprep.subr.bf16.mxu0 0
      %1845 = vmatpush1.bf16.msra.mxu0 0
      %1846 = vmatprep.subr.bf16.mxu0 0
      %1847 = vmatpush1.bf16.msra.mxu0 0
      %1848 = vmatprep.subr.bf16.mxu0 0
      %1849 = vmatpush1.bf16.msra.mxu0 0
      %1850 = vmatprep.subr.bf16.mxu0 0
      %1851 = vmatpush1.bf16.msra.mxu0 0
      %1852 = vmatprep.subr.bf16.mxu0 0
      %1853 = vmatpush1.bf16.msra.mxu0 0
      %1854 = vmatprep.subr.bf16.mxu0 0
      %1855 = vmatpush1.bf16.msra.mxu0 0
      %1856 = vmatprep.subr.bf16.mxu0 0
      %1857 = vmatpush1.bf16.msra.mxu0 0
      %1858 = vmatprep.subr.bf16.mxu0 0
      %1859 = vmatpush1.bf16.msra.mxu0 0
      %1860 = vmatprep.subr.bf16.mxu0 0
      %1861 = vmatpush1.bf16.msra.mxu0 0
      %1862 = vmatprep.subr.bf16.mxu0 0
      %1863 = vmatpush1.bf16.msra.mxu0 0
      %1864 = vmatprep.subr.bf16.mxu0 0
      %1865 = vmatpush1.bf16.msra.mxu0 0
      %1866 = vmatprep.subr.bf16.mxu0 0
      %1867 = vmatpush1.bf16.msra.mxu0 0
      %1868 = vmatprep.subr.bf16.mxu0 0
      %1869 = vmatpush1.bf16.msra.mxu0 0
      %1870 = vmatprep.subr.bf16.mxu0 0
      %1871 = vmatpush1.bf16.msra.mxu0 0
      %1872 = vmatprep.mubr.bf16.mxu0 0
      %1873 = vmatmul.mubr.bf16.gmra.mrb[0].mxu0 %v1835
      %v1874 = vpop.f32.mrb[0].mxu0
      %v1875 = vadd.f32 0.0, %v1874
      %v1876 = vpop.f32.mrb[0].mxu0
      %v1877 = vpop.f32.mrb[0].mxu0
      %v1878 = vpop.f32.mrb[0].mxu0
      %1879 = vdwg.mxu0
      %1880 = vrot.lane.b32.xlu0 %v597, 88
      %v1881 = vpop.permute.xlu0 %1880
      %v1883 = vsel %vm601, %v1831, 0
      %v1886 = vsel %vm726, %v1881, 0
      %1888 = vmatprep.subr.bf16.mxu0 0
      %1889 = vmatpush1.bf16.msra.mxu0 %v1886
      %1890 = vmatprep.subr.bf16.mxu0 0
      %1891 = vmatpush1.bf16.msra.mxu0 0
      %1892 = vmatprep.subr.bf16.mxu0 0
      %1893 = vmatpush1.bf16.msra.mxu0 0
      %1894 = vmatprep.subr.bf16.mxu0 0
      %1895 = vmatpush1.bf16.msra.mxu0 0
      %1896 = vmatprep.subr.bf16.mxu0 0
      %1897 = vmatpush1.bf16.msra.mxu0 0
      %1898 = vmatprep.subr.bf16.mxu0 0
      %1899 = vmatpush1.bf16.msra.mxu0 0
      %1900 = vmatprep.subr.bf16.mxu0 0
      %1901 = vmatpush1.bf16.msra.mxu0 0
      %1902 = vmatprep.subr.bf16.mxu0 0
      %1903 = vmatpush1.bf16.msra.mxu0 0
      %1904 = vmatprep.subr.bf16.mxu0 0
      %1905 = vmatpush1.bf16.msra.mxu0 0
      %1906 = vmatprep.subr.bf16.mxu0 0
      %1907 = vmatpush1.bf16.msra.mxu0 0
      %1908 = vmatprep.subr.bf16.mxu0 0
      %1909 = vmatpush1.bf16.msra.mxu0 0
      %1910 = vmatprep.subr.bf16.mxu0 0
      %1911 = vmatpush1.bf16.msra.mxu0 0
      %1912 = vmatprep.subr.bf16.mxu0 0
      %1913 = vmatpush1.bf16.msra.mxu0 0
      %1914 = vmatprep.subr.bf16.mxu0 0
      %1915 = vmatpush1.bf16.msra.mxu0 0
      %1916 = vmatprep.subr.bf16.mxu0 0
      %1917 = vmatpush1.bf16.msra.mxu0 0
      %1918 = vmatprep.subr.bf16.mxu0 0
      %1919 = vmatpush1.bf16.msra.mxu0 0
      %1920 = vmatprep.mubr.bf16.mxu0 0
      %1921 = vmatmul.mubr.bf16.gmra.mrb[0].mxu0 %v1883
      %v1922 = vpop.f32.mrb[0].mxu0
      %v1923 = vadd.f32 0.0, %v1922
      %v1924 = vpop.f32.mrb[0].mxu0
      %v1925 = vpop.f32.mrb[0].mxu0
      %v1926 = vpop.f32.mrb[0].mxu0
      %1927 = vdwg.mxu0
      %1928 = vrot.lane.b32.xlu0 %v594, 80
      %v1929 = vpop.permute.xlu0 %1928
      %1930 = vrot.lane.b32.xlu0 %v594, 16
      %v1931 = vpop.permute.xlu0 %1930
      %v1933 = vsel %vm601, %v1929, 0
      %v1936 = vsel %vm601, %v1931, 0
      %1938 = vmatprep.subr.bf16.mxu0 0
      %1939 = vmatpush1.bf16.xpose.msra.mxu0 %v1936
      %1940 = vmatprep.subr.bf16.mxu0 0
      %1941 = vmatpush1.bf16.xpose.msra.mxu0 0
      %1942 = vmatprep.subr.bf16.mxu0 0
      %1943 = vmatpush1.bf16.xpose.msra.mxu0 0
      %1944 = vmatprep.subr.bf16.mxu0 0
      %1945 = vmatpush1.bf16.xpose.msra.mxu0 0
      %1946 = vmatprep.subr.bf16.mxu0 0
      %1947 = vmatpush1.bf16.xpose.msra.mxu0 0
      %1948 = vmatprep.subr.bf16.mxu0 0
      %1949 = vmatpush1.bf16.xpose.msra.mxu0 0
      %1950 = vmatprep.subr.bf16.mxu0 0
      %1951 = vmatpush1.bf16.xpose.msra.mxu0 0
      %1952 = vmatprep.subr.bf16.mxu0 0
      %1953 = vmatpush1.bf16.xpose.msra.mxu0 0
      %1954 = vmatprep.subr.bf16.mxu0 0
      %1955 = vmatpush1.bf16.xpose.msra.mxu0 0
      %1956 = vmatprep.subr.bf16.mxu0 0
      %1957 = vmatpush1.bf16.xpose.msra.mxu0 0
      %1958 = vmatprep.subr.bf16.mxu0 0
      %1959 = vmatpush1.bf16.xpose.msra.mxu0 0
      %1960 = vmatprep.subr.bf16.mxu0 0
      %1961 = vmatpush1.bf16.xpose.msra.mxu0 0
      %1962 = vmatprep.subr.bf16.mxu0 0
      %1963 = vmatpush1.bf16.xpose.msra.mxu0 0
      %1964 = vmatprep.subr.bf16.mxu0 0
      %1965 = vmatpush1.bf16.xpose.msra.mxu0 0
      %1966 = vmatprep.subr.bf16.mxu0 0
      %1967 = vmatpush1.bf16.xpose.msra.mxu0 0
      %1968 = vmatprep.subr.bf16.mxu0 0
      %1969 = vmatpush1.bf16.xpose.msra.mxu0 0
      %1970 = vmatprep.mubr.bf16.mxu0 0
      %1971 = vmatmul.mubr.bf16.gmra.mrb[0].mxu0 %v1933
      %v1972 = vpop.f32.mrb[0].mxu0
      %v1973 = vadd.f32 0.0, %v1972
      %v1974 = vpop.f32.mrb[0].mxu0
      %v1975 = vpop.f32.mrb[0].mxu0
      %v1976 = vpop.f32.mrb[0].mxu0
      %1977 = vdwg.mxu0
      %1978 = vrot.lane.b32.xlu0 %v595, 80
      %v1979 = vpop.permute.xlu0 %1978
      %1980 = vrot.lane.b32.xlu0 %v595, 16
      %v1981 = vpop.permute.xlu0 %1980
      %v1983 = vsel %vm601, %v1979, 0
      %v1986 = vsel %vm601, %v1981, 0
      %1988 = vmatprep.subr.bf16.mxu0 0
      %1989 = vmatpush1.bf16.xpose.msra.mxu0 %v1986
      %1990 = vmatprep.subr.bf16.mxu0 0
      %1991 = vmatpush1.bf16.xpose.msra.mxu0 0
      %1992 = vmatprep.subr.bf16.mxu0 0
      %1993 = vmatpush1.bf16.xpose.msra.mxu0 0
      %1994 = vmatprep.subr.bf16.mxu0 0
      %1995 = vmatpush1.bf16.xpose.msra.mxu0 0
      %1996 = vmatprep.subr.bf16.mxu0 0
      %1997 = vmatpush1.bf16.xpose.msra.mxu0 0
      %1998 = vmatprep.subr.bf16.mxu0 0
      %1999 = vmatpush1.bf16.xpose.msra.mxu0 0
      %2000 = vmatprep.subr.bf16.mxu0 0
      %2001 = vmatpush1.bf16.xpose.msra.mxu0 0
      %2002 = vmatprep.subr.bf16.mxu0 0
      %2003 = vmatpush1.bf16.xpose.msra.mxu0 0
      %2004 = vmatprep.subr.bf16.mxu0 0
      %2005 = vmatpush1.bf16.xpose.msra.mxu0 0
      %2006 = vmatprep.subr.bf16.mxu0 0
      %2007 = vmatpush1.bf16.xpose.msra.mxu0 0
      %2008 = vmatprep.subr.bf16.mxu0 0
      %2009 = vmatpush1.bf16.xpose.msra.mxu0 0
      %2010 = vmatprep.subr.bf16.mxu0 0
      %2011 = vmatpush1.bf16.xpose.msra.mxu0 0
      %2012 = vmatprep.subr.bf16.mxu0 0
      %2013 = vmatpush1.bf16.xpose.msra.mxu0 0
      %2014 = vmatprep.subr.bf16.mxu0 0
      %2015 = vmatpush1.bf16.xpose.msra.mxu0 0
      %2016 = vmatprep.subr.bf16.mxu0 0
      %2017 = vmatpush1.bf16.xpose.msra.mxu0 0
      %2018 = vmatprep.subr.bf16.mxu0 0
      %2019 = vmatpush1.bf16.xpose.msra.mxu0 0
      %2020 = vmatprep.mubr.bf16.mxu0 0
      %2021 = vmatmul.mubr.bf16.gmra.mrb[0].mxu0 %v1983
      %v2022 = vpop.f32.mrb[0].mxu0
      %v2023 = vadd.f32 0.0, %v2022
      %v2024 = vpop.f32.mrb[0].mxu0
      %v2025 = vpop.f32.mrb[0].mxu0
      %v2026 = vpop.f32.mrb[0].mxu0
      %2027 = vdwg.mxu0
      %v2028 = vmul.f32 %v1973, 0.35355338
      %v2029 = vmul.f32 %v2023, 0.35355338
      %v2030 = vsel %vm601, %v2028, -inf
      %2031 = vmax.xlane.f32.xlu0 %v2030
      %v2032 = vpop.xlane.xlu0 %2031
      %v2033 = vsel %vm601, %v2029, -inf
      %2034 = vmax.xlane.f32.xlu0 %v2033
      %v2035 = vpop.xlane.xlu0 %2034
      %v2036 = vsub.f32 %v2028, %v2032
      %v2037 = vsub.f32 %v2029, %v2035
      %v2038 = vmul.f32 %v2036, 1.442695
      %v2039 = vpow.pop %v2038
      %v2040 = vmul.f32 %v2037, 1.442695
      %v2041 = vpow.pop %v2040
      %v2042 = vsel %vm601, %v2039, 0.0
      %2043 = vadd.xlane.f32.xlu0 %v2042
      %v2044 = vpop.xlane.xlu0 %2043
      %v2045 = vsel %vm601, %v2041, 0.0
      %2046 = vadd.xlane.f32.xlu0 %v2045
      %v2047 = vpop.xlane.xlu0 %2046
      %v2048 = vrcp.pop %v2044
      %v2049 = vrcp.pop %v2047
      %v2050 = vmul.f32 %v2039, %v2048
      %v2051 = vmul.f32 %v2041, %v2049
      %v2052 = vpack.c.bf16 %v2050, %v2050
      %v2053 = vpack.c.bf16 %v2051, %v2051
      %2054 = vrot.lane.b32.xlu0 %v596, 80
      %v2055 = vpop.permute.xlu0 %2054
      %v2057 = vsel %vm601, %v2052, 0
      %v2060 = vsel %vm726, %v2055, 0
      %2062 = vmatprep.subr.bf16.mxu0 0
      %2063 = vmatpush1.bf16.msra.mxu0 %v2060
      %2064 = vmatprep.subr.bf16.mxu0 0
      %2065 = vmatpush1.bf16.msra.mxu0 0
      %2066 = vmatprep.subr.bf16.mxu0 0
      %2067 = vmatpush1.bf16.msra.mxu0 0
      %2068 = vmatprep.subr.bf16.mxu0 0
      %2069 = vmatpush1.bf16.msra.mxu0 0
      %2070 = vmatprep.subr.bf16.mxu0 0
      %2071 = vmatpush1.bf16.msra.mxu0 0
      %2072 = vmatprep.subr.bf16.mxu0 0
      %2073 = vmatpush1.bf16.msra.mxu0 0
      %2074 = vmatprep.subr.bf16.mxu0 0
      %2075 = vmatpush1.bf16.msra.mxu0 0
      %2076 = vmatprep.subr.bf16.mxu0 0
      %2077 = vmatpush1.bf16.msra.mxu0 0
      %2078 = vmatprep.subr.bf16.mxu0 0
      %2079 = vmatpush1.bf16.msra.mxu0 0
      %2080 = vmatprep.subr.bf16.mxu0 0
      %2081 = vmatpush1.bf16.msra.mxu0 0
      %2082 = vmatprep.subr.bf16.mxu0 0
      %2083 = vmatpush1.bf16.msra.mxu0 0
      %2084 = vmatprep.subr.bf16.mxu0 0
      %2085 = vmatpush1.bf16.msra.mxu0 0
      %2086 = vmatprep.subr.bf16.mxu0 0
      %2087 = vmatpush1.bf16.msra.mxu0 0
      %2088 = vmatprep.subr.bf16.mxu0 0
      %2089 = vmatpush1.bf16.msra.mxu0 0
      %2090 = vmatprep.subr.bf16.mxu0 0
      %2091 = vmatpush1.bf16.msra.mxu0 0
      %2092 = vmatprep.subr.bf16.mxu0 0
      %2093 = vmatpush1.bf16.msra.mxu0 0
      %2094 = vmatprep.mubr.bf16.mxu0 0
      %2095 = vmatmul.mubr.bf16.gmra.mrb[0].mxu0 %v2057
      %v2096 = vpop.f32.mrb[0].mxu0
      %v2097 = vadd.f32 0.0, %v2096
      %v2098 = vpop.f32.mrb[0].mxu0
      %v2099 = vpop.f32.mrb[0].mxu0
      %v2100 = vpop.f32.mrb[0].mxu0
      %2101 = vdwg.mxu0
      %2102 = vrot.lane.b32.xlu0 %v597, 80
      %v2103 = vpop.permute.xlu0 %2102
      %v2105 = vsel %vm601, %v2053, 0
      %v2108 = vsel %vm726, %v2103, 0
      %2110 = vmatprep.subr.bf16.mxu0 0
      %2111 = vmatpush1.bf16.msra.mxu0 %v2108
      %2112 = vmatprep.subr.bf16.mxu0 0
      %2113 = vmatpush1.bf16.msra.mxu0 0
      %2114 = vmatprep.subr.bf16.mxu0 0
      %2115 = vmatpush1.bf16.msra.mxu0 0
      %2116 = vmatprep.subr.bf16.mxu0 0
      %2117 = vmatpush1.bf16.msra.mxu0 0
      %2118 = vmatprep.subr.bf16.mxu0 0
      %2119 = vmatpush1.bf16.msra.mxu0 0
      %2120 = vmatprep.subr.bf16.mxu0 0
      %2121 = vmatpush1.bf16.msra.mxu0 0
      %2122 = vmatprep.subr.bf16.mxu0 0
      %2123 = vmatpush1.bf16.msra.mxu0 0
      %2124 = vmatprep.subr.bf16.mxu0 0
      %2125 = vmatpush1.bf16.msra.mxu0 0
      %2126 = vmatprep.subr.bf16.mxu0 0
      %2127 = vmatpush1.bf16.msra.mxu0 0
      %2128 = vmatprep.subr.bf16.mxu0 0
      %2129 = vmatpush1.bf16.msra.mxu0 0
      %2130 = vmatprep.subr.bf16.mxu0 0
      %2131 = vmatpush1.bf16.msra.mxu0 0
      %2132 = vmatprep.subr.bf16.mxu0 0
      %2133 = vmatpush1.bf16.msra.mxu0 0
      %2134 = vmatprep.subr.bf16.mxu0 0
      %2135 = vmatpush1.bf16.msra.mxu0 0
      %2136 = vmatprep.subr.bf16.mxu0 0
      %2137 = vmatpush1.bf16.msra.mxu0 0
      %2138 = vmatprep.subr.bf16.mxu0 0
      %2139 = vmatpush1.bf16.msra.mxu0 0
      %2140 = vmatprep.subr.bf16.mxu0 0
      %2141 = vmatpush1.bf16.msra.mxu0 0
      %2142 = vmatprep.mubr.bf16.mxu0 0
      %2143 = vmatmul.mubr.bf16.gmra.mrb[0].mxu0 %v2105
      %v2144 = vpop.f32.mrb[0].mxu0
      %v2145 = vadd.f32 0.0, %v2144
      %v2146 = vpop.f32.mrb[0].mxu0
      %v2147 = vpop.f32.mrb[0].mxu0
      %v2148 = vpop.f32.mrb[0].mxu0
      %2149 = vdwg.mxu0
      %2150 = vrot.lane.b32.xlu0 %v594, 72
      %v2151 = vpop.permute.xlu0 %2150
      %2152 = vrot.lane.b32.xlu0 %v594, 8
      %v2153 = vpop.permute.xlu0 %2152
      %v2155 = vsel %vm601, %v2151, 0
      %v2158 = vsel %vm601, %v2153, 0
      %2160 = vmatprep.subr.bf16.mxu0 0
      %2161 = vmatpush1.bf16.xpose.msra.mxu0 %v2158
      %2162 = vmatprep.subr.bf16.mxu0 0
      %2163 = vmatpush1.bf16.xpose.msra.mxu0 0
      %2164 = vmatprep.subr.bf16.mxu0 0
      %2165 = vmatpush1.bf16.xpose.msra.mxu0 0
      %2166 = vmatprep.subr.bf16.mxu0 0
      %2167 = vmatpush1.bf16.xpose.msra.mxu0 0
      %2168 = vmatprep.subr.bf16.mxu0 0
      %2169 = vmatpush1.bf16.xpose.msra.mxu0 0
      %2170 = vmatprep.subr.bf16.mxu0 0
      %2171 = vmatpush1.bf16.xpose.msra.mxu0 0
      %2172 = vmatprep.subr.bf16.mxu0 0
      %2173 = vmatpush1.bf16.xpose.msra.mxu0 0
      %2174 = vmatprep.subr.bf16.mxu0 0
      %2175 = vmatpush1.bf16.xpose.msra.mxu0 0
      %2176 = vmatprep.subr.bf16.mxu0 0
      %2177 = vmatpush1.bf16.xpose.msra.mxu0 0
      %2178 = vmatprep.subr.bf16.mxu0 0
      %2179 = vmatpush1.bf16.xpose.msra.mxu0 0
      %2180 = vmatprep.subr.bf16.mxu0 0
      %2181 = vmatpush1.bf16.xpose.msra.mxu0 0
      %2182 = vmatprep.subr.bf16.mxu0 0
      %2183 = vmatpush1.bf16.xpose.msra.mxu0 0
      %2184 = vmatprep.subr.bf16.mxu0 0
      %2185 = vmatpush1.bf16.xpose.msra.mxu0 0
      %2186 = vmatprep.subr.bf16.mxu0 0
      %2187 = vmatpush1.bf16.xpose.msra.mxu0 0
      %2188 = vmatprep.subr.bf16.mxu0 0
      %2189 = vmatpush1.bf16.xpose.msra.mxu0 0
      %2190 = vmatprep.subr.bf16.mxu0 0
      %2191 = vmatpush1.bf16.xpose.msra.mxu0 0
      %2192 = vmatprep.mubr.bf16.mxu0 0
      %2193 = vmatmul.mubr.bf16.gmra.mrb[0].mxu0 %v2155
      %v2194 = vpop.f32.mrb[0].mxu0
      %v2195 = vadd.f32 0.0, %v2194
      %v2196 = vpop.f32.mrb[0].mxu0
      %v2197 = vpop.f32.mrb[0].mxu0
      %v2198 = vpop.f32.mrb[0].mxu0
      %2199 = vdwg.mxu0
      %2200 = vrot.lane.b32.xlu0 %v595, 72
      %v2201 = vpop.permute.xlu0 %2200
      %2202 = vrot.lane.b32.xlu0 %v595, 8
      %v2203 = vpop.permute.xlu0 %2202
      %v2205 = vsel %vm601, %v2201, 0
      %v2208 = vsel %vm601, %v2203, 0
      %2210 = vmatprep.subr.bf16.mxu0 0
      %2211 = vmatpush1.bf16.xpose.msra.mxu0 %v2208
      %2212 = vmatprep.subr.bf16.mxu0 0
      %2213 = vmatpush1.bf16.xpose.msra.mxu0 0
      %2214 = vmatprep.subr.bf16.mxu0 0
      %2215 = vmatpush1.bf16.xpose.msra.mxu0 0
      %2216 = vmatprep.subr.bf16.mxu0 0
      %2217 = vmatpush1.bf16.xpose.msra.mxu0 0
      %2218 = vmatprep.subr.bf16.mxu0 0
      %2219 = vmatpush1.bf16.xpose.msra.mxu0 0
      %2220 = vmatprep.subr.bf16.mxu0 0
      %2221 = vmatpush1.bf16.xpose.msra.mxu0 0
      %2222 = vmatprep.subr.bf16.mxu0 0
      %2223 = vmatpush1.bf16.xpose.msra.mxu0 0
      %2224 = vmatprep.subr.bf16.mxu0 0
      %2225 = vmatpush1.bf16.xpose.msra.mxu0 0
      %2226 = vmatprep.subr.bf16.mxu0 0
      %2227 = vmatpush1.bf16.xpose.msra.mxu0 0
      %2228 = vmatprep.subr.bf16.mxu0 0
      %2229 = vmatpush1.bf16.xpose.msra.mxu0 0
      %2230 = vmatprep.subr.bf16.mxu0 0
      %2231 = vmatpush1.bf16.xpose.msra.mxu0 0
      %2232 = vmatprep.subr.bf16.mxu0 0
      %2233 = vmatpush1.bf16.xpose.msra.mxu0 0
      %2234 = vmatprep.subr.bf16.mxu0 0
      %2235 = vmatpush1.bf16.xpose.msra.mxu0 0
      %2236 = vmatprep.subr.bf16.mxu0 0
      %2237 = vmatpush1.bf16.xpose.msra.mxu0 0
      %2238 = vmatprep.subr.bf16.mxu0 0
      %2239 = vmatpush1.bf16.xpose.msra.mxu0 0
      %2240 = vmatprep.subr.bf16.mxu0 0
      %2241 = vmatpush1.bf16.xpose.msra.mxu0 0
      %2242 = vmatprep.mubr.bf16.mxu0 0
      %2243 = vmatmul.mubr.bf16.gmra.mrb[0].mxu0 %v2205
      %v2244 = vpop.f32.mrb[0].mxu0
      %v2245 = vadd.f32 0.0, %v2244
      %v2246 = vpop.f32.mrb[0].mxu0
      %v2247 = vpop.f32.mrb[0].mxu0
      %v2248 = vpop.f32.mrb[0].mxu0
      %2249 = vdwg.mxu0
      %v2250 = vmul.f32 %v2195, 0.35355338
      %v2251 = vmul.f32 %v2245, 0.35355338
      %v2252 = vsel %vm601, %v2250, -inf
      %2253 = vmax.xlane.f32.xlu0 %v2252
      %v2254 = vpop.xlane.xlu0 %2253
      %v2255 = vsel %vm601, %v2251, -inf
      %2256 = vmax.xlane.f32.xlu0 %v2255
      %v2257 = vpop.xlane.xlu0 %2256
      %v2258 = vsub.f32 %v2250, %v2254
      %v2259 = vsub.f32 %v2251, %v2257
      %v2260 = vmul.f32 %v2258, 1.442695
      %v2261 = vpow.pop %v2260
      %v2262 = vmul.f32 %v2259, 1.442695
      %v2263 = vpow.pop %v2262
      %v2264 = vsel %vm601, %v2261, 0.0
      %2265 = vadd.xlane.f32.xlu0 %v2264
      %v2266 = vpop.xlane.xlu0 %2265
      %v2267 = vsel %vm601, %v2263, 0.0
      %2268 = vadd.xlane.f32.xlu0 %v2267
      %v2269 = vpop.xlane.xlu0 %2268
      %v2270 = vrcp.pop %v2266
      %v2271 = vrcp.pop %v2269
      %v2272 = vmul.f32 %v2261, %v2270
      %v2273 = vmul.f32 %v2263, %v2271
      %v2274 = vpack.c.bf16 %v2272, %v2272
      %v2275 = vpack.c.bf16 %v2273, %v2273
      %2276 = vrot.lane.b32.xlu0 %v596, 72
      %v2277 = vpop.permute.xlu0 %2276
      %v2279 = vsel %vm601, %v2274, 0
      %v2282 = vsel %vm726, %v2277, 0
      %2284 = vmatprep.subr.bf16.mxu0 0
      %2285 = vmatpush1.bf16.msra.mxu0 %v2282
      %2286 = vmatprep.subr.bf16.mxu0 0
      %2287 = vmatpush1.bf16.msra.mxu0 0
      %2288 = vmatprep.subr.bf16.mxu0 0
      %2289 = vmatpush1.bf16.msra.mxu0 0
      %2290 = vmatprep.subr.bf16.mxu0 0
      %2291 = vmatpush1.bf16.msra.mxu0 0
      %2292 = vmatprep.subr.bf16.mxu0 0
      %2293 = vmatpush1.bf16.msra.mxu0 0
      %2294 = vmatprep.subr.bf16.mxu0 0
      %2295 = vmatpush1.bf16.msra.mxu0 0
      %2296 = vmatprep.subr.bf16.mxu0 0
      %2297 = vmatpush1.bf16.msra.mxu0 0
      %2298 = vmatprep.subr.bf16.mxu0 0
      %2299 = vmatpush1.bf16.msra.mxu0 0
      %2300 = vmatprep.subr.bf16.mxu0 0
      %2301 = vmatpush1.bf16.msra.mxu0 0
      %2302 = vmatprep.subr.bf16.mxu0 0
      %2303 = vmatpush1.bf16.msra.mxu0 0
      %2304 = vmatprep.subr.bf16.mxu0 0
      %2305 = vmatpush1.bf16.msra.mxu0 0
      %2306 = vmatprep.subr.bf16.mxu0 0
      %2307 = vmatpush1.bf16.msra.mxu0 0
      %2308 = vmatprep.subr.bf16.mxu0 0
      %2309 = vmatpush1.bf16.msra.mxu0 0
      %2310 = vmatprep.subr.bf16.mxu0 0
      %2311 = vmatpush1.bf16.msra.mxu0 0
      %2312 = vmatprep.subr.bf16.mxu0 0
      %2313 = vmatpush1.bf16.msra.mxu0 0
      %2314 = vmatprep.subr.bf16.mxu0 0
      %2315 = vmatpush1.bf16.msra.mxu0 0
      %2316 = vmatprep.mubr.bf16.mxu0 0
      %2317 = vmatmul.mubr.bf16.gmra.mrb[0].mxu0 %v2279
      %v2318 = vpop.f32.mrb[0].mxu0
      %v2319 = vadd.f32 0.0, %v2318
      %v2320 = vpop.f32.mrb[0].mxu0
      %v2321 = vpop.f32.mrb[0].mxu0
      %v2322 = vpop.f32.mrb[0].mxu0
      %2323 = vdwg.mxu0
      %2324 = vrot.lane.b32.xlu0 %v597, 72
      %v2325 = vpop.permute.xlu0 %2324
      %v2327 = vsel %vm601, %v2275, 0
      %v2330 = vsel %vm726, %v2325, 0
      %2332 = vmatprep.subr.bf16.mxu0 0
      %2333 = vmatpush1.bf16.msra.mxu0 %v2330
      %2334 = vmatprep.subr.bf16.mxu0 0
      %2335 = vmatpush1.bf16.msra.mxu0 0
      %2336 = vmatprep.subr.bf16.mxu0 0
      %2337 = vmatpush1.bf16.msra.mxu0 0
      %2338 = vmatprep.subr.bf16.mxu0 0
      %2339 = vmatpush1.bf16.msra.mxu0 0
      %2340 = vmatprep.subr.bf16.mxu0 0
      %2341 = vmatpush1.bf16.msra.mxu0 0
      %2342 = vmatprep.subr.bf16.mxu0 0
      %2343 = vmatpush1.bf16.msra.mxu0 0
      %2344 = vmatprep.subr.bf16.mxu0 0
      %2345 = vmatpush1.bf16.msra.mxu0 0
      %2346 = vmatprep.subr.bf16.mxu0 0
      %2347 = vmatpush1.bf16.msra.mxu0 0
      %2348 = vmatprep.subr.bf16.mxu0 0
      %2349 = vmatpush1.bf16.msra.mxu0 0
      %2350 = vmatprep.subr.bf16.mxu0 0
      %2351 = vmatpush1.bf16.msra.mxu0 0
      %2352 = vmatprep.subr.bf16.mxu0 0
      %2353 = vmatpush1.bf16.msra.mxu0 0
      %2354 = vmatprep.subr.bf16.mxu0 0
      %2355 = vmatpush1.bf16.msra.mxu0 0
      %2356 = vmatprep.subr.bf16.mxu0 0
      %2357 = vmatpush1.bf16.msra.mxu0 0
      %2358 = vmatprep.subr.bf16.mxu0 0
      %2359 = vmatpush1.bf16.msra.mxu0 0
      %2360 = vmatprep.subr.bf16.mxu0 0
      %2361 = vmatpush1.bf16.msra.mxu0 0
      %2362 = vmatprep.subr.bf16.mxu0 0
      %2363 = vmatpush1.bf16.msra.mxu0 0
      %2364 = vmatprep.mubr.bf16.mxu0 0
      %2365 = vmatmul.mubr.bf16.gmra.mrb[0].mxu0 %v2327
      %v2366 = vpop.f32.mrb[0].mxu0
      %v2367 = vadd.f32 0.0, %v2366
      %v2368 = vpop.f32.mrb[0].mxu0
      %v2369 = vpop.f32.mrb[0].mxu0
      %v2370 = vpop.f32.mrb[0].mxu0
      %2371 = vdwg.mxu0
      %2374 = vrot.lane.b32.xlu0 %v986, 8
      %v2375 = vpop.permute.xlu0 %2374
      %2376 = vrot.lane.b32.xlu0 %v1035, 8
      %v2377 = vpop.permute.xlu0 %2376
      %2382 = vrot.lane.b32.xlu0 %v1209, 16
      %v2383 = vpop.permute.xlu0 %2382
      %2384 = vrot.lane.b32.xlu0 %v1257, 16
      %v2385 = vpop.permute.xlu0 %2384
      %2390 = vrot.lane.b32.xlu0 %v1431, 24
      %v2391 = vpop.permute.xlu0 %2390
      %2392 = vrot.lane.b32.xlu0 %v1479, 24
      %v2393 = vpop.permute.xlu0 %2392
      %2398 = vrot.lane.b32.xlu0 %v1653, 32
      %v2399 = vpop.permute.xlu0 %2398
      %2400 = vrot.lane.b32.xlu0 %v1701, 32
      %v2401 = vpop.permute.xlu0 %2400
      %2406 = vrot.lane.b32.xlu0 %v1875, 40
      %v2407 = vpop.permute.xlu0 %2406
      %2408 = vrot.lane.b32.xlu0 %v1923, 40
      %v2409 = vpop.permute.xlu0 %2408
      %2414 = vrot.lane.b32.xlu0 %v2097, 48
      %v2415 = vpop.permute.xlu0 %2414
      %2416 = vrot.lane.b32.xlu0 %v2145, 48
      %v2417 = vpop.permute.xlu0 %2416
      %2422 = vrot.lane.b32.xlu0 %v2319, 56
      %v2423 = vpop.permute.xlu0 %2422
      %2424 = vrot.lane.b32.xlu0 %v2367, 56
      %v2425 = vpop.permute.xlu0 %2424
      %v2428 = vsel %vm601, %v765, %v2375
      %v2429 = vsel %vm601, %v811, %v2377
      %vm2430 = vcmask 130048
      %v2431 = vsel %vm2430, %v2428, %v2383
      %v2432 = vsel %vm2430, %v2429, %v2385
      %vm2433 = vcmask 195584
      %v2434 = vsel %vm2433, %v2431, %v2391
      %v2435 = vsel %vm2433, %v2432, %v2393
      %vm2436 = vcmask 261120
      %v2437 = vsel %vm2436, %v2434, %v2399
      %v2438 = vsel %vm2436, %v2435, %v2401
      %vm2439 = vcmask 326656
      %v2440 = vsel %vm2439, %v2437, %v2407
      %v2441 = vsel %vm2439, %v2438, %v2409
      %vm2442 = vcmask 392192
      %v2443 = vsel %vm2442, %v2440, %v2415
      %v2444 = vsel %vm2442, %v2441, %v2417
      %vm2445 = vcmask 457728
      %v2446 = vsel %vm2445, %v2443, %v2423
      %v2447 = vsel %vm2445, %v2444, %v2425
      %v2448 = vpack.c.bf16 %v2447, %v2446
      %s2449 = smul.u32 %s474, 8
      %s2450 = smul.addr %s2449, 4
      %s2451 = scalar_lea.vmem %s17, %s2450
      %v2452 = vld [vmem:[%s2451] sm:$0xf]
      %v2453 = vld [vmem:[%s2451 + $0x4] sm:$0xf]
      %v2454 = vld [vmem:[%s2451 + $0x8] sm:$0xf]
      %v2455 = vld [vmem:[%s2451 + $0xc] sm:$0xf]
      %v2456 = vld [vmem:[%s2451 + $0x10] sm:$0xf]
      %v2457 = vld [vmem:[%s2451 + $0x14] sm:$0xf]
      %v2458 = vld [vmem:[%s2451 + $0x18] sm:$0xf]
      %v2459 = vld [vmem:[%s2451 + $0x1c] sm:$0xf]
      %s2460 = scalar_lea.vmem %s19, %s474
      %v2461 = vld [vmem:[%s2460] sm:$0x1]
      %v2463 = vlaneseq
      %v2464 = vshrl.u32 %v2463, 7
      %v2465 = vsub.s32 0, %v2464
      %v2466 = vrot.slane %v2461, %v2465
      %v2476 = vunpack.c.l.b16 %v2452
      %v2477 = vunpack.c.l.b16 %v2453
      %v2478 = vunpack.c.l.b16 %v2454
      %v2479 = vunpack.c.l.b16 %v2455
      %v2480 = vunpack.c.l.b16 %v2456
      %v2481 = vunpack.c.l.b16 %v2457
      %v2482 = vunpack.c.l.b16 %v2458
      %v2483 = vunpack.c.l.b16 %v2459
      %v2484 = vpack.c.b16 %v2477, %v2476
      %v2485 = vpack.c.b16 %v2479, %v2478
      %v2486 = vpack.c.b16 %v2481, %v2480
      %v2487 = vpack.c.b16 %v2483, %v2482
      %v2493 = vsel %vm547, %v2448, 0
      %2495 = vmatprep.subr.bf16.mxu0 0
      %2496 = vmatpush1.bf16.msra.mxu0 %v2484
      %2497 = vmatprep.subr.bf16.mxu0 0
      %2498 = vmatpush1.bf16.msra.mxu0 %v2485
      %2499 = vmatprep.subr.bf16.mxu0 0
      %2500 = vmatpush1.bf16.msra.mxu0 %v2486
      %2501 = vmatprep.subr.bf16.mxu0 0
      %2502 = vmatpush1.bf16.msra.mxu0 %v2487
      %2503 = vmatprep.subr.bf16.mxu0 0
      %2504 = vmatpush1.bf16.msra.mxu0 0
      %2505 = vmatprep.subr.bf16.mxu0 0
      %2506 = vmatpush1.bf16.msra.mxu0 0
      %2507 = vmatprep.subr.bf16.mxu0 0
      %2508 = vmatpush1.bf16.msra.mxu0 0
      %2509 = vmatprep.subr.bf16.mxu0 0
      %2510 = vmatpush1.bf16.msra.mxu0 0
      %2511 = vmatprep.subr.bf16.mxu0 0
      %2512 = vmatpush1.bf16.msra.mxu0 0
      %2513 = vmatprep.subr.bf16.mxu0 0
      %2514 = vmatpush1.bf16.msra.mxu0 0
      %2515 = vmatprep.subr.bf16.mxu0 0
      %2516 = vmatpush1.bf16.msra.mxu0 0
      %2517 = vmatprep.subr.bf16.mxu0 0
      %2518 = vmatpush1.bf16.msra.mxu0 0
      %2519 = vmatprep.subr.bf16.mxu0 0
      %2520 = vmatpush1.bf16.msra.mxu0 0
      %2521 = vmatprep.subr.bf16.mxu0 0
      %2522 = vmatpush1.bf16.msra.mxu0 0
      %2523 = vmatprep.subr.bf16.mxu0 0
      %2524 = vmatpush1.bf16.msra.mxu0 0
      %2525 = vmatprep.subr.bf16.mxu0 0
      %2526 = vmatpush1.bf16.msra.mxu0 0
      %2527 = vmatprep.mubr.bf16.mxu0 0
      %2528 = vmatmul.mubr.bf16.gmra.mrb[0].mxu0 %v2493
      %v2529 = vpop.f32.mrb[0].mxu0
      %v2530 = vadd.f32 %v2466, %v2529
      %v2531 = vpop.f32.mrb[0].mxu0
      %v2532 = vpop.f32.mrb[0].mxu0
      %v2533 = vadd.f32 %v2466, %v2532
      %v2534 = vpop.f32.mrb[0].mxu0
      %2535 = vdwg.mxu0
      %s2536 = scalar_lea.vmem %s21, %s474
      %v2537 = vld [vmem:[%s2536] sm:$0x1]
      %s2538 = scalar_lea.vmem [#allocation3], %s474
      %v2539 = vld [vmem:[%s2538] sm:$0x1]
      %v2540 = vadd.f32 %v2530, %v479
      %v2541 = vadd.f32 %v2533, %v480
      %v2542 = vsel %vm547, %v2540, 0.0
      %2543 = vadd.xlane.f32.xlu0 %v2542
      %v2544 = vpop.xlane.xlu0 %2543
      %v2545 = vsel %vm547, %v2541, 0.0
      %2546 = vadd.xlane.f32.xlu0 %v2545
      %v2547 = vpop.xlane.xlu0 %2546
      %v2548 = vrcp.pop 64.0
      %v2549 = vmul.f32 %v2544, %v2548
      %v2550 = vmul.f32 %v2547, %v2548
      %v2551 = vsub.f32 %v2540, %v2549
      %v2552 = vsub.f32 %v2541, %v2550
      %v2553 = vmul.f32 %v2551, %v2551
      %v2554 = vmul.f32 %v2552, %v2552
      %v2555 = vsel %vm547, %v2553, 0.0
      %2556 = vadd.xlane.f32.xlu0 %v2555
      %v2557 = vpop.xlane.xlu0 %2556
      %v2558 = vsel %vm547, %v2554, 0.0
      %2559 = vadd.xlane.f32.xlu0 %v2558
      %v2560 = vpop.xlane.xlu0 %2559
      %v2561 = vmul.f32 %v2557, %v2548
      %v2562 = vmul.f32 %v2560, %v2548
      %v2563 = vadd.f32 %v2561, 1e-05
      %v2564 = vadd.f32 %v2562, 1e-05
      %v2565 = vrsqrt.pop %v2563
      %v2566 = vrsqrt.pop %v2564
      %v2567 = vmul.f32 %v2551, %v2565
      %v2568 = vmul.f32 %v2552, %v2566
      %v2570 = vlaneseq
      %v2571 = vshrl.u32 %v2570, 7
      %v2572 = vsub.s32 0, %v2571
      %v2573 = vrot.slane %v2537, %v2572
      %v2575 = vmul.f32 %v2567, %v2573
      %v2576 = vmul.f32 %v2568, %v2573
      %v2578 = vlaneseq
      %v2579 = vshrl.u32 %v2578, 7
      %v2580 = vsub.s32 0, %v2579
      %v2581 = vrot.slane %v2539, %v2580
      %v2583 = vadd.f32 %v2575, %v2581
      %v2584 = vadd.f32 %v2576, %v2581
      %v2585 = vpack.c.bf16 %v2584, %v2583
      %s2586 = smul.addr %s2449, 4
      %s2587 = scalar_lea.vmem [#allocation6], %s2586
      %v2588 = vld [vmem:[%s2587] sm:$0xf]
      %v2589 = vld [vmem:[%s2587 + $0x4] sm:$0xf]
      %v2590 = vld [vmem:[%s2587 + $0x8] sm:$0xf]
      %v2591 = vld [vmem:[%s2587 + $0xc] sm:$0xf]
      %v2592 = vld [vmem:[%s2587 + $0x10] sm:$0xf]
      %v2593 = vld [vmem:[%s2587 + $0x14] sm:$0xf]
      %v2594 = vld [vmem:[%s2587 + $0x18] sm:$0xf]
      %v2595 = vld [vmem:[%s2587 + $0x1c] sm:$0xf]
      %s2596 = scalar_lea.vmem [#allocation8], %s474
      %v2597 = vld [vmem:[%s2596] sm:$0x1]
      %v2599 = vlaneseq
      %v2600 = vshrl.u32 %v2599, 7
      %v2601 = vsub.s32 0, %v2600
      %v2602 = vrot.slane %v2597, %v2601
      %v2612 = vunpack.c.l.b16 %v2588
      %v2613 = vunpack.c.l.b16 %v2589
      %v2614 = vunpack.c.l.b16 %v2590
      %v2615 = vunpack.c.l.b16 %v2591
      %v2616 = vunpack.c.l.b16 %v2592
      %v2617 = vunpack.c.l.b16 %v2593
      %v2618 = vunpack.c.l.b16 %v2594
      %v2619 = vunpack.c.l.b16 %v2595
      %v2620 = vpack.c.b16 %v2613, %v2612
      %v2621 = vpack.c.b16 %v2615, %v2614
      %v2622 = vpack.c.b16 %v2617, %v2616
      %v2623 = vpack.c.b16 %v2619, %v2618
      %v2629 = vsel %vm547, %v2585, 0
      %2631 = vmatprep.subr.bf16.mxu0 0
      %2632 = vmatpush1.bf16.msra.mxu0 %v2620
      %2633 = vmatprep.subr.bf16.mxu0 0
      %2634 = vmatpush1.bf16.msra.mxu0 %v2621
      %2635 = vmatprep.subr.bf16.mxu0 0
      %2636 = vmatpush1.bf16.msra.mxu0 %v2622
      %2637 = vmatprep.subr.bf16.mxu0 0
      %2638 = vmatpush1.bf16.msra.mxu0 %v2623
      %2639 = vmatprep.subr.bf16.mxu0 0
      %2640 = vmatpush1.bf16.msra.mxu0 0
      %2641 = vmatprep.subr.bf16.mxu0 0
      %2642 = vmatpush1.bf16.msra.mxu0 0
      %2643 = vmatprep.subr.bf16.mxu0 0
      %2644 = vmatpush1.bf16.msra.mxu0 0
      %2645 = vmatprep.subr.bf16.mxu0 0
      %2646 = vmatpush1.bf16.msra.mxu0 0
      %2647 = vmatprep.subr.bf16.mxu0 0
      %2648 = vmatpush1.bf16.msra.mxu0 0
      %2649 = vmatprep.subr.bf16.mxu0 0
      %2650 = vmatpush1.bf16.msra.mxu0 0
      %2651 = vmatprep.subr.bf16.mxu0 0
      %2652 = vmatpush1.bf16.msra.mxu0 0
      %2653 = vmatprep.subr.bf16.mxu0 0
      %2654 = vmatpush1.bf16.msra.mxu0 0
      %2655 = vmatprep.subr.bf16.mxu0 0
      %2656 = vmatpush1.bf16.msra.mxu0 0
      %2657 = vmatprep.subr.bf16.mxu0 0
      %2658 = vmatpush1.bf16.msra.mxu0 0
      %2659 = vmatprep.subr.bf16.mxu0 0
      %2660 = vmatpush1.bf16.msra.mxu0 0
      %2661 = vmatprep.subr.bf16.mxu0 0
      %2662 = vmatpush1.bf16.msra.mxu0 0
      %2663 = vmatprep.mubr.bf16.mxu0 0
      %2664 = vmatmul.mubr.bf16.gmra.mrb[0].mxu0 %v2629
      %v2665 = vpop.f32.mrb[0].mxu0
      %v2666 = vadd.f32 %v2602, %v2665
      %v2667 = vpop.f32.mrb[0].mxu0
      %v2668 = vpop.f32.mrb[0].mxu0
      %v2669 = vadd.f32 %v2602, %v2668
      %v2670 = vpop.f32.mrb[0].mxu0
      %2671 = vdwg.mxu0
      %v2672 = vmax.f32 %v2666, 0.0
      %v2673 = vmax.f32 %v2669, 0.0
      %v2674 = vpack.c.bf16 %v2673, %v2672
      %s2675 = smul.addr %s482, 4
      %s2676 = scalar_lea.vmem %s29, %s2675
      %v2677 = vld [vmem:[%s2676] sm:$0xf]
      %v2678 = vld [vmem:[%s2676 + $0x4] sm:$0xf]
      %v2679 = vld [vmem:[%s2676 + $0x8] sm:$0xf]
      %v2680 = vld [vmem:[%s2676 + $0xc] sm:$0xf]
      %v2681 = vld [vmem:[%s2676 + $0x10] sm:$0xf]
      %v2682 = vld [vmem:[%s2676 + $0x14] sm:$0xf]
      %v2683 = vld [vmem:[%s2676 + $0x18] sm:$0xf]
      %v2684 = vld [vmem:[%s2676 + $0x1c] sm:$0xf]
      %v2685 = vld [vmem:[%s2676 + $0x20] sm:$0xf]
      %v2686 = vld [vmem:[%s2676 + $0x24] sm:$0xf]
      %v2687 = vld [vmem:[%s2676 + $0x28] sm:$0xf]
      %v2688 = vld [vmem:[%s2676 + $0x2c] sm:$0xf]
      %v2689 = vld [vmem:[%s2676 + $0x30] sm:$0xf]
      %v2690 = vld [vmem:[%s2676 + $0x34] sm:$0xf]
      %v2691 = vld [vmem:[%s2676 + $0x38] sm:$0xf]
      %v2692 = vld [vmem:[%s2676 + $0x3c] sm:$0xf]
      %s2693 = scalar_lea.vmem [#allocation9], %s474
      %v2694 = vld [vmem:[%s2693] sm:$0x1]
      %v2696 = vlaneseq
      %v2697 = vshrl.u32 %v2696, 7
      %v2698 = vsub.s32 0, %v2697
      %v2699 = vrot.slane %v2694, %v2698
      %v2717 = vunpack.c.l.b16 %v2677
      %v2718 = vunpack.c.l.b16 %v2678
      %v2719 = vunpack.c.l.b16 %v2679
      %v2720 = vunpack.c.l.b16 %v2680
      %v2721 = vunpack.c.l.b16 %v2681
      %v2722 = vunpack.c.l.b16 %v2682
      %v2723 = vunpack.c.l.b16 %v2683
      %v2724 = vunpack.c.l.b16 %v2684
      %v2725 = vunpack.c.l.b16 %v2685
      %v2726 = vunpack.c.l.b16 %v2686
      %v2727 = vunpack.c.l.b16 %v2687
      %v2728 = vunpack.c.l.b16 %v2688
      %v2729 = vunpack.c.l.b16 %v2689
      %v2730 = vunpack.c.l.b16 %v2690
      %v2731 = vunpack.c.l.b16 %v2691
      %v2732 = vunpack.c.l.b16 %v2692
      %v2733 = vpack.c.b16 %v2718, %v2717
      %v2734 = vpack.c.b16 %v2720, %v2719
      %v2735 = vpack.c.b16 %v2722, %v2721
      %v2736 = vpack.c.b16 %v2724, %v2723
      %v2737 = vpack.c.b16 %v2726, %v2725
      %v2738 = vpack.c.b16 %v2728, %v2727
      %v2739 = vpack.c.b16 %v2730, %v2729
      %v2740 = vpack.c.b16 %v2732, %v2731
      %2749 = vmatprep.subr.bf16.mxu0 0
      %2750 = vmatpush1.bf16.msra.mxu0 %v2733
      %2751 = vmatprep.subr.bf16.mxu0 0
      %2752 = vmatpush1.bf16.msra.mxu0 %v2734
      %2753 = vmatprep.subr.bf16.mxu0 0
      %2754 = vmatpush1.bf16.msra.mxu0 %v2735
      %2755 = vmatprep.subr.bf16.mxu0 0
      %2756 = vmatpush1.bf16.msra.mxu0 %v2736
      %2757 = vmatprep.subr.bf16.mxu0 0
      %2758 = vmatpush1.bf16.msra.mxu0 %v2737
      %2759 = vmatprep.subr.bf16.mxu0 0
      %2760 = vmatpush1.bf16.msra.mxu0 %v2738
      %2761 = vmatprep.subr.bf16.mxu0 0
      %2762 = vmatpush1.bf16.msra.mxu0 %v2739
      %2763 = vmatprep.subr.bf16.mxu0 0
      %2764 = vmatpush1.bf16.msra.mxu0 %v2740
      %2765 = vmatprep.subr.bf16.mxu0 0
      %2766 = vmatpush1.bf16.msra.mxu0 0
      %2767 = vmatprep.subr.bf16.mxu0 0
      %2768 = vmatpush1.bf16.msra.mxu0 0
      %2769 = vmatprep.subr.bf16.mxu0 0
      %2770 = vmatpush1.bf16.msra.mxu0 0
      %2771 = vmatprep.subr.bf16.mxu0 0
      %2772 = vmatpush1.bf16.msra.mxu0 0
      %2773 = vmatprep.subr.bf16.mxu0 0
      %2774 = vmatpush1.bf16.msra.mxu0 0
      %2775 = vmatprep.subr.bf16.mxu0 0
      %2776 = vmatpush1.bf16.msra.mxu0 0
      %2777 = vmatprep.subr.bf16.mxu0 0
      %2778 = vmatpush1.bf16.msra.mxu0 0
      %2779 = vmatprep.subr.bf16.mxu0 0
      %2780 = vmatpush1.bf16.msra.mxu0 0
      %2781 = vmatprep.mubr.bf16.mxu0 0
      %2782 = vmatmul.mubr.bf16.gmra.mrb[0].mxu0 %v2674
      %v2783 = vpop.f32.mrb[0].mxu0
      %v2784 = vadd.f32 %v2699, %v2783
      %v2785 = vpop.f32.mrb[0].mxu0
      %v2786 = vpop.f32.mrb[0].mxu0
      %v2787 = vadd.f32 %v2699, %v2786
      %v2788 = vpop.f32.mrb[0].mxu0
      %2789 = vdwg.mxu0
      %s2790 = scalar_lea.vmem [#allocation11], %s474
      %v2791 = vld [vmem:[%s2790] sm:$0x1]
      %s2792 = scalar_lea.vmem [#allocation12], %s474
      %v2793 = vld [vmem:[%s2792] sm:$0x1]
      %v2794 = vadd.f32 %v2784, %v2583
      %v2795 = vadd.f32 %v2787, %v2584
      %v2796 = vsel %vm547, %v2794, 0.0
      %2797 = vadd.xlane.f32.xlu0 %v2796
      %v2798 = vpop.xlane.xlu0 %2797
      %v2799 = vsel %vm547, %v2795, 0.0
      %2800 = vadd.xlane.f32.xlu0 %v2799
      %v2801 = vpop.xlane.xlu0 %2800
      %v2802 = vmul.f32 %v2798, %v2548
      %v2803 = vmul.f32 %v2801, %v2548
      %v2804 = vsub.f32 %v2794, %v2802
      %v2805 = vsub.f32 %v2795, %v2803
      %v2806 = vmul.f32 %v2804, %v2804
      %v2807 = vmul.f32 %v2805, %v2805
      %v2808 = vsel %vm547, %v2806, 0.0
      %2809 = vadd.xlane.f32.xlu0 %v2808
      %v2810 = vpop.xlane.xlu0 %2809
      %v2811 = vsel %vm547, %v2807, 0.0
      %2812 = vadd.xlane.f32.xlu0 %v2811
      %v2813 = vpop.xlane.xlu0 %2812
      %v2814 = vmul.f32 %v2810, %v2548
      %v2815 = vmul.f32 %v2813, %v2548
      %v2816 = vadd.f32 %v2814, 1e-05
      %v2817 = vadd.f32 %v2815, 1e-05
      %v2818 = vrsqrt.pop %v2816
      %v2819 = vrsqrt.pop %v2817
      %v2820 = vmul.f32 %v2804, %v2818
      %v2821 = vmul.f32 %v2805, %v2819
      %v2823 = vlaneseq
      %v2824 = vshrl.u32 %v2823, 7
      %v2825 = vsub.s32 0, %v2824
      %v2826 = vrot.slane %v2791, %v2825
      %v2828 = vmul.f32 %v2820, %v2826
      %v2829 = vmul.f32 %v2821, %v2826
      %v2831 = vlaneseq
      %v2832 = vshrl.u32 %v2831, 7
      %v2833 = vsub.s32 0, %v2832
      %v2834 = vrot.slane %v2793, %v2833
      %v2836 = vadd.f32 %v2828, %v2834
      %v2837 = vadd.f32 %v2829, %v2834
    $region250: #{_forward.1} parent=1 // loop_footer
      %s478 = sadd.s32 1, %s474
    $region251: #{_forward.1} parent=1 // loop_footer_branch
      %473 = sbr.rel target = $region247
    $region252: #{_forward.1} parent=1 // loop_exit
      _
    %v2838 = vpack.c.bf16 %v480, %v479
    %v2839 = vld [vmem:[#allocation23] sm:$0xf]
    %v2840 = vld [vmem:[#allocation23 + $0x4] sm:$0xf]
    %v2841 = vld [vmem:[#allocation23 + $0x8] sm:$0xf]
    %v2842 = vld [vmem:[#allocation23 + $0xc] sm:$0xf]
    %v2843 = vld [vmem:[#allocation23 + $0x10] sm:$0xf]
    %v2844 = vld [vmem:[#allocation23 + $0x14] sm:$0xf]
    %v2845 = vld [vmem:[#allocation23 + $0x18] sm:$0xf]
    %v2846 = vld [vmem:[#allocation23 + $0x1c] sm:$0xf]
    %v2847 = vld [vmem:[#allocation24] sm:$0x1]
    %v2849 = vlaneseq
    %v2850 = vshrl.u32 %v2849, 7
    %v2851 = vsub.s32 0, %v2850
    %v2852 = vrot.slane %v2847, %v2851
    %v2862 = vunpack.c.l.b16 %v2839
    %v2863 = vunpack.c.l.b16 %v2840
    %v2864 = vunpack.c.l.b16 %v2841
    %v2865 = vunpack.c.l.b16 %v2842
    %v2866 = vunpack.c.l.b16 %v2843
    %v2867 = vunpack.c.l.b16 %v2844
    %v2868 = vunpack.c.l.b16 %v2845
    %v2869 = vunpack.c.l.b16 %v2846
    %v2870 = vpack.c.b16 %v2863, %v2862
    %v2871 = vpack.c.b16 %v2865, %v2864
    %v2872 = vpack.c.b16 %v2867, %v2866
    %v2873 = vpack.c.b16 %v2869, %v2868
    %vm2878 = vcmask 523264
    %v2880 = vsel %vm2878, %v2838, 0
    %2882 = vmatprep.subr.bf16.mxu0 0
    %2883 = vmatpush1.bf16.msra.mxu0 %v2870
    %2884 = vmatprep.subr.bf16.mxu0 0
    %2885 = vmatpush1.bf16.msra.mxu0 %v2871
    %2886 = vmatprep.subr.bf16.mxu0 0
    %2887 = vmatpush1.bf16.msra.mxu0 %v2872
    %2888 = vmatprep.subr.bf16.mxu0 0
    %2889 = vmatpush1.bf16.msra.mxu0 %v2873
    %2890 = vmatprep.subr.bf16.mxu0 0
    %2891 = vmatpush1.bf16.msra.mxu0 0
    %2892 = vmatprep.subr.bf16.mxu0 0
    %2893 = vmatpush1.bf16.msra.mxu0 0
    %2894 = vmatprep.subr.bf16.mxu0 0
    %2895 = vmatpush1.bf16.msra.mxu0 0
    %2896 = vmatprep.subr.bf16.mxu0 0
    %2897 = vmatpush1.bf16.msra.mxu0 0
    %2898 = vmatprep.subr.bf16.mxu0 0
    %2899 = vmatpush1.bf16.msra.mxu0 0
    %2900 = vmatprep.subr.bf16.mxu0 0
    %2901 = vmatpush1.bf16.msra.mxu0 0
    %2902 = vmatprep.subr.bf16.mxu0 0
    %2903 = vmatpush1.bf16.msra.mxu0 0
    %2904 = vmatprep.subr.bf16.mxu0 0
    %2905 = vmatpush1.bf16.msra.mxu0 0
    %2906 = vmatprep.subr.bf16.mxu0 0
    %2907 = vmatpush1.bf16.msra.mxu0 0
    %2908 = vmatprep.subr.bf16.mxu0 0
    %2909 = vmatpush1.bf16.msra.mxu0 0
    %2910 = vmatprep.subr.bf16.mxu0 0
    %2911 = vmatpush1.bf16.msra.mxu0 0
    %2912 = vmatprep.subr.bf16.mxu0 0
    %2913 = vmatpush1.bf16.msra.mxu0 0
    %2914 = vmatprep.mubr.bf16.mxu0 0
    %2915 = vmatmul.mubr.bf16.gmra.mrb[0].mxu0 %v2880
    %v2916 = vpop.f32.mrb[0].mxu0
    %v2917 = vadd.f32 %v2852, %v2916
    %v2918 = vpop.f32.mrb[0].mxu0
    %v2919 = vpop.f32.mrb[0].mxu0
    %v2920 = vadd.f32 %v2852, %v2919
    %v2921 = vpop.f32.mrb[0].mxu0
    %2922 = vdwg.mxu0
    %2923 = vst [vmem:[#allocation2] sm:$0xff] %v2917
    %2924 = vst [vmem:[#allocation2 + $0x8] sm:$0xff] %v2920
    %s2925 = scalar_lea.vmem [#allocation23], 32
    %v2926 = vld [vmem:[%s2925] sm:$0xf]
    %v2927 = vld [vmem:[%s2925 + $0x4] sm:$0xf]
    %v2928 = vld [vmem:[%s2925 + $0x8] sm:$0xf]
    %v2929 = vld [vmem:[%s2925 + $0xc] sm:$0xf]
    %v2930 = vld [vmem:[%s2925 + $0x10] sm:$0xf]
    %v2931 = vld [vmem:[%s2925 + $0x14] sm:$0xf]
    %v2932 = vld [vmem:[%s2925 + $0x18] sm:$0xf]
    %v2933 = vld [vmem:[%s2925 + $0x1c] sm:$0xf]
    %s2934 = scalar_lea.vmem [#allocation24], 1
    %v2935 = vld [vmem:[%s2934] sm:$0x1]
    %v2937 = vlaneseq
    %v2938 = vshrl.u32 %v2937, 7
    %v2939 = vsub.s32 0, %v2938
    %v2940 = vrot.slane %v2935, %v2939
    %v2950 = vunpack.c.l.b16 %v2926
    %v2951 = vunpack.c.l.b16 %v2927
    %v2952 = vunpack.c.l.b16 %v2928
    %v2953 = vunpack.c.l.b16 %v2929
    %v2954 = vunpack.c.l.b16 %v2930
    %v2955 = vunpack.c.l.b16 %v2931
    %v2956 = vunpack.c.l.b16 %v2932
    %v2957 = vunpack.c.l.b16 %v2933
    %v2958 = vpack.c.b16 %v2951, %v2950
    %v2959 = vpack.c.b16 %v2953, %v2952
    %v2960 = vpack.c.b16 %v2955, %v2954
    %v2961 = vpack.c.b16 %v2957, %v2956
    %2966 = vmatprep.subr.bf16.mxu0 0
    %2967 = vmatpush1.bf16.msra.mxu0 %v2958
    %2968 = vmatprep.subr.bf16.mxu0 0
    %2969 = vmatpush1.bf16.msra.mxu0 %v2959
    %2970 = vmatprep.subr.bf16.mxu0 0
    %2971 = vmatpush1.bf16.msra.mxu0 %v2960
    %2972 = vmatprep.subr.bf16.mxu0 0
    %2973 = vmatpush1.bf16.msra.mxu0 %v2961
    %2974 = vmatprep.subr.bf16.mxu0 0
    %2975 = vmatpush1.bf16.msra.mxu0 0
    %2976 = vmatprep.subr.bf16.mxu0 0
    %2977 = vmatpush1.bf16.msra.mxu0 0
    %2978 = vmatprep.subr.bf16.mxu0 0
    %2979 = vmatpush1.bf16.msra.mxu0 0
    %2980 = vmatprep.subr.bf16.mxu0 0
    %2981 = vmatpush1.bf16.msra.mxu0 0
    %2982 = vmatprep.subr.bf16.mxu0 0
    %2983 = vmatpush1.bf16.msra.mxu0 0
    %2984 = vmatprep.subr.bf16.mxu0 0
    %2985 = vmatpush1.bf16.msra.mxu0 0
    %2986 = vmatprep.subr.bf16.mxu0 0
    %2987 = vmatpush1.bf16.msra.mxu0 0
    %2988 = vmatprep.subr.bf16.mxu0 0
    %2989 = vmatpush1.bf16.msra.mxu0 0
    %2990 = vmatprep.subr.bf16.mxu0 0
    %2991 = vmatpush1.bf16.msra.mxu0 0
    %2992 = vmatprep.subr.bf16.mxu0 0
    %2993 = vmatpush1.bf16.msra.mxu0 0
    %2994 = vmatprep.subr.bf16.mxu0 0
    %2995 = vmatpush1.bf16.msra.mxu0 0
    %2996 = vmatprep.subr.bf16.mxu0 0
    %2997 = vmatpush1.bf16.msra.mxu0 0
    %2998 = vmatprep.mubr.bf16.mxu0 0
    %2999 = vmatmul.mubr.bf16.gmra.mrb[0].mxu0 %v2880
    %v3000 = vpop.f32.mrb[0].mxu0
    %v3001 = vadd.f32 %v2940, %v3000
    %v3002 = vpop.f32.mrb[0].mxu0
    %v3003 = vpop.f32.mrb[0].mxu0
    %v3004 = vadd.f32 %v2940, %v3003
    %v3005 = vpop.f32.mrb[0].mxu0
    %3006 = vdwg.mxu0
    %s3007 = scalar_lea.vmem [#allocation2], 16
    %3008 = vst [vmem:[%s3007] sm:$0xff] %v3001
    %3009 = vst [vmem:[%s3007 + $0x8] sm:$0xff] %v3004
    %s3010 = scalar_lea.vmem [#allocation23], 64
    %v3011 = vld [vmem:[%s3010] sm:$0xf]
    %v3012 = vld [vmem:[%s3010 + $0x4] sm:$0xf]
    %v3013 = vld [vmem:[%s3010 + $0x8] sm:$0xf]
    %v3014 = vld [vmem:[%s3010 + $0xc] sm:$0xf]
    %v3015 = vld [vmem:[%s3010 + $0x10] sm:$0xf]
    %v3016 = vld [vmem:[%s3010 + $0x14] sm:$0xf]
    %v3017 = vld [vmem:[%s3010 + $0x18] sm:$0xf]
    %v3018 = vld [vmem:[%s3010 + $0x1c] sm:$0xf]
    %s3019 = scalar_lea.vmem [#allocation24], 2
    %v3020 = vld [vmem:[%s3019] sm:$0x1]
    %v3022 = vlaneseq
    %v3023 = vshrl.u32 %v3022, 7
    %v3024 = vsub.s32 0, %v3023
    %v3025 = vrot.slane %v3020, %v3024
    %v3035 = vunpack.c.l.b16 %v3011
    %v3036 = vunpack.c.l.b16 %v3012
    %v3037 = vunpack.c.l.b16 %v3013
    %v3038 = vunpack.c.l.b16 %v3014
    %v3039 = vunpack.c.l.b16 %v3015
    %v3040 = vunpack.c.l.b16 %v3016
    %v3041 = vunpack.c.l.b16 %v3017
    %v3042 = vunpack.c.l.b16 %v3018
    %v3043 = vpack.c.b16 %v3036, %v3035
    %v3044 = vpack.c.b16 %v3038, %v3037
    %v3045 = vpack.c.b16 %v3040, %v3039
    %v3046 = vpack.c.b16 %v3042, %v3041
    %3051 = vmatprep.subr.bf16.mxu0 0
    %3052 = vmatpush1.bf16.msra.mxu0 %v3043
    %3053 = vmatprep.subr.bf16.mxu0 0
    %3054 = vmatpush1.bf16.msra.mxu0 %v3044
    %3055 = vmatprep.subr.bf16.mxu0 0
    %3056 = vmatpush1.bf16.msra.mxu0 %v3045
    %3057 = vmatprep.subr.bf16.mxu0 0
    %3058 = vmatpush1.bf16.msra.mxu0 %v3046
    %3059 = vmatprep.subr.bf16.mxu0 0
    %3060 = vmatpush1.bf16.msra.mxu0 0
    %3061 = vmatprep.subr.bf16.mxu0 0
    %3062 = vmatpush1.bf16.msra.mxu0 0
    %3063 = vmatprep.subr.bf16.mxu0 0
    %3064 = vmatpush1.bf16.msra.mxu0 0
    %3065 = vmatprep.subr.bf16.mxu0 0
    %3066 = vmatpush1.bf16.msra.mxu0 0
    %3067 = vmatprep.subr.bf16.mxu0 0
    %3068 = vmatpush1.bf16.msra.mxu0 0
    %3069 = vmatprep.subr.bf16.mxu0 0
    %3070 = vmatpush1.bf16.msra.mxu0 0
    %3071 = vmatprep.subr.bf16.mxu0 0
    %3072 = vmatpush1.bf16.msra.mxu0 0
    %3073 = vmatprep.subr.bf16.mxu0 0
    %3074 = vmatpush1.bf16.msra.mxu0 0
    %3075 = vmatprep.subr.bf16.mxu0 0
    %3076 = vmatpush1.bf16.msra.mxu0 0
    %3077 = vmatprep.subr.bf16.mxu0 0
    %3078 = vmatpush1.bf16.msra.mxu0 0
    %3079 = vmatprep.subr.bf16.mxu0 0
    %3080 = vmatpush1.bf16.msra.mxu0 0
    %3081 = vmatprep.subr.bf16.mxu0 0
    %3082 = vmatpush1.bf16.msra.mxu0 0
    %3083 = vmatprep.mubr.bf16.mxu0 0
    %3084 = vmatmul.mubr.bf16.gmra.mrb[0].mxu0 %v2880
    %v3085 = vpop.f32.mrb[0].mxu0
    %v3086 = vadd.f32 %v3025, %v3085
    %v3087 = vpop.f32.mrb[0].mxu0
    %v3088 = vpop.f32.mrb[0].mxu0
    %v3089 = vadd.f32 %v3025, %v3088
    %v3090 = vpop.f32.mrb[0].mxu0
    %3091 = vdwg.mxu0
    %s3092 = scalar_lea.vmem [#allocation2], 32
    %3093 = vst [vmem:[%s3092] sm:$0xff] %v3086
    %3094 = vst [vmem:[%s3092 + $0x8] sm:$0xff] %v3089
    %s3095 = scalar_lea.vmem [#allocation23], 96
    %v3096 = vld [vmem:[%s3095] sm:$0xf]
    %v3097 = vld [vmem:[%s3095 + $0x4] sm:$0xf]
    %v3098 = vld [vmem:[%s3095 + $0x8] sm:$0xf]
    %v3099 = vld [vmem:[%s3095 + $0xc] sm:$0xf]
    %v3100 = vld [vmem:[%s3095 + $0x10] sm:$0xf]
    %v3101 = vld [vmem:[%s3095 + $0x14] sm:$0xf]
    %v3102 = vld [vmem:[%s3095 + $0x18] sm:$0xf]
    %v3103 = vld [vmem:[%s3095 + $0x1c] sm:$0xf]
    %s3104 = scalar_lea.vmem [#allocation24], 3
    %v3105 = vld [vmem:[%s3104] sm:$0x1]
    %v3107 = vlaneseq
    %v3108 = vshrl.u32 %v3107, 7
    %v3109 = vsub.s32 0, %v3108
    %v3110 = vrot.slane %v3105, %v3109
    %v3120 = vunpack.c.l.b16 %v3096
    %v3121 = vunpack.c.l.b16 %v3097
    %v3122 = vunpack.c.l.b16 %v3098
    %v3123 = vunpack.c.l.b16 %v3099
    %v3124 = vunpack.c.l.b16 %v3100
    %v3125 = vunpack.c.l.b16 %v3101
    %v3126 = vunpack.c.l.b16 %v3102
    %v3127 = vunpack.c.l.b16 %v3103
    %v3128 = vpack.c.b16 %v3121, %v3120
    %v3129 = vpack.c.b16 %v3123, %v3122
    %v3130 = vpack.c.b16 %v3125, %v3124
    %v3131 = vpack.c.b16 %v3127, %v3126
    %3136 = vmatprep.subr.bf16.mxu0 0
    %3137 = vmatpush1.bf16.msra.mxu0 %v3128
    %3138 = vmatprep.subr.bf16.mxu0 0
    %3139 = vmatpush1.bf16.msra.mxu0 %v3129
    %3140 = vmatprep.subr.bf16.mxu0 0
    %3141 = vmatpush1.bf16.msra.mxu0 %v3130
    %3142 = vmatprep.subr.bf16.mxu0 0
    %3143 = vmatpush1.bf16.msra.mxu0 %v3131
    %3144 = vmatprep.subr.bf16.mxu0 0
    %3145 = vmatpush1.bf16.msra.mxu0 0
    %3146 = vmatprep.subr.bf16.mxu0 0
    %3147 = vmatpush1.bf16.msra.mxu0 0
    %3148 = vmatprep.subr.bf16.mxu0 0
    %3149 = vmatpush1.bf16.msra.mxu0 0
    %3150 = vmatprep.subr.bf16.mxu0 0
    %3151 = vmatpush1.bf16.msra.mxu0 0
    %3152 = vmatprep.subr.bf16.mxu0 0
    %3153 = vmatpush1.bf16.msra.mxu0 0
    %3154 = vmatprep.subr.bf16.mxu0 0
    %3155 = vmatpush1.bf16.msra.mxu0 0
    %3156 = vmatprep.subr.bf16.mxu0 0
    %3157 = vmatpush1.bf16.msra.mxu0 0
    %3158 = vmatprep.subr.bf16.mxu0 0
    %3159 = vmatpush1.bf16.msra.mxu0 0
    %3160 = vmatprep.subr.bf16.mxu0 0
    %3161 = vmatpush1.bf16.msra.mxu0 0
    %3162 = vmatprep.subr.bf16.mxu0 0
    %3163 = vmatpush1.bf16.msra.mxu0 0
    %3164 = vmatprep.subr.bf16.mxu0 0
    %3165 = vmatpush1.bf16.msra.mxu0 0
    %3166 = vmatprep.subr.bf16.mxu0 0
    %3167 = vmatpush1.bf16.msra.mxu0 0
    %3168 = vmatprep.mubr.bf16.mxu0 0
    %3169 = vmatmul.mubr.bf16.gmra.mrb[0].mxu0 %v2880
    %v3170 = vpop.f32.mrb[0].mxu0
    %v3171 = vadd.f32 %v3110, %v3170
    %v3172 = vpop.f32.mrb[0].mxu0
    %v3173 = vpop.f32.mrb[0].mxu0
    %v3174 = vadd.f32 %v3110, %v3173
    %v3175 = vpop.f32.mrb[0].mxu0
    %3176 = vdwg.mxu0
    %s3177 = scalar_lea.vmem [#allocation2], 48
    %3178 = vst [vmem:[%s3177] sm:$0xff] %v3171
    %3179 = vst [vmem:[%s3177 + $0x8] sm:$0xff] %v3174
    %s3180 = scalar_lea.vmem [#allocation23], 128
    %v3181 = vld [vmem:[%s3180] sm:$0xf]
    %v3182 = vld [vmem:[%s3180 + $0x4] sm:$0xf]
    %v3183 = vld [vmem:[%s3180 + $0x8] sm:$0xf]
    %v3184 = vld [vmem:[%s3180 + $0xc] sm:$0xf]
    %v3185 = vld [vmem:[%s3180 + $0x10] sm:$0xf]
    %v3186 = vld [vmem:[%s3180 + $0x14] sm:$0xf]
    %v3187 = vld [vmem:[%s3180 + $0x18] sm:$0xf]
    %v3188 = vld [vmem:[%s3180 + $0x1c] sm:$0xf]
    %s3189 = scalar_lea.vmem [#allocation24], 4
    %v3190 = vld [vmem:[%s3189] sm:$0x1]
    %v3192 = vlaneseq
    %v3193 = vshrl.u32 %v3192, 7
    %v3194 = vsub.s32 0, %v3193
    %v3195 = vrot.slane %v3190, %v3194
    %v3205 = vunpack.c.l.b16 %v3181
    %v3206 = vunpack.c.l.b16 %v3182
    %v3207 = vunpack.c.l.b16 %v3183
    %v3208 = vunpack.c.l.b16 %v3184
    %v3209 = vunpack.c.l.b16 %v3185
    %v3210 = vunpack.c.l.b16 %v3186
    %v3211 = vunpack.c.l.b16 %v3187
    %v3212 = vunpack.c.l.b16 %v3188
    %v3213 = vpack.c.b16 %v3206, %v3205
    %v3214 = vpack.c.b16 %v3208, %v3207
    %v3215 = vpack.c.b16 %v3210, %v3209
    %v3216 = vpack.c.b16 %v3212, %v3211
    %3221 = vmatprep.subr.bf16.mxu0 0
    %3222 = vmatpush1.bf16.msra.mxu0 %v3213
    %3223 = vmatprep.subr.bf16.mxu0 0
    %3224 = vmatpush1.bf16.msra.mxu0 %v3214
    %3225 = vmatprep.subr.bf16.mxu0 0
    %3226 = vmatpush1.bf16.msra.mxu0 %v3215
    %3227 = vmatprep.subr.bf16.mxu0 0
    %3228 = vmatpush1.bf16.msra.mxu0 %v3216
    %3229 = vmatprep.subr.bf16.mxu0 0
    %3230 = vmatpush1.bf16.msra.mxu0 0
    %3231 = vmatprep.subr.bf16.mxu0 0
    %3232 = vmatpush1.bf16.msra.mxu0 0
    %3233 = vmatprep.subr.bf16.mxu0 0
    %3234 = vmatpush1.bf16.msra.mxu0 0
    %3235 = vmatprep.subr.bf16.mxu0 0
    %3236 = vmatpush1.bf16.msra.mxu0 0
    %3237 = vmatprep.subr.bf16.mxu0 0
    %3238 = vmatpush1.bf16.msra.mxu0 0
    %3239 = vmatprep.subr.bf16.mxu0 0
    %3240 = vmatpush1.bf16.msra.mxu0 0
    %3241 = vmatprep.subr.bf16.mxu0 0
    %3242 = vmatpush1.bf16.msra.mxu0 0
    %3243 = vmatprep.subr.bf16.mxu0 0
    %3244 = vmatpush1.bf16.msra.mxu0 0
    %3245 = vmatprep.subr.bf16.mxu0 0
    %3246 = vmatpush1.bf16.msra.mxu0 0
    %3247 = vmatprep.subr.bf16.mxu0 0
    %3248 = vmatpush1.bf16.msra.mxu0 0
    %3249 = vmatprep.subr.bf16.mxu0 0
    %3250 = vmatpush1.bf16.msra.mxu0 0
    %3251 = vmatprep.subr.bf16.mxu0 0
    %3252 = vmatpush1.bf16.msra.mxu0 0
    %3253 = vmatprep.mubr.bf16.mxu0 0
    %3254 = vmatmul.mubr.bf16.gmra.mrb[0].mxu0 %v2880
    %v3255 = vpop.f32.mrb[0].mxu0
    %v3256 = vadd.f32 %v3195, %v3255
    %v3257 = vpop.f32.mrb[0].mxu0
    %v3258 = vpop.f32.mrb[0].mxu0
    %v3259 = vadd.f32 %v3195, %v3258
    %v3260 = vpop.f32.mrb[0].mxu0
    %3261 = vdwg.mxu0
    %s3262 = scalar_lea.vmem [#allocation2], 64
    %3263 = vst [vmem:[%s3262] sm:$0xff] %v3256
    %3264 = vst [vmem:[%s3262 + $0x8] sm:$0xff] %v3259
    %s3265 = scalar_lea.vmem [#allocation23], 160
    %v3266 = vld [vmem:[%s3265] sm:$0xf]
    %v3267 = vld [vmem:[%s3265 + $0x4] sm:$0xf]
    %v3268 = vld [vmem:[%s3265 + $0x8] sm:$0xf]
    %v3269 = vld [vmem:[%s3265 + $0xc] sm:$0xf]
    %v3270 = vld [vmem:[%s3265 + $0x10] sm:$0xf]
    %v3271 = vld [vmem:[%s3265 + $0x14] sm:$0xf]
    %v3272 = vld [vmem:[%s3265 + $0x18] sm:$0xf]
    %v3273 = vld [vmem:[%s3265 + $0x1c] sm:$0xf]
    %s3274 = scalar_lea.vmem [#allocation24], 5
    %v3275 = vld [vmem:[%s3274] sm:$0x1]
    %v3277 = vlaneseq
    %v3278 = vshrl.u32 %v3277, 7
    %v3279 = vsub.s32 0, %v3278
    %v3280 = vrot.slane %v3275, %v3279
    %v3290 = vunpack.c.l.b16 %v3266
    %v3291 = vunpack.c.l.b16 %v3267
    %v3292 = vunpack.c.l.b16 %v3268
    %v3293 = vunpack.c.l.b16 %v3269
    %v3294 = vunpack.c.l.b16 %v3270
    %v3295 = vunpack.c.l.b16 %v3271
    %v3296 = vunpack.c.l.b16 %v3272
    %v3297 = vunpack.c.l.b16 %v3273
    %v3298 = vpack.c.b16 %v3291, %v3290
    %v3299 = vpack.c.b16 %v3293, %v3292
    %v3300 = vpack.c.b16 %v3295, %v3294
    %v3301 = vpack.c.b16 %v3297, %v3296
    %3306 = vmatprep.subr.bf16.mxu0 0
    %3307 = vmatpush1.bf16.msra.mxu0 %v3298
    %3308 = vmatprep.subr.bf16.mxu0 0
    %3309 = vmatpush1.bf16.msra.mxu0 %v3299
    %3310 = vmatprep.subr.bf16.mxu0 0
    %3311 = vmatpush1.bf16.msra.mxu0 %v3300
    %3312 = vmatprep.subr.bf16.mxu0 0
    %3313 = vmatpush1.bf16.msra.mxu0 %v3301
    %3314 = vmatprep.subr.bf16.mxu0 0
    %3315 = vmatpush1.bf16.msra.mxu0 0
    %3316 = vmatprep.subr.bf16.mxu0 0
    %3317 = vmatpush1.bf16.msra.mxu0 0
    %3318 = vmatprep.subr.bf16.mxu0 0
    %3319 = vmatpush1.bf16.msra.mxu0 0
    %3320 = vmatprep.subr.bf16.mxu0 0
    %3321 = vmatpush1.bf16.msra.mxu0 0
    %3322 = vmatprep.subr.bf16.mxu0 0
    %3323 = vmatpush1.bf16.msra.mxu0 0
    %3324 = vmatprep.subr.bf16.mxu0 0
    %3325 = vmatpush1.bf16.msra.mxu0 0
    %3326 = vmatprep.subr.bf16.mxu0 0
    %3327 = vmatpush1.bf16.msra.mxu0 0
    %3328 = vmatprep.subr.bf16.mxu0 0
    %3329 = vmatpush1.bf16.msra.mxu0 0
    %3330 = vmatprep.subr.bf16.mxu0 0
    %3331 = vmatpush1.bf16.msra.mxu0 0
    %3332 = vmatprep.subr.bf16.mxu0 0
    %3333 = vmatpush1.bf16.msra.mxu0 0
    %3334 = vmatprep.subr.bf16.mxu0 0
    %3335 = vmatpush1.bf16.msra.mxu0 0
    %3336 = vmatprep.subr.bf16.mxu0 0
    %3337 = vmatpush1.bf16.msra.mxu0 0
    %3338 = vmatprep.mubr.bf16.mxu0 0
    %3339 = vmatmul.mubr.bf16.gmra.mrb[0].mxu0 %v2880
    %v3340 = vpop.f32.mrb[0].mxu0
    %v3341 = vadd.f32 %v3280, %v3340
    %v3342 = vpop.f32.mrb[0].mxu0
    %v3343 = vpop.f32.mrb[0].mxu0
    %v3344 = vadd.f32 %v3280, %v3343
    %v3345 = vpop.f32.mrb[0].mxu0
    %3346 = vdwg.mxu0
    %s3347 = scalar_lea.vmem [#allocation2], 80
    %3348 = vst [vmem:[%s3347] sm:$0xff] %v3341
    %3349 = vst [vmem:[%s3347 + $0x8] sm:$0xff] %v3344
    %s3350 = scalar_lea.vmem [#allocation23], 192
    %v3351 = vld [vmem:[%s3350] sm:$0xf]
    %v3352 = vld [vmem:[%s3350 + $0x4] sm:$0xf]
    %v3353 = vld [vmem:[%s3350 + $0x8] sm:$0xf]
    %v3354 = vld [vmem:[%s3350 + $0xc] sm:$0xf]
    %v3355 = vld [vmem:[%s3350 + $0x10] sm:$0xf]
    %v3356 = vld [vmem:[%s3350 + $0x14] sm:$0xf]
    %v3357 = vld [vmem:[%s3350 + $0x18] sm:$0xf]
    %v3358 = vld [vmem:[%s3350 + $0x1c] sm:$0xf]
    %s3359 = scalar_lea.vmem [#allocation24], 6
    %v3360 = vld [vmem:[%s3359] sm:$0x1]
    %v3362 = vlaneseq
    %v3363 = vshrl.u32 %v3362, 7
    %v3364 = vsub.s32 0, %v3363
    %v3365 = vrot.slane %v3360, %v3364
    %v3375 = vunpack.c.l.b16 %v3351
    %v3376 = vunpack.c.l.b16 %v3352
    %v3377 = vunpack.c.l.b16 %v3353
    %v3378 = vunpack.c.l.b16 %v3354
    %v3379 = vunpack.c.l.b16 %v3355
    %v3380 = vunpack.c.l.b16 %v3356
    %v3381 = vunpack.c.l.b16 %v3357
    %v3382 = vunpack.c.l.b16 %v3358
    %v3383 = vpack.c.b16 %v3376, %v3375
    %v3384 = vpack.c.b16 %v3378, %v3377
    %v3385 = vpack.c.b16 %v3380, %v3379
    %v3386 = vpack.c.b16 %v3382, %v3381
    %3391 = vmatprep.subr.bf16.mxu0 0
    %3392 = vmatpush1.bf16.msra.mxu0 %v3383
    %3393 = vmatprep.subr.bf16.mxu0 0
    %3394 = vmatpush1.bf16.msra.mxu0 %v3384
    %3395 = vmatprep.subr.bf16.mxu0 0
    %3396 = vmatpush1.bf16.msra.mxu0 %v3385
    %3397 = vmatprep.subr.bf16.mxu0 0
    %3398 = vmatpush1.bf16.msra.mxu0 %v3386
    %3399 = vmatprep.subr.bf16.mxu0 0
    %3400 = vmatpush1.bf16.msra.mxu0 0
    %3401 = vmatprep.subr.bf16.mxu0 0
    %3402 = vmatpush1.bf16.msra.mxu0 0
    %3403 = vmatprep.subr.bf16.mxu0 0
    %3404 = vmatpush1.bf16.msra.mxu0 0
    %3405 = vmatprep.subr.bf16.mxu0 0
    %3406 = vmatpush1.bf16.msra.mxu0 0
    %3407 = vmatprep.subr.bf16.mxu0 0
    %3408 = vmatpush1.bf16.msra.mxu0 0
    %3409 = vmatprep.subr.bf16.mxu0 0
    %3410 = vmatpush1.bf16.msra.mxu0 0
    %3411 = vmatprep.subr.bf16.mxu0 0
    %3412 = vmatpush1.bf16.msra.mxu0 0
    %3413 = vmatprep.subr.bf16.mxu0 0
    %3414 = vmatpush1.bf16.msra.mxu0 0
    %3415 = vmatprep.subr.bf16.mxu0 0
    %3416 = vmatpush1.bf16.msra.mxu0 0
    %3417 = vmatprep.subr.bf16.mxu0 0
    %3418 = vmatpush1.bf16.msra.mxu0 0
    %3419 = vmatprep.subr.bf16.mxu0 0
    %3420 = vmatpush1.bf16.msra.mxu0 0
    %3421 = vmatprep.subr.bf16.mxu0 0
    %3422 = vmatpush1.bf16.msra.mxu0 0
    %3423 = vmatprep.mubr.bf16.mxu0 0
    %3424 = vmatmul.mubr.bf16.gmra.mrb[0].mxu0 %v2880
    %v3425 = vpop.f32.mrb[0].mxu0
    %v3426 = vadd.f32 %v3365, %v3425
    %v3427 = vpop.f32.mrb[0].mxu0
    %v3428 = vpop.f32.mrb[0].mxu0
    %v3429 = vadd.f32 %v3365, %v3428
    %v3430 = vpop.f32.mrb[0].mxu0
    %3431 = vdwg.mxu0
    %s3432 = scalar_lea.vmem [#allocation2], 96
    %3433 = vst [vmem:[%s3432] sm:$0xff] %v3426
    %3434 = vst [vmem:[%s3432 + $0x8] sm:$0xff] %v3429
    %s3435 = scalar_lea.vmem [#allocation23], 224
    %v3436 = vld [vmem:[%s3435] sm:$0xf]
    %v3437 = vld [vmem:[%s3435 + $0x4] sm:$0xf]
    %v3438 = vld [vmem:[%s3435 + $0x8] sm:$0xf]
    %v3439 = vld [vmem:[%s3435 + $0xc] sm:$0xf]
    %v3440 = vld [vmem:[%s3435 + $0x10] sm:$0xf]
    %v3441 = vld [vmem:[%s3435 + $0x14] sm:$0xf]
    %v3442 = vld [vmem:[%s3435 + $0x18] sm:$0xf]
    %v3443 = vld [vmem:[%s3435 + $0x1c] sm:$0xf]
    %s3444 = scalar_lea.vmem [#allocation24], 7
    %v3445 = vld [vmem:[%s3444] sm:$0x1]
    %v3447 = vlaneseq
    %v3448 = vshrl.u32 %v3447, 7
    %v3449 = vsub.s32 0, %v3448
    %v3450 = vrot.slane %v3445, %v3449
    %v3460 = vunpack.c.l.b16 %v3436
    %v3461 = vunpack.c.l.b16 %v3437
    %v3462 = vunpack.c.l.b16 %v3438
    %v3463 = vunpack.c.l.b16 %v3439
    %v3464 = vunpack.c.l.b16 %v3440
    %v3465 = vunpack.c.l.b16 %v3441
    %v3466 = vunpack.c.l.b16 %v3442
    %v3467 = vunpack.c.l.b16 %v3443
    %v3468 = vpack.c.b16 %v3461, %v3460
    %v3469 = vpack.c.b16 %v3463, %v3462
    %v3470 = vpack.c.b16 %v3465, %v3464
    %v3471 = vpack.c.b16 %v3467, %v3466
    %3476 = vmatprep.subr.bf16.mxu0 0
    %3477 = vmatpush1.bf16.msra.mxu0 %v3468
    %3478 = vmatprep.subr.bf16.mxu0 0
    %3479 = vmatpush1.bf16.msra.mxu0 %v3469
    %3480 = vmatprep.subr.bf16.mxu0 0
    %3481 = vmatpush1.bf16.msra.mxu0 %v3470
    %3482 = vmatprep.subr.bf16.mxu0 0
    %3483 = vmatpush1.bf16.msra.mxu0 %v3471
    %3484 = vmatprep.subr.bf16.mxu0 0
    %3485 = vmatpush1.bf16.msra.mxu0 0
    %3486 = vmatprep.subr.bf16.mxu0 0
    %3487 = vmatpush1.bf16.msra.mxu0 0
    %3488 = vmatprep.subr.bf16.mxu0 0
    %3489 = vmatpush1.bf16.msra.mxu0 0
    %3490 = vmatprep.subr.bf16.mxu0 0
    %3491 = vmatpush1.bf16.msra.mxu0 0
    %3492 = vmatprep.subr.bf16.mxu0 0
    %3493 = vmatpush1.bf16.msra.mxu0 0
    %3494 = vmatprep.subr.bf16.mxu0 0
    %3495 = vmatpush1.bf16.msra.mxu0 0
    %3496 = vmatprep.subr.bf16.mxu0 0
    %3497 = vmatpush1.bf16.msra.mxu0 0
    %3498 = vmatprep.subr.bf16.mxu0 0
    %3499 = vmatpush1.bf16.msra.mxu0 0
    %3500 = vmatprep.subr.bf16.mxu0 0
    %3501 = vmatpush1.bf16.msra.mxu0 0
    %3502 = vmatprep.subr.bf16.mxu0 0
    %3503 = vmatpush1.bf16.msra.mxu0 0
    %3504 = vmatprep.subr.bf16.mxu0 0
    %3505 = vmatpush1.bf16.msra.mxu0 0
    %3506 = vmatprep.subr.bf16.mxu0 0
    %3507 = vmatpush1.bf16.msra.mxu0 0
    %3508 = vmatprep.mubr.bf16.mxu0 0
    %3509 = vmatmul.mubr.bf16.gmra.mrb[0].mxu0 %v2880
    %v3510 = vpop.f32.mrb[0].mxu0
    %v3511 = vadd.f32 %v3450, %v3510
    %v3512 = vpop.f32.mrb[0].mxu0
    %v3513 = vpop.f32.mrb[0].mxu0
    %v3514 = vadd.f32 %v3450, %v3513
    %v3515 = vpop.f32.mrb[0].mxu0
    %3516 = vdwg.mxu0
    %s3517 = scalar_lea.vmem [#allocation2], 112
    %3518 = vst [vmem:[%s3517] sm:$0xff] %v3511
    %3519 = vst [vmem:[%s3517 + $0x8] sm:$0xff] %v3514
    %v3520 = vld [vmem:[%s5] sm:$0xff]
    %v3521 = vld [vmem:[%s7] sm:$0xff]
    %v3522 = vld [vmem:[%s7 + $0x8] sm:$0xff]
    %v3523 = vld [vmem:[%s7 + $0x10] sm:$0xff]
    %v3524 = vld [vmem:[%s7 + $0x18] sm:$0xff]
    %v3525 = vld [vmem:[%s9] sm:$0xf]
    %v3526 = vld [vmem:[%s9 + $0x4] sm:$0xf]
    %v3527 = vld [vmem:[%s9 + $0x8] sm:$0xf]
    %v3528 = vld [vmem:[%s9 + $0xc] sm:$0xf]
    %v3529 = vld [vmem:[%s9 + $0x10] sm:$0xf]
    %v3530 = vld [vmem:[%s9 + $0x14] sm:$0xf]
    %v3531 = vld [vmem:[%s9 + $0x18] sm:$0xf]
    %v3532 = vld [vmem:[%s9 + $0x1c] sm:$0xf]
    %v3533 = vld [vmem:[%s11] sm:$0x1]
    %v3534 = vld [vmem:[%s3] sm:$0xff]
    loop: start=0, step=1, limit=4
    $region253: #{_forward.1} parent=1 // loop_pre_header
      _
    $region254: #{_forward.1} parent=1 // loop_header
      %s3536 = sphi 0, %s3540
      %p3537 = scmp.ge.s32.totalorder %s3536, 4
      %v3541 = vphi %v3534, %v8196
      %v3542 = vphi 0.0, %v3628
    $region255: #{_forward.1} parent=1 // loop_header_branch
      %3539 = sbr.rel (%p3537) target = $region259
    $region256: #{_forward.1} parent=1 // loop_body
      %vm3543 = vcmask 261120
      %v3545 = vsel %vm3543, %v3541, 0
      %3547 = vmatprep.subr.mxu0 0.0
      %3548 = vmatpush1.msra.mxu0 %v3521
      %3549 = vmatprep.subr.mxu0 0.0
      %3550 = vmatpush1.msra.mxu0 %v3522
      %3551 = vmatprep.subr.mxu0 0.0
      %3552 = vmatpush1.msra.mxu0 %v3523
      %3553 = vmatprep.subr.mxu0 0.0
      %3554 = vmatpush1.msra.mxu0 %v3524
      %3555 = vmatprep.subr.mxu0 0.0
      %3556 = vmatpush1.msra.mxu0 0.0
      %3557 = vmatprep.subr.mxu0 0.0
      %3558 = vmatpush1.msra.mxu0 0.0
      %3559 = vmatprep.subr.mxu0 0.0
      %3560 = vmatpush1.msra.mxu0 0.0
      %3561 = vmatprep.subr.mxu0 0.0
      %3562 = vmatpush1.msra.mxu0 0.0
      %3563 = vmatprep.subr.mxu0 0.0
      %3564 = vmatpush1.msra.mxu0 0.0
      %3565 = vmatprep.subr.mxu0 0.0
      %3566 = vmatpush1.msra.mxu0 0.0
      %3567 = vmatprep.subr.mxu0 0.0
      %3568 = vmatpush1.msra.mxu0 0.0
      %3569 = vmatprep.subr.mxu0 0.0
      %3570 = vmatpush1.msra.mxu0 0.0
      %3571 = vmatprep.subr.mxu0 0.0
      %3572 = vmatpush1.msra.mxu0 0.0
      %3573 = vmatprep.subr.mxu0 0.0
      %3574 = vmatpush1.msra.mxu0 0.0
      %3575 = vmatprep.subr.mxu0 0.0
      %3576 = vmatpush1.msra.mxu0 0.0
      %3577 = vmatprep.subr.mxu0 0.0
      %3578 = vmatpush1.msra.mxu0 0.0
      %3579 = vmatprep.subr.mxu0 0.0
      %3580 = vmatpush1.msra.mxu0 0.0
      %3581 = vmatprep.subr.mxu0 0.0
      %3582 = vmatpush1.msra.mxu0 0.0
      %3583 = vmatprep.subr.mxu0 0.0
      %3584 = vmatpush1.msra.mxu0 0.0
      %3585 = vmatprep.subr.mxu0 0.0
      %3586 = vmatpush1.msra.mxu0 0.0
      %3587 = vmatprep.subr.mxu0 0.0
      %3588 = vmatpush1.msra.mxu0 0.0
      %3589 = vmatprep.subr.mxu0 0.0
      %3590 = vmatpush1.msra.mxu0 0.0
      %3591 = vmatprep.subr.mxu0 0.0
      %3592 = vmatpush1.msra.mxu0 0.0
      %3593 = vmatprep.subr.mxu0 0.0
      %3594 = vmatpush1.msra.mxu0 0.0
      %3595 = vmatprep.subr.mxu0 0.0
      %3596 = vmatpush1.msra.mxu0 0.0
      %3597 = vmatprep.subr.mxu0 0.0
      %3598 = vmatpush1.msra.mxu0 0.0
      %3599 = vmatprep.subr.mxu0 0.0
      %3600 = vmatpush1.msra.mxu0 0.0
      %3601 = vmatprep.subr.mxu0 0.0
      %3602 = vmatpush1.msra.mxu0 0.0
      %3603 = vmatprep.subr.mxu0 0.0
      %3604 = vmatpush1.msra.mxu0 0.0
      %3605 = vmatprep.subr.mxu0 0.0
      %3606 = vmatpush1.msra.mxu0 0.0
      %3607 = vmatprep.subr.mxu0 0.0
      %3608 = vmatpush1.msra.mxu0 0.0
      %3609 = vmatprep.subr.mxu0 0.0
      %3610 = vmatpush1.msra.mxu0 0.0
      %3611 = vmatprep.mubr.f32.mxu0 0.0
      %3612 = vmatmul.mubr.f32.gmra.mrb[0].mxu0 %v3545
      %v3613 = vpop.f32.mrb[0].mxu0
      %v3614 = vadd.f32 %v3520, %v3613
      %v3615 = vpop.f32.mrb[0].mxu0
      %3616 = vdwg.mxu0
      %v3617 = vlaneseq
      %v3618 = vand.u32 %v3617, 127
      %v3619 = vstv %s3536
      %vm3620 = vcmp.le.s32.totalorder %v3618, %v3619
      %v3621 = vsel %vm3620, 0.0, -1e+30
      loop: start=0, step=1, limit=8
      $region260: #{_forward.1} parent=256 // loop_pre_header
        _
      $region261: #{_forward.1} parent=256 // loop_header
        %s3623 = sphi 0, %s3627
        %p3624 = scmp.ge.s32.totalorder %s3623, 8
        %v3628 = vphi %v3614, %v8035
      $region262: #{_forward.1} parent=256 // loop_header_branch
        %3626 = sbr.rel (%p3624) target = $region266
      $region263: #{_forward.1} parent=256 // loop_body
        %v3629 = vpack.c.bf16 %v3628, %v3628
        %s3630 = smul.u32 %s3623, 16
        %s3631 = smul.addr %s3630, 4
        %s3632 = scalar_lea.vmem %s37, %s3631
        %v3633 = vld [vmem:[%s3632] sm:$0xff]
        %v3634 = vld [vmem:[%s3632 + $0x8] sm:$0xff]
        %v3635 = vld [vmem:[%s3632 + $0x10] sm:$0xff]
        %v3636 = vld [vmem:[%s3632 + $0x18] sm:$0xff]
        %v3637 = vld [vmem:[%s3632 + $0x20] sm:$0xff]
        %v3638 = vld [vmem:[%s3632 + $0x28] sm:$0xff]
        %v3639 = vld [vmem:[%s3632 + $0x30] sm:$0xff]
        %v3640 = vld [vmem:[%s3632 + $0x38] sm:$0xff]
        %s3641 = smul.u32 %s3623, 2
        %s3642 = scalar_lea.vmem %s39, %s3641
        %v3643 = vld [vmem:[%s3642] sm:$0x3]
        %v3645 = vlaneseq
        %v3646 = vshrl.u32 %v3645, 7
        %v3647 = vsub.s32 0, %v3646
        %v3648 = vrot.slane %v3643, %v3647
        %v3649 = vlaneseq
        %v3650 = vshrl.u32 %v3649, 7
        %v3651 = vsub.s32 1, %v3650
        %v3652 = vrot.slane %v3643, %v3651
        %v3663 = vunpack.c.l.b16 %v3633
        %v3664 = vunpack.c.h.b16 %v3633
        %v3665 = vunpack.c.l.b16 %v3634
        %v3666 = vunpack.c.h.b16 %v3634
        %v3667 = vunpack.c.l.b16 %v3635
        %v3668 = vunpack.c.h.b16 %v3635
        %v3669 = vunpack.c.l.b16 %v3636
        %v3670 = vunpack.c.h.b16 %v3636
        %v3671 = vunpack.c.l.b16 %v3637
        %v3672 = vunpack.c.h.b16 %v3637
        %v3673 = vunpack.c.l.b16 %v3638
        %v3674 = vunpack.c.h.b16 %v3638
        %v3675 = vunpack.c.l.b16 %v3639
        %v3676 = vunpack.c.h.b16 %v3639
        %v3677 = vunpack.c.l.b16 %v3640
        %v3678 = vunpack.c.h.b16 %v3640
        %v3679 = vpack.c.b16 %v3665, %v3663
        %v3680 = vpack.c.b16 %v3666, %v3664
        %v3681 = vpack.c.b16 %v3669, %v3667
        %v3682 = vpack.c.b16 %v3670, %v3668
        %v3683 = vpack.c.b16 %v3673, %v3671
        %v3684 = vpack.c.b16 %v3674, %v3672
        %v3685 = vpack.c.b16 %v3677, %v3675
        %v3686 = vpack.c.b16 %v3678, %v3676
        %v3696 = vsel %vm2878, %v3629, 0
        %3698 = vmatprep.subr.bf16.mxu0 %v3680
        %3699 = vmatpush1.bf16.msra.mxu0 %v3679
        %3700 = vmatprep.subr.bf16.mxu0 %v3682
        %3701 = vmatpush1.bf16.msra.mxu0 %v3681
        %3702 = vmatprep.subr.bf16.mxu0 %v3684
        %3703 = vmatpush1.bf16.msra.mxu0 %v3683
        %3704 = vmatprep.subr.bf16.mxu0 %v3686
        %3705 = vmatpush1.bf16.msra.mxu0 %v3685
        %3706 = vmatprep.subr.bf16.mxu0 0
        %3707 = vmatpush1.bf16.msra.mxu0 0
        %3708 = vmatprep.subr.bf16.mxu0 0
        %3709 = vmatpush1.bf16.msra.mxu0 0
        %3710 = vmatprep.subr.bf16.mxu0 0
        %3711 = vmatpush1.bf16.msra.mxu0 0
        %3712 = vmatprep.subr.bf16.mxu0 0
        %3713 = vmatpush1.bf16.msra.mxu0 0
        %3714 = vmatprep.subr.bf16.mxu0 0
        %3715 = vmatpush1.bf16.msra.mxu0 0
        %3716 = vmatprep.subr.bf16.mxu0 0
        %3717 = vmatpush1.bf16.msra.mxu0 0
        %3718 = vmatprep.subr.bf16.mxu0 0
        %3719 = vmatpush1.bf16.msra.mxu0 0
        %3720 = vmatprep.subr.bf16.mxu0 0
        %3721 = vmatpush1.bf16.msra.mxu0 0
        %3722 = vmatprep.subr.bf16.mxu0 0
        %3723 = vmatpush1.bf16.msra.mxu0 0
        %3724 = vmatprep.subr.bf16.mxu0 0
        %3725 = vmatpush1.bf16.msra.mxu0 0
        %3726 = vmatprep.subr.bf16.mxu0 0
        %3727 = vmatpush1.bf16.msra.mxu0 0
        %3728 = vmatprep.subr.bf16.mxu0 0
        %3729 = vmatpush1.bf16.msra.mxu0 0
        %3730 = vmatprep.mubr.bf16.mxu0 0
        %3731 = vmatmul.mubr.bf16.gmra.mrb[0].mxu0 %v3696
        %v3732 = vpop.f32.mrb[0].mxu0
        %v3733 = vadd.f32 %v3648, %v3732
        %v3734 = vpop.f32.mrb[0].mxu0
        %v3735 = vadd.f32 %v3652, %v3734
        %v3736 = vpop.f32.mrb[0].mxu0
        %v3737 = vpop.f32.mrb[0].mxu0
        %3738 = vdwg.mxu0
        %v3740 = vcombine.high %v3733, %v3733
        %v3743 = vcombine.high %v3735, %v3735
        %v3745 = vpack.c.bf16 %v3733, %v3733
        %v3746 = vpack.c.bf16 %v3740, %v3740
        %v3747 = vpack.c.bf16 %v3735, %v3735
        %v3748 = vpack.c.bf16 %v3743, %v3743
        %3750 = vrot.lane.b32.xlu0 %v3745, 64
        %v3751 = vpop.permute.xlu0 %3750
        %vm3752 = vcmask 64512
        %v3754 = vsel %vm3752, %v3745, 0
        %v3757 = vsel %vm3752, %v3751, 0
        %3759 = vmatprep.subr.bf16.mxu0 0
        %3760 = vmatpush1.bf16.xpose.msra.mxu0 %v3757
        %3761 = vmatprep.subr.bf16.mxu0 0
        %3762 = vmatpush1.bf16.xpose.msra.mxu0 0
        %3763 = vmatprep.subr.bf16.mxu0 0
        %3764 = vmatpush1.bf16.xpose.msra.mxu0 0
        %3765 = vmatprep.subr.bf16.mxu0 0
        %3766 = vmatpush1.bf16.xpose.msra.mxu0 0
        %3767 = vmatprep.subr.bf16.mxu0 0
        %3768 = vmatpush1.bf16.xpose.msra.mxu0 0
        %3769 = vmatprep.subr.bf16.mxu0 0
        %3770 = vmatpush1.bf16.xpose.msra.mxu0 0
        %3771 = vmatprep.subr.bf16.mxu0 0
        %3772 = vmatpush1.bf16.xpose.msra.mxu0 0
        %3773 = vmatprep.subr.bf16.mxu0 0
        %3774 = vmatpush1.bf16.xpose.msra.mxu0 0
        %3775 = vmatprep.subr.bf16.mxu0 0
        %3776 = vmatpush1.bf16.xpose.msra.mxu0 0
        %3777 = vmatprep.subr.bf16.mxu0 0
        %3778 = vmatpush1.bf16.xpose.msra.mxu0 0
        %3779 = vmatprep.subr.bf16.mxu0 0
        %3780 = vmatpush1.bf16.xpose.msra.mxu0 0
        %3781 = vmatprep.subr.bf16.mxu0 0
        %3782 = vmatpush1.bf16.xpose.msra.mxu0 0
        %3783 = vmatprep.subr.bf16.mxu0 0
        %3784 = vmatpush1.bf16.xpose.msra.mxu0 0
        %3785 = vmatprep.subr.bf16.mxu0 0
        %3786 = vmatpush1.bf16.xpose.msra.mxu0 0
        %3787 = vmatprep.subr.bf16.mxu0 0
        %3788 = vmatpush1.bf16.xpose.msra.mxu0 0
        %3789 = vmatprep.subr.bf16.mxu0 0
        %3790 = vmatpush1.bf16.xpose.msra.mxu0 0
        %3791 = vmatprep.mubr.bf16.mxu0 0
        %3792 = vmatmul.mubr.bf16.gmra.mrb[0].mxu0 %v3754
        %v3793 = vpop.f32.mrb[0].mxu0
        %v3794 = vadd.f32 0.0, %v3793
        %v3795 = vpop.f32.mrb[0].mxu0
        %v3796 = vpop.f32.mrb[0].mxu0
        %v3797 = vpop.f32.mrb[0].mxu0
        %3798 = vdwg.mxu0
        %3800 = vrot.lane.b32.xlu0 %v3746, 64
        %v3801 = vpop.permute.xlu0 %3800
        %v3803 = vsel %vm3752, %v3746, 0
        %v3806 = vsel %vm3752, %v3801, 0
        %3808 = vmatprep.subr.bf16.mxu0 0
        %3809 = vmatpush1.bf16.xpose.msra.mxu0 %v3806
        %3810 = vmatprep.subr.bf16.mxu0 0
        %3811 = vmatpush1.bf16.xpose.msra.mxu0 0
        %3812 = vmatprep.subr.bf16.mxu0 0
        %3813 = vmatpush1.bf16.xpose.msra.mxu0 0
        %3814 = vmatprep.subr.bf16.mxu0 0
        %3815 = vmatpush1.bf16.xpose.msra.mxu0 0
        %3816 = vmatprep.subr.bf16.mxu0 0
        %3817 = vmatpush1.bf16.xpose.msra.mxu0 0
        %3818 = vmatprep.subr.bf16.mxu0 0
        %3819 = vmatpush1.bf16.xpose.msra.mxu0 0
        %3820 = vmatprep.subr.bf16.mxu0 0
        %3821 = vmatpush1.bf16.xpose.msra.mxu0 0
        %3822 = vmatprep.subr.bf16.mxu0 0
        %3823 = vmatpush1.bf16.xpose.msra.mxu0 0
        %3824 = vmatprep.subr.bf16.mxu0 0
        %3825 = vmatpush1.bf16.xpose.msra.mxu0 0
        %3826 = vmatprep.subr.bf16.mxu0 0
        %3827 = vmatpush1.bf16.xpose.msra.mxu0 0
        %3828 = vmatprep.subr.bf16.mxu0 0
        %3829 = vmatpush1.bf16.xpose.msra.mxu0 0
        %3830 = vmatprep.subr.bf16.mxu0 0
        %3831 = vmatpush1.bf16.xpose.msra.mxu0 0
        %3832 = vmatprep.subr.bf16.mxu0 0
        %3833 = vmatpush1.bf16.xpose.msra.mxu0 0
        %3834 = vmatprep.subr.bf16.mxu0 0
        %3835 = vmatpush1.bf16.xpose.msra.mxu0 0
        %3836 = vmatprep.subr.bf16.mxu0 0
        %3837 = vmatpush1.bf16.xpose.msra.mxu0 0
        %3838 = vmatprep.subr.bf16.mxu0 0
        %3839 = vmatpush1.bf16.xpose.msra.mxu0 0
        %3840 = vmatprep.mubr.bf16.mxu0 0
        %3841 = vmatmul.mubr.bf16.gmra.mrb[0].mxu0 %v3803
        %v3842 = vpop.f32.mrb[0].mxu0
        %v3843 = vadd.f32 0.0, %v3842
        %v3844 = vpop.f32.mrb[0].mxu0
        %v3845 = vpop.f32.mrb[0].mxu0
        %v3846 = vpop.f32.mrb[0].mxu0
        %3847 = vdwg.mxu0
        %v3848 = vmul.f32 %v3794, 0.35355338
        %v3849 = vmul.f32 %v3843, 0.35355338
        %v3850 = vadd.f32 %v3848, %v3621
        %v3851 = vadd.f32 %v3849, %v3621
        %vm3852 = vcmask 27648
        %v3853 = vsel %vm3852, %v3850, -inf
        %3854 = vmax.xlane.f32.xlu0 %v3853
        %v3855 = vpop.xlane.xlu0 %3854
        %v3856 = vsel %vm3852, %v3851, -inf
        %3857 = vmax.xlane.f32.xlu0 %v3856
        %v3858 = vpop.xlane.xlu0 %3857
        %v3859 = vsub.f32 %v3850, %v3855
        %v3860 = vsub.f32 %v3851, %v3858
        %v3861 = vmul.f32 %v3859, 1.442695
        %v3862 = vpow.pop %v3861
        %v3863 = vmul.f32 %v3860, 1.442695
        %v3864 = vpow.pop %v3863
        %v3865 = vsel %vm3852, %v3862, 0.0
        %3866 = vadd.xlane.f32.xlu0 %v3865
        %v3867 = vpop.xlane.xlu0 %3866
        %v3868 = vsel %vm3852, %v3864, 0.0
        %3869 = vadd.xlane.f32.xlu0 %v3868
        %v3870 = vpop.xlane.xlu0 %3869
        %v3871 = vrcp.pop %v3867
        %v3872 = vrcp.pop %v3870
        %v3873 = vmul.f32 %v3862, %v3871
        %v3874 = vmul.f32 %v3864, %v3872
        %v3875 = vpack.c.bf16 %v3873, %v3873
        %v3876 = vpack.c.bf16 %v3874, %v3874
        %vm3877 = vcmask 31744
        %v3879 = vsel %vm3877, %v3875, 0
        %vm3881 = vcmask 1041408
        %v3883 = vsel %vm3881, %v3747, 0
        %3885 = vmatprep.subr.bf16.mxu0 0
        %3886 = vmatpush1.bf16.msra.mxu0 %v3883
        %3887 = vmatprep.subr.bf16.mxu0 0
        %3888 = vmatpush1.bf16.msra.mxu0 0
        %3889 = vmatprep.subr.bf16.mxu0 0
        %3890 = vmatpush1.bf16.msra.mxu0 0
        %3891 = vmatprep.subr.bf16.mxu0 0
        %3892 = vmatpush1.bf16.msra.mxu0 0
        %3893 = vmatprep.subr.bf16.mxu0 0
        %3894 = vmatpush1.bf16.msra.mxu0 0
        %3895 = vmatprep.subr.bf16.mxu0 0
        %3896 = vmatpush1.bf16.msra.mxu0 0
        %3897 = vmatprep.subr.bf16.mxu0 0
        %3898 = vmatpush1.bf16.msra.mxu0 0
        %3899 = vmatprep.subr.bf16.mxu0 0
        %3900 = vmatpush1.bf16.msra.mxu0 0
        %3901 = vmatprep.subr.bf16.mxu0 0
        %3902 = vmatpush1.bf16.msra.mxu0 0
        %3903 = vmatprep.subr.bf16.mxu0 0
        %3904 = vmatpush1.bf16.msra.mxu0 0
        %3905 = vmatprep.subr.bf16.mxu0 0
        %3906 = vmatpush1.bf16.msra.mxu0 0
        %3907 = vmatprep.subr.bf16.mxu0 0
        %3908 = vmatpush1.bf16.msra.mxu0 0
        %3909 = vmatprep.subr.bf16.mxu0 0
        %3910 = vmatpush1.bf16.msra.mxu0 0
        %3911 = vmatprep.subr.bf16.mxu0 0
        %3912 = vmatpush1.bf16.msra.mxu0 0
        %3913 = vmatprep.subr.bf16.mxu0 0
        %3914 = vmatpush1.bf16.msra.mxu0 0
        %3915 = vmatprep.subr.bf16.mxu0 0
        %3916 = vmatpush1.bf16.msra.mxu0 0
        %3917 = vmatprep.mubr.bf16.mxu0 0
        %3918 = vmatmul.mubr.bf16.gmra.mrb[0].mxu0 %v3879
        %v3919 = vpop.f32.mrb[0].mxu0
        %v3920 = vadd.f32 0.0, %v3919
        %v3921 = vpop.f32.mrb[0].mxu0
        %v3922 = vpop.f32.mrb[0].mxu0
        %v3923 = vpop.f32.mrb[0].mxu0
        %3924 = vdwg.mxu0
        %v3926 = vsel %vm3877, %v3876, 0
        %v3929 = vsel %vm3881, %v3748, 0
        %3931 = vmatprep.subr.bf16.mxu0 0
        %3932 = vmatpush1.bf16.msra.mxu0 %v3929
        %3933 = vmatprep.subr.bf16.mxu0 0
        %3934 = vmatpush1.bf16.msra.mxu0 0
        %3935 = vmatprep.subr.bf16.mxu0 0
        %3936 = vmatpush1.bf16.msra.mxu0 0
        %3937 = vmatprep.subr.bf16.mxu0 0
        %3938 = vmatpush1.bf16.msra.mxu0 0
        %3939 = vmatprep.subr.bf16.mxu0 0
        %3940 = vmatpush1.bf16.msra.mxu0 0
        %3941 = vmatprep.subr.bf16.mxu0 0
        %3942 = vmatpush1.bf16.msra.mxu0 0
        %3943 = vmatprep.subr.bf16.mxu0 0
        %3944 = vmatpush1.bf16.msra.mxu0 0
        %3945 = vmatprep.subr.bf16.mxu0 0
        %3946 = vmatpush1.bf16.msra.mxu0 0
        %3947 = vmatprep.subr.bf16.mxu0 0
        %3948 = vmatpush1.bf16.msra.mxu0 0
        %3949 = vmatprep.subr.bf16.mxu0 0
        %3950 = vmatpush1.bf16.msra.mxu0 0
        %3951 = vmatprep.subr.bf16.mxu0 0
        %3952 = vmatpush1.bf16.msra.mxu0 0
        %3953 = vmatprep.subr.bf16.mxu0 0
        %3954 = vmatpush1.bf16.msra.mxu0 0
        %3955 = vmatprep.subr.bf16.mxu0 0
        %3956 = vmatpush1.bf16.msra.mxu0 0
        %3957 = vmatprep.subr.bf16.mxu0 0
        %3958 = vmatpush1.bf16.msra.mxu0 0
        %3959 = vmatprep.subr.bf16.mxu0 0
        %3960 = vmatpush1.bf16.msra.mxu0 0
        %3961 = vmatprep.subr.bf16.mxu0 0
        %3962 = vmatpush1.bf16.msra.mxu0 0
        %3963 = vmatprep.mubr.bf16.mxu0 0
        %3964 = vmatmul.mubr.bf16.gmra.mrb[0].mxu0 %v3926
        %v3965 = vpop.f32.mrb[0].mxu0
        %v3966 = vadd.f32 0.0, %v3965
        %v3967 = vpop.f32.mrb[0].mxu0
        %v3968 = vpop.f32.mrb[0].mxu0
        %v3969 = vpop.f32.mrb[0].mxu0
        %3970 = vdwg.mxu0
        %3971 = vrot.lane.b32.xlu0 %v3745, 120
        %v3972 = vpop.permute.xlu0 %3971
        %3973 = vrot.lane.b32.xlu0 %v3745, 56
        %v3974 = vpop.permute.xlu0 %3973
        %v3976 = vsel %vm3752, %v3972, 0
        %v3979 = vsel %vm3752, %v3974, 0
        %3981 = vmatprep.subr.bf16.mxu0 0
        %3982 = vmatpush1.bf16.xpose.msra.mxu0 %v3979
        %3983 = vmatprep.subr.bf16.mxu0 0
        %3984 = vmatpush1.bf16.xpose.msra.mxu0 0
        %3985 = vmatprep.subr.bf16.mxu0 0
        %3986 = vmatpush1.bf16.xpose.msra.mxu0 0
        %3987 = vmatprep.subr.bf16.mxu0 0
        %3988 = vmatpush1.bf16.xpose.msra.mxu0 0
        %3989 = vmatprep.subr.bf16.mxu0 0
        %3990 = vmatpush1.bf16.xpose.msra.mxu0 0
        %3991 = vmatprep.subr.bf16.mxu0 0
        %3992 = vmatpush1.bf16.xpose.msra.mxu0 0
        %3993 = vmatprep.subr.bf16.mxu0 0
        %3994 = vmatpush1.bf16.xpose.msra.mxu0 0
        %3995 = vmatprep.subr.bf16.mxu0 0
        %3996 = vmatpush1.bf16.xpose.msra.mxu0 0
        %3997 = vmatprep.subr.bf16.mxu0 0
        %3998 = vmatpush1.bf16.xpose.msra.mxu0 0
        %3999 = vmatprep.subr.bf16.mxu0 0
        %4000 = vmatpush1.bf16.xpose.msra.mxu0 0
        %4001 = vmatprep.subr.bf16.mxu0 0
        %4002 = vmatpush1.bf16.xpose.msra.mxu0 0
        %4003 = vmatprep.subr.bf16.mxu0 0
        %4004 = vmatpush1.bf16.xpose.msra.mxu0 0
        %4005 = vmatprep.subr.bf16.mxu0 0
        %4006 = vmatpush1.bf16.xpose.msra.mxu0 0
        %4007 = vmatprep.subr.bf16.mxu0 0
        %4008 = vmatpush1.bf16.xpose.msra.mxu0 0
        %4009 = vmatprep.subr.bf16.mxu0 0
        %4010 = vmatpush1.bf16.xpose.msra.mxu0 0
        %4011 = vmatprep.subr.bf16.mxu0 0
        %4012 = vmatpush1.bf16.xpose.msra.mxu0 0
        %4013 = vmatprep.mubr.bf16.mxu0 0
        %4014 = vmatmul.mubr.bf16.gmra.mrb[0].mxu0 %v3976
        %v4015 = vpop.f32.mrb[0].mxu0
        %v4016 = vadd.f32 0.0, %v4015
        %v4017 = vpop.f32.mrb[0].mxu0
        %v4018 = vpop.f32.mrb[0].mxu0
        %v4019 = vpop.f32.mrb[0].mxu0
        %4020 = vdwg.mxu0
        %4021 = vrot.lane.b32.xlu0 %v3746, 120
        %v4022 = vpop.permute.xlu0 %4021
        %4023 = vrot.lane.b32.xlu0 %v3746, 56
        %v4024 = vpop.permute.xlu0 %4023
        %v4026 = vsel %vm3752, %v4022, 0
        %v4029 = vsel %vm3752, %v4024, 0
        %4031 = vmatprep.subr.bf16.mxu0 0
        %4032 = vmatpush1.bf16.xpose.msra.mxu0 %v4029
        %4033 = vmatprep.subr.bf16.mxu0 0
        %4034 = vmatpush1.bf16.xpose.msra.mxu0 0
        %4035 = vmatprep.subr.bf16.mxu0 0
        %4036 = vmatpush1.bf16.xpose.msra.mxu0 0
        %4037 = vmatprep.subr.bf16.mxu0 0
        %4038 = vmatpush1.bf16.xpose.msra.mxu0 0
        %4039 = vmatprep.subr.bf16.mxu0 0
        %4040 = vmatpush1.bf16.xpose.msra.mxu0 0
        %4041 = vmatprep.subr.bf16.mxu0 0
        %4042 = vmatpush1.bf16.xpose.msra.mxu0 0
        %4043 = vmatprep.subr.bf16.mxu0 0
        %4044 = vmatpush1.bf16.xpose.msra.mxu0 0
        %4045 = vmatprep.subr.bf16.mxu0 0
        %4046 = vmatpush1.bf16.xpose.msra.mxu0 0
        %4047 = vmatprep.subr.bf16.mxu0 0
        %4048 = vmatpush1.bf16.xpose.msra.mxu0 0
        %4049 = vmatprep.subr.bf16.mxu0 0
        %4050 = vmatpush1.bf16.xpose.msra.mxu0 0
        %4051 = vmatprep.subr.bf16.mxu0 0
        %4052 = vmatpush1.bf16.xpose.msra.mxu0 0
        %4053 = vmatprep.subr.bf16.mxu0 0
        %4054 = vmatpush1.bf16.xpose.msra.mxu0 0
        %4055 = vmatprep.subr.bf16.mxu0 0
        %4056 = vmatpush1.bf16.xpose.msra.mxu0 0
        %4057 = vmatprep.subr.bf16.mxu0 0
        %4058 = vmatpush1.bf16.xpose.msra.mxu0 0
        %4059 = vmatprep.subr.bf16.mxu0 0
        %4060 = vmatpush1.bf16.xpose.msra.mxu0 0
        %4061 = vmatprep.subr.bf16.mxu0 0
        %4062 = vmatpush1.bf16.xpose.msra.mxu0 0
        %4063 = vmatprep.mubr.bf16.mxu0 0
        %4064 = vmatmul.mubr.bf16.gmra.mrb[0].mxu0 %v4026
        %v4065 = vpop.f32.mrb[0].mxu0
        %v4066 = vadd.f32 0.0, %v4065
        %v4067 = vpop.f32.mrb[0].mxu0
        %v4068 = vpop.f32.mrb[0].mxu0
        %v4069 = vpop.f32.mrb[0].mxu0
        %4070 = vdwg.mxu0
        %v4071 = vmul.f32 %v4016, 0.35355338
        %v4072 = vmul.f32 %v4066, 0.35355338
        %v4073 = vadd.f32 %v4071, %v3621
        %v4074 = vadd.f32 %v4072, %v3621
        %v4075 = vsel %vm3852, %v4073, -inf
        %4076 = vmax.xlane.f32.xlu0 %v4075
        %v4077 = vpop.xlane.xlu0 %4076
        %v4078 = vsel %vm3852, %v4074, -inf
        %4079 = vmax.xlane.f32.xlu0 %v4078
        %v4080 = vpop.xlane.xlu0 %4079
        %v4081 = vsub.f32 %v4073, %v4077
        %v4082 = vsub.f32 %v4074, %v4080
        %v4083 = vmul.f32 %v4081, 1.442695
        %v4084 = vpow.pop %v4083
        %v4085 = vmul.f32 %v4082, 1.442695
        %v4086 = vpow.pop %v4085
        %v4087 = vsel %vm3852, %v4084, 0.0
        %4088 = vadd.xlane.f32.xlu0 %v4087
        %v4089 = vpop.xlane.xlu0 %4088
        %v4090 = vsel %vm3852, %v4086, 0.0
        %4091 = vadd.xlane.f32.xlu0 %v4090
        %v4092 = vpop.xlane.xlu0 %4091
        %v4093 = vrcp.pop %v4089
        %v4094 = vrcp.pop %v4092
        %v4095 = vmul.f32 %v4084, %v4093
        %v4096 = vmul.f32 %v4086, %v4094
        %v4097 = vpack.c.bf16 %v4095, %v4095
        %v4098 = vpack.c.bf16 %v4096, %v4096
        %4100 = vrot.lane.b32.xlu0 %v3747, 120
        %v4101 = vpop.permute.xlu0 %4100
        %v4103 = vsel %vm3877, %v4097, 0
        %v4106 = vsel %vm3881, %v4101, 0
        %4108 = vmatprep.subr.bf16.mxu0 0
        %4109 = vmatpush1.bf16.msra.mxu0 %v4106
        %4110 = vmatprep.subr.bf16.mxu0 0
        %4111 = vmatpush1.bf16.msra.mxu0 0
        %4112 = vmatprep.subr.bf16.mxu0 0
        %4113 = vmatpush1.bf16.msra.mxu0 0
        %4114 = vmatprep.subr.bf16.mxu0 0
        %4115 = vmatpush1.bf16.msra.mxu0 0
        %4116 = vmatprep.subr.bf16.mxu0 0
        %4117 = vmatpush1.bf16.msra.mxu0 0
        %4118 = vmatprep.subr.bf16.mxu0 0
        %4119 = vmatpush1.bf16.msra.mxu0 0
        %4120 = vmatprep.subr.bf16.mxu0 0
        %4121 = vmatpush1.bf16.msra.mxu0 0
        %4122 = vmatprep.subr.bf16.mxu0 0
        %4123 = vmatpush1.bf16.msra.mxu0 0
        %4124 = vmatprep.subr.bf16.mxu0 0
        %4125 = vmatpush1.bf16.msra.mxu0 0
        %4126 = vmatprep.subr.bf16.mxu0 0
        %4127 = vmatpush1.bf16.msra.mxu0 0
        %4128 = vmatprep.subr.bf16.mxu0 0
        %4129 = vmatpush1.bf16.msra.mxu0 0
        %4130 = vmatprep.subr.bf16.mxu0 0
        %4131 = vmatpush1.bf16.msra.mxu0 0
        %4132 = vmatprep.subr.bf16.mxu0 0
        %4133 = vmatpush1.bf16.msra.mxu0 0
        %4134 = vmatprep.subr.bf16.mxu0 0
        %4135 = vmatpush1.bf16.msra.mxu0 0
        %4136 = vmatprep.subr.bf16.mxu0 0
        %4137 = vmatpush1.bf16.msra.mxu0 0
        %4138 = vmatprep.subr.bf16.mxu0 0
        %4139 = vmatpush1.bf16.msra.mxu0 0
        %4140 = vmatprep.mubr.bf16.mxu0 0
        %4141 = vmatmul.mubr.bf16.gmra.mrb[0].mxu0 %v4103
        %v4142 = vpop.f32.mrb[0].mxu0
        %v4143 = vadd.f32 0.0, %v4142
        %v4144 = vpop.f32.mrb[0].mxu0
        %v4145 = vpop.f32.mrb[0].mxu0
        %v4146 = vpop.f32.mrb[0].mxu0
        %4147 = vdwg.mxu0
        %4149 = vrot.lane.b32.xlu0 %v3748, 120
        %v4150 = vpop.permute.xlu0 %4149
        %v4152 = vsel %vm3877, %v4098, 0
        %v4155 = vsel %vm3881, %v4150, 0
        %4157 = vmatprep.subr.bf16.mxu0 0
        %4158 = vmatpush1.bf16.msra.mxu0 %v4155
        %4159 = vmatprep.subr.bf16.mxu0 0
        %4160 = vmatpush1.bf16.msra.mxu0 0
        %4161 = vmatprep.subr.bf16.mxu0 0
        %4162 = vmatpush1.bf16.msra.mxu0 0
        %4163 = vmatprep.subr.bf16.mxu0 0
        %4164 = vmatpush1.bf16.msra.mxu0 0
        %4165 = vmatprep.subr.bf16.mxu0 0
        %4166 = vmatpush1.bf16.msra.mxu0 0
        %4167 = vmatprep.subr.bf16.mxu0 0
        %4168 = vmatpush1.bf16.msra.mxu0 0
        %4169 = vmatprep.subr.bf16.mxu0 0
        %4170 = vmatpush1.bf16.msra.mxu0 0
        %4171 = vmatprep.subr.bf16.mxu0 0
        %4172 = vmatpush1.bf16.msra.mxu0 0
        %4173 = vmatprep.subr.bf16.mxu0 0
        %4174 = vmatpush1.bf16.msra.mxu0 0
        %4175 = vmatprep.subr.bf16.mxu0 0
        %4176 = vmatpush1.bf16.msra.mxu0 0
        %4177 = vmatprep.subr.bf16.mxu0 0
        %4178 = vmatpush1.bf16.msra.mxu0 0
        %4179 = vmatprep.subr.bf16.mxu0 0
        %4180 = vmatpush1.bf16.msra.mxu0 0
        %4181 = vmatprep.subr.bf16.mxu0 0
        %4182 = vmatpush1.bf16.msra.mxu0 0
        %4183 = vmatprep.subr.bf16.mxu0 0
        %4184 = vmatpush1.bf16.msra.mxu0 0
        %4185 = vmatprep.subr.bf16.mxu0 0
        %4186 = vmatpush1.bf16.msra.mxu0 0
        %4187 = vmatprep.subr.bf16.mxu0 0
        %4188 = vmatpush1.bf16.msra.mxu0 0
        %4189 = vmatprep.mubr.bf16.mxu0 0
        %4190 = vmatmul.mubr.bf16.gmra.mrb[0].mxu0 %v4152
        %v4191 = vpop.f32.mrb[0].mxu0
        %v4192 = vadd.f32 0.0, %v4191
        %v4193 = vpop.f32.mrb[0].mxu0
        %v4194 = vpop.f32.mrb[0].mxu0
        %v4195 = vpop.f32.mrb[0].mxu0
        %4196 = vdwg.mxu0
        %4197 = vrot.lane.b32.xlu0 %v3745, 112
        %v4198 = vpop.permute.xlu0 %4197
        %4199 = vrot.lane.b32.xlu0 %v3745, 48
        %v4200 = vpop.permute.xlu0 %4199
        %v4202 = vsel %vm3752, %v4198, 0
        %v4205 = vsel %vm3752, %v4200, 0
        %4207 = vmatprep.subr.bf16.mxu0 0
        %4208 = vmatpush1.bf16.xpose.msra.mxu0 %v4205
        %4209 = vmatprep.subr.bf16.mxu0 0
        %4210 = vmatpush1.bf16.xpose.msra.mxu0 0
        %4211 = vmatprep.subr.bf16.mxu0 0
        %4212 = vmatpush1.bf16.xpose.msra.mxu0 0
        %4213 = vmatprep.subr.bf16.mxu0 0
        %4214 = vmatpush1.bf16.xpose.msra.mxu0 0
        %4215 = vmatprep.subr.bf16.mxu0 0
        %4216 = vmatpush1.bf16.xpose.msra.mxu0 0
        %4217 = vmatprep.subr.bf16.mxu0 0
        %4218 = vmatpush1.bf16.xpose.msra.mxu0 0
        %4219 = vmatprep.subr.bf16.mxu0 0
        %4220 = vmatpush1.bf16.xpose.msra.mxu0 0
        %4221 = vmatprep.subr.bf16.mxu0 0
        %4222 = vmatpush1.bf16.xpose.msra.mxu0 0
        %4223 = vmatprep.subr.bf16.mxu0 0
        %4224 = vmatpush1.bf16.xpose.msra.mxu0 0
        %4225 = vmatprep.subr.bf16.mxu0 0
        %4226 = vmatpush1.bf16.xpose.msra.mxu0 0
        %4227 = vmatprep.subr.bf16.mxu0 0
        %4228 = vmatpush1.bf16.xpose.msra.mxu0 0
        %4229 = vmatprep.subr.bf16.mxu0 0
        %4230 = vmatpush1.bf16.xpose.msra.mxu0 0
        %4231 = vmatprep.subr.bf16.mxu0 0
        %4232 = vmatpush1.bf16.xpose.msra.mxu0 0
        %4233 = vmatprep.subr.bf16.mxu0 0
        %4234 = vmatpush1.bf16.xpose.msra.mxu0 0
        %4235 = vmatprep.subr.bf16.mxu0 0
        %4236 = vmatpush1.bf16.xpose.msra.mxu0 0
        %4237 = vmatprep.subr.bf16.mxu0 0
        %4238 = vmatpush1.bf16.xpose.msra.mxu0 0
        %4239 = vmatprep.mubr.bf16.mxu0 0
        %4240 = vmatmul.mubr.bf16.gmra.mrb[0].mxu0 %v4202
        %v4241 = vpop.f32.mrb[0].mxu0
        %v4242 = vadd.f32 0.0, %v4241
        %v4243 = vpop.f32.mrb[0].mxu0
        %v4244 = vpop.f32.mrb[0].mxu0
        %v4245 = vpop.f32.mrb[0].mxu0
        %4246 = vdwg.mxu0
        %4247 = vrot.lane.b32.xlu0 %v3746, 112
        %v4248 = vpop.permute.xlu0 %4247
        %4249 = vrot.lane.b32.xlu0 %v3746, 48
        %v4250 = vpop.permute.xlu0 %4249
        %v4252 = vsel %vm3752, %v4248, 0
        %v4255 = vsel %vm3752, %v4250, 0
        %4257 = vmatprep.subr.bf16.mxu0 0
        %4258 = vmatpush1.bf16.xpose.msra.mxu0 %v4255
        %4259 = vmatprep.subr.bf16.mxu0 0
        %4260 = vmatpush1.bf16.xpose.msra.mxu0 0
        %4261 = vmatprep.subr.bf16.mxu0 0
        %4262 = vmatpush1.bf16.xpose.msra.mxu0 0
        %4263 = vmatprep.subr.bf16.mxu0 0
        %4264 = vmatpush1.bf16.xpose.msra.mxu0 0
        %4265 = vmatprep.subr.bf16.mxu0 0
        %4266 = vmatpush1.bf16.xpose.msra.mxu0 0
        %4267 = vmatprep.subr.bf16.mxu0 0
        %4268 = vmatpush1.bf16.xpose.msra.mxu0 0
        %4269 = vmatprep.subr.bf16.mxu0 0
        %4270 = vmatpush1.bf16.xpose.msra.mxu0 0
        %4271 = vmatprep.subr.bf16.mxu0 0
        %4272 = vmatpush1.bf16.xpose.msra.mxu0 0
        %4273 = vmatprep.subr.bf16.mxu0 0
        %4274 = vmatpush1.bf16.xpose.msra.mxu0 0
        %4275 = vmatprep.subr.bf16.mxu0 0
        %4276 = vmatpush1.bf16.xpose.msra.mxu0 0
        %4277 = vmatprep.subr.bf16.mxu0 0
        %4278 = vmatpush1.bf16.xpose.msra.mxu0 0
        %4279 = vmatprep.subr.bf16.mxu0 0
        %4280 = vmatpush1.bf16.xpose.msra.mxu0 0
        %4281 = vmatprep.subr.bf16.mxu0 0
        %4282 = vmatpush1.bf16.xpose.msra.mxu0 0
        %4283 = vmatprep.subr.bf16.mxu0 0
        %4284 = vmatpush1.bf16.xpose.msra.mxu0 0
        %4285 = vmatprep.subr.bf16.mxu0 0
        %4286 = vmatpush1.bf16.xpose.msra.mxu0 0
        %4287 = vmatprep.subr.bf16.mxu0 0
        %4288 = vmatpush1.bf16.xpose.msra.mxu0 0
        %4289 = vmatprep.mubr.bf16.mxu0 0
        %4290 = vmatmul.mubr.bf16.gmra.mrb[0].mxu0 %v4252
        %v4291 = vpop.f32.mrb[0].mxu0
        %v4292 = vadd.f32 0.0, %v4291
        %v4293 = vpop.f32.mrb[0].mxu0
        %v4294 = vpop.f32.mrb[0].mxu0
        %v4295 = vpop.f32.mrb[0].mxu0
        %4296 = vdwg.mxu0
        %v4297 = vmul.f32 %v4242, 0.35355338
        %v4298 = vmul.f32 %v4292, 0.35355338
        %v4299 = vadd.f32 %v4297, %v3621
        %v4300 = vadd.f32 %v4298, %v3621
        %v4301 = vsel %vm3852, %v4299, -inf
        %4302 = vmax.xlane.f32.xlu0 %v4301
        %v4303 = vpop.xlane.xlu0 %4302
        %v4304 = vsel %vm3852, %v4300, -inf
        %4305 = vmax.xlane.f32.xlu0 %v4304
        %v4306 = vpop.xlane.xlu0 %4305
        %v4307 = vsub.f32 %v4299, %v4303
        %v4308 = vsub.f32 %v4300, %v4306
        %v4309 = vmul.f32 %v4307, 1.442695
        %v4310 = vpow.pop %v4309
        %v4311 = vmul.f32 %v4308, 1.442695
        %v4312 = vpow.pop %v4311
        %v4313 = vsel %vm3852, %v4310, 0.0
        %4314 = vadd.xlane.f32.xlu0 %v4313
        %v4315 = vpop.xlane.xlu0 %4314
        %v4316 = vsel %vm3852, %v4312, 0.0
        %4317 = vadd.xlane.f32.xlu0 %v4316
        %v4318 = vpop.xlane.xlu0 %4317
        %v4319 = vrcp.pop %v4315
        %v4320 = vrcp.pop %v4318
        %v4321 = vmul.f32 %v4310, %v4319
        %v4322 = vmul.f32 %v4312, %v4320
        %v4323 = vpack.c.bf16 %v4321, %v4321
        %v4324 = vpack.c.bf16 %v4322, %v4322
        %4325 = vrot.lane.b32.xlu0 %v3747, 112
        %v4326 = vpop.permute.xlu0 %4325
        %v4328 = vsel %vm3877, %v4323, 0
        %v4331 = vsel %vm3881, %v4326, 0
        %4333 = vmatprep.subr.bf16.mxu0 0
        %4334 = vmatpush1.bf16.msra.mxu0 %v4331
        %4335 = vmatprep.subr.bf16.mxu0 0
        %4336 = vmatpush1.bf16.msra.mxu0 0
        %4337 = vmatprep.subr.bf16.mxu0 0
        %4338 = vmatpush1.bf16.msra.mxu0 0
        %4339 = vmatprep.subr.bf16.mxu0 0
        %4340 = vmatpush1.bf16.msra.mxu0 0
        %4341 = vmatprep.subr.bf16.mxu0 0
        %4342 = vmatpush1.bf16.msra.mxu0 0
        %4343 = vmatprep.subr.bf16.mxu0 0
        %4344 = vmatpush1.bf16.msra.mxu0 0
        %4345 = vmatprep.subr.bf16.mxu0 0
        %4346 = vmatpush1.bf16.msra.mxu0 0
        %4347 = vmatprep.subr.bf16.mxu0 0
        %4348 = vmatpush1.bf16.msra.mxu0 0
        %4349 = vmatprep.subr.bf16.mxu0 0
        %4350 = vmatpush1.bf16.msra.mxu0 0
        %4351 = vmatprep.subr.bf16.mxu0 0
        %4352 = vmatpush1.bf16.msra.mxu0 0
        %4353 = vmatprep.subr.bf16.mxu0 0
        %4354 = vmatpush1.bf16.msra.mxu0 0
        %4355 = vmatprep.subr.bf16.mxu0 0
        %4356 = vmatpush1.bf16.msra.mxu0 0
        %4357 = vmatprep.subr.bf16.mxu0 0
        %4358 = vmatpush1.bf16.msra.mxu0 0
        %4359 = vmatprep.subr.bf16.mxu0 0
        %4360 = vmatpush1.bf16.msra.mxu0 0
        %4361 = vmatprep.subr.bf16.mxu0 0
        %4362 = vmatpush1.bf16.msra.mxu0 0
        %4363 = vmatprep.subr.bf16.mxu0 0
        %4364 = vmatpush1.bf16.msra.mxu0 0
        %4365 = vmatprep.mubr.bf16.mxu0 0
        %4366 = vmatmul.mubr.bf16.gmra.mrb[0].mxu0 %v4328
        %v4367 = vpop.f32.mrb[0].mxu0
        %v4368 = vadd.f32 0.0, %v4367
        %v4369 = vpop.f32.mrb[0].mxu0
        %v4370 = vpop.f32.mrb[0].mxu0
        %v4371 = vpop.f32.mrb[0].mxu0
        %4372 = vdwg.mxu0
        %4373 = vrot.lane.b32.xlu0 %v3748, 112
        %v4374 = vpop.permute.xlu0 %4373
        %v4376 = vsel %vm3877, %v4324, 0
        %v4379 = vsel %vm3881, %v4374, 0
        %4381 = vmatprep.subr.bf16.mxu0 0
        %4382 = vmatpush1.bf16.msra.mxu0 %v4379
        %4383 = vmatprep.subr.bf16.mxu0 0
        %4384 = vmatpush1.bf16.msra.mxu0 0
        %4385 = vmatprep.subr.bf16.mxu0 0
        %4386 = vmatpush1.bf16.msra.mxu0 0
        %4387 = vmatprep.subr.bf16.mxu0 0
        %4388 = vmatpush1.bf16.msra.mxu0 0
        %4389 = vmatprep.subr.bf16.mxu0 0
        %4390 = vmatpush1.bf16.msra.mxu0 0
        %4391 = vmatprep.subr.bf16.mxu0 0
        %4392 = vmatpush1.bf16.msra.mxu0 0
        %4393 = vmatprep.subr.bf16.mxu0 0
        %4394 = vmatpush1.bf16.msra.mxu0 0
        %4395 = vmatprep.subr.bf16.mxu0 0
        %4396 = vmatpush1.bf16.msra.mxu0 0
        %4397 = vmatprep.subr.bf16.mxu0 0
        %4398 = vmatpush1.bf16.msra.mxu0 0
        %4399 = vmatprep.subr.bf16.mxu0 0
        %4400 = vmatpush1.bf16.msra.mxu0 0
        %4401 = vmatprep.subr.bf16.mxu0 0
        %4402 = vmatpush1.bf16.msra.mxu0 0
        %4403 = vmatprep.subr.bf16.mxu0 0
        %4404 = vmatpush1.bf16.msra.mxu0 0
        %4405 = vmatprep.subr.bf16.mxu0 0
        %4406 = vmatpush1.bf16.msra.mxu0 0
        %4407 = vmatprep.subr.bf16.mxu0 0
        %4408 = vmatpush1.bf16.msra.mxu0 0
        %4409 = vmatprep.subr.bf16.mxu0 0
        %4410 = vmatpush1.bf16.msra.mxu0 0
        %4411 = vmatprep.subr.bf16.mxu0 0
        %4412 = vmatpush1.bf16.msra.mxu0 0
        %4413 = vmatprep.mubr.bf16.mxu0 0
        %4414 = vmatmul.mubr.bf16.gmra.mrb[0].mxu0 %v4376
        %v4415 = vpop.f32.mrb[0].mxu0
        %v4416 = vadd.f32 0.0, %v4415
        %v4417 = vpop.f32.mrb[0].mxu0
        %v4418 = vpop.f32.mrb[0].mxu0
        %v4419 = vpop.f32.mrb[0].mxu0
        %4420 = vdwg.mxu0
        %4421 = vrot.lane.b32.xlu0 %v3745, 104
        %v4422 = vpop.permute.xlu0 %4421
        %4423 = vrot.lane.b32.xlu0 %v3745, 40
        %v4424 = vpop.permute.xlu0 %4423
        %v4426 = vsel %vm3752, %v4422, 0
        %v4429 = vsel %vm3752, %v4424, 0
        %4431 = vmatprep.subr.bf16.mxu0 0
        %4432 = vmatpush1.bf16.xpose.msra.mxu0 %v4429
        %4433 = vmatprep.subr.bf16.mxu0 0
        %4434 = vmatpush1.bf16.xpose.msra.mxu0 0
        %4435 = vmatprep.subr.bf16.mxu0 0
        %4436 = vmatpush1.bf16.xpose.msra.mxu0 0
        %4437 = vmatprep.subr.bf16.mxu0 0
        %4438 = vmatpush1.bf16.xpose.msra.mxu0 0
        %4439 = vmatprep.subr.bf16.mxu0 0
        %4440 = vmatpush1.bf16.xpose.msra.mxu0 0
        %4441 = vmatprep.subr.bf16.mxu0 0
        %4442 = vmatpush1.bf16.xpose.msra.mxu0 0
        %4443 = vmatprep.subr.bf16.mxu0 0
        %4444 = vmatpush1.bf16.xpose.msra.mxu0 0
        %4445 = vmatprep.subr.bf16.mxu0 0
        %4446 = vmatpush1.bf16.xpose.msra.mxu0 0
        %4447 = vmatprep.subr.bf16.mxu0 0
        %4448 = vmatpush1.bf16.xpose.msra.mxu0 0
        %4449 = vmatprep.subr.bf16.mxu0 0
        %4450 = vmatpush1.bf16.xpose.msra.mxu0 0
        %4451 = vmatprep.subr.bf16.mxu0 0
        %4452 = vmatpush1.bf16.xpose.msra.mxu0 0
        %4453 = vmatprep.subr.bf16.mxu0 0
        %4454 = vmatpush1.bf16.xpose.msra.mxu0 0
        %4455 = vmatprep.subr.bf16.mxu0 0
        %4456 = vmatpush1.bf16.xpose.msra.mxu0 0
        %4457 = vmatprep.subr.bf16.mxu0 0
        %4458 = vmatpush1.bf16.xpose.msra.mxu0 0
        %4459 = vmatprep.subr.bf16.mxu0 0
        %4460 = vmatpush1.bf16.xpose.msra.mxu0 0
        %4461 = vmatprep.subr.bf16.mxu0 0
        %4462 = vmatpush1.bf16.xpose.msra.mxu0 0
        %4463 = vmatprep.mubr.bf16.mxu0 0
        %4464 = vmatmul.mubr.bf16.gmra.mrb[0].mxu0 %v4426
        %v4465 = vpop.f32.mrb[0].mxu0
        %v4466 = vadd.f32 0.0, %v4465
        %v4467 = vpop.f32.mrb[0].mxu0
        %v4468 = vpop.f32.mrb[0].mxu0
        %v4469 = vpop.f32.mrb[0].mxu0
        %4470 = vdwg.mxu0
        %4471 = vrot.lane.b32.xlu0 %v3746, 104
        %v4472 = vpop.permute.xlu0 %4471
        %4473 = vrot.lane.b32.xlu0 %v3746, 40
        %v4474 = vpop.permute.xlu0 %4473
        %v4476 = vsel %vm3752, %v4472, 0
        %v4479 = vsel %vm3752, %v4474, 0
        %4481 = vmatprep.subr.bf16.mxu0 0
        %4482 = vmatpush1.bf16.xpose.msra.mxu0 %v4479
        %4483 = vmatprep.subr.bf16.mxu0 0
        %4484 = vmatpush1.bf16.xpose.msra.mxu0 0
        %4485 = vmatprep.subr.bf16.mxu0 0
        %4486 = vmatpush1.bf16.xpose.msra.mxu0 0
        %4487 = vmatprep.subr.bf16.mxu0 0
        %4488 = vmatpush1.bf16.xpose.msra.mxu0 0
        %4489 = vmatprep.subr.bf16.mxu0 0
        %4490 = vmatpush1.bf16.xpose.msra.mxu0 0
        %4491 = vmatprep.subr.bf16.mxu0 0
        %4492 = vmatpush1.bf16.xpose.msra.mxu0 0
        %4493 = vmatprep.subr.bf16.mxu0 0
        %4494 = vmatpush1.bf16.xpose.msra.mxu0 0
        %4495 = vmatprep.subr.bf16.mxu0 0
        %4496 = vmatpush1.bf16.xpose.msra.mxu0 0
        %4497 = vmatprep.subr.bf16.mxu0 0
        %4498 = vmatpush1.bf16.xpose.msra.mxu0 0
        %4499 = vmatprep.subr.bf16.mxu0 0
        %4500 = vmatpush1.bf16.xpose.msra.mxu0 0
        %4501 = vmatprep.subr.bf16.mxu0 0
        %4502 = vmatpush1.bf16.xpose.msra.mxu0 0
        %4503 = vmatprep.subr.bf16.mxu0 0
        %4504 = vmatpush1.bf16.xpose.msra.mxu0 0
        %4505 = vmatprep.subr.bf16.mxu0 0
        %4506 = vmatpush1.bf16.xpose.msra.mxu0 0
        %4507 = vmatprep.subr.bf16.mxu0 0
        %4508 = vmatpush1.bf16.xpose.msra.mxu0 0
        %4509 = vmatprep.subr.bf16.mxu0 0
        %4510 = vmatpush1.bf16.xpose.msra.mxu0 0
        %4511 = vmatprep.subr.bf16.mxu0 0
        %4512 = vmatpush1.bf16.xpose.msra.mxu0 0
        %4513 = vmatprep.mubr.bf16.mxu0 0
        %4514 = vmatmul.mubr.bf16.gmra.mrb[0].mxu0 %v4476
        %v4515 = vpop.f32.mrb[0].mxu0
        %v4516 = vadd.f32 0.0, %v4515
        %v4517 = vpop.f32.mrb[0].mxu0
        %v4518 = vpop.f32.mrb[0].mxu0
        %v4519 = vpop.f32.mrb[0].mxu0
        %4520 = vdwg.mxu0
        %v4521 = vmul.f32 %v4466, 0.35355338
        %v4522 = vmul.f32 %v4516, 0.35355338
        %v4523 = vadd.f32 %v4521, %v3621
        %v4524 = vadd.f32 %v4522, %v3621
        %v4525 = vsel %vm3852, %v4523, -inf
        %4526 = vmax.xlane.f32.xlu0 %v4525
        %v4527 = vpop.xlane.xlu0 %4526
        %v4528 = vsel %vm3852, %v4524, -inf
        %4529 = vmax.xlane.f32.xlu0 %v4528
        %v4530 = vpop.xlane.xlu0 %4529
        %v4531 = vsub.f32 %v4523, %v4527
        %v4532 = vsub.f32 %v4524, %v4530
        %v4533 = vmul.f32 %v4531, 1.442695
        %v4534 = vpow.pop %v4533
        %v4535 = vmul.f32 %v4532, 1.442695
        %v4536 = vpow.pop %v4535
        %v4537 = vsel %vm3852, %v4534, 0.0
        %4538 = vadd.xlane.f32.xlu0 %v4537
        %v4539 = vpop.xlane.xlu0 %4538
        %v4540 = vsel %vm3852, %v4536, 0.0
        %4541 = vadd.xlane.f32.xlu0 %v4540
        %v4542 = vpop.xlane.xlu0 %4541
        %v4543 = vrcp.pop %v4539
        %v4544 = vrcp.pop %v4542
        %v4545 = vmul.f32 %v4534, %v4543
        %v4546 = vmul.f32 %v4536, %v4544
        %v4547 = vpack.c.bf16 %v4545, %v4545
        %v4548 = vpack.c.bf16 %v4546, %v4546
        %4549 = vrot.lane.b32.xlu0 %v3747, 104
        %v4550 = vpop.permute.xlu0 %4549
        %v4552 = vsel %vm3877, %v4547, 0
        %v4555 = vsel %vm3881, %v4550, 0
        %4557 = vmatprep.subr.bf16.mxu0 0
        %4558 = vmatpush1.bf16.msra.mxu0 %v4555
        %4559 = vmatprep.subr.bf16.mxu0 0
        %4560 = vmatpush1.bf16.msra.mxu0 0
        %4561 = vmatprep.subr.bf16.mxu0 0
        %4562 = vmatpush1.bf16.msra.mxu0 0
        %4563 = vmatprep.subr.bf16.mxu0 0
        %4564 = vmatpush1.bf16.msra.mxu0 0
        %4565 = vmatprep.subr.bf16.mxu0 0
        %4566 = vmatpush1.bf16.msra.mxu0 0
        %4567 = vmatprep.subr.bf16.mxu0 0
        %4568 = vmatpush1.bf16.msra.mxu0 0
        %4569 = vmatprep.subr.bf16.mxu0 0
        %4570 = vmatpush1.bf16.msra.mxu0 0
        %4571 = vmatprep.subr.bf16.mxu0 0
        %4572 = vmatpush1.bf16.msra.mxu0 0
        %4573 = vmatprep.subr.bf16.mxu0 0
        %4574 = vmatpush1.bf16.msra.mxu0 0
        %4575 = vmatprep.subr.bf16.mxu0 0
        %4576 = vmatpush1.bf16.msra.mxu0 0
        %4577 = vmatprep.subr.bf16.mxu0 0
        %4578 = vmatpush1.bf16.msra.mxu0 0
        %4579 = vmatprep.subr.bf16.mxu0 0
        %4580 = vmatpush1.bf16.msra.mxu0 0
        %4581 = vmatprep.subr.bf16.mxu0 0
        %4582 = vmatpush1.bf16.msra.mxu0 0
        %4583 = vmatprep.subr.bf16.mxu0 0
        %4584 = vmatpush1.bf16.msra.mxu0 0
        %4585 = vmatprep.subr.bf16.mxu0 0
        %4586 = vmatpush1.bf16.msra.mxu0 0
        %4587 = vmatprep.subr.bf16.mxu0 0
        %4588 = vmatpush1.bf16.msra.mxu0 0
        %4589 = vmatprep.mubr.bf16.mxu0 0
        %4590 = vmatmul.mubr.bf16.gmra.mrb[0].mxu0 %v4552
        %v4591 = vpop.f32.mrb[0].mxu0
        %v4592 = vadd.f32 0.0, %v4591
        %v4593 = vpop.f32.mrb[0].mxu0
        %v4594 = vpop.f32.mrb[0].mxu0
        %v4595 = vpop.f32.mrb[0].mxu0
        %4596 = vdwg.mxu0
        %4597 = vrot.lane.b32.xlu0 %v3748, 104
        %v4598 = vpop.permute.xlu0 %4597
        %v4600 = vsel %vm3877, %v4548, 0
        %v4603 = vsel %vm3881, %v4598, 0
        %4605 = vmatprep.subr.bf16.mxu0 0
        %4606 = vmatpush1.bf16.msra.mxu0 %v4603
        %4607 = vmatprep.subr.bf16.mxu0 0
        %4608 = vmatpush1.bf16.msra.mxu0 0
        %4609 = vmatprep.subr.bf16.mxu0 0
        %4610 = vmatpush1.bf16.msra.mxu0 0
        %4611 = vmatprep.subr.bf16.mxu0 0
        %4612 = vmatpush1.bf16.msra.mxu0 0
        %4613 = vmatprep.subr.bf16.mxu0 0
        %4614 = vmatpush1.bf16.msra.mxu0 0
        %4615 = vmatprep.subr.bf16.mxu0 0
        %4616 = vmatpush1.bf16.msra.mxu0 0
        %4617 = vmatprep.subr.bf16.mxu0 0
        %4618 = vmatpush1.bf16.msra.mxu0 0
        %4619 = vmatprep.subr.bf16.mxu0 0
        %4620 = vmatpush1.bf16.msra.mxu0 0
        %4621 = vmatprep.subr.bf16.mxu0 0
        %4622 = vmatpush1.bf16.msra.mxu0 0
        %4623 = vmatprep.subr.bf16.mxu0 0
        %4624 = vmatpush1.bf16.msra.mxu0 0
        %4625 = vmatprep.subr.bf16.mxu0 0
        %4626 = vmatpush1.bf16.msra.mxu0 0
        %4627 = vmatprep.subr.bf16.mxu0 0
        %4628 = vmatpush1.bf16.msra.mxu0 0
        %4629 = vmatprep.subr.bf16.mxu0 0
        %4630 = vmatpush1.bf16.msra.mxu0 0
        %4631 = vmatprep.subr.bf16.mxu0 0
        %4632 = vmatpush1.bf16.msra.mxu0 0
        %4633 = vmatprep.subr.bf16.mxu0 0
        %4634 = vmatpush1.bf16.msra.mxu0 0
        %4635 = vmatprep.subr.bf16.mxu0 0
        %4636 = vmatpush1.bf16.msra.mxu0 0
        %4637 = vmatprep.mubr.bf16.mxu0 0
        %4638 = vmatmul.mubr.bf16.gmra.mrb[0].mxu0 %v4600
        %v4639 = vpop.f32.mrb[0].mxu0
        %v4640 = vadd.f32 0.0, %v4639
        %v4641 = vpop.f32.mrb[0].mxu0
        %v4642 = vpop.f32.mrb[0].mxu0
        %v4643 = vpop.f32.mrb[0].mxu0
        %4644 = vdwg.mxu0
        %4645 = vrot.lane.b32.xlu0 %v3745, 96
        %v4646 = vpop.permute.xlu0 %4645
        %4647 = vrot.lane.b32.xlu0 %v3745, 32
        %v4648 = vpop.permute.xlu0 %4647
        %v4650 = vsel %vm3752, %v4646, 0
        %v4653 = vsel %vm3752, %v4648, 0
        %4655 = vmatprep.subr.bf16.mxu0 0
        %4656 = vmatpush1.bf16.xpose.msra.mxu0 %v4653
        %4657 = vmatprep.subr.bf16.mxu0 0
        %4658 = vmatpush1.bf16.xpose.msra.mxu0 0
        %4659 = vmatprep.subr.bf16.mxu0 0
        %4660 = vmatpush1.bf16.xpose.msra.mxu0 0
        %4661 = vmatprep.subr.bf16.mxu0 0
        %4662 = vmatpush1.bf16.xpose.msra.mxu0 0
        %4663 = vmatprep.subr.bf16.mxu0 0
        %4664 = vmatpush1.bf16.xpose.msra.mxu0 0
        %4665 = vmatprep.subr.bf16.mxu0 0
        %4666 = vmatpush1.bf16.xpose.msra.mxu0 0
        %4667 = vmatprep.subr.bf16.mxu0 0
        %4668 = vmatpush1.bf16.xpose.msra.mxu0 0
        %4669 = vmatprep.subr.bf16.mxu0 0
        %4670 = vmatpush1.bf16.xpose.msra.mxu0 0
        %4671 = vmatprep.subr.bf16.mxu0 0
        %4672 = vmatpush1.bf16.xpose.msra.mxu0 0
        %4673 = vmatprep.subr.bf16.mxu0 0
        %4674 = vmatpush1.bf16.xpose.msra.mxu0 0
        %4675 = vmatprep.subr.bf16.mxu0 0
        %4676 = vmatpush1.bf16.xpose.msra.mxu0 0
        %4677 = vmatprep.subr.bf16.mxu0 0
        %4678 = vmatpush1.bf16.xpose.msra.mxu0 0
        %4679 = vmatprep.subr.bf16.mxu0 0
        %4680 = vmatpush1.bf16.xpose.msra.mxu0 0
        %4681 = vmatprep.subr.bf16.mxu0 0
        %4682 = vmatpush1.bf16.xpose.msra.mxu0 0
        %4683 = vmatprep.subr.bf16.mxu0 0
        %4684 = vmatpush1.bf16.xpose.msra.mxu0 0
        %4685 = vmatprep.subr.bf16.mxu0 0
        %4686 = vmatpush1.bf16.xpose.msra.mxu0 0
        %4687 = vmatprep.mubr.bf16.mxu0 0
        %4688 = vmatmul.mubr.bf16.gmra.mrb[0].mxu0 %v4650
        %v4689 = vpop.f32.mrb[0].mxu0
        %v4690 = vadd.f32 0.0, %v4689
        %v4691 = vpop.f32.mrb[0].mxu0
        %v4692 = vpop.f32.mrb[0].mxu0
        %v4693 = vpop.f32.mrb[0].mxu0
        %4694 = vdwg.mxu0
        %4695 = vrot.lane.b32.xlu0 %v3746, 96
        %v4696 = vpop.permute.xlu0 %4695
        %4697 = vrot.lane.b32.xlu0 %v3746, 32
        %v4698 = vpop.permute.xlu0 %4697
        %v4700 = vsel %vm3752, %v4696, 0
        %v4703 = vsel %vm3752, %v4698, 0
        %4705 = vmatprep.subr.bf16.mxu0 0
        %4706 = vmatpush1.bf16.xpose.msra.mxu0 %v4703
        %4707 = vmatprep.subr.bf16.mxu0 0
        %4708 = vmatpush1.bf16.xpose.msra.mxu0 0
        %4709 = vmatprep.subr.bf16.mxu0 0
        %4710 = vmatpush1.bf16.xpose.msra.mxu0 0
        %4711 = vmatprep.subr.bf16.mxu0 0
        %4712 = vmatpush1.bf16.xpose.msra.mxu0 0
        %4713 = vmatprep.subr.bf16.mxu0 0
        %4714 = vmatpush1.bf16.xpose.msra.mxu0 0
        %4715 = vmatprep.subr.bf16.mxu0 0
        %4716 = vmatpush1.bf16.xpose.msra.mxu0 0
        %4717 = vmatprep.subr.bf16.mxu0 0
        %4718 = vmatpush1.bf16.xpose.msra.mxu0 0
        %4719 = vmatprep.subr.bf16.mxu0 0
        %4720 = vmatpush1.bf16.xpose.msra.mxu0 0
        %4721 = vmatprep.subr.bf16.mxu0 0
        %4722 = vmatpush1.bf16.xpose.msra.mxu0 0
        %4723 = vmatprep.subr.bf16.mxu0 0
        %4724 = vmatpush1.bf16.xpose.msra.mxu0 0
        %4725 = vmatprep.subr.bf16.mxu0 0
        %4726 = vmatpush1.bf16.xpose.msra.mxu0 0
        %4727 = vmatprep.subr.bf16.mxu0 0
        %4728 = vmatpush1.bf16.xpose.msra.mxu0 0
        %4729 = vmatprep.subr.bf16.mxu0 0
        %4730 = vmatpush1.bf16.xpose.msra.mxu0 0
        %4731 = vmatprep.subr.bf16.mxu0 0
        %4732 = vmatpush1.bf16.xpose.msra.mxu0 0
        %4733 = vmatprep.subr.bf16.mxu0 0
        %4734 = vmatpush1.bf16.xpose.msra.mxu0 0
        %4735 = vmatprep.subr.bf16.mxu0 0
        %4736 = vmatpush1.bf16.xpose.msra.mxu0 0
        %4737 = vmatprep.mubr.bf16.mxu0 0
        %4738 = vmatmul.mubr.bf16.gmra.mrb[0].mxu0 %v4700
        %v4739 = vpop.f32.mrb[0].mxu0
        %v4740 = vadd.f32 0.0, %v4739
        %v4741 = vpop.f32.mrb[0].mxu0
        %v4742 = vpop.f32.mrb[0].mxu0
        %v4743 = vpop.f32.mrb[0].mxu0
        %4744 = vdwg.mxu0
        %v4745 = vmul.f32 %v4690, 0.35355338
        %v4746 = vmul.f32 %v4740, 0.35355338
        %v4747 = vadd.f32 %v4745, %v3621
        %v4748 = vadd.f32 %v4746, %v3621
        %v4749 = vsel %vm3852, %v4747, -inf
        %4750 = vmax.xlane.f32.xlu0 %v4749
        %v4751 = vpop.xlane.xlu0 %4750
        %v4752 = vsel %vm3852, %v4748, -inf
        %4753 = vmax.xlane.f32.xlu0 %v4752
        %v4754 = vpop.xlane.xlu0 %4753
        %v4755 = vsub.f32 %v4747, %v4751
        %v4756 = vsub.f32 %v4748, %v4754
        %v4757 = vmul.f32 %v4755, 1.442695
        %v4758 = vpow.pop %v4757
        %v4759 = vmul.f32 %v4756, 1.442695
        %v4760 = vpow.pop %v4759
        %v4761 = vsel %vm3852, %v4758, 0.0
        %4762 = vadd.xlane.f32.xlu0 %v4761
        %v4763 = vpop.xlane.xlu0 %4762
        %v4764 = vsel %vm3852, %v4760, 0.0
        %4765 = vadd.xlane.f32.xlu0 %v4764
        %v4766 = vpop.xlane.xlu0 %4765
        %v4767 = vrcp.pop %v4763
        %v4768 = vrcp.pop %v4766
        %v4769 = vmul.f32 %v4758, %v4767
        %v4770 = vmul.f32 %v4760, %v4768
        %v4771 = vpack.c.bf16 %v4769, %v4769
        %v4772 = vpack.c.bf16 %v4770, %v4770
        %4773 = vrot.lane.b32.xlu0 %v3747, 96
        %v4774 = vpop.permute.xlu0 %4773
        %v4776 = vsel %vm3877, %v4771, 0
        %v4779 = vsel %vm3881, %v4774, 0
        %4781 = vmatprep.subr.bf16.mxu0 0
        %4782 = vmatpush1.bf16.msra.mxu0 %v4779
        %4783 = vmatprep.subr.bf16.mxu0 0
        %4784 = vmatpush1.bf16.msra.mxu0 0
        %4785 = vmatprep.subr.bf16.mxu0 0
        %4786 = vmatpush1.bf16.msra.mxu0 0
        %4787 = vmatprep.subr.bf16.mxu0 0
        %4788 = vmatpush1.bf16.msra.mxu0 0
        %4789 = vmatprep.subr.bf16.mxu0 0
        %4790 = vmatpush1.bf16.msra.mxu0 0
        %4791 = vmatprep.subr.bf16.mxu0 0
        %4792 = vmatpush1.bf16.msra.mxu0 0
        %4793 = vmatprep.subr.bf16.mxu0 0
        %4794 = vmatpush1.bf16.msra.mxu0 0
        %4795 = vmatprep.subr.bf16.mxu0 0
        %4796 = vmatpush1.bf16.msra.mxu0 0
        %4797 = vmatprep.subr.bf16.mxu0 0
        %4798 = vmatpush1.bf16.msra.mxu0 0
        %4799 = vmatprep.subr.bf16.mxu0 0
        %4800 = vmatpush1.bf16.msra.mxu0 0
        %4801 = vmatprep.subr.bf16.mxu0 0
        %4802 = vmatpush1.bf16.msra.mxu0 0
        %4803 = vmatprep.subr.bf16.mxu0 0
        %4804 = vmatpush1.bf16.msra.mxu0 0
        %4805 = vmatprep.subr.bf16.mxu0 0
        %4806 = vmatpush1.bf16.msra.mxu0 0
        %4807 = vmatprep.subr.bf16.mxu0 0
        %4808 = vmatpush1.bf16.msra.mxu0 0
        %4809 = vmatprep.subr.bf16.mxu0 0
        %4810 = vmatpush1.bf16.msra.mxu0 0
        %4811 = vmatprep.subr.bf16.mxu0 0
        %4812 = vmatpush1.bf16.msra.mxu0 0
        %4813 = vmatprep.mubr.bf16.mxu0 0
        %4814 = vmatmul.mubr.bf16.gmra.mrb[0].mxu0 %v4776
        %v4815 = vpop.f32.mrb[0].mxu0
        %v4816 = vadd.f32 0.0, %v4815
        %v4817 = vpop.f32.mrb[0].mxu0
        %v4818 = vpop.f32.mrb[0].mxu0
        %v4819 = vpop.f32.mrb[0].mxu0
        %4820 = vdwg.mxu0
        %4821 = vrot.lane.b32.xlu0 %v3748, 96
        %v4822 = vpop.permute.xlu0 %4821
        %v4824 = vsel %vm3877, %v4772, 0
        %v4827 = vsel %vm3881, %v4822, 0
        %4829 = vmatprep.subr.bf16.mxu0 0
        %4830 = vmatpush1.bf16.msra.mxu0 %v4827
        %4831 = vmatprep.subr.bf16.mxu0 0
        %4832 = vmatpush1.bf16.msra.mxu0 0
        %4833 = vmatprep.subr.bf16.mxu0 0
        %4834 = vmatpush1.bf16.msra.mxu0 0
        %4835 = vmatprep.subr.bf16.mxu0 0
        %4836 = vmatpush1.bf16.msra.mxu0 0
        %4837 = vmatprep.subr.bf16.mxu0 0
        %4838 = vmatpush1.bf16.msra.mxu0 0
        %4839 = vmatprep.subr.bf16.mxu0 0
        %4840 = vmatpush1.bf16.msra.mxu0 0
        %4841 = vmatprep.subr.bf16.mxu0 0
        %4842 = vmatpush1.bf16.msra.mxu0 0
        %4843 = vmatprep.subr.bf16.mxu0 0
        %4844 = vmatpush1.bf16.msra.mxu0 0
        %4845 = vmatprep.subr.bf16.mxu0 0
        %4846 = vmatpush1.bf16.msra.mxu0 0
        %4847 = vmatprep.subr.bf16.mxu0 0
        %4848 = vmatpush1.bf16.msra.mxu0 0
        %4849 = vmatprep.subr.bf16.mxu0 0
        %4850 = vmatpush1.bf16.msra.mxu0 0
        %4851 = vmatprep.subr.bf16.mxu0 0
        %4852 = vmatpush1.bf16.msra.mxu0 0
        %4853 = vmatprep.subr.bf16.mxu0 0
        %4854 = vmatpush1.bf16.msra.mxu0 0
        %4855 = vmatprep.subr.bf16.mxu0 0
        %4856 = vmatpush1.bf16.msra.mxu0 0
        %4857 = vmatprep.subr.bf16.mxu0 0
        %4858 = vmatpush1.bf16.msra.mxu0 0
        %4859 = vmatprep.subr.bf16.mxu0 0
        %4860 = vmatpush1.bf16.msra.mxu0 0
        %4861 = vmatprep.mubr.bf16.mxu0 0
        %4862 = vmatmul.mubr.bf16.gmra.mrb[0].mxu0 %v4824
        %v4863 = vpop.f32.mrb[0].mxu0
        %v4864 = vadd.f32 0.0, %v4863
        %v4865 = vpop.f32.mrb[0].mxu0
        %v4866 = vpop.f32.mrb[0].mxu0
        %v4867 = vpop.f32.mrb[0].mxu0
        %4868 = vdwg.mxu0
        %4869 = vrot.lane.b32.xlu0 %v3745, 88
        %v4870 = vpop.permute.xlu0 %4869
        %4871 = vrot.lane.b32.xlu0 %v3745, 24
        %v4872 = vpop.permute.xlu0 %4871
        %v4874 = vsel %vm3752, %v4870, 0
        %v4877 = vsel %vm3752, %v4872, 0
        %4879 = vmatprep.subr.bf16.mxu0 0
        %4880 = vmatpush1.bf16.xpose.msra.mxu0 %v4877
        %4881 = vmatprep.subr.bf16.mxu0 0
        %4882 = vmatpush1.bf16.xpose.msra.mxu0 0
        %4883 = vmatprep.subr.bf16.mxu0 0
        %4884 = vmatpush1.bf16.xpose.msra.mxu0 0
        %4885 = vmatprep.subr.bf16.mxu0 0
        %4886 = vmatpush1.bf16.xpose.msra.mxu0 0
        %4887 = vmatprep.subr.bf16.mxu0 0
        %4888 = vmatpush1.bf16.xpose.msra.mxu0 0
        %4889 = vmatprep.subr.bf16.mxu0 0
        %4890 = vmatpush1.bf16.xpose.msra.mxu0 0
        %4891 = vmatprep.subr.bf16.mxu0 0
        %4892 = vmatpush1.bf16.xpose.msra.mxu0 0
        %4893 = vmatprep.subr.bf16.mxu0 0
        %4894 = vmatpush1.bf16.xpose.msra.mxu0 0
        %4895 = vmatprep.subr.bf16.mxu0 0
        %4896 = vmatpush1.bf16.xpose.msra.mxu0 0
        %4897 = vmatprep.subr.bf16.mxu0 0
        %4898 = vmatpush1.bf16.xpose.msra.mxu0 0
        %4899 = vmatprep.subr.bf16.mxu0 0
        %4900 = vmatpush1.bf16.xpose.msra.mxu0 0
        %4901 = vmatprep.subr.bf16.mxu0 0
        %4902 = vmatpush1.bf16.xpose.msra.mxu0 0
        %4903 = vmatprep.subr.bf16.mxu0 0
        %4904 = vmatpush1.bf16.xpose.msra.mxu0 0
        %4905 = vmatprep.subr.bf16.mxu0 0
        %4906 = vmatpush1.bf16.xpose.msra.mxu0 0
        %4907 = vmatprep.subr.bf16.mxu0 0
        %4908 = vmatpush1.bf16.xpose.msra.mxu0 0
        %4909 = vmatprep.subr.bf16.mxu0 0
        %4910 = vmatpush1.bf16.xpose.msra.mxu0 0
        %4911 = vmatprep.mubr.bf16.mxu0 0
        %4912 = vmatmul.mubr.bf16.gmra.mrb[0].mxu0 %v4874
        %v4913 = vpop.f32.mrb[0].mxu0
        %v4914 = vadd.f32 0.0, %v4913
        %v4915 = vpop.f32.mrb[0].mxu0
        %v4916 = vpop.f32.mrb[0].mxu0
        %v4917 = vpop.f32.mrb[0].mxu0
        %4918 = vdwg.mxu0
        %4919 = vrot.lane.b32.xlu0 %v3746, 88
        %v4920 = vpop.permute.xlu0 %4919
        %4921 = vrot.lane.b32.xlu0 %v3746, 24
        %v4922 = vpop.permute.xlu0 %4921
        %v4924 = vsel %vm3752, %v4920, 0
        %v4927 = vsel %vm3752, %v4922, 0
        %4929 = vmatprep.subr.bf16.mxu0 0
        %4930 = vmatpush1.bf16.xpose.msra.mxu0 %v4927
        %4931 = vmatprep.subr.bf16.mxu0 0
        %4932 = vmatpush1.bf16.xpose.msra.mxu0 0
        %4933 = vmatprep.subr.bf16.mxu0 0
        %4934 = vmatpush1.bf16.xpose.msra.mxu0 0
        %4935 = vmatprep.subr.bf16.mxu0 0
        %4936 = vmatpush1.bf16.xpose.msra.mxu0 0
        %4937 = vmatprep.subr.bf16.mxu0 0
        %4938 = vmatpush1.bf16.xpose.msra.mxu0 0
        %4939 = vmatprep.subr.bf16.mxu0 0
        %4940 = vmatpush1.bf16.xpose.msra.mxu0 0
        %4941 = vmatprep.subr.bf16.mxu0 0
        %4942 = vmatpush1.bf16.xpose.msra.mxu0 0
        %4943 = vmatprep.subr.bf16.mxu0 0
        %4944 = vmatpush1.bf16.xpose.msra.mxu0 0
        %4945 = vmatprep.subr.bf16.mxu0 0
        %4946 = vmatpush1.bf16.xpose.msra.mxu0 0
        %4947 = vmatprep.subr.bf16.mxu0 0
        %4948 = vmatpush1.bf16.xpose.msra.mxu0 0
        %4949 = vmatprep.subr.bf16.mxu0 0
        %4950 = vmatpush1.bf16.xpose.msra.mxu0 0
        %4951 = vmatprep.subr.bf16.mxu0 0
        %4952 = vmatpush1.bf16.xpose.msra.mxu0 0
        %4953 = vmatprep.subr.bf16.mxu0 0
        %4954 = vmatpush1.bf16.xpose.msra.mxu0 0
        %4955 = vmatprep.subr.bf16.mxu0 0
        %4956 = vmatpush1.bf16.xpose.msra.mxu0 0
        %4957 = vmatprep.subr.bf16.mxu0 0
        %4958 = vmatpush1.bf16.xpose.msra.mxu0 0
        %4959 = vmatprep.subr.bf16.mxu0 0
        %4960 = vmatpush1.bf16.xpose.msra.mxu0 0
        %4961 = vmatprep.mubr.bf16.mxu0 0
        %4962 = vmatmul.mubr.bf16.gmra.mrb[0].mxu0 %v4924
        %v4963 = vpop.f32.mrb[0].mxu0
        %v4964 = vadd.f32 0.0, %v4963
        %v4965 = vpop.f32.mrb[0].mxu0
        %v4966 = vpop.f32.mrb[0].mxu0
        %v4967 = vpop.f32.mrb[0].mxu0
        %4968 = vdwg.mxu0
        %v4969 = vmul.f32 %v4914, 0.35355338
        %v4970 = vmul.f32 %v4964, 0.35355338
        %v4971 = vadd.f32 %v4969, %v3621
        %v4972 = vadd.f32 %v4970, %v3621
        %v4973 = vsel %vm3852, %v4971, -inf
        %4974 = vmax.xlane.f32.xlu0 %v4973
        %v4975 = vpop.xlane.xlu0 %4974
        %v4976 = vsel %vm3852, %v4972, -inf
        %4977 = vmax.xlane.f32.xlu0 %v4976
        %v4978 = vpop.xlane.xlu0 %4977
        %v4979 = vsub.f32 %v4971, %v4975
        %v4980 = vsub.f32 %v4972, %v4978
        %v4981 = vmul.f32 %v4979, 1.442695
        %v4982 = vpow.pop %v4981
        %v4983 = vmul.f32 %v4980, 1.442695
        %v4984 = vpow.pop %v4983
        %v4985 = vsel %vm3852, %v4982, 0.0
        %4986 = vadd.xlane.f32.xlu0 %v4985
        %v4987 = vpop.xlane.xlu0 %4986
        %v4988 = vsel %vm3852, %v4984, 0.0
        %4989 = vadd.xlane.f32.xlu0 %v4988
        %v4990 = vpop.xlane.xlu0 %4989
        %v4991 = vrcp.pop %v4987
        %v4992 = vrcp.pop %v4990
        %v4993 = vmul.f32 %v4982, %v4991
        %v4994 = vmul.f32 %v4984, %v4992
        %v4995 = vpack.c.bf16 %v4993, %v4993
        %v4996 = vpack.c.bf16 %v4994, %v4994
        %4997 = vrot.lane.b32.xlu0 %v3747, 88
        %v4998 = vpop.permute.xlu0 %4997
        %v5000 = vsel %vm3877, %v4995, 0
        %v5003 = vsel %vm3881, %v4998, 0
        %5005 = vmatprep.subr.bf16.mxu0 0
        %5006 = vmatpush1.bf16.msra.mxu0 %v5003
        %5007 = vmatprep.subr.bf16.mxu0 0
        %5008 = vmatpush1.bf16.msra.mxu0 0
        %5009 = vmatprep.subr.bf16.mxu0 0
        %5010 = vmatpush1.bf16.msra.mxu0 0
        %5011 = vmatprep.subr.bf16.mxu0 0
        %5012 = vmatpush1.bf16.msra.mxu0 0
        %5013 = vmatprep.subr.bf16.mxu0 0
        %5014 = vmatpush1.bf16.msra.mxu0 0
        %5015 = vmatprep.subr.bf16.mxu0 0
        %5016 = vmatpush1.bf16.msra.mxu0 0
        %5017 = vmatprep.subr.bf16.mxu0 0
        %5018 = vmatpush1.bf16.msra.mxu0 0
        %5019 = vmatprep.subr.bf16.mxu0 0
        %5020 = vmatpush1.bf16.msra.mxu0 0
        %5021 = vmatprep.subr.bf16.mxu0 0
        %5022 = vmatpush1.bf16.msra.mxu0 0
        %5023 = vmatprep.subr.bf16.mxu0 0
        %5024 = vmatpush1.bf16.msra.mxu0 0
        %5025 = vmatprep.subr.bf16.mxu0 0
        %5026 = vmatpush1.bf16.msra.mxu0 0
        %5027 = vmatprep.subr.bf16.mxu0 0
        %5028 = vmatpush1.bf16.msra.mxu0 0
        %5029 = vmatprep.subr.bf16.mxu0 0
        %5030 = vmatpush1.bf16.msra.mxu0 0
        %5031 = vmatprep.subr.bf16.mxu0 0
        %5032 = vmatpush1.bf16.msra.mxu0 0
        %5033 = vmatprep.subr.bf16.mxu0 0
        %5034 = vmatpush1.bf16.msra.mxu0 0
        %5035 = vmatprep.subr.bf16.mxu0 0
        %5036 = vmatpush1.bf16.msra.mxu0 0
        %5037 = vmatprep.mubr.bf16.mxu0 0
        %5038 = vmatmul.mubr.bf16.gmra.mrb[0].mxu0 %v5000
        %v5039 = vpop.f32.mrb[0].mxu0
        %v5040 = vadd.f32 0.0, %v5039
        %v5041 = vpop.f32.mrb[0].mxu0
        %v5042 = vpop.f32.mrb[0].mxu0
        %v5043 = vpop.f32.mrb[0].mxu0
        %5044 = vdwg.mxu0
        %5045 = vrot.lane.b32.xlu0 %v3748, 88
        %v5046 = vpop.permute.xlu0 %5045
        %v5048 = vsel %vm3877, %v4996, 0
        %v5051 = vsel %vm3881, %v5046, 0
        %5053 = vmatprep.subr.bf16.mxu0 0
        %5054 = vmatpush1.bf16.msra.mxu0 %v5051
        %5055 = vmatprep.subr.bf16.mxu0 0
        %5056 = vmatpush1.bf16.msra.mxu0 0
        %5057 = vmatprep.subr.bf16.mxu0 0
        %5058 = vmatpush1.bf16.msra.mxu0 0
        %5059 = vmatprep.subr.bf16.mxu0 0
        %5060 = vmatpush1.bf16.msra.mxu0 0
        %5061 = vmatprep.subr.bf16.mxu0 0
        %5062 = vmatpush1.bf16.msra.mxu0 0
        %5063 = vmatprep.subr.bf16.mxu0 0
        %5064 = vmatpush1.bf16.msra.mxu0 0
        %5065 = vmatprep.subr.bf16.mxu0 0
        %5066 = vmatpush1.bf16.msra.mxu0 0
        %5067 = vmatprep.subr.bf16.mxu0 0
        %5068 = vmatpush1.bf16.msra.mxu0 0
        %5069 = vmatprep.subr.bf16.mxu0 0
        %5070 = vmatpush1.bf16.msra.mxu0 0
        %5071 = vmatprep.subr.bf16.mxu0 0
        %5072 = vmatpush1.bf16.msra.mxu0 0
        %5073 = vmatprep.subr.bf16.mxu0 0
        %5074 = vmatpush1.bf16.msra.mxu0 0
        %5075 = vmatprep.subr.bf16.mxu0 0
        %5076 = vmatpush1.bf16.msra.mxu0 0
        %5077 = vmatprep.subr.bf16.mxu0 0
        %5078 = vmatpush1.bf16.msra.mxu0 0
        %5079 = vmatprep.subr.bf16.mxu0 0
        %5080 = vmatpush1.bf16.msra.mxu0 0
        %5081 = vmatprep.subr.bf16.mxu0 0
        %5082 = vmatpush1.bf16.msra.mxu0 0
        %5083 = vmatprep.subr.bf16.mxu0 0
        %5084 = vmatpush1.bf16.msra.mxu0 0
        %5085 = vmatprep.mubr.bf16.mxu0 0
        %5086 = vmatmul.mubr.bf16.gmra.mrb[0].mxu0 %v5048
        %v5087 = vpop.f32.mrb[0].mxu0
        %v5088 = vadd.f32 0.0, %v5087
        %v5089 = vpop.f32.mrb[0].mxu0
        %v5090 = vpop.f32.mrb[0].mxu0
        %v5091 = vpop.f32.mrb[0].mxu0
        %5092 = vdwg.mxu0
        %5093 = vrot.lane.b32.xlu0 %v3745, 80
        %v5094 = vpop.permute.xlu0 %5093
        %5095 = vrot.lane.b32.xlu0 %v3745, 16
        %v5096 = vpop.permute.xlu0 %5095
        %v5098 = vsel %vm3752, %v5094, 0
        %v5101 = vsel %vm3752, %v5096, 0
        %5103 = vmatprep.subr.bf16.mxu0 0
        %5104 = vmatpush1.bf16.xpose.msra.mxu0 %v5101
        %5105 = vmatprep.subr.bf16.mxu0 0
        %5106 = vmatpush1.bf16.xpose.msra.mxu0 0
        %5107 = vmatprep.subr.bf16.mxu0 0
        %5108 = vmatpush1.bf16.xpose.msra.mxu0 0
        %5109 = vmatprep.subr.bf16.mxu0 0
        %5110 = vmatpush1.bf16.xpose.msra.mxu0 0
        %5111 = vmatprep.subr.bf16.mxu0 0
        %5112 = vmatpush1.bf16.xpose.msra.mxu0 0
        %5113 = vmatprep.subr.bf16.mxu0 0
        %5114 = vmatpush1.bf16.xpose.msra.mxu0 0
        %5115 = vmatprep.subr.bf16.mxu0 0
        %5116 = vmatpush1.bf16.xpose.msra.mxu0 0
        %5117 = vmatprep.subr.bf16.mxu0 0
        %5118 = vmatpush1.bf16.xpose.msra.mxu0 0
        %5119 = vmatprep.subr.bf16.mxu0 0
        %5120 = vmatpush1.bf16.xpose.msra.mxu0 0
        %5121 = vmatprep.subr.bf16.mxu0 0
        %5122 = vmatpush1.bf16.xpose.msra.mxu0 0
        %5123 = vmatprep.subr.bf16.mxu0 0
        %5124 = vmatpush1.bf16.xpose.msra.mxu0 0
        %5125 = vmatprep.subr.bf16.mxu0 0
        %5126 = vmatpush1.bf16.xpose.msra.mxu0 0
        %5127 = vmatprep.subr.bf16.mxu0 0
        %5128 = vmatpush1.bf16.xpose.msra.mxu0 0
        %5129 = vmatprep.subr.bf16.mxu0 0
        %5130 = vmatpush1.bf16.xpose.msra.mxu0 0
        %5131 = vmatprep.subr.bf16.mxu0 0
        %5132 = vmatpush1.bf16.xpose.msra.mxu0 0
        %5133 = vmatprep.subr.bf16.mxu0 0
        %5134 = vmatpush1.bf16.xpose.msra.mxu0 0
        %5135 = vmatprep.mubr.bf16.mxu0 0
        %5136 = vmatmul.mubr.bf16.gmra.mrb[0].mxu0 %v5098
        %v5137 = vpop.f32.mrb[0].mxu0
        %v5138 = vadd.f32 0.0, %v5137
        %v5139 = vpop.f32.mrb[0].mxu0
        %v5140 = vpop.f32.mrb[0].mxu0
        %v5141 = vpop.f32.mrb[0].mxu0
        %5142 = vdwg.mxu0
        %5143 = vrot.lane.b32.xlu0 %v3746, 80
        %v5144 = vpop.permute.xlu0 %5143
        %5145 = vrot.lane.b32.xlu0 %v3746, 16
        %v5146 = vpop.permute.xlu0 %5145
        %v5148 = vsel %vm3752, %v5144, 0
        %v5151 = vsel %vm3752, %v5146, 0
        %5153 = vmatprep.subr.bf16.mxu0 0
        %5154 = vmatpush1.bf16.xpose.msra.mxu0 %v5151
        %5155 = vmatprep.subr.bf16.mxu0 0
        %5156 = vmatpush1.bf16.xpose.msra.mxu0 0
        %5157 = vmatprep.subr.bf16.mxu0 0
        %5158 = vmatpush1.bf16.xpose.msra.mxu0 0
        %5159 = vmatprep.subr.bf16.mxu0 0
        %5160 = vmatpush1.bf16.xpose.msra.mxu0 0
        %5161 = vmatprep.subr.bf16.mxu0 0
        %5162 = vmatpush1.bf16.xpose.msra.mxu0 0
        %5163 = vmatprep.subr.bf16.mxu0 0
        %5164 = vmatpush1.bf16.xpose.msra.mxu0 0
        %5165 = vmatprep.subr.bf16.mxu0 0
        %5166 = vmatpush1.bf16.xpose.msra.mxu0 0
        %5167 = vmatprep.subr.bf16.mxu0 0
        %5168 = vmatpush1.bf16.xpose.msra.mxu0 0
        %5169 = vmatprep.subr.bf16.mxu0 0
        %5170 = vmatpush1.bf16.xpose.msra.mxu0 0
        %5171 = vmatprep.subr.bf16.mxu0 0
        %5172 = vmatpush1.bf16.xpose.msra.mxu0 0
        %5173 = vmatprep.subr.bf16.mxu0 0
        %5174 = vmatpush1.bf16.xpose.msra.mxu0 0
        %5175 = vmatprep.subr.bf16.mxu0 0
        %5176 = vmatpush1.bf16.xpose.msra.mxu0 0
        %5177 = vmatprep.subr.bf16.mxu0 0
        %5178 = vmatpush1.bf16.xpose.msra.mxu0 0
        %5179 = vmatprep.subr.bf16.mxu0 0
        %5180 = vmatpush1.bf16.xpose.msra.mxu0 0
        %5181 = vmatprep.subr.bf16.mxu0 0
        %5182 = vmatpush1.bf16.xpose.msra.mxu0 0
        %5183 = vmatprep.subr.bf16.mxu0 0
        %5184 = vmatpush1.bf16.xpose.msra.mxu0 0
        %5185 = vmatprep.mubr.bf16.mxu0 0
        %5186 = vmatmul.mubr.bf16.gmra.mrb[0].mxu0 %v5148
        %v5187 = vpop.f32.mrb[0].mxu0
        %v5188 = vadd.f32 0.0, %v5187
        %v5189 = vpop.f32.mrb[0].mxu0
        %v5190 = vpop.f32.mrb[0].mxu0
        %v5191 = vpop.f32.mrb[0].mxu0
        %5192 = vdwg.mxu0
        %v5193 = vmul.f32 %v5138, 0.35355338
        %v5194 = vmul.f32 %v5188, 0.35355338
        %v5195 = vadd.f32 %v5193, %v3621
        %v5196 = vadd.f32 %v5194, %v3621
        %v5197 = vsel %vm3852, %v5195, -inf
        %5198 = vmax.xlane.f32.xlu0 %v5197
        %v5199 = vpop.xlane.xlu0 %5198
        %v5200 = vsel %vm3852, %v5196, -inf
        %5201 = vmax.xlane.f32.xlu0 %v5200
        %v5202 = vpop.xlane.xlu0 %5201
        %v5203 = vsub.f32 %v5195, %v5199
        %v5204 = vsub.f32 %v5196, %v5202
        %v5205 = vmul.f32 %v5203, 1.442695
        %v5206 = vpow.pop %v5205
        %v5207 = vmul.f32 %v5204, 1.442695
        %v5208 = vpow.pop %v5207
        %v5209 = vsel %vm3852, %v5206, 0.0
        %5210 = vadd.xlane.f32.xlu0 %v5209
        %v5211 = vpop.xlane.xlu0 %5210
        %v5212 = vsel %vm3852, %v5208, 0.0
        %5213 = vadd.xlane.f32.xlu0 %v5212
        %v5214 = vpop.xlane.xlu0 %5213
        %v5215 = vrcp.pop %v5211
        %v5216 = vrcp.pop %v5214
        %v5217 = vmul.f32 %v5206, %v5215
        %v5218 = vmul.f32 %v5208, %v5216
        %v5219 = vpack.c.bf16 %v5217, %v5217
        %v5220 = vpack.c.bf16 %v5218, %v5218
        %5221 = vrot.lane.b32.xlu0 %v3747, 80
        %v5222 = vpop.permute.xlu0 %5221
        %v5224 = vsel %vm3877, %v5219, 0
        %v5227 = vsel %vm3881, %v5222, 0
        %5229 = vmatprep.subr.bf16.mxu0 0
        %5230 = vmatpush1.bf16.msra.mxu0 %v5227
        %5231 = vmatprep.subr.bf16.mxu0 0
        %5232 = vmatpush1.bf16.msra.mxu0 0
        %5233 = vmatprep.subr.bf16.mxu0 0
        %5234 = vmatpush1.bf16.msra.mxu0 0
        %5235 = vmatprep.subr.bf16.mxu0 0
        %5236 = vmatpush1.bf16.msra.mxu0 0
        %5237 = vmatprep.subr.bf16.mxu0 0
        %5238 = vmatpush1.bf16.msra.mxu0 0
        %5239 = vmatprep.subr.bf16.mxu0 0
        %5240 = vmatpush1.bf16.msra.mxu0 0
        %5241 = vmatprep.subr.bf16.mxu0 0
        %5242 = vmatpush1.bf16.msra.mxu0 0
        %5243 = vmatprep.subr.bf16.mxu0 0
        %5244 = vmatpush1.bf16.msra.mxu0 0
        %5245 = vmatprep.subr.bf16.mxu0 0
        %5246 = vmatpush1.bf16.msra.mxu0 0
        %5247 = vmatprep.subr.bf16.mxu0 0
        %5248 = vmatpush1.bf16.msra.mxu0 0
        %5249 = vmatprep.subr.bf16.mxu0 0
        %5250 = vmatpush1.bf16.msra.mxu0 0
        %5251 = vmatprep.subr.bf16.mxu0 0
        %5252 = vmatpush1.bf16.msra.mxu0 0
        %5253 = vmatprep.subr.bf16.mxu0 0
        %5254 = vmatpush1.bf16.msra.mxu0 0
        %5255 = vmatprep.subr.bf16.mxu0 0
        %5256 = vmatpush1.bf16.msra.mxu0 0
        %5257 = vmatprep.subr.bf16.mxu0 0
        %5258 = vmatpush1.bf16.msra.mxu0 0
        %5259 = vmatprep.subr.bf16.mxu0 0
        %5260 = vmatpush1.bf16.msra.mxu0 0
        %5261 = vmatprep.mubr.bf16.mxu0 0
        %5262 = vmatmul.mubr.bf16.gmra.mrb[0].mxu0 %v5224
        %v5263 = vpop.f32.mrb[0].mxu0
        %v5264 = vadd.f32 0.0, %v5263
        %v5265 = vpop.f32.mrb[0].mxu0
        %v5266 = vpop.f32.mrb[0].mxu0
        %v5267 = vpop.f32.mrb[0].mxu0
        %5268 = vdwg.mxu0
        %5269 = vrot.lane.b32.xlu0 %v3748, 80
        %v5270 = vpop.permute.xlu0 %5269
        %v5272 = vsel %vm3877, %v5220, 0
        %v5275 = vsel %vm3881, %v5270, 0
        %5277 = vmatprep.subr.bf16.mxu0 0
        %5278 = vmatpush1.bf16.msra.mxu0 %v5275
        %5279 = vmatprep.subr.bf16.mxu0 0
        %5280 = vmatpush1.bf16.msra.mxu0 0
        %5281 = vmatprep.subr.bf16.mxu0 0
        %5282 = vmatpush1.bf16.msra.mxu0 0
        %5283 = vmatprep.subr.bf16.mxu0 0
        %5284 = vmatpush1.bf16.msra.mxu0 0
        %5285 = vmatprep.subr.bf16.mxu0 0
        %5286 = vmatpush1.bf16.msra.mxu0 0
        %5287 = vmatprep.subr.bf16.mxu0 0
        %5288 = vmatpush1.bf16.msra.mxu0 0
        %5289 = vmatprep.subr.bf16.mxu0 0
        %5290 = vmatpush1.bf16.msra.mxu0 0
        %5291 = vmatprep.subr.bf16.mxu0 0
        %5292 = vmatpush1.bf16.msra.mxu0 0
        %5293 = vmatprep.subr.bf16.mxu0 0
        %5294 = vmatpush1.bf16.msra.mxu0 0
        %5295 = vmatprep.subr.bf16.mxu0 0
        %5296 = vmatpush1.bf16.msra.mxu0 0
        %5297 = vmatprep.subr.bf16.mxu0 0
        %5298 = vmatpush1.bf16.msra.mxu0 0
        %5299 = vmatprep.subr.bf16.mxu0 0
        %5300 = vmatpush1.bf16.msra.mxu0 0
        %5301 = vmatprep.subr.bf16.mxu0 0
        %5302 = vmatpush1.bf16.msra.mxu0 0
        %5303 = vmatprep.subr.bf16.mxu0 0
        %5304 = vmatpush1.bf16.msra.mxu0 0
        %5305 = vmatprep.subr.bf16.mxu0 0
        %5306 = vmatpush1.bf16.msra.mxu0 0
        %5307 = vmatprep.subr.bf16.mxu0 0
        %5308 = vmatpush1.bf16.msra.mxu0 0
        %5309 = vmatprep.mubr.bf16.mxu0 0
        %5310 = vmatmul.mubr.bf16.gmra.mrb[0].mxu0 %v5272
        %v5311 = vpop.f32.mrb[0].mxu0
        %v5312 = vadd.f32 0.0, %v5311
        %v5313 = vpop.f32.mrb[0].mxu0
        %v5314 = vpop.f32.mrb[0].mxu0
        %v5315 = vpop.f32.mrb[0].mxu0
        %5316 = vdwg.mxu0
        %5317 = vrot.lane.b32.xlu0 %v3745, 72
        %v5318 = vpop.permute.xlu0 %5317
        %5319 = vrot.lane.b32.xlu0 %v3745, 8
        %v5320 = vpop.permute.xlu0 %5319
        %v5322 = vsel %vm3752, %v5318, 0
        %v5325 = vsel %vm3752, %v5320, 0
        %5327 = vmatprep.subr.bf16.mxu0 0
        %5328 = vmatpush1.bf16.xpose.msra.mxu0 %v5325
        %5329 = vmatprep.subr.bf16.mxu0 0
        %5330 = vmatpush1.bf16.xpose.msra.mxu0 0
        %5331 = vmatprep.subr.bf16.mxu0 0
        %5332 = vmatpush1.bf16.xpose.msra.mxu0 0
        %5333 = vmatprep.subr.bf16.mxu0 0
        %5334 = vmatpush1.bf16.xpose.msra.mxu0 0
        %5335 = vmatprep.subr.bf16.mxu0 0
        %5336 = vmatpush1.bf16.xpose.msra.mxu0 0
        %5337 = vmatprep.subr.bf16.mxu0 0
        %5338 = vmatpush1.bf16.xpose.msra.mxu0 0
        %5339 = vmatprep.subr.bf16.mxu0 0
        %5340 = vmatpush1.bf16.xpose.msra.mxu0 0
        %5341 = vmatprep.subr.bf16.mxu0 0
        %5342 = vmatpush1.bf16.xpose.msra.mxu0 0
        %5343 = vmatprep.subr.bf16.mxu0 0
        %5344 = vmatpush1.bf16.xpose.msra.mxu0 0
        %5345 = vmatprep.subr.bf16.mxu0 0
        %5346 = vmatpush1.bf16.xpose.msra.mxu0 0
        %5347 = vmatprep.subr.bf16.mxu0 0
        %5348 = vmatpush1.bf16.xpose.msra.mxu0 0
        %5349 = vmatprep.subr.bf16.mxu0 0
        %5350 = vmatpush1.bf16.xpose.msra.mxu0 0
        %5351 = vmatprep.subr.bf16.mxu0 0
        %5352 = vmatpush1.bf16.xpose.msra.mxu0 0
        %5353 = vmatprep.subr.bf16.mxu0 0
        %5354 = vmatpush1.bf16.xpose.msra.mxu0 0
        %5355 = vmatprep.subr.bf16.mxu0 0
        %5356 = vmatpush1.bf16.xpose.msra.mxu0 0
        %5357 = vmatprep.subr.bf16.mxu0 0
        %5358 = vmatpush1.bf16.xpose.msra.mxu0 0
        %5359 = vmatprep.mubr.bf16.mxu0 0
        %5360 = vmatmul.mubr.bf16.gmra.mrb[0].mxu0 %v5322
        %v5361 = vpop.f32.mrb[0].mxu0
        %v5362 = vadd.f32 0.0, %v5361
        %v5363 = vpop.f32.mrb[0].mxu0
        %v5364 = vpop.f32.mrb[0].mxu0
        %v5365 = vpop.f32.mrb[0].mxu0
        %5366 = vdwg.mxu0
        %5367 = vrot.lane.b32.xlu0 %v3746, 72
        %v5368 = vpop.permute.xlu0 %5367
        %5369 = vrot.lane.b32.xlu0 %v3746, 8
        %v5370 = vpop.permute.xlu0 %5369
        %v5372 = vsel %vm3752, %v5368, 0
        %v5375 = vsel %vm3752, %v5370, 0
        %5377 = vmatprep.subr.bf16.mxu0 0
        %5378 = vmatpush1.bf16.xpose.msra.mxu0 %v5375
        %5379 = vmatprep.subr.bf16.mxu0 0
        %5380 = vmatpush1.bf16.xpose.msra.mxu0 0
        %5381 = vmatprep.subr.bf16.mxu0 0
        %5382 = vmatpush1.bf16.xpose.msra.mxu0 0
        %5383 = vmatprep.subr.bf16.mxu0 0
        %5384 = vmatpush1.bf16.xpose.msra.mxu0 0
        %5385 = vmatprep.subr.bf16.mxu0 0
        %5386 = vmatpush1.bf16.xpose.msra.mxu0 0
        %5387 = vmatprep.subr.bf16.mxu0 0
        %5388 = vmatpush1.bf16.xpose.msra.mxu0 0
        %5389 = vmatprep.subr.bf16.mxu0 0
        %5390 = vmatpush1.bf16.xpose.msra.mxu0 0
        %5391 = vmatprep.subr.bf16.mxu0 0
        %5392 = vmatpush1.bf16.xpose.msra.mxu0 0
        %5393 = vmatprep.subr.bf16.mxu0 0
        %5394 = vmatpush1.bf16.xpose.msra.mxu0 0
        %5395 = vmatprep.subr.bf16.mxu0 0
        %5396 = vmatpush1.bf16.xpose.msra.mxu0 0
        %5397 = vmatprep.subr.bf16.mxu0 0
        %5398 = vmatpush1.bf16.xpose.msra.mxu0 0
        %5399 = vmatprep.subr.bf16.mxu0 0
        %5400 = vmatpush1.bf16.xpose.msra.mxu0 0
        %5401 = vmatprep.subr.bf16.mxu0 0
        %5402 = vmatpush1.bf16.xpose.msra.mxu0 0
        %5403 = vmatprep.subr.bf16.mxu0 0
        %5404 = vmatpush1.bf16.xpose.msra.mxu0 0
        %5405 = vmatprep.subr.bf16.mxu0 0
        %5406 = vmatpush1.bf16.xpose.msra.mxu0 0
        %5407 = vmatprep.subr.bf16.mxu0 0
        %5408 = vmatpush1.bf16.xpose.msra.mxu0 0
        %5409 = vmatprep.mubr.bf16.mxu0 0
        %5410 = vmatmul.mubr.bf16.gmra.mrb[0].mxu0 %v5372
        %v5411 = vpop.f32.mrb[0].mxu0
        %v5412 = vadd.f32 0.0, %v5411
        %v5413 = vpop.f32.mrb[0].mxu0
        %v5414 = vpop.f32.mrb[0].mxu0
        %v5415 = vpop.f32.mrb[0].mxu0
        %5416 = vdwg.mxu0
        %v5417 = vmul.f32 %v5362, 0.35355338
        %v5418 = vmul.f32 %v5412, 0.35355338
        %v5419 = vadd.f32 %v5417, %v3621
        %v5420 = vadd.f32 %v5418, %v3621
        %v5421 = vsel %vm3852, %v5419, -inf
        %5422 = vmax.xlane.f32.xlu0 %v5421
        %v5423 = vpop.xlane.xlu0 %5422
        %v5424 = vsel %vm3852, %v5420, -inf
        %5425 = vmax.xlane.f32.xlu0 %v5424
        %v5426 = vpop.xlane.xlu0 %5425
        %v5427 = vsub.f32 %v5419, %v5423
        %v5428 = vsub.f32 %v5420, %v5426
        %v5429 = vmul.f32 %v5427, 1.442695
        %v5430 = vpow.pop %v5429
        %v5431 = vmul.f32 %v5428, 1.442695
        %v5432 = vpow.pop %v5431
        %v5433 = vsel %vm3852, %v5430, 0.0
        %5434 = vadd.xlane.f32.xlu0 %v5433
        %v5435 = vpop.xlane.xlu0 %5434
        %v5436 = vsel %vm3852, %v5432, 0.0
        %5437 = vadd.xlane.f32.xlu0 %v5436
        %v5438 = vpop.xlane.xlu0 %5437
        %v5439 = vrcp.pop %v5435
        %v5440 = vrcp.pop %v5438
        %v5441 = vmul.f32 %v5430, %v5439
        %v5442 = vmul.f32 %v5432, %v5440
        %v5443 = vpack.c.bf16 %v5441, %v5441
        %v5444 = vpack.c.bf16 %v5442, %v5442
        %5445 = vrot.lane.b32.xlu0 %v3747, 72
        %v5446 = vpop.permute.xlu0 %5445
        %v5448 = vsel %vm3877, %v5443, 0
        %v5451 = vsel %vm3881, %v5446, 0
        %5453 = vmatprep.subr.bf16.mxu0 0
        %5454 = vmatpush1.bf16.msra.mxu0 %v5451
        %5455 = vmatprep.subr.bf16.mxu0 0
        %5456 = vmatpush1.bf16.msra.mxu0 0
        %5457 = vmatprep.subr.bf16.mxu0 0
        %5458 = vmatpush1.bf16.msra.mxu0 0
        %5459 = vmatprep.subr.bf16.mxu0 0
        %5460 = vmatpush1.bf16.msra.mxu0 0
        %5461 = vmatprep.subr.bf16.mxu0 0
        %5462 = vmatpush1.bf16.msra.mxu0 0
        %5463 = vmatprep.subr.bf16.mxu0 0
        %5464 = vmatpush1.bf16.msra.mxu0 0
        %5465 = vmatprep.subr.bf16.mxu0 0
        %5466 = vmatpush1.bf16.msra.mxu0 0
        %5467 = vmatprep.subr.bf16.mxu0 0
        %5468 = vmatpush1.bf16.msra.mxu0 0
        %5469 = vmatprep.subr.bf16.mxu0 0
        %5470 = vmatpush1.bf16.msra.mxu0 0
        %5471 = vmatprep.subr.bf16.mxu0 0
        %5472 = vmatpush1.bf16.msra.mxu0 0
        %5473 = vmatprep.subr.bf16.mxu0 0
        %5474 = vmatpush1.bf16.msra.mxu0 0
        %5475 = vmatprep.subr.bf16.mxu0 0
        %5476 = vmatpush1.bf16.msra.mxu0 0
        %5477 = vmatprep.subr.bf16.mxu0 0
        %5478 = vmatpush1.bf16.msra.mxu0 0
        %5479 = vmatprep.subr.bf16.mxu0 0
        %5480 = vmatpush1.bf16.msra.mxu0 0
        %5481 = vmatprep.subr.bf16.mxu0 0
        %5482 = vmatpush1.bf16.msra.mxu0 0
        %5483 = vmatprep.subr.bf16.mxu0 0
        %5484 = vmatpush1.bf16.msra.mxu0 0
        %5485 = vmatprep.mubr.bf16.mxu0 0
        %5486 = vmatmul.mubr.bf16.gmra.mrb[0].mxu0 %v5448
        %v5487 = vpop.f32.mrb[0].mxu0
        %v5488 = vadd.f32 0.0, %v5487
        %v5489 = vpop.f32.mrb[0].mxu0
        %v5490 = vpop.f32.mrb[0].mxu0
        %v5491 = vpop.f32.mrb[0].mxu0
        %5492 = vdwg.mxu0
        %5493 = vrot.lane.b32.xlu0 %v3748, 72
        %v5494 = vpop.permute.xlu0 %5493
        %v5496 = vsel %vm3877, %v5444, 0
        %v5499 = vsel %vm3881, %v5494, 0
        %5501 = vmatprep.subr.bf16.mxu0 0
        %5502 = vmatpush1.bf16.msra.mxu0 %v5499
        %5503 = vmatprep.subr.bf16.mxu0 0
        %5504 = vmatpush1.bf16.msra.mxu0 0
        %5505 = vmatprep.subr.bf16.mxu0 0
        %5506 = vmatpush1.bf16.msra.mxu0 0
        %5507 = vmatprep.subr.bf16.mxu0 0
        %5508 = vmatpush1.bf16.msra.mxu0 0
        %5509 = vmatprep.subr.bf16.mxu0 0
        %5510 = vmatpush1.bf16.msra.mxu0 0
        %5511 = vmatprep.subr.bf16.mxu0 0
        %5512 = vmatpush1.bf16.msra.mxu0 0
        %5513 = vmatprep.subr.bf16.mxu0 0
        %5514 = vmatpush1.bf16.msra.mxu0 0
        %5515 = vmatprep.subr.bf16.mxu0 0
        %5516 = vmatpush1.bf16.msra.mxu0 0
        %5517 = vmatprep.subr.bf16.mxu0 0
        %5518 = vmatpush1.bf16.msra.mxu0 0
        %5519 = vmatprep.subr.bf16.mxu0 0
        %5520 = vmatpush1.bf16.msra.mxu0 0
        %5521 = vmatprep.subr.bf16.mxu0 0
        %5522 = vmatpush1.bf16.msra.mxu0 0
        %5523 = vmatprep.subr.bf16.mxu0 0
        %5524 = vmatpush1.bf16.msra.mxu0 0
        %5525 = vmatprep.subr.bf16.mxu0 0
        %5526 = vmatpush1.bf16.msra.mxu0 0
        %5527 = vmatprep.subr.bf16.mxu0 0
        %5528 = vmatpush1.bf16.msra.mxu0 0
        %5529 = vmatprep.subr.bf16.mxu0 0
        %5530 = vmatpush1.bf16.msra.mxu0 0
        %5531 = vmatprep.subr.bf16.mxu0 0
        %5532 = vmatpush1.bf16.msra.mxu0 0
        %5533 = vmatprep.mubr.bf16.mxu0 0
        %5534 = vmatmul.mubr.bf16.gmra.mrb[0].mxu0 %v5496
        %v5535 = vpop.f32.mrb[0].mxu0
        %v5536 = vadd.f32 0.0, %v5535
        %v5537 = vpop.f32.mrb[0].mxu0
        %v5538 = vpop.f32.mrb[0].mxu0
        %v5539 = vpop.f32.mrb[0].mxu0
        %5540 = vdwg.mxu0
        %5543 = vrot.lane.b32.xlu0 %v4143, 8
        %v5544 = vpop.permute.xlu0 %5543
        %5545 = vrot.lane.b32.xlu0 %v4192, 8
        %v5546 = vpop.permute.xlu0 %5545
        %5551 = vrot.lane.b32.xlu0 %v4368, 16
        %v5552 = vpop.permute.xlu0 %5551
        %5553 = vrot.lane.b32.xlu0 %v4416, 16
        %v5554 = vpop.permute.xlu0 %5553
        %5559 = vrot.lane.b32.xlu0 %v4592, 24
        %v5560 = vpop.permute.xlu0 %5559
        %5561 = vrot.lane.b32.xlu0 %v4640, 24
        %v5562 = vpop.permute.xlu0 %5561
        %5567 = vrot.lane.b32.xlu0 %v4816, 32
        %v5568 = vpop.permute.xlu0 %5567
        %5569 = vrot.lane.b32.xlu0 %v4864, 32
        %v5570 = vpop.permute.xlu0 %5569
        %5575 = vrot.lane.b32.xlu0 %v5040, 40
        %v5576 = vpop.permute.xlu0 %5575
        %5577 = vrot.lane.b32.xlu0 %v5088, 40
        %v5578 = vpop.permute.xlu0 %5577
        %5583 = vrot.lane.b32.xlu0 %v5264, 48
        %v5584 = vpop.permute.xlu0 %5583
        %5585 = vrot.lane.b32.xlu0 %v5312, 48
        %v5586 = vpop.permute.xlu0 %5585
        %5591 = vrot.lane.b32.xlu0 %v5488, 56
        %v5592 = vpop.permute.xlu0 %5591
        %5593 = vrot.lane.b32.xlu0 %v5536, 56
        %v5594 = vpop.permute.xlu0 %5593
        %v5597 = vsel %vm3752, %v3920, %v5544
        %v5598 = vsel %vm3752, %v3966, %v5546
        %vm5599 = vcmask 130048
        %v5600 = vsel %vm5599, %v5597, %v5552
        %v5601 = vsel %vm5599, %v5598, %v5554
        %vm5602 = vcmask 195584
        %v5603 = vsel %vm5602, %v5600, %v5560
        %v5604 = vsel %vm5602, %v5601, %v5562
        %v5605 = vsel %vm3543, %v5603, %v5568
        %v5606 = vsel %vm3543, %v5604, %v5570
        %vm5607 = vcmask 326656
        %v5608 = vsel %vm5607, %v5605, %v5576
        %v5609 = vsel %vm5607, %v5606, %v5578
        %vm5610 = vcmask 392192
        %v5611 = vsel %vm5610, %v5608, %v5584
        %v5612 = vsel %vm5610, %v5609, %v5586
        %vm5613 = vcmask 457728
        %v5614 = vsel %vm5613, %v5611, %v5592
        %v5615 = vsel %vm5613, %v5612, %v5594
        %v5618 = vcombine.low %v5614, %v5615
        %v5620 = vpack.c.bf16 %v5618, %v5618
        %s5621 = smul.u32 %s3623, 8
        %s5622 = smul.addr %s5621, 4
        %s5623 = scalar_lea.vmem [#allocation14], %s5622
        %v5624 = vld [vmem:[%s5623] sm:$0xf]
        %v5625 = vld [vmem:[%s5623 + $0x4] sm:$0xf]
        %v5626 = vld [vmem:[%s5623 + $0x8] sm:$0xf]
        %v5627 = vld [vmem:[%s5623 + $0xc] sm:$0xf]
        %v5628 = vld [vmem:[%s5623 + $0x10] sm:$0xf]
        %v5629 = vld [vmem:[%s5623 + $0x14] sm:$0xf]
        %v5630 = vld [vmem:[%s5623 + $0x18] sm:$0xf]
        %v5631 = vld [vmem:[%s5623 + $0x1c] sm:$0xf]
        %s5632 = scalar_lea.vmem [#allocation15], %s3623
        %v5633 = vld [vmem:[%s5632] sm:$0x1]
        %v5635 = vlaneseq
        %v5636 = vshrl.u32 %v5635, 7
        %v5637 = vsub.s32 0, %v5636
        %v5638 = vrot.slane %v5633, %v5637
        %v5648 = vunpack.c.l.b16 %v5624
        %v5649 = vunpack.c.l.b16 %v5625
        %v5650 = vunpack.c.l.b16 %v5626
        %v5651 = vunpack.c.l.b16 %v5627
        %v5652 = vunpack.c.l.b16 %v5628
        %v5653 = vunpack.c.l.b16 %v5629
        %v5654 = vunpack.c.l.b16 %v5630
        %v5655 = vunpack.c.l.b16 %v5631
        %v5656 = vpack.c.b16 %v5649, %v5648
        %v5657 = vpack.c.b16 %v5651, %v5650
        %v5658 = vpack.c.b16 %v5653, %v5652
        %v5659 = vpack.c.b16 %v5655, %v5654
        %v5665 = vsel %vm2878, %v5620, 0
        %5667 = vmatprep.subr.bf16.mxu0 0
        %5668 = vmatpush1.bf16.msra.mxu0 %v5656
        %5669 = vmatprep.subr.bf16.mxu0 0
        %5670 = vmatpush1.bf16.msra.mxu0 %v5657
        %5671 = vmatprep.subr.bf16.mxu0 0
        %5672 = vmatpush1.bf16.msra.mxu0 %v5658
        %5673 = vmatprep.subr.bf16.mxu0 0
        %5674 = vmatpush1.bf16.msra.mxu0 %v5659
        %5675 = vmatprep.subr.bf16.mxu0 0
        %5676 = vmatpush1.bf16.msra.mxu0 0
        %5677 = vmatprep.subr.bf16.mxu0 0
        %5678 = vmatpush1.bf16.msra.mxu0 0
        %5679 = vmatprep.subr.bf16.mxu0 0
        %5680 = vmatpush1.bf16.msra.mxu0 0
        %5681 = vmatprep.subr.bf16.mxu0 0
        %5682 = vmatpush1.bf16.msra.mxu0 0
        %5683 = vmatprep.subr.bf16.mxu0 0
        %5684 = vmatpush1.bf16.msra.mxu0 0
        %5685 = vmatprep.subr.bf16.mxu0 0
        %5686 = vmatpush1.bf16.msra.mxu0 0
        %5687 = vmatprep.subr.bf16.mxu0 0
        %5688 = vmatpush1.bf16.msra.mxu0 0
        %5689 = vmatprep.subr.bf16.mxu0 0
        %5690 = vmatpush1.bf16.msra.mxu0 0
        %5691 = vmatprep.subr.bf16.mxu0 0
        %5692 = vmatpush1.bf16.msra.mxu0 0
        %5693 = vmatprep.subr.bf16.mxu0 0
        %5694 = vmatpush1.bf16.msra.mxu0 0
        %5695 = vmatprep.subr.bf16.mxu0 0
        %5696 = vmatpush1.bf16.msra.mxu0 0
        %5697 = vmatprep.subr.bf16.mxu0 0
        %5698 = vmatpush1.bf16.msra.mxu0 0
        %5699 = vmatprep.mubr.bf16.mxu0 0
        %5700 = vmatmul.mubr.bf16.gmra.mrb[0].mxu0 %v5665
        %v5701 = vpop.f32.mrb[0].mxu0
        %v5702 = vadd.f32 %v5638, %v5701
        %v5703 = vpop.f32.mrb[0].mxu0
        %v5704 = vpop.f32.mrb[0].mxu0
        %v5705 = vpop.f32.mrb[0].mxu0
        %5706 = vdwg.mxu0
        %s5707 = scalar_lea.vmem [#allocation17], %s3623
        %v5708 = vld [vmem:[%s5707] sm:$0x1]
        %s5709 = scalar_lea.vmem [#allocation18], %s3623
        %v5710 = vld [vmem:[%s5709] sm:$0x1]
        %v5711 = vadd.f32 %v5702, %v3628
        %v5712 = vsel %vm2878, %v5711, 0.0
        %5713 = vadd.xlane.f32.xlu0 %v5712
        %v5714 = vpop.xlane.xlu0 %5713
        %v5715 = vrcp.pop 64.0
        %v5716 = vmul.f32 %v5714, %v5715
        %v5717 = vsub.f32 %v5711, %v5716
        %v5718 = vmul.f32 %v5717, %v5717
        %v5719 = vsel %vm2878, %v5718, 0.0
        %5720 = vadd.xlane.f32.xlu0 %v5719
        %v5721 = vpop.xlane.xlu0 %5720
        %v5722 = vmul.f32 %v5721, %v5715
        %v5723 = vadd.f32 %v5722, 1e-05
        %v5724 = vrsqrt.pop %v5723
        %v5725 = vmul.f32 %v5717, %v5724
        %v5727 = vlaneseq
        %v5728 = vshrl.u32 %v5727, 7
        %v5729 = vsub.s32 0, %v5728
        %v5730 = vrot.slane %v5708, %v5729
        %v5732 = vmul.f32 %v5725, %v5730
        %v5734 = vlaneseq
        %v5735 = vshrl.u32 %v5734, 7
        %v5736 = vsub.s32 0, %v5735
        %v5737 = vrot.slane %v5710, %v5736
        %v5739 = vadd.f32 %v5732, %v5737
        %v5740 = vpack.c.bf16 %v5739, %v5739
        %s5741 = smul.addr %s5621, 4
        %s5742 = scalar_lea.vmem [#allocation20], %s5741
        %v5743 = vld [vmem:[%s5742] sm:$0xf]
        %v5744 = vld [vmem:[%s5742 + $0x4] sm:$0xf]
        %v5745 = vld [vmem:[%s5742 + $0x8] sm:$0xf]
        %v5746 = vld [vmem:[%s5742 + $0xc] sm:$0xf]
        %v5747 = vld [vmem:[%s5742 + $0x10] sm:$0xf]
        %v5748 = vld [vmem:[%s5742 + $0x14] sm:$0xf]
        %v5749 = vld [vmem:[%s5742 + $0x18] sm:$0xf]
        %v5750 = vld [vmem:[%s5742 + $0x1c] sm:$0xf]
        %s5751 = scalar_lea.vmem [#allocation21], %s3623
        %v5752 = vld [vmem:[%s5751] sm:$0x1]
        %v5754 = vlaneseq
        %v5755 = vshrl.u32 %v5754, 7
        %v5756 = vsub.s32 0, %v5755
        %v5757 = vrot.slane %v5752, %v5756
        %v5767 = vunpack.c.l.b16 %v5743
        %v5768 = vunpack.c.l.b16 %v5744
        %v5769 = vunpack.c.l.b16 %v5745
        %v5770 = vunpack.c.l.b16 %v5746
        %v5771 = vunpack.c.l.b16 %v5747
        %v5772 = vunpack.c.l.b16 %v5748
        %v5773 = vunpack.c.l.b16 %v5749
        %v5774 = vunpack.c.l.b16 %v5750
        %v5775 = vpack.c.b16 %v5768, %v5767
        %v5776 = vpack.c.b16 %v5770, %v5769
        %v5777 = vpack.c.b16 %v5772, %v5771
        %v5778 = vpack.c.b16 %v5774, %v5773
        %v5784 = vsel %vm2878, %v5740, 0
        %5786 = vmatprep.subr.bf16.mxu0 0
        %5787 = vmatpush1.bf16.msra.mxu0 %v5775
        %5788 = vmatprep.subr.bf16.mxu0 0
        %5789 = vmatpush1.bf16.msra.mxu0 %v5776
        %5790 = vmatprep.subr.bf16.mxu0 0
        %5791 = vmatpush1.bf16.msra.mxu0 %v5777
        %5792 = vmatprep.subr.bf16.mxu0 0
        %5793 = vmatpush1.bf16.msra.mxu0 %v5778
        %5794 = vmatprep.subr.bf16.mxu0 0
        %5795 = vmatpush1.bf16.msra.mxu0 0
        %5796 = vmatprep.subr.bf16.mxu0 0
        %5797 = vmatpush1.bf16.msra.mxu0 0
        %5798 = vmatprep.subr.bf16.mxu0 0
        %5799 = vmatpush1.bf16.msra.mxu0 0
        %5800 = vmatprep.subr.bf16.mxu0 0
        %5801 = vmatpush1.bf16.msra.mxu0 0
        %5802 = vmatprep.subr.bf16.mxu0 0
        %5803 = vmatpush1.bf16.msra.mxu0 0
        %5804 = vmatprep.subr.bf16.mxu0 0
        %5805 = vmatpush1.bf16.msra.mxu0 0
        %5806 = vmatprep.subr.bf16.mxu0 0
        %5807 = vmatpush1.bf16.msra.mxu0 0
        %5808 = vmatprep.subr.bf16.mxu0 0
        %5809 = vmatpush1.bf16.msra.mxu0 0
        %5810 = vmatprep.subr.bf16.mxu0 0
        %5811 = vmatpush1.bf16.msra.mxu0 0
        %5812 = vmatprep.subr.bf16.mxu0 0
        %5813 = vmatpush1.bf16.msra.mxu0 0
        %5814 = vmatprep.subr.bf16.mxu0 0
        %5815 = vmatpush1.bf16.msra.mxu0 0
        %5816 = vmatprep.subr.bf16.mxu0 0
        %5817 = vmatpush1.bf16.msra.mxu0 0
        %5818 = vmatprep.mubr.bf16.mxu0 0
        %5819 = vmatmul.mubr.bf16.gmra.mrb[0].mxu0 %v5784
        %v5820 = vpop.f32.mrb[0].mxu0
        %v5821 = vadd.f32 %v5757, %v5820
        %v5822 = vpop.f32.mrb[0].mxu0
        %v5823 = vpop.f32.mrb[0].mxu0
        %v5824 = vpop.f32.mrb[0].mxu0
        %5825 = vdwg.mxu0
        %s5826 = scalar_lea.vmem [#allocation2], %s3630
        %v5827 = vld [vmem:[%s5826] sm:$0xff]
        %v5828 = vld [vmem:[%s5826 + $0x8] sm:$0xff]
        %v5830 = vcombine.high %v5821, %v5821
        %v5832 = vpack.c.bf16 %v5821, %v5821
        %v5833 = vpack.c.bf16 %v5830, %v5830
        %v5834 = vpack.c.bf16 %v5827, %v5827
        %v5835 = vpack.c.bf16 %v5828, %v5828
        %v5837 = vsel %vm3752, %v5832, 0
        %v5840 = vsel %vm3752, %v5834, 0
        %5842 = vmatprep.subr.bf16.mxu0 0
        %5843 = vmatpush1.bf16.xpose.msra.mxu0 %v5840
        %5844 = vmatprep.subr.bf16.mxu0 0
        %5845 = vmatpush1.bf16.xpose.msra.mxu0 0
        %5846 = vmatprep.subr.bf16.mxu0 0
        %5847 = vmatpush1.bf16.xpose.msra.mxu0 0
        %5848 = vmatprep.subr.bf16.mxu0 0
        %5849 = vmatpush1.bf16.xpose.msra.mxu0 0
        %5850 = vmatprep.subr.bf16.mxu0 0
        %5851 = vmatpush1.bf16.xpose.msra.mxu0 0
        %5852 = vmatprep.subr.bf16.mxu0 0
        %5853 = vmatpush1.bf16.xpose.msra.mxu0 0
        %5854 = vmatprep.subr.bf16.mxu0 0
        %5855 = vmatpush1.bf16.xpose.msra.mxu0 0
        %5856 = vmatprep.subr.bf16.mxu0 0
        %5857 = vmatpush1.bf16.xpose.msra.mxu0 0
        %5858 = vmatprep.subr.bf16.mxu0 0
        %5859 = vmatpush1.bf16.xpose.msra.mxu0 0
        %5860 = vmatprep.subr.bf16.mxu0 0
        %5861 = vmatpush1.bf16.xpose.msra.mxu0 0
        %5862 = vmatprep.subr.bf16.mxu0 0
        %5863 = vmatpush1.bf16.xpose.msra.mxu0 0
        %5864 = vmatprep.subr.bf16.mxu0 0
        %5865 = vmatpush1.bf16.xpose.msra.mxu0 0
        %5866 = vmatprep.subr.bf16.mxu0 0
        %5867 = vmatpush1.bf16.xpose.msra.mxu0 0
        %5868 = vmatprep.subr.bf16.mxu0 0
        %5869 = vmatpush1.bf16.xpose.msra.mxu0 0
        %5870 = vmatprep.subr.bf16.mxu0 0
        %5871 = vmatpush1.bf16.xpose.msra.mxu0 0
        %5872 = vmatprep.subr.bf16.mxu0 0
        %5873 = vmatpush1.bf16.xpose.msra.mxu0 0
        %5874 = vmatprep.mubr.bf16.mxu0 0
        %5875 = vmatmul.mubr.bf16.gmra.mrb[0].mxu0 %v5837
        %v5876 = vpop.f32.mrb[0].mxu0
        %v5877 = vadd.f32 0.0, %v5876
        %v5878 = vpop.f32.mrb[0].mxu0
        %v5879 = vpop.f32.mrb[0].mxu0
        %v5880 = vpop.f32.mrb[0].mxu0
        %5881 = vdwg.mxu0
        %v5883 = vsel %vm3752, %v5833, 0
        %v5886 = vsel %vm3752, %v5835, 0
        %5888 = vmatprep.subr.bf16.mxu0 0
        %5889 = vmatpush1.bf16.xpose.msra.mxu0 %v5886
        %5890 = vmatprep.subr.bf16.mxu0 0
        %5891 = vmatpush1.bf16.xpose.msra.mxu0 0
        %5892 = vmatprep.subr.bf16.mxu0 0
        %5893 = vmatpush1.bf16.xpose.msra.mxu0 0
        %5894 = vmatprep.subr.bf16.mxu0 0
        %5895 = vmatpush1.bf16.xpose.msra.mxu0 0
        %5896 = vmatprep.subr.bf16.mxu0 0
        %5897 = vmatpush1.bf16.xpose.msra.mxu0 0
        %5898 = vmatprep.subr.bf16.mxu0 0
        %5899 = vmatpush1.bf16.xpose.msra.mxu0 0
        %5900 = vmatprep.subr.bf16.mxu0 0
        %5901 = vmatpush1.bf16.xpose.msra.mxu0 0
        %5902 = vmatprep.subr.bf16.mxu0 0
        %5903 = vmatpush1.bf16.xpose.msra.mxu0 0
        %5904 = vmatprep.subr.bf16.mxu0 0
        %5905 = vmatpush1.bf16.xpose.msra.mxu0 0
        %5906 = vmatprep.subr.bf16.mxu0 0
        %5907 = vmatpush1.bf16.xpose.msra.mxu0 0
        %5908 = vmatprep.subr.bf16.mxu0 0
        %5909 = vmatpush1.bf16.xpose.msra.mxu0 0
        %5910 = vmatprep.subr.bf16.mxu0 0
        %5911 = vmatpush1.bf16.xpose.msra.mxu0 0
        %5912 = vmatprep.subr.bf16.mxu0 0
        %5913 = vmatpush1.bf16.xpose.msra.mxu0 0
        %5914 = vmatprep.subr.bf16.mxu0 0
        %5915 = vmatpush1.bf16.xpose.msra.mxu0 0
        %5916 = vmatprep.subr.bf16.mxu0 0
        %5917 = vmatpush1.bf16.xpose.msra.mxu0 0
        %5918 = vmatprep.subr.bf16.mxu0 0
        %5919 = vmatpush1.bf16.xpose.msra.mxu0 0
        %5920 = vmatprep.mubr.bf16.mxu0 0
        %5921 = vmatmul.mubr.bf16.gmra.mrb[0].mxu0 %v5883
        %v5922 = vpop.f32.mrb[0].mxu0
        %v5923 = vadd.f32 0.0, %v5922
        %v5924 = vpop.f32.mrb[0].mxu0
        %v5925 = vpop.f32.mrb[0].mxu0
        %v5926 = vpop.f32.mrb[0].mxu0
        %5927 = vdwg.mxu0
        %v5928 = vmul.f32 %v5877, 0.35355338
        %v5929 = vmul.f32 %v5923, 0.35355338
        %vm5930 = vcmask 60416
        %v5931 = vsel %vm5930, %v5928, -inf
        %5932 = vmax.xlane.f32.xlu0 %v5931
        %v5933 = vpop.xlane.xlu0 %5932
        %v5934 = vsel %vm5930, %v5929, -inf
        %5935 = vmax.xlane.f32.xlu0 %v5934
        %v5936 = vpop.xlane.xlu0 %5935
        %v5937 = vsub.f32 %v5928, %v5933
        %v5938 = vsub.f32 %v5929, %v5936
        %v5939 = vmul.f32 %v5937, 1.442695
        %v5940 = vpow.pop %v5939
        %v5941 = vmul.f32 %v5938, 1.442695
        %v5942 = vpow.pop %v5941
        %v5943 = vsel %vm5930, %v5940, 0.0
        %5944 = vadd.xlane.f32.xlu0 %v5943
        %v5945 = vpop.xlane.xlu0 %5944
        %v5946 = vsel %vm5930, %v5942, 0.0
        %5947 = vadd.xlane.f32.xlu0 %v5946
        %v5948 = vpop.xlane.xlu0 %5947
        %v5949 = vrcp.pop %v5945
        %v5950 = vrcp.pop %v5948
        %v5951 = vmul.f32 %v5940, %v5949
        %v5952 = vmul.f32 %v5942, %v5950
        %v5953 = vpack.c.bf16 %v5951, %v5951
        %v5954 = vpack.c.bf16 %v5952, %v5952
        %5956 = vrot.lane.b32.xlu0 %v5834, 64
        %v5957 = vpop.permute.xlu0 %5956
        %v5959 = vsel %vm3752, %v5953, 0
        %vm5961 = vcmask 1043456
        %v5963 = vsel %vm5961, %v5957, 0
        %5965 = vmatprep.subr.bf16.mxu0 0
        %5966 = vmatpush1.bf16.msra.mxu0 %v5963
        %5967 = vmatprep.subr.bf16.mxu0 0
        %5968 = vmatpush1.bf16.msra.mxu0 0
        %5969 = vmatprep.subr.bf16.mxu0 0
        %5970 = vmatpush1.bf16.msra.mxu0 0
        %5971 = vmatprep.subr.bf16.mxu0 0
        %5972 = vmatpush1.bf16.msra.mxu0 0
        %5973 = vmatprep.subr.bf16.mxu0 0
        %5974 = vmatpush1.bf16.msra.mxu0 0
        %5975 = vmatprep.subr.bf16.mxu0 0
        %5976 = vmatpush1.bf16.msra.mxu0 0
        %5977 = vmatprep.subr.bf16.mxu0 0
        %5978 = vmatpush1.bf16.msra.mxu0 0
        %5979 = vmatprep.subr.bf16.mxu0 0
        %5980 = vmatpush1.bf16.msra.mxu0 0
        %5981 = vmatprep.subr.bf16.mxu0 0
        %5982 = vmatpush1.bf16.msra.mxu0 0
        %5983 = vmatprep.subr.bf16.mxu0 0
        %5984 = vmatpush1.bf16.msra.mxu0 0
        %5985 = vmatprep.subr.bf16.mxu0 0
        %5986 = vmatpush1.bf16.msra.mxu0 0
        %5987 = vmatprep.subr.bf16.mxu0 0
        %5988 = vmatpush1.bf16.msra.mxu0 0
        %5989 = vmatprep.subr.bf16.mxu0 0
        %5990 = vmatpush1.bf16.msra.mxu0 0
        %5991 = vmatprep.subr.bf16.mxu0 0
        %5992 = vmatpush1.bf16.msra.mxu0 0
        %5993 = vmatprep.subr.bf16.mxu0 0
        %5994 = vmatpush1.bf16.msra.mxu0 0
        %5995 = vmatprep.subr.bf16.mxu0 0
        %5996 = vmatpush1.bf16.msra.mxu0 0
        %5997 = vmatprep.mubr.bf16.mxu0 0
        %5998 = vmatmul.mubr.bf16.gmra.mrb[0].mxu0 %v5959
        %v5999 = vpop.f32.mrb[0].mxu0
        %v6000 = vadd.f32 0.0, %v5999
        %v6001 = vpop.f32.mrb[0].mxu0
        %v6002 = vpop.f32.mrb[0].mxu0
        %v6003 = vpop.f32.mrb[0].mxu0
        %6004 = vdwg.mxu0
        %6006 = vrot.lane.b32.xlu0 %v5835, 64
        %v6007 = vpop.permute.xlu0 %6006
        %v6009 = vsel %vm3752, %v5954, 0
        %v6012 = vsel %vm5961, %v6007, 0
        %6014 = vmatprep.subr.bf16.mxu0 0
        %6015 = vmatpush1.bf16.msra.mxu0 %v6012
        %6016 = vmatprep.subr.bf16.mxu0 0
        %6017 = vmatpush1.bf16.msra.mxu0 0
        %6018 = vmatprep.subr.bf16.mxu0 0
        %6019 = vmatpush1.bf16.msra.mxu0 0
        %6020 = vmatprep.subr.bf16.mxu0 0
        %6021 = vmatpush1.bf16.msra.mxu0 0
        %6022 = vmatprep.subr.bf16.mxu0 0
        %6023 = vmatpush1.bf16.msra.mxu0 0
        %6024 = vmatprep.subr.bf16.mxu0 0
        %6025 = vmatpush1.bf16.msra.mxu0 0
        %6026 = vmatprep.subr.bf16.mxu0 0
        %6027 = vmatpush1.bf16.msra.mxu0 0
        %6028 = vmatprep.subr.bf16.mxu0 0
        %6029 = vmatpush1.bf16.msra.mxu0 0
        %6030 = vmatprep.subr.bf16.mxu0 0
        %6031 = vmatpush1.bf16.msra.mxu0 0
        %6032 = vmatprep.subr.bf16.mxu0 0
        %6033 = vmatpush1.bf16.msra.mxu0 0
        %6034 = vmatprep.subr.bf16.mxu0 0
        %6035 = vmatpush1.bf16.msra.mxu0 0
        %6036 = vmatprep.subr.bf16.mxu0 0
        %6037 = vmatpush1.bf16.msra.mxu0 0
        %6038 = vmatprep.subr.bf16.mxu0 0
        %6039 = vmatpush1.bf16.msra.mxu0 0
        %6040 = vmatprep.subr.bf16.mxu0 0
        %6041 = vmatpush1.bf16.msra.mxu0 0
        %6042 = vmatprep.subr.bf16.mxu0 0
        %6043 = vmatpush1.bf16.msra.mxu0 0
        %6044 = vmatprep.subr.bf16.mxu0 0
        %6045 = vmatpush1.bf16.msra.mxu0 0
        %6046 = vmatprep.mubr.bf16.mxu0 0
        %6047 = vmatmul.mubr.bf16.gmra.mrb[0].mxu0 %v6009
        %v6048 = vpop.f32.mrb[0].mxu0
        %v6049 = vadd.f32 0.0, %v6048
        %v6050 = vpop.f32.mrb[0].mxu0
        %v6051 = vpop.f32.mrb[0].mxu0
        %v6052 = vpop.f32.mrb[0].mxu0
        %6053 = vdwg.mxu0
        %6055 = vrot.lane.b32.xlu0 %v5832, 120
        %v6056 = vpop.permute.xlu0 %6055
        %6057 = vrot.lane.b32.xlu0 %v5834, 120
        %v6058 = vpop.permute.xlu0 %6057
        %v6060 = vsel %vm3752, %v6056, 0
        %v6063 = vsel %vm3752, %v6058, 0
        %6065 = vmatprep.subr.bf16.mxu0 0
        %6066 = vmatpush1.bf16.xpose.msra.mxu0 %v6063
        %6067 = vmatprep.subr.bf16.mxu0 0
        %6068 = vmatpush1.bf16.xpose.msra.mxu0 0
        %6069 = vmatprep.subr.bf16.mxu0 0
        %6070 = vmatpush1.bf16.xpose.msra.mxu0 0
        %6071 = vmatprep.subr.bf16.mxu0 0
        %6072 = vmatpush1.bf16.xpose.msra.mxu0 0
        %6073 = vmatprep.subr.bf16.mxu0 0
        %6074 = vmatpush1.bf16.xpose.msra.mxu0 0
        %6075 = vmatprep.subr.bf16.mxu0 0
        %6076 = vmatpush1.bf16.xpose.msra.mxu0 0
        %6077 = vmatprep.subr.bf16.mxu0 0
        %6078 = vmatpush1.bf16.xpose.msra.mxu0 0
        %6079 = vmatprep.subr.bf16.mxu0 0
        %6080 = vmatpush1.bf16.xpose.msra.mxu0 0
        %6081 = vmatprep.subr.bf16.mxu0 0
        %6082 = vmatpush1.bf16.xpose.msra.mxu0 0
        %6083 = vmatprep.subr.bf16.mxu0 0
        %6084 = vmatpush1.bf16.xpose.msra.mxu0 0
        %6085 = vmatprep.subr.bf16.mxu0 0
        %6086 = vmatpush1.bf16.xpose.msra.mxu0 0
        %6087 = vmatprep.subr.bf16.mxu0 0
        %6088 = vmatpush1.bf16.xpose.msra.mxu0 0
        %6089 = vmatprep.subr.bf16.mxu0 0
        %6090 = vmatpush1.bf16.xpose.msra.mxu0 0
        %6091 = vmatprep.subr.bf16.mxu0 0
        %6092 = vmatpush1.bf16.xpose.msra.mxu0 0
        %6093 = vmatprep.subr.bf16.mxu0 0
        %6094 = vmatpush1.bf16.xpose.msra.mxu0 0
        %6095 = vmatprep.subr.bf16.mxu0 0
        %6096 = vmatpush1.bf16.xpose.msra.mxu0 0
        %6097 = vmatprep.mubr.bf16.mxu0 0
        %6098 = vmatmul.mubr.bf16.gmra.mrb[0].mxu0 %v6060
        %v6099 = vpop.f32.mrb[0].mxu0
        %v6100 = vadd.f32 0.0, %v6099
        %v6101 = vpop.f32.mrb[0].mxu0
        %v6102 = vpop.f32.mrb[0].mxu0
        %v6103 = vpop.f32.mrb[0].mxu0
        %6104 = vdwg.mxu0
        %6106 = vrot.lane.b32.xlu0 %v5833, 120
        %v6107 = vpop.permute.xlu0 %6106
        %6108 = vrot.lane.b32.xlu0 %v5835, 120
        %v6109 = vpop.permute.xlu0 %6108
        %v6111 = vsel %vm3752, %v6107, 0
        %v6114 = vsel %vm3752, %v6109, 0
        %6116 = vmatprep.subr.bf16.mxu0 0
        %6117 = vmatpush1.bf16.xpose.msra.mxu0 %v6114
        %6118 = vmatprep.subr.bf16.mxu0 0
        %6119 = vmatpush1.bf16.xpose.msra.mxu0 0
        %6120 = vmatprep.subr.bf16.mxu0 0
        %6121 = vmatpush1.bf16.xpose.msra.mxu0 0
        %6122 = vmatprep.subr.bf16.mxu0 0
        %6123 = vmatpush1.bf16.xpose.msra.mxu0 0
        %6124 = vmatprep.subr.bf16.mxu0 0
        %6125 = vmatpush1.bf16.xpose.msra.mxu0 0
        %6126 = vmatprep.subr.bf16.mxu0 0
        %6127 = vmatpush1.bf16.xpose.msra.mxu0 0
        %6128 = vmatprep.subr.bf16.mxu0 0
        %6129 = vmatpush1.bf16.xpose.msra.mxu0 0
        %6130 = vmatprep.subr.bf16.mxu0 0
        %6131 = vmatpush1.bf16.xpose.msra.mxu0 0
        %6132 = vmatprep.subr.bf16.mxu0 0
        %6133 = vmatpush1.bf16.xpose.msra.mxu0 0
        %6134 = vmatprep.subr.bf16.mxu0 0
        %6135 = vmatpush1.bf16.xpose.msra.mxu0 0
        %6136 = vmatprep.subr.bf16.mxu0 0
        %6137 = vmatpush1.bf16.xpose.msra.mxu0 0
        %6138 = vmatprep.subr.bf16.mxu0 0
        %6139 = vmatpush1.bf16.xpose.msra.mxu0 0
        %6140 = vmatprep.subr.bf16.mxu0 0
        %6141 = vmatpush1.bf16.xpose.msra.mxu0 0
        %6142 = vmatprep.subr.bf16.mxu0 0
        %6143 = vmatpush1.bf16.xpose.msra.mxu0 0
        %6144 = vmatprep.subr.bf16.mxu0 0
        %6145 = vmatpush1.bf16.xpose.msra.mxu0 0
        %6146 = vmatprep.subr.bf16.mxu0 0
        %6147 = vmatpush1.bf16.xpose.msra.mxu0 0
        %6148 = vmatprep.mubr.bf16.mxu0 0
        %6149 = vmatmul.mubr.bf16.gmra.mrb[0].mxu0 %v6111
        %v6150 = vpop.f32.mrb[0].mxu0
        %v6151 = vadd.f32 0.0, %v6150
        %v6152 = vpop.f32.mrb[0].mxu0
        %v6153 = vpop.f32.mrb[0].mxu0
        %v6154 = vpop.f32.mrb[0].mxu0
        %6155 = vdwg.mxu0
        %v6156 = vmul.f32 %v6100, 0.35355338
        %v6157 = vmul.f32 %v6151, 0.35355338
        %v6158 = vsel %vm5930, %v6156, -inf
        %6159 = vmax.xlane.f32.xlu0 %v6158
        %v6160 = vpop.xlane.xlu0 %6159
        %v6161 = vsel %vm5930, %v6157, -inf
        %6162 = vmax.xlane.f32.xlu0 %v6161
        %v6163 = vpop.xlane.xlu0 %6162
        %v6164 = vsub.f32 %v6156, %v6160
        %v6165 = vsub.f32 %v6157, %v6163
        %v6166 = vmul.f32 %v6164, 1.442695
        %v6167 = vpow.pop %v6166
        %v6168 = vmul.f32 %v6165, 1.442695
        %v6169 = vpow.pop %v6168
        %v6170 = vsel %vm5930, %v6167, 0.0
        %6171 = vadd.xlane.f32.xlu0 %v6170
        %v6172 = vpop.xlane.xlu0 %6171
        %v6173 = vsel %vm5930, %v6169, 0.0
        %6174 = vadd.xlane.f32.xlu0 %v6173
        %v6175 = vpop.xlane.xlu0 %6174
        %v6176 = vrcp.pop %v6172
        %v6177 = vrcp.pop %v6175
        %v6178 = vmul.f32 %v6167, %v6176
        %v6179 = vmul.f32 %v6169, %v6177
        %v6180 = vpack.c.bf16 %v6178, %v6178
        %v6181 = vpack.c.bf16 %v6179, %v6179
        %6182 = vrot.lane.b32.xlu0 %v5834, 56
        %v6183 = vpop.permute.xlu0 %6182
        %v6185 = vsel %vm3752, %v6180, 0
        %v6188 = vsel %vm5961, %v6183, 0
        %6190 = vmatprep.subr.bf16.mxu0 0
        %6191 = vmatpush1.bf16.msra.mxu0 %v6188
        %6192 = vmatprep.subr.bf16.mxu0 0
        %6193 = vmatpush1.bf16.msra.mxu0 0
        %6194 = vmatprep.subr.bf16.mxu0 0
        %6195 = vmatpush1.bf16.msra.mxu0 0
        %6196 = vmatprep.subr.bf16.mxu0 0
        %6197 = vmatpush1.bf16.msra.mxu0 0
        %6198 = vmatprep.subr.bf16.mxu0 0
        %6199 = vmatpush1.bf16.msra.mxu0 0
        %6200 = vmatprep.subr.bf16.mxu0 0
        %6201 = vmatpush1.bf16.msra.mxu0 0
        %6202 = vmatprep.subr.bf16.mxu0 0
        %6203 = vmatpush1.bf16.msra.mxu0 0
        %6204 = vmatprep.subr.bf16.mxu0 0
        %6205 = vmatpush1.bf16.msra.mxu0 0
        %6206 = vmatprep.subr.bf16.mxu0 0
        %6207 = vmatpush1.bf16.msra.mxu0 0
        %6208 = vmatprep.subr.bf16.mxu0 0
        %6209 = vmatpush1.bf16.msra.mxu0 0
        %6210 = vmatprep.subr.bf16.mxu0 0
        %6211 = vmatpush1.bf16.msra.mxu0 0
        %6212 = vmatprep.subr.bf16.mxu0 0
        %6213 = vmatpush1.bf16.msra.mxu0 0
        %6214 = vmatprep.subr.bf16.mxu0 0
        %6215 = vmatpush1.bf16.msra.mxu0 0
        %6216 = vmatprep.subr.bf16.mxu0 0
        %6217 = vmatpush1.bf16.msra.mxu0 0
        %6218 = vmatprep.subr.bf16.mxu0 0
        %6219 = vmatpush1.bf16.msra.mxu0 0
        %6220 = vmatprep.subr.bf16.mxu0 0
        %6221 = vmatpush1.bf16.msra.mxu0 0
        %6222 = vmatprep.mubr.bf16.mxu0 0
        %6223 = vmatmul.mubr.bf16.gmra.mrb[0].mxu0 %v6185
        %v6224 = vpop.f32.mrb[0].mxu0
        %v6225 = vadd.f32 0.0, %v6224
        %v6226 = vpop.f32.mrb[0].mxu0
        %v6227 = vpop.f32.mrb[0].mxu0
        %v6228 = vpop.f32.mrb[0].mxu0
        %6229 = vdwg.mxu0
        %6230 = vrot.lane.b32.xlu0 %v5835, 56
        %v6231 = vpop.permute.xlu0 %6230
        %v6233 = vsel %vm3752, %v6181, 0
        %v6236 = vsel %vm5961, %v6231, 0
        %6238 = vmatprep.subr.bf16.mxu0 0
        %6239 = vmatpush1.bf16.msra.mxu0 %v6236
        %6240 = vmatprep.subr.bf16.mxu0 0
        %6241 = vmatpush1.bf16.msra.mxu0 0
        %6242 = vmatprep.subr.bf16.mxu0 0
        %6243 = vmatpush1.bf16.msra.mxu0 0
        %6244 = vmatprep.subr.bf16.mxu0 0
        %6245 = vmatpush1.bf16.msra.mxu0 0
        %6246 = vmatprep.subr.bf16.mxu0 0
        %6247 = vmatpush1.bf16.msra.mxu0 0
        %6248 = vmatprep.subr.bf16.mxu0 0
        %6249 = vmatpush1.bf16.msra.mxu0 0
        %6250 = vmatprep.subr.bf16.mxu0 0
        %6251 = vmatpush1.bf16.msra.mxu0 0
        %6252 = vmatprep.subr.bf16.mxu0 0
        %6253 = vmatpush1.bf16.msra.mxu0 0
        %6254 = vmatprep.subr.bf16.mxu0 0
        %6255 = vmatpush1.bf16.msra.mxu0 0
        %6256 = vmatprep.subr.bf16.mxu0 0
        %6257 = vmatpush1.bf16.msra.mxu0 0
        %6258 = vmatprep.subr.bf16.mxu0 0
        %6259 = vmatpush1.bf16.msra.mxu0 0
        %6260 = vmatprep.subr.bf16.mxu0 0
        %6261 = vmatpush1.bf16.msra.mxu0 0
        %6262 = vmatprep.subr.bf16.mxu0 0
        %6263 = vmatpush1.bf16.msra.mxu0 0
        %6264 = vmatprep.subr.bf16.mxu0 0
        %6265 = vmatpush1.bf16.msra.mxu0 0
        %6266 = vmatprep.subr.bf16.mxu0 0
        %6267 = vmatpush1.bf16.msra.mxu0 0
        %6268 = vmatprep.subr.bf16.mxu0 0
        %6269 = vmatpush1.bf16.msra.mxu0 0
        %6270 = vmatprep.mubr.bf16.mxu0 0
        %6271 = vmatmul.mubr.bf16.gmra.mrb[0].mxu0 %v6233
        %v6272 = vpop.f32.mrb[0].mxu0
        %v6273 = vadd.f32 0.0, %v6272
        %v6274 = vpop.f32.mrb[0].mxu0
        %v6275 = vpop.f32.mrb[0].mxu0
        %v6276 = vpop.f32.mrb[0].mxu0
        %6277 = vdwg.mxu0
        %6278 = vrot.lane.b32.xlu0 %v5832, 112
        %v6279 = vpop.permute.xlu0 %6278
        %6280 = vrot.lane.b32.xlu0 %v5834, 112
        %v6281 = vpop.permute.xlu0 %6280
        %v6283 = vsel %vm3752, %v6279, 0
        %v6286 = vsel %vm3752, %v6281, 0
        %6288 = vmatprep.subr.bf16.mxu0 0
        %6289 = vmatpush1.bf16.xpose.msra.mxu0 %v6286
        %6290 = vmatprep.subr.bf16.mxu0 0
        %6291 = vmatpush1.bf16.xpose.msra.mxu0 0
        %6292 = vmatprep.subr.bf16.mxu0 0
        %6293 = vmatpush1.bf16.xpose.msra.mxu0 0
        %6294 = vmatprep.subr.bf16.mxu0 0
        %6295 = vmatpush1.bf16.xpose.msra.mxu0 0
        %6296 = vmatprep.subr.bf16.mxu0 0
        %6297 = vmatpush1.bf16.xpose.msra.mxu0 0
        %6298 = vmatprep.subr.bf16.mxu0 0
        %6299 = vmatpush1.bf16.xpose.msra.mxu0 0
        %6300 = vmatprep.subr.bf16.mxu0 0
        %6301 = vmatpush1.bf16.xpose.msra.mxu0 0
        %6302 = vmatprep.subr.bf16.mxu0 0
        %6303 = vmatpush1.bf16.xpose.msra.mxu0 0
        %6304 = vmatprep.subr.bf16.mxu0 0
        %6305 = vmatpush1.bf16.xpose.msra.mxu0 0
        %6306 = vmatprep.subr.bf16.mxu0 0
        %6307 = vmatpush1.bf16.xpose.msra.mxu0 0
        %6308 = vmatprep.subr.bf16.mxu0 0
        %6309 = vmatpush1.bf16.xpose.msra.mxu0 0
        %6310 = vmatprep.subr.bf16.mxu0 0
        %6311 = vmatpush1.bf16.xpose.msra.mxu0 0
        %6312 = vmatprep.subr.bf16.mxu0 0
        %6313 = vmatpush1.bf16.xpose.msra.mxu0 0
        %6314 = vmatprep.subr.bf16.mxu0 0
        %6315 = vmatpush1.bf16.xpose.msra.mxu0 0
        %6316 = vmatprep.subr.bf16.mxu0 0
        %6317 = vmatpush1.bf16.xpose.msra.mxu0 0
        %6318 = vmatprep.subr.bf16.mxu0 0
        %6319 = vmatpush1.bf16.xpose.msra.mxu0 0
        %6320 = vmatprep.mubr.bf16.mxu0 0
        %6321 = vmatmul.mubr.bf16.gmra.mrb[0].mxu0 %v6283
        %v6322 = vpop.f32.mrb[0].mxu0
        %v6323 = vadd.f32 0.0, %v6322
        %v6324 = vpop.f32.mrb[0].mxu0
        %v6325 = vpop.f32.mrb[0].mxu0
        %v6326 = vpop.f32.mrb[0].mxu0
        %6327 = vdwg.mxu0
        %6328 = vrot.lane.b32.xlu0 %v5833, 112
        %v6329 = vpop.permute.xlu0 %6328
        %6330 = vrot.lane.b32.xlu0 %v5835, 112
        %v6331 = vpop.permute.xlu0 %6330
        %v6333 = vsel %vm3752, %v6329, 0
        %v6336 = vsel %vm3752, %v6331, 0
        %6338 = vmatprep.subr.bf16.mxu0 0
        %6339 = vmatpush1.bf16.xpose.msra.mxu0 %v6336
        %6340 = vmatprep.subr.bf16.mxu0 0
        %6341 = vmatpush1.bf16.xpose.msra.mxu0 0
        %6342 = vmatprep.subr.bf16.mxu0 0
        %6343 = vmatpush1.bf16.xpose.msra.mxu0 0
        %6344 = vmatprep.subr.bf16.mxu0 0
        %6345 = vmatpush1.bf16.xpose.msra.mxu0 0
        %6346 = vmatprep.subr.bf16.mxu0 0
        %6347 = vmatpush1.bf16.xpose.msra.mxu0 0
        %6348 = vmatprep.subr.bf16.mxu0 0
        %6349 = vmatpush1.bf16.xpose.msra.mxu0 0
        %6350 = vmatprep.subr.bf16.mxu0 0
        %6351 = vmatpush1.bf16.xpose.msra.mxu0 0
        %6352 = vmatprep.subr.bf16.mxu0 0
        %6353 = vmatpush1.bf16.xpose.msra.mxu0 0
        %6354 = vmatprep.subr.bf16.mxu0 0
        %6355 = vmatpush1.bf16.xpose.msra.mxu0 0
        %6356 = vmatprep.subr.bf16.mxu0 0
        %6357 = vmatpush1.bf16.xpose.msra.mxu0 0
        %6358 = vmatprep.subr.bf16.mxu0 0
        %6359 = vmatpush1.bf16.xpose.msra.mxu0 0
        %6360 = vmatprep.subr.bf16.mxu0 0
        %6361 = vmatpush1.bf16.xpose.msra.mxu0 0
        %6362 = vmatprep.subr.bf16.mxu0 0
        %6363 = vmatpush1.bf16.xpose.msra.mxu0 0
        %6364 = vmatprep.subr.bf16.mxu0 0
        %6365 = vmatpush1.bf16.xpose.msra.mxu0 0
        %6366 = vmatprep.subr.bf16.mxu0 0
        %6367 = vmatpush1.bf16.xpose.msra.mxu0 0
        %6368 = vmatprep.subr.bf16.mxu0 0
        %6369 = vmatpush1.bf16.xpose.msra.mxu0 0
        %6370 = vmatprep.mubr.bf16.mxu0 0
        %6371 = vmatmul.mubr.bf16.gmra.mrb[0].mxu0 %v6333
        %v6372 = vpop.f32.mrb[0].mxu0
        %v6373 = vadd.f32 0.0, %v6372
        %v6374 = vpop.f32.mrb[0].mxu0
        %v6375 = vpop.f32.mrb[0].mxu0
        %v6376 = vpop.f32.mrb[0].mxu0
        %6377 = vdwg.mxu0
        %v6378 = vmul.f32 %v6323, 0.35355338
        %v6379 = vmul.f32 %v6373, 0.35355338
        %v6380 = vsel %vm5930, %v6378, -inf
        %6381 = vmax.xlane.f32.xlu0 %v6380
        %v6382 = vpop.xlane.xlu0 %6381
        %v6383 = vsel %vm5930, %v6379, -inf
        %6384 = vmax.xlane.f32.xlu0 %v6383
        %v6385 = vpop.xlane.xlu0 %6384
        %v6386 = vsub.f32 %v6378, %v6382
        %v6387 = vsub.f32 %v6379, %v6385
        %v6388 = vmul.f32 %v6386, 1.442695
        %v6389 = vpow.pop %v6388
        %v6390 = vmul.f32 %v6387, 1.442695
        %v6391 = vpow.pop %v6390
        %v6392 = vsel %vm5930, %v6389, 0.0
        %6393 = vadd.xlane.f32.xlu0 %v6392
        %v6394 = vpop.xlane.xlu0 %6393
        %v6395 = vsel %vm5930, %v6391, 0.0
        %6396 = vadd.xlane.f32.xlu0 %v6395
        %v6397 = vpop.xlane.xlu0 %6396
        %v6398 = vrcp.pop %v6394
        %v6399 = vrcp.pop %v6397
        %v6400 = vmul.f32 %v6389, %v6398
        %v6401 = vmul.f32 %v6391, %v6399
        %v6402 = vpack.c.bf16 %v6400, %v6400
        %v6403 = vpack.c.bf16 %v6401, %v6401
        %6404 = vrot.lane.b32.xlu0 %v5834, 48
        %v6405 = vpop.permute.xlu0 %6404
        %v6407 = vsel %vm3752, %v6402, 0
        %v6410 = vsel %vm5961, %v6405, 0
        %6412 = vmatprep.subr.bf16.mxu0 0
        %6413 = vmatpush1.bf16.msra.mxu0 %v6410
        %6414 = vmatprep.subr.bf16.mxu0 0
        %6415 = vmatpush1.bf16.msra.mxu0 0
        %6416 = vmatprep.subr.bf16.mxu0 0
        %6417 = vmatpush1.bf16.msra.mxu0 0
        %6418 = vmatprep.subr.bf16.mxu0 0
        %6419 = vmatpush1.bf16.msra.mxu0 0
        %6420 = vmatprep.subr.bf16.mxu0 0
        %6421 = vmatpush1.bf16.msra.mxu0 0
        %6422 = vmatprep.subr.bf16.mxu0 0
        %6423 = vmatpush1.bf16.msra.mxu0 0
        %6424 = vmatprep.subr.bf16.mxu0 0
        %6425 = vmatpush1.bf16.msra.mxu0 0
        %6426 = vmatprep.subr.bf16.mxu0 0
        %6427 = vmatpush1.bf16.msra.mxu0 0
        %6428 = vmatprep.subr.bf16.mxu0 0
        %6429 = vmatpush1.bf16.msra.mxu0 0
        %6430 = vmatprep.subr.bf16.mxu0 0
        %6431 = vmatpush1.bf16.msra.mxu0 0
        %6432 = vmatprep.subr.bf16.mxu0 0
        %6433 = vmatpush1.bf16.msra.mxu0 0
        %6434 = vmatprep.subr.bf16.mxu0 0
        %6435 = vmatpush1.bf16.msra.mxu0 0
        %6436 = vmatprep.subr.bf16.mxu0 0
        %6437 = vmatpush1.bf16.msra.mxu0 0
        %6438 = vmatprep.subr.bf16.mxu0 0
        %6439 = vmatpush1.bf16.msra.mxu0 0
        %6440 = vmatprep.subr.bf16.mxu0 0
        %6441 = vmatpush1.bf16.msra.mxu0 0
        %6442 = vmatprep.subr.bf16.mxu0 0
        %6443 = vmatpush1.bf16.msra.mxu0 0
        %6444 = vmatprep.mubr.bf16.mxu0 0
        %6445 = vmatmul.mubr.bf16.gmra.mrb[0].mxu0 %v6407
        %v6446 = vpop.f32.mrb[0].mxu0
        %v6447 = vadd.f32 0.0, %v6446
        %v6448 = vpop.f32.mrb[0].mxu0
        %v6449 = vpop.f32.mrb[0].mxu0
        %v6450 = vpop.f32.mrb[0].mxu0
        %6451 = vdwg.mxu0
        %6452 = vrot.lane.b32.xlu0 %v5835, 48
        %v6453 = vpop.permute.xlu0 %6452
        %v6455 = vsel %vm3752, %v6403, 0
        %v6458 = vsel %vm5961, %v6453, 0
        %6460 = vmatprep.subr.bf16.mxu0 0
        %6461 = vmatpush1.bf16.msra.mxu0 %v6458
        %6462 = vmatprep.subr.bf16.mxu0 0
        %6463 = vmatpush1.bf16.msra.mxu0 0
        %6464 = vmatprep.subr.bf16.mxu0 0
        %6465 = vmatpush1.bf16.msra.mxu0 0
        %6466 = vmatprep.subr.bf16.mxu0 0
        %6467 = vmatpush1.bf16.msra.mxu0 0
        %6468 = vmatprep.subr.bf16.mxu0 0
        %6469 = vmatpush1.bf16.msra.mxu0 0
        %6470 = vmatprep.subr.bf16.mxu0 0
        %6471 = vmatpush1.bf16.msra.mxu0 0
        %6472 = vmatprep.subr.bf16.mxu0 0
        %6473 = vmatpush1.bf16.msra.mxu0 0
        %6474 = vmatprep.subr.bf16.mxu0 0
        %6475 = vmatpush1.bf16.msra.mxu0 0
        %6476 = vmatprep.subr.bf16.mxu0 0
        %6477 = vmatpush1.bf16.msra.mxu0 0
        %6478 = vmatprep.subr.bf16.mxu0 0
        %6479 = vmatpush1.bf16.msra.mxu0 0
        %6480 = vmatprep.subr.bf16.mxu0 0
        %6481 = vmatpush1.bf16.msra.mxu0 0
        %6482 = vmatprep.subr.bf16.mxu0 0
        %6483 = vmatpush1.bf16.msra.mxu0 0
        %6484 = vmatprep.subr.bf16.mxu0 0
        %6485 = vmatpush1.bf16.msra.mxu0 0
        %6486 = vmatprep.subr.bf16.mxu0 0
        %6487 = vmatpush1.bf16.msra.mxu0 0
        %6488 = vmatprep.subr.bf16.mxu0 0
        %6489 = vmatpush1.bf16.msra.mxu0 0
        %6490 = vmatprep.subr.bf16.mxu0 0
        %6491 = vmatpush1.bf16.msra.mxu0 0
        %6492 = vmatprep.mubr.bf16.mxu0 0
        %6493 = vmatmul.mubr.bf16.gmra.mrb[0].mxu0 %v6455
        %v6494 = vpop.f32.mrb[0].mxu0
        %v6495 = vadd.f32 0.0, %v6494
        %v6496 = vpop.f32.mrb[0].mxu0
        %v6497 = vpop.f32.mrb[0].mxu0
        %v6498 = vpop.f32.mrb[0].mxu0
        %6499 = vdwg.mxu0
        %6500 = vrot.lane.b32.xlu0 %v5832, 104
        %v6501 = vpop.permute.xlu0 %6500
        %6502 = vrot.lane.b32.xlu0 %v5834, 104
        %v6503 = vpop.permute.xlu0 %6502
        %v6505 = vsel %vm3752, %v6501, 0
        %v6508 = vsel %vm3752, %v6503, 0
        %6510 = vmatprep.subr.bf16.mxu0 0
        %6511 = vmatpush1.bf16.xpose.msra.mxu0 %v6508
        %6512 = vmatprep.subr.bf16.mxu0 0
        %6513 = vmatpush1.bf16.xpose.msra.mxu0 0
        %6514 = vmatprep.subr.bf16.mxu0 0
        %6515 = vmatpush1.bf16.xpose.msra.mxu0 0
        %6516 = vmatprep.subr.bf16.mxu0 0
        %6517 = vmatpush1.bf16.xpose.msra.mxu0 0
        %6518 = vmatprep.subr.bf16.mxu0 0
        %6519 = vmatpush1.bf16.xpose.msra.mxu0 0
        %6520 = vmatprep.subr.bf16.mxu0 0
        %6521 = vmatpush1.bf16.xpose.msra.mxu0 0
        %6522 = vmatprep.subr.bf16.mxu0 0
        %6523 = vmatpush1.bf16.xpose.msra.mxu0 0
        %6524 = vmatprep.subr.bf16.mxu0 0
        %6525 = vmatpush1.bf16.xpose.msra.mxu0 0
        %6526 = vmatprep.subr.bf16.mxu0 0
        %6527 = vmatpush1.bf16.xpose.msra.mxu0 0
        %6528 = vmatprep.subr.bf16.mxu0 0
        %6529 = vmatpush1.bf16.xpose.msra.mxu0 0
        %6530 = vmatprep.subr.bf16.mxu0 0
        %6531 = vmatpush1.bf16.xpose.msra.mxu0 0
        %6532 = vmatprep.subr.bf16.mxu0 0
        %6533 = vmatpush1.bf16.xpose.msra.mxu0 0
        %6534 = vmatprep.subr.bf16.mxu0 0
        %6535 = vmatpush1.bf16.xpose.msra.mxu0 0
        %6536 = vmatprep.subr.bf16.mxu0 0
        %6537 = vmatpush1.bf16.xpose.msra.mxu0 0
        %6538 = vmatprep.subr.bf16.mxu0 0
        %6539 = vmatpush1.bf16.xpose.msra.mxu0 0
        %6540 = vmatprep.subr.bf16.mxu0 0
        %6541 = vmatpush1.bf16.xpose.msra.mxu0 0
        %6542 = vmatprep.mubr.bf16.mxu0 0
        %6543 = vmatmul.mubr.bf16.gmra.mrb[0].mxu0 %v6505
        %v6544 = vpop.f32.mrb[0].mxu0
        %v6545 = vadd.f32 0.0, %v6544
        %v6546 = vpop.f32.mrb[0].mxu0
        %v6547 = vpop.f32.mrb[0].mxu0
        %v6548 = vpop.f32.mrb[0].mxu0
        %6549 = vdwg.mxu0
        %6550 = vrot.lane.b32.xlu0 %v5833, 104
        %v6551 = vpop.permute.xlu0 %6550
        %6552 = vrot.lane.b32.xlu0 %v5835, 104
        %v6553 = vpop.permute.xlu0 %6552
        %v6555 = vsel %vm3752, %v6551, 0
        %v6558 = vsel %vm3752, %v6553, 0
        %6560 = vmatprep.subr.bf16.mxu0 0
        %6561 = vmatpush1.bf16.xpose.msra.mxu0 %v6558
        %6562 = vmatprep.subr.bf16.mxu0 0
        %6563 = vmatpush1.bf16.xpose.msra.mxu0 0
        %6564 = vmatprep.subr.bf16.mxu0 0
        %6565 = vmatpush1.bf16.xpose.msra.mxu0 0
        %6566 = vmatprep.subr.bf16.mxu0 0
        %6567 = vmatpush1.bf16.xpose.msra.mxu0 0
        %6568 = vmatprep.subr.bf16.mxu0 0
        %6569 = vmatpush1.bf16.xpose.msra.mxu0 0
        %6570 = vmatprep.subr.bf16.mxu0 0
        %6571 = vmatpush1.bf16.xpose.msra.mxu0 0
        %6572 = vmatprep.subr.bf16.mxu0 0
        %6573 = vmatpush1.bf16.xpose.msra.mxu0 0
        %6574 = vmatprep.subr.bf16.mxu0 0
        %6575 = vmatpush1.bf16.xpose.msra.mxu0 0
        %6576 = vmatprep.subr.bf16.mxu0 0
        %6577 = vmatpush1.bf16.xpose.msra.mxu0 0
        %6578 = vmatprep.subr.bf16.mxu0 0
        %6579 = vmatpush1.bf16.xpose.msra.mxu0 0
        %6580 = vmatprep.subr.bf16.mxu0 0
        %6581 = vmatpush1.bf16.xpose.msra.mxu0 0
        %6582 = vmatprep.subr.bf16.mxu0 0
        %6583 = vmatpush1.bf16.xpose.msra.mxu0 0
        %6584 = vmatprep.subr.bf16.mxu0 0
        %6585 = vmatpush1.bf16.xpose.msra.mxu0 0
        %6586 = vmatprep.subr.bf16.mxu0 0
        %6587 = vmatpush1.bf16.xpose.msra.mxu0 0
        %6588 = vmatprep.subr.bf16.mxu0 0
        %6589 = vmatpush1.bf16.xpose.msra.mxu0 0
        %6590 = vmatprep.subr.bf16.mxu0 0
        %6591 = vmatpush1.bf16.xpose.msra.mxu0 0
        %6592 = vmatprep.mubr.bf16.mxu0 0
        %6593 = vmatmul.mubr.bf16.gmra.mrb[0].mxu0 %v6555
        %v6594 = vpop.f32.mrb[0].mxu0
        %v6595 = vadd.f32 0.0, %v6594
        %v6596 = vpop.f32.mrb[0].mxu0
        %v6597 = vpop.f32.mrb[0].mxu0
        %v6598 = vpop.f32.mrb[0].mxu0
        %6599 = vdwg.mxu0
        %v6600 = vmul.f32 %v6545, 0.35355338
        %v6601 = vmul.f32 %v6595, 0.35355338
        %v6602 = vsel %vm5930, %v6600, -inf
        %6603 = vmax.xlane.f32.xlu0 %v6602
        %v6604 = vpop.xlane.xlu0 %6603
        %v6605 = vsel %vm5930, %v6601, -inf
        %6606 = vmax.xlane.f32.xlu0 %v6605
        %v6607 = vpop.xlane.xlu0 %6606
        %v6608 = vsub.f32 %v6600, %v6604
        %v6609 = vsub.f32 %v6601, %v6607
        %v6610 = vmul.f32 %v6608, 1.442695
        %v6611 = vpow.pop %v6610
        %v6612 = vmul.f32 %v6609, 1.442695
        %v6613 = vpow.pop %v6612
        %v6614 = vsel %vm5930, %v6611, 0.0
        %6615 = vadd.xlane.f32.xlu0 %v6614
        %v6616 = vpop.xlane.xlu0 %6615
        %v6617 = vsel %vm5930, %v6613, 0.0
        %6618 = vadd.xlane.f32.xlu0 %v6617
        %v6619 = vpop.xlane.xlu0 %6618
        %v6620 = vrcp.pop %v6616
        %v6621 = vrcp.pop %v6619
        %v6622 = vmul.f32 %v6611, %v6620
        %v6623 = vmul.f32 %v6613, %v6621
        %v6624 = vpack.c.bf16 %v6622, %v6622
        %v6625 = vpack.c.bf16 %v6623, %v6623
        %6626 = vrot.lane.b32.xlu0 %v5834, 40
        %v6627 = vpop.permute.xlu0 %6626
        %v6629 = vsel %vm3752, %v6624, 0
        %v6632 = vsel %vm5961, %v6627, 0
        %6634 = vmatprep.subr.bf16.mxu0 0
        %6635 = vmatpush1.bf16.msra.mxu0 %v6632
        %6636 = vmatprep.subr.bf16.mxu0 0
        %6637 = vmatpush1.bf16.msra.mxu0 0
        %6638 = vmatprep.subr.bf16.mxu0 0
        %6639 = vmatpush1.bf16.msra.mxu0 0
        %6640 = vmatprep.subr.bf16.mxu0 0
        %6641 = vmatpush1.bf16.msra.mxu0 0
        %6642 = vmatprep.subr.bf16.mxu0 0
        %6643 = vmatpush1.bf16.msra.mxu0 0
        %6644 = vmatprep.subr.bf16.mxu0 0
        %6645 = vmatpush1.bf16.msra.mxu0 0
        %6646 = vmatprep.subr.bf16.mxu0 0
        %6647 = vmatpush1.bf16.msra.mxu0 0
        %6648 = vmatprep.subr.bf16.mxu0 0
        %6649 = vmatpush1.bf16.msra.mxu0 0
        %6650 = vmatprep.subr.bf16.mxu0 0
        %6651 = vmatpush1.bf16.msra.mxu0 0
        %6652 = vmatprep.subr.bf16.mxu0 0
        %6653 = vmatpush1.bf16.msra.mxu0 0
        %6654 = vmatprep.subr.bf16.mxu0 0
        %6655 = vmatpush1.bf16.msra.mxu0 0
        %6656 = vmatprep.subr.bf16.mxu0 0
        %6657 = vmatpush1.bf16.msra.mxu0 0
        %6658 = vmatprep.subr.bf16.mxu0 0
        %6659 = vmatpush1.bf16.msra.mxu0 0
        %6660 = vmatprep.subr.bf16.mxu0 0
        %6661 = vmatpush1.bf16.msra.mxu0 0
        %6662 = vmatprep.subr.bf16.mxu0 0
        %6663 = vmatpush1.bf16.msra.mxu0 0
        %6664 = vmatprep.subr.bf16.mxu0 0
        %6665 = vmatpush1.bf16.msra.mxu0 0
        %6666 = vmatprep.mubr.bf16.mxu0 0
        %6667 = vmatmul.mubr.bf16.gmra.mrb[0].mxu0 %v6629
        %v6668 = vpop.f32.mrb[0].mxu0
        %v6669 = vadd.f32 0.0, %v6668
        %v6670 = vpop.f32.mrb[0].mxu0
        %v6671 = vpop.f32.mrb[0].mxu0
        %v6672 = vpop.f32.mrb[0].mxu0
        %6673 = vdwg.mxu0
        %6674 = vrot.lane.b32.xlu0 %v5835, 40
        %v6675 = vpop.permute.xlu0 %6674
        %v6677 = vsel %vm3752, %v6625, 0
        %v6680 = vsel %vm5961, %v6675, 0
        %6682 = vmatprep.subr.bf16.mxu0 0
        %6683 = vmatpush1.bf16.msra.mxu0 %v6680
        %6684 = vmatprep.subr.bf16.mxu0 0
        %6685 = vmatpush1.bf16.msra.mxu0 0
        %6686 = vmatprep.subr.bf16.mxu0 0
        %6687 = vmatpush1.bf16.msra.mxu0 0
        %6688 = vmatprep.subr.bf16.mxu0 0
        %6689 = vmatpush1.bf16.msra.mxu0 0
        %6690 = vmatprep.subr.bf16.mxu0 0
        %6691 = vmatpush1.bf16.msra.mxu0 0
        %6692 = vmatprep.subr.bf16.mxu0 0
        %6693 = vmatpush1.bf16.msra.mxu0 0
        %6694 = vmatprep.subr.bf16.mxu0 0
        %6695 = vmatpush1.bf16.msra.mxu0 0
        %6696 = vmatprep.subr.bf16.mxu0 0
        %6697 = vmatpush1.bf16.msra.mxu0 0
        %6698 = vmatprep.subr.bf16.mxu0 0
        %6699 = vmatpush1.bf16.msra.mxu0 0
        %6700 = vmatprep.subr.bf16.mxu0 0
        %6701 = vmatpush1.bf16.msra.mxu0 0
        %6702 = vmatprep.subr.bf16.mxu0 0
        %6703 = vmatpush1.bf16.msra.mxu0 0
        %6704 = vmatprep.subr.bf16.mxu0 0
        %6705 = vmatpush1.bf16.msra.mxu0 0
        %6706 = vmatprep.subr.bf16.mxu0 0
        %6707 = vmatpush1.bf16.msra.mxu0 0
        %6708 = vmatprep.subr.bf16.mxu0 0
        %6709 = vmatpush1.bf16.msra.mxu0 0
        %6710 = vmatprep.subr.bf16.mxu0 0
        %6711 = vmatpush1.bf16.msra.mxu0 0
        %6712 = vmatprep.subr.bf16.mxu0 0
        %6713 = vmatpush1.bf16.msra.mxu0 0
        %6714 = vmatprep.mubr.bf16.mxu0 0
        %6715 = vmatmul.mubr.bf16.gmra.mrb[0].mxu0 %v6677
        %v6716 = vpop.f32.mrb[0].mxu0
        %v6717 = vadd.f32 0.0, %v6716
        %v6718 = vpop.f32.mrb[0].mxu0
        %v6719 = vpop.f32.mrb[0].mxu0
        %v6720 = vpop.f32.mrb[0].mxu0
        %6721 = vdwg.mxu0
        %6722 = vrot.lane.b32.xlu0 %v5832, 96
        %v6723 = vpop.permute.xlu0 %6722
        %6724 = vrot.lane.b32.xlu0 %v5834, 96
        %v6725 = vpop.permute.xlu0 %6724
        %v6727 = vsel %vm3752, %v6723, 0
        %v6730 = vsel %vm3752, %v6725, 0
        %6732 = vmatprep.subr.bf16.mxu0 0
        %6733 = vmatpush1.bf16.xpose.msra.mxu0 %v6730
        %6734 = vmatprep.subr.bf16.mxu0 0
        %6735 = vmatpush1.bf16.xpose.msra.mxu0 0
        %6736 = vmatprep.subr.bf16.mxu0 0
        %6737 = vmatpush1.bf16.xpose.msra.mxu0 0
        %6738 = vmatprep.subr.bf16.mxu0 0
        %6739 = vmatpush1.bf16.xpose.msra.mxu0 0
        %6740 = vmatprep.subr.bf16.mxu0 0
        %6741 = vmatpush1.bf16.xpose.msra.mxu0 0
        %6742 = vmatprep.subr.bf16.mxu0 0
        %6743 = vmatpush1.bf16.xpose.msra.mxu0 0
        %6744 = vmatprep.subr.bf16.mxu0 0
        %6745 = vmatpush1.bf16.xpose.msra.mxu0 0
        %6746 = vmatprep.subr.bf16.mxu0 0
        %6747 = vmatpush1.bf16.xpose.msra.mxu0 0
        %6748 = vmatprep.subr.bf16.mxu0 0
        %6749 = vmatpush1.bf16.xpose.msra.mxu0 0
        %6750 = vmatprep.subr.bf16.mxu0 0
        %6751 = vmatpush1.bf16.xpose.msra.mxu0 0
        %6752 = vmatprep.subr.bf16.mxu0 0
        %6753 = vmatpush1.bf16.xpose.msra.mxu0 0
        %6754 = vmatprep.subr.bf16.mxu0 0
        %6755 = vmatpush1.bf16.xpose.msra.mxu0 0
        %6756 = vmatprep.subr.bf16.mxu0 0
        %6757 = vmatpush1.bf16.xpose.msra.mxu0 0
        %6758 = vmatprep.subr.bf16.mxu0 0
        %6759 = vmatpush1.bf16.xpose.msra.mxu0 0
        %6760 = vmatprep.subr.bf16.mxu0 0
        %6761 = vmatpush1.bf16.xpose.msra.mxu0 0
        %6762 = vmatprep.subr.bf16.mxu0 0
        %6763 = vmatpush1.bf16.xpose.msra.mxu0 0
        %6764 = vmatprep.mubr.bf16.mxu0 0
        %6765 = vmatmul.mubr.bf16.gmra.mrb[0].mxu0 %v6727
        %v6766 = vpop.f32.mrb[0].mxu0
        %v6767 = vadd.f32 0.0, %v6766
        %v6768 = vpop.f32.mrb[0].mxu0
        %v6769 = vpop.f32.mrb[0].mxu0
        %v6770 = vpop.f32.mrb[0].mxu0
        %6771 = vdwg.mxu0
        %6772 = vrot.lane.b32.xlu0 %v5833, 96
        %v6773 = vpop.permute.xlu0 %6772
        %6774 = vrot.lane.b32.xlu0 %v5835, 96
        %v6775 = vpop.permute.xlu0 %6774
        %v6777 = vsel %vm3752, %v6773, 0
        %v6780 = vsel %vm3752, %v6775, 0
        %6782 = vmatprep.subr.bf16.mxu0 0
        %6783 = vmatpush1.bf16.xpose.msra.mxu0 %v6780
        %6784 = vmatprep.subr.bf16.mxu0 0
        %6785 = vmatpush1.bf16.xpose.msra.mxu0 0
        %6786 = vmatprep.subr.bf16.mxu0 0
        %6787 = vmatpush1.bf16.xpose.msra.mxu0 0
        %6788 = vmatprep.subr.bf16.mxu0 0
        %6789 = vmatpush1.bf16.xpose.msra.mxu0 0
        %6790 = vmatprep.subr.bf16.mxu0 0
        %6791 = vmatpush1.bf16.xpose.msra.mxu0 0
        %6792 = vmatprep.subr.bf16.mxu0 0
        %6793 = vmatpush1.bf16.xpose.msra.mxu0 0
        %6794 = vmatprep.subr.bf16.mxu0 0
        %6795 = vmatpush1.bf16.xpose.msra.mxu0 0
        %6796 = vmatprep.subr.bf16.mxu0 0
        %6797 = vmatpush1.bf16.xpose.msra.mxu0 0
        %6798 = vmatprep.subr.bf16.mxu0 0
        %6799 = vmatpush1.bf16.xpose.msra.mxu0 0
        %6800 = vmatprep.subr.bf16.mxu0 0
        %6801 = vmatpush1.bf16.xpose.msra.mxu0 0
        %6802 = vmatprep.subr.bf16.mxu0 0
        %6803 = vmatpush1.bf16.xpose.msra.mxu0 0
        %6804 = vmatprep.subr.bf16.mxu0 0
        %6805 = vmatpush1.bf16.xpose.msra.mxu0 0
        %6806 = vmatprep.subr.bf16.mxu0 0
        %6807 = vmatpush1.bf16.xpose.msra.mxu0 0
        %6808 = vmatprep.subr.bf16.mxu0 0
        %6809 = vmatpush1.bf16.xpose.msra.mxu0 0
        %6810 = vmatprep.subr.bf16.mxu0 0
        %6811 = vmatpush1.bf16.xpose.msra.mxu0 0
        %6812 = vmatprep.subr.bf16.mxu0 0
        %6813 = vmatpush1.bf16.xpose.msra.mxu0 0
        %6814 = vmatprep.mubr.bf16.mxu0 0
        %6815 = vmatmul.mubr.bf16.gmra.mrb[0].mxu0 %v6777
        %v6816 = vpop.f32.mrb[0].mxu0
        %v6817 = vadd.f32 0.0, %v6816
        %v6818 = vpop.f32.mrb[0].mxu0
        %v6819 = vpop.f32.mrb[0].mxu0
        %v6820 = vpop.f32.mrb[0].mxu0
        %6821 = vdwg.mxu0
        %v6822 = vmul.f32 %v6767, 0.35355338
        %v6823 = vmul.f32 %v6817, 0.35355338
        %v6824 = vsel %vm5930, %v6822, -inf
        %6825 = vmax.xlane.f32.xlu0 %v6824
        %v6826 = vpop.xlane.xlu0 %6825
        %v6827 = vsel %vm5930, %v6823, -inf
        %6828 = vmax.xlane.f32.xlu0 %v6827
        %v6829 = vpop.xlane.xlu0 %6828
        %v6830 = vsub.f32 %v6822, %v6826
        %v6831 = vsub.f32 %v6823, %v6829
        %v6832 = vmul.f32 %v6830, 1.442695
        %v6833 = vpow.pop %v6832
        %v6834 = vmul.f32 %v6831, 1.442695
        %v6835 = vpow.pop %v6834
        %v6836 = vsel %vm5930, %v6833, 0.0
        %6837 = vadd.xlane.f32.xlu0 %v6836
        %v6838 = vpop.xlane.xlu0 %6837
        %v6839 = vsel %vm5930, %v6835, 0.0
        %6840 = vadd.xlane.f32.xlu0 %v6839
        %v6841 = vpop.xlane.xlu0 %6840
        %v6842 = vrcp.pop %v6838
        %v6843 = vrcp.pop %v6841
        %v6844 = vmul.f32 %v6833, %v6842
        %v6845 = vmul.f32 %v6835, %v6843
        %v6846 = vpack.c.bf16 %v6844, %v6844
        %v6847 = vpack.c.bf16 %v6845, %v6845
        %6848 = vrot.lane.b32.xlu0 %v5834, 32
        %v6849 = vpop.permute.xlu0 %6848
        %v6851 = vsel %vm3752, %v6846, 0
        %v6854 = vsel %vm5961, %v6849, 0
        %6856 = vmatprep.subr.bf16.mxu0 0
        %6857 = vmatpush1.bf16.msra.mxu0 %v6854
        %6858 = vmatprep.subr.bf16.mxu0 0
        %6859 = vmatpush1.bf16.msra.mxu0 0
        %6860 = vmatprep.subr.bf16.mxu0 0
        %6861 = vmatpush1.bf16.msra.mxu0 0
        %6862 = vmatprep.subr.bf16.mxu0 0
        %6863 = vmatpush1.bf16.msra.mxu0 0
        %6864 = vmatprep.subr.bf16.mxu0 0
        %6865 = vmatpush1.bf16.msra.mxu0 0
        %6866 = vmatprep.subr.bf16.mxu0 0
        %6867 = vmatpush1.bf16.msra.mxu0 0
        %6868 = vmatprep.subr.bf16.mxu0 0
        %6869 = vmatpush1.bf16.msra.mxu0 0
        %6870 = vmatprep.subr.bf16.mxu0 0
        %6871 = vmatpush1.bf16.msra.mxu0 0
        %6872 = vmatprep.subr.bf16.mxu0 0
        %6873 = vmatpush1.bf16.msra.mxu0 0
        %6874 = vmatprep.subr.bf16.mxu0 0
        %6875 = vmatpush1.bf16.msra.mxu0 0
        %6876 = vmatprep.subr.bf16.mxu0 0
        %6877 = vmatpush1.bf16.msra.mxu0 0
        %6878 = vmatprep.subr.bf16.mxu0 0
        %6879 = vmatpush1.bf16.msra.mxu0 0
        %6880 = vmatprep.subr.bf16.mxu0 0
        %6881 = vmatpush1.bf16.msra.mxu0 0
        %6882 = vmatprep.subr.bf16.mxu0 0
        %6883 = vmatpush1.bf16.msra.mxu0 0
        %6884 = vmatprep.subr.bf16.mxu0 0
        %6885 = vmatpush1.bf16.msra.mxu0 0
        %6886 = vmatprep.subr.bf16.mxu0 0
        %6887 = vmatpush1.bf16.msra.mxu0 0
        %6888 = vmatprep.mubr.bf16.mxu0 0
        %6889 = vmatmul.mubr.bf16.gmra.mrb[0].mxu0 %v6851
        %v6890 = vpop.f32.mrb[0].mxu0
        %v6891 = vadd.f32 0.0, %v6890
        %v6892 = vpop.f32.mrb[0].mxu0
        %v6893 = vpop.f32.mrb[0].mxu0
        %v6894 = vpop.f32.mrb[0].mxu0
        %6895 = vdwg.mxu0
        %6896 = vrot.lane.b32.xlu0 %v5835, 32
        %v6897 = vpop.permute.xlu0 %6896
        %v6899 = vsel %vm3752, %v6847, 0
        %v6902 = vsel %vm5961, %v6897, 0
        %6904 = vmatprep.subr.bf16.mxu0 0
        %6905 = vmatpush1.bf16.msra.mxu0 %v6902
        %6906 = vmatprep.subr.bf16.mxu0 0
        %6907 = vmatpush1.bf16.msra.mxu0 0
        %6908 = vmatprep.subr.bf16.mxu0 0
        %6909 = vmatpush1.bf16.msra.mxu0 0
        %6910 = vmatprep.subr.bf16.mxu0 0
        %6911 = vmatpush1.bf16.msra.mxu0 0
        %6912 = vmatprep.subr.bf16.mxu0 0
        %6913 = vmatpush1.bf16.msra.mxu0 0
        %6914 = vmatprep.subr.bf16.mxu0 0
        %6915 = vmatpush1.bf16.msra.mxu0 0
        %6916 = vmatprep.subr.bf16.mxu0 0
        %6917 = vmatpush1.bf16.msra.mxu0 0
        %6918 = vmatprep.subr.bf16.mxu0 0
        %6919 = vmatpush1.bf16.msra.mxu0 0
        %6920 = vmatprep.subr.bf16.mxu0 0
        %6921 = vmatpush1.bf16.msra.mxu0 0
        %6922 = vmatprep.subr.bf16.mxu0 0
        %6923 = vmatpush1.bf16.msra.mxu0 0
        %6924 = vmatprep.subr.bf16.mxu0 0
        %6925 = vmatpush1.bf16.msra.mxu0 0
        %6926 = vmatprep.subr.bf16.mxu0 0
        %6927 = vmatpush1.bf16.msra.mxu0 0
        %6928 = vmatprep.subr.bf16.mxu0 0
        %6929 = vmatpush1.bf16.msra.mxu0 0
        %6930 = vmatprep.subr.bf16.mxu0 0
        %6931 = vmatpush1.bf16.msra.mxu0 0
        %6932 = vmatprep.subr.bf16.mxu0 0
        %6933 = vmatpush1.bf16.msra.mxu0 0
        %6934 = vmatprep.subr.bf16.mxu0 0
        %6935 = vmatpush1.bf16.msra.mxu0 0
        %6936 = vmatprep.mubr.bf16.mxu0 0
        %6937 = vmatmul.mubr.bf16.gmra.mrb[0].mxu0 %v6899
        %v6938 = vpop.f32.mrb[0].mxu0
        %v6939 = vadd.f32 0.0, %v6938
        %v6940 = vpop.f32.mrb[0].mxu0
        %v6941 = vpop.f32.mrb[0].mxu0
        %v6942 = vpop.f32.mrb[0].mxu0
        %6943 = vdwg.mxu0
        %6944 = vrot.lane.b32.xlu0 %v5832, 88
        %v6945 = vpop.permute.xlu0 %6944
        %6946 = vrot.lane.b32.xlu0 %v5834, 88
        %v6947 = vpop.permute.xlu0 %6946
        %v6949 = vsel %vm3752, %v6945, 0
        %v6952 = vsel %vm3752, %v6947, 0
        %6954 = vmatprep.subr.bf16.mxu0 0
        %6955 = vmatpush1.bf16.xpose.msra.mxu0 %v6952
        %6956 = vmatprep.subr.bf16.mxu0 0
        %6957 = vmatpush1.bf16.xpose.msra.mxu0 0
        %6958 = vmatprep.subr.bf16.mxu0 0
        %6959 = vmatpush1.bf16.xpose.msra.mxu0 0
        %6960 = vmatprep.subr.bf16.mxu0 0
        %6961 = vmatpush1.bf16.xpose.msra.mxu0 0
        %6962 = vmatprep.subr.bf16.mxu0 0
        %6963 = vmatpush1.bf16.xpose.msra.mxu0 0
        %6964 = vmatprep.subr.bf16.mxu0 0
        %6965 = vmatpush1.bf16.xpose.msra.mxu0 0
        %6966 = vmatprep.subr.bf16.mxu0 0
        %6967 = vmatpush1.bf16.xpose.msra.mxu0 0
        %6968 = vmatprep.subr.bf16.mxu0 0
        %6969 = vmatpush1.bf16.xpose.msra.mxu0 0
        %6970 = vmatprep.subr.bf16.mxu0 0
        %6971 = vmatpush1.bf16.xpose.msra.mxu0 0
        %6972 = vmatprep.subr.bf16.mxu0 0
        %6973 = vmatpush1.bf16.xpose.msra.mxu0 0
        %6974 = vmatprep.subr.bf16.mxu0 0
        %6975 = vmatpush1.bf16.xpose.msra.mxu0 0
        %6976 = vmatprep.subr.bf16.mxu0 0
        %6977 = vmatpush1.bf16.xpose.msra.mxu0 0
        %6978 = vmatprep.subr.bf16.mxu0 0
        %6979 = vmatpush1.bf16.xpose.msra.mxu0 0
        %6980 = vmatprep.subr.bf16.mxu0 0
        %6981 = vmatpush1.bf16.xpose.msra.mxu0 0
        %6982 = vmatprep.subr.bf16.mxu0 0
        %6983 = vmatpush1.bf16.xpose.msra.mxu0 0
        %6984 = vmatprep.subr.bf16.mxu0 0
        %6985 = vmatpush1.bf16.xpose.msra.mxu0 0
        %6986 = vmatprep.mubr.bf16.mxu0 0
        %6987 = vmatmul.mubr.bf16.gmra.mrb[0].mxu0 %v6949
        %v6988 = vpop.f32.mrb[0].mxu0
        %v6989 = vadd.f32 0.0, %v6988
        %v6990 = vpop.f32.mrb[0].mxu0
        %v6991 = vpop.f32.mrb[0].mxu0
        %v6992 = vpop.f32.mrb[0].mxu0
        %6993 = vdwg.mxu0
        %6994 = vrot.lane.b32.xlu0 %v5833, 88
        %v6995 = vpop.permute.xlu0 %6994
        %6996 = vrot.lane.b32.xlu0 %v5835, 88
        %v6997 = vpop.permute.xlu0 %6996
        %v6999 = vsel %vm3752, %v6995, 0
        %v7002 = vsel %vm3752, %v6997, 0
        %7004 = vmatprep.subr.bf16.mxu0 0
        %7005 = vmatpush1.bf16.xpose.msra.mxu0 %v7002
        %7006 = vmatprep.subr.bf16.mxu0 0
        %7007 = vmatpush1.bf16.xpose.msra.mxu0 0
        %7008 = vmatprep.subr.bf16.mxu0 0
        %7009 = vmatpush1.bf16.xpose.msra.mxu0 0
        %7010 = vmatprep.subr.bf16.mxu0 0
        %7011 = vmatpush1.bf16.xpose.msra.mxu0 0
        %7012 = vmatprep.subr.bf16.mxu0 0
        %7013 = vmatpush1.bf16.xpose.msra.mxu0 0
        %7014 = vmatprep.subr.bf16.mxu0 0
        %7015 = vmatpush1.bf16.xpose.msra.mxu0 0
        %7016 = vmatprep.subr.bf16.mxu0 0
        %7017 = vmatpush1.bf16.xpose.msra.mxu0 0
        %7018 = vmatprep.subr.bf16.mxu0 0
        %7019 = vmatpush1.bf16.xpose.msra.mxu0 0
        %7020 = vmatprep.subr.bf16.mxu0 0
        %7021 = vmatpush1.bf16.xpose.msra.mxu0 0
        %7022 = vmatprep.subr.bf16.mxu0 0
        %7023 = vmatpush1.bf16.xpose.msra.mxu0 0
        %7024 = vmatprep.subr.bf16.mxu0 0
        %7025 = vmatpush1.bf16.xpose.msra.mxu0 0
        %7026 = vmatprep.subr.bf16.mxu0 0
        %7027 = vmatpush1.bf16.xpose.msra.mxu0 0
        %7028 = vmatprep.subr.bf16.mxu0 0
        %7029 = vmatpush1.bf16.xpose.msra.mxu0 0
        %7030 = vmatprep.subr.bf16.mxu0 0
        %7031 = vmatpush1.bf16.xpose.msra.mxu0 0
        %7032 = vmatprep.subr.bf16.mxu0 0
        %7033 = vmatpush1.bf16.xpose.msra.mxu0 0
        %7034 = vmatprep.subr.bf16.mxu0 0
        %7035 = vmatpush1.bf16.xpose.msra.mxu0 0
        %7036 = vmatprep.mubr.bf16.mxu0 0
        %7037 = vmatmul.mubr.bf16.gmra.mrb[0].mxu0 %v6999
        %v7038 = vpop.f32.mrb[0].mxu0
        %v7039 = vadd.f32 0.0, %v7038
        %v7040 = vpop.f32.mrb[0].mxu0
        %v7041 = vpop.f32.mrb[0].mxu0
        %v7042 = vpop.f32.mrb[0].mxu0
        %7043 = vdwg.mxu0
        %v7044 = vmul.f32 %v6989, 0.35355338
        %v7045 = vmul.f32 %v7039, 0.35355338
        %v7046 = vsel %vm5930, %v7044, -inf
        %7047 = vmax.xlane.f32.xlu0 %v7046
        %v7048 = vpop.xlane.xlu0 %7047
        %v7049 = vsel %vm5930, %v7045, -inf
        %7050 = vmax.xlane.f32.xlu0 %v7049
        %v7051 = vpop.xlane.xlu0 %7050
        %v7052 = vsub.f32 %v7044, %v7048
        %v7053 = vsub.f32 %v7045, %v7051
        %v7054 = vmul.f32 %v7052, 1.442695
        %v7055 = vpow.pop %v7054
        %v7056 = vmul.f32 %v7053, 1.442695
        %v7057 = vpow.pop %v7056
        %v7058 = vsel %vm5930, %v7055, 0.0
        %7059 = vadd.xlane.f32.xlu0 %v7058
        %v7060 = vpop.xlane.xlu0 %7059
        %v7061 = vsel %vm5930, %v7057, 0.0
        %7062 = vadd.xlane.f32.xlu0 %v7061
        %v7063 = vpop.xlane.xlu0 %7062
        %v7064 = vrcp.pop %v7060
        %v7065 = vrcp.pop %v7063
        %v7066 = vmul.f32 %v7055, %v7064
        %v7067 = vmul.f32 %v7057, %v7065
        %v7068 = vpack.c.bf16 %v7066, %v7066
        %v7069 = vpack.c.bf16 %v7067, %v7067
        %7070 = vrot.lane.b32.xlu0 %v5834, 24
        %v7071 = vpop.permute.xlu0 %7070
        %v7073 = vsel %vm3752, %v7068, 0
        %v7076 = vsel %vm5961, %v7071, 0
        %7078 = vmatprep.subr.bf16.mxu0 0
        %7079 = vmatpush1.bf16.msra.mxu0 %v7076
        %7080 = vmatprep.subr.bf16.mxu0 0
        %7081 = vmatpush1.bf16.msra.mxu0 0
        %7082 = vmatprep.subr.bf16.mxu0 0
        %7083 = vmatpush1.bf16.msra.mxu0 0
        %7084 = vmatprep.subr.bf16.mxu0 0
        %7085 = vmatpush1.bf16.msra.mxu0 0
        %7086 = vmatprep.subr.bf16.mxu0 0
        %7087 = vmatpush1.bf16.msra.mxu0 0
        %7088 = vmatprep.subr.bf16.mxu0 0
        %7089 = vmatpush1.bf16.msra.mxu0 0
        %7090 = vmatprep.subr.bf16.mxu0 0
        %7091 = vmatpush1.bf16.msra.mxu0 0
        %7092 = vmatprep.subr.bf16.mxu0 0
        %7093 = vmatpush1.bf16.msra.mxu0 0
        %7094 = vmatprep.subr.bf16.mxu0 0
        %7095 = vmatpush1.bf16.msra.mxu0 0
        %7096 = vmatprep.subr.bf16.mxu0 0
        %7097 = vmatpush1.bf16.msra.mxu0 0
        %7098 = vmatprep.subr.bf16.mxu0 0
        %7099 = vmatpush1.bf16.msra.mxu0 0
        %7100 = vmatprep.subr.bf16.mxu0 0
        %7101 = vmatpush1.bf16.msra.mxu0 0
        %7102 = vmatprep.subr.bf16.mxu0 0
        %7103 = vmatpush1.bf16.msra.mxu0 0
        %7104 = vmatprep.subr.bf16.mxu0 0
        %7105 = vmatpush1.bf16.msra.mxu0 0
        %7106 = vmatprep.subr.bf16.mxu0 0
        %7107 = vmatpush1.bf16.msra.mxu0 0
        %7108 = vmatprep.subr.bf16.mxu0 0
        %7109 = vmatpush1.bf16.msra.mxu0 0
        %7110 = vmatprep.mubr.bf16.mxu0 0
        %7111 = vmatmul.mubr.bf16.gmra.mrb[0].mxu0 %v7073
        %v7112 = vpop.f32.mrb[0].mxu0
        %v7113 = vadd.f32 0.0, %v7112
        %v7114 = vpop.f32.mrb[0].mxu0
        %v7115 = vpop.f32.mrb[0].mxu0
        %v7116 = vpop.f32.mrb[0].mxu0
        %7117 = vdwg.mxu0
        %7118 = vrot.lane.b32.xlu0 %v5835, 24
        %v7119 = vpop.permute.xlu0 %7118
        %v7121 = vsel %vm3752, %v7069, 0
        %v7124 = vsel %vm5961, %v7119, 0
        %7126 = vmatprep.subr.bf16.mxu0 0
        %7127 = vmatpush1.bf16.msra.mxu0 %v7124
        %7128 = vmatprep.subr.bf16.mxu0 0
        %7129 = vmatpush1.bf16.msra.mxu0 0
        %7130 = vmatprep.subr.bf16.mxu0 0
        %7131 = vmatpush1.bf16.msra.mxu0 0
        %7132 = vmatprep.subr.bf16.mxu0 0
        %7133 = vmatpush1.bf16.msra.mxu0 0
        %7134 = vmatprep.subr.bf16.mxu0 0
        %7135 = vmatpush1.bf16.msra.mxu0 0
        %7136 = vmatprep.subr.bf16.mxu0 0
        %7137 = vmatpush1.bf16.msra.mxu0 0
        %7138 = vmatprep.subr.bf16.mxu0 0
        %7139 = vmatpush1.bf16.msra.mxu0 0
        %7140 = vmatprep.subr.bf16.mxu0 0
        %7141 = vmatpush1.bf16.msra.mxu0 0
        %7142 = vmatprep.subr.bf16.mxu0 0
        %7143 = vmatpush1.bf16.msra.mxu0 0
        %7144 = vmatprep.subr.bf16.mxu0 0
        %7145 = vmatpush1.bf16.msra.mxu0 0
        %7146 = vmatprep.subr.bf16.mxu0 0
        %7147 = vmatpush1.bf16.msra.mxu0 0
        %7148 = vmatprep.subr.bf16.mxu0 0
        %7149 = vmatpush1.bf16.msra.mxu0 0
        %7150 = vmatprep.subr.bf16.mxu0 0
        %7151 = vmatpush1.bf16.msra.mxu0 0
        %7152 = vmatprep.subr.bf16.mxu0 0
        %7153 = vmatpush1.bf16.msra.mxu0 0
        %7154 = vmatprep.subr.bf16.mxu0 0
        %7155 = vmatpush1.bf16.msra.mxu0 0
        %7156 = vmatprep.subr.bf16.mxu0 0
        %7157 = vmatpush1.bf16.msra.mxu0 0
        %7158 = vmatprep.mubr.bf16.mxu0 0
        %7159 = vmatmul.mubr.bf16.gmra.mrb[0].mxu0 %v7121
        %v7160 = vpop.f32.mrb[0].mxu0
        %v7161 = vadd.f32 0.0, %v7160
        %v7162 = vpop.f32.mrb[0].mxu0
        %v7163 = vpop.f32.mrb[0].mxu0
        %v7164 = vpop.f32.mrb[0].mxu0
        %7165 = vdwg.mxu0
        %7166 = vrot.lane.b32.xlu0 %v5832, 80
        %v7167 = vpop.permute.xlu0 %7166
        %7168 = vrot.lane.b32.xlu0 %v5834, 80
        %v7169 = vpop.permute.xlu0 %7168
        %v7171 = vsel %vm3752, %v7167, 0
        %v7174 = vsel %vm3752, %v7169, 0
        %7176 = vmatprep.subr.bf16.mxu0 0
        %7177 = vmatpush1.bf16.xpose.msra.mxu0 %v7174
        %7178 = vmatprep.subr.bf16.mxu0 0
        %7179 = vmatpush1.bf16.xpose.msra.mxu0 0
        %7180 = vmatprep.subr.bf16.mxu0 0
        %7181 = vmatpush1.bf16.xpose.msra.mxu0 0
        %7182 = vmatprep.subr.bf16.mxu0 0
        %7183 = vmatpush1.bf16.xpose.msra.mxu0 0
        %7184 = vmatprep.subr.bf16.mxu0 0
        %7185 = vmatpush1.bf16.xpose.msra.mxu0 0
        %7186 = vmatprep.subr.bf16.mxu0 0
        %7187 = vmatpush1.bf16.xpose.msra.mxu0 0
        %7188 = vmatprep.subr.bf16.mxu0 0
        %7189 = vmatpush1.bf16.xpose.msra.mxu0 0
        %7190 = vmatprep.subr.bf16.mxu0 0
        %7191 = vmatpush1.bf16.xpose.msra.mxu0 0
        %7192 = vmatprep.subr.bf16.mxu0 0
        %7193 = vmatpush1.bf16.xpose.msra.mxu0 0
        %7194 = vmatprep.subr.bf16.mxu0 0
        %7195 = vmatpush1.bf16.xpose.msra.mxu0 0
        %7196 = vmatprep.subr.bf16.mxu0 0
        %7197 = vmatpush1.bf16.xpose.msra.mxu0 0
        %7198 = vmatprep.subr.bf16.mxu0 0
        %7199 = vmatpush1.bf16.xpose.msra.mxu0 0
        %7200 = vmatprep.subr.bf16.mxu0 0
        %7201 = vmatpush1.bf16.xpose.msra.mxu0 0
        %7202 = vmatprep.subr.bf16.mxu0 0
        %7203 = vmatpush1.bf16.xpose.msra.mxu0 0
        %7204 = vmatprep.subr.bf16.mxu0 0
        %7205 = vmatpush1.bf16.xpose.msra.mxu0 0
        %7206 = vmatprep.subr.bf16.mxu0 0
        %7207 = vmatpush1.bf16.xpose.msra.mxu0 0
        %7208 = vmatprep.mubr.bf16.mxu0 0
        %7209 = vmatmul.mubr.bf16.gmra.mrb[0].mxu0 %v7171
        %v7210 = vpop.f32.mrb[0].mxu0
        %v7211 = vadd.f32 0.0, %v7210
        %v7212 = vpop.f32.mrb[0].mxu0
        %v7213 = vpop.f32.mrb[0].mxu0
        %v7214 = vpop.f32.mrb[0].mxu0
        %7215 = vdwg.mxu0
        %7216 = vrot.lane.b32.xlu0 %v5833, 80
        %v7217 = vpop.permute.xlu0 %7216
        %7218 = vrot.lane.b32.xlu0 %v5835, 80
        %v7219 = vpop.permute.xlu0 %7218
        %v7221 = vsel %vm3752, %v7217, 0
        %v7224 = vsel %vm3752, %v7219, 0
        %7226 = vmatprep.subr.bf16.mxu0 0
        %7227 = vmatpush1.bf16.xpose.msra.mxu0 %v7224
        %7228 = vmatprep.subr.bf16.mxu0 0
        %7229 = vmatpush1.bf16.xpose.msra.mxu0 0
        %7230 = vmatprep.subr.bf16.mxu0 0
        %7231 = vmatpush1.bf16.xpose.msra.mxu0 0
        %7232 = vmatprep.subr.bf16.mxu0 0
        %7233 = vmatpush1.bf16.xpose.msra.mxu0 0
        %7234 = vmatprep.subr.bf16.mxu0 0
        %7235 = vmatpush1.bf16.xpose.msra.mxu0 0
        %7236 = vmatprep.subr.bf16.mxu0 0
        %7237 = vmatpush1.bf16.xpose.msra.mxu0 0
        %7238 = vmatprep.subr.bf16.mxu0 0
        %7239 = vmatpush1.bf16.xpose.msra.mxu0 0
        %7240 = vmatprep.subr.bf16.mxu0 0
        %7241 = vmatpush1.bf16.xpose.msra.mxu0 0
        %7242 = vmatprep.subr.bf16.mxu0 0
        %7243 = vmatpush1.bf16.xpose.msra.mxu0 0
        %7244 = vmatprep.subr.bf16.mxu0 0
        %7245 = vmatpush1.bf16.xpose.msra.mxu0 0
        %7246 = vmatprep.subr.bf16.mxu0 0
        %7247 = vmatpush1.bf16.xpose.msra.mxu0 0
        %7248 = vmatprep.subr.bf16.mxu0 0
        %7249 = vmatpush1.bf16.xpose.msra.mxu0 0
        %7250 = vmatprep.subr.bf16.mxu0 0
        %7251 = vmatpush1.bf16.xpose.msra.mxu0 0
        %7252 = vmatprep.subr.bf16.mxu0 0
        %7253 = vmatpush1.bf16.xpose.msra.mxu0 0
        %7254 = vmatprep.subr.bf16.mxu0 0
        %7255 = vmatpush1.bf16.xpose.msra.mxu0 0
        %7256 = vmatprep.subr.bf16.mxu0 0
        %7257 = vmatpush1.bf16.xpose.msra.mxu0 0
        %7258 = vmatprep.mubr.bf16.mxu0 0
        %7259 = vmatmul.mubr.bf16.gmra.mrb[0].mxu0 %v7221
        %v7260 = vpop.f32.mrb[0].mxu0
        %v7261 = vadd.f32 0.0, %v7260
        %v7262 = vpop.f32.mrb[0].mxu0
        %v7263 = vpop.f32.mrb[0].mxu0
        %v7264 = vpop.f32.mrb[0].mxu0
        %7265 = vdwg.mxu0
        %v7266 = vmul.f32 %v7211, 0.35355338
        %v7267 = vmul.f32 %v7261, 0.35355338
        %v7268 = vsel %vm5930, %v7266, -inf
        %7269 = vmax.xlane.f32.xlu0 %v7268
        %v7270 = vpop.xlane.xlu0 %7269
        %v7271 = vsel %vm5930, %v7267, -inf
        %7272 = vmax.xlane.f32.xlu0 %v7271
        %v7273 = vpop.xlane.xlu0 %7272
        %v7274 = vsub.f32 %v7266, %v7270
        %v7275 = vsub.f32 %v7267, %v7273
        %v7276 = vmul.f32 %v7274, 1.442695
        %v7277 = vpow.pop %v7276
        %v7278 = vmul.f32 %v7275, 1.442695
        %v7279 = vpow.pop %v7278
        %v7280 = vsel %vm5930, %v7277, 0.0
        %7281 = vadd.xlane.f32.xlu0 %v7280
        %v7282 = vpop.xlane.xlu0 %7281
        %v7283 = vsel %vm5930, %v7279, 0.0
        %7284 = vadd.xlane.f32.xlu0 %v7283
        %v7285 = vpop.xlane.xlu0 %7284
        %v7286 = vrcp.pop %v7282
        %v7287 = vrcp.pop %v7285
        %v7288 = vmul.f32 %v7277, %v7286
        %v7289 = vmul.f32 %v7279, %v7287
        %v7290 = vpack.c.bf16 %v7288, %v7288
        %v7291 = vpack.c.bf16 %v7289, %v7289
        %7292 = vrot.lane.b32.xlu0 %v5834, 16
        %v7293 = vpop.permute.xlu0 %7292
        %v7295 = vsel %vm3752, %v7290, 0
        %v7298 = vsel %vm5961, %v7293, 0
        %7300 = vmatprep.subr.bf16.mxu0 0
        %7301 = vmatpush1.bf16.msra.mxu0 %v7298
        %7302 = vmatprep.subr.bf16.mxu0 0
        %7303 = vmatpush1.bf16.msra.mxu0 0
        %7304 = vmatprep.subr.bf16.mxu0 0
        %7305 = vmatpush1.bf16.msra.mxu0 0
        %7306 = vmatprep.subr.bf16.mxu0 0
        %7307 = vmatpush1.bf16.msra.mxu0 0
        %7308 = vmatprep.subr.bf16.mxu0 0
        %7309 = vmatpush1.bf16.msra.mxu0 0
        %7310 = vmatprep.subr.bf16.mxu0 0
        %7311 = vmatpush1.bf16.msra.mxu0 0
        %7312 = vmatprep.subr.bf16.mxu0 0
        %7313 = vmatpush1.bf16.msra.mxu0 0
        %7314 = vmatprep.subr.bf16.mxu0 0
        %7315 = vmatpush1.bf16.msra.mxu0 0
        %7316 = vmatprep.subr.bf16.mxu0 0
        %7317 = vmatpush1.bf16.msra.mxu0 0
        %7318 = vmatprep.subr.bf16.mxu0 0
        %7319 = vmatpush1.bf16.msra.mxu0 0
        %7320 = vmatprep.subr.bf16.mxu0 0
        %7321 = vmatpush1.bf16.msra.mxu0 0
        %7322 = vmatprep.subr.bf16.mxu0 0
        %7323 = vmatpush1.bf16.msra.mxu0 0
        %7324 = vmatprep.subr.bf16.mxu0 0
        %7325 = vmatpush1.bf16.msra.mxu0 0
        %7326 = vmatprep.subr.bf16.mxu0 0
        %7327 = vmatpush1.bf16.msra.mxu0 0
        %7328 = vmatprep.subr.bf16.mxu0 0
        %7329 = vmatpush1.bf16.msra.mxu0 0
        %7330 = vmatprep.subr.bf16.mxu0 0
        %7331 = vmatpush1.bf16.msra.mxu0 0
        %7332 = vmatprep.mubr.bf16.mxu0 0
        %7333 = vmatmul.mubr.bf16.gmra.mrb[0].mxu0 %v7295
        %v7334 = vpop.f32.mrb[0].mxu0
        %v7335 = vadd.f32 0.0, %v7334
        %v7336 = vpop.f32.mrb[0].mxu0
        %v7337 = vpop.f32.mrb[0].mxu0
        %v7338 = vpop.f32.mrb[0].mxu0
        %7339 = vdwg.mxu0
        %7340 = vrot.lane.b32.xlu0 %v5835, 16
        %v7341 = vpop.permute.xlu0 %7340
        %v7343 = vsel %vm3752, %v7291, 0
        %v7346 = vsel %vm5961, %v7341, 0
        %7348 = vmatprep.subr.bf16.mxu0 0
        %7349 = vmatpush1.bf16.msra.mxu0 %v7346
        %7350 = vmatprep.subr.bf16.mxu0 0
        %7351 = vmatpush1.bf16.msra.mxu0 0
        %7352 = vmatprep.subr.bf16.mxu0 0
        %7353 = vmatpush1.bf16.msra.mxu0 0
        %7354 = vmatprep.subr.bf16.mxu0 0
        %7355 = vmatpush1.bf16.msra.mxu0 0
        %7356 = vmatprep.subr.bf16.mxu0 0
        %7357 = vmatpush1.bf16.msra.mxu0 0
        %7358 = vmatprep.subr.bf16.mxu0 0
        %7359 = vmatpush1.bf16.msra.mxu0 0
        %7360 = vmatprep.subr.bf16.mxu0 0
        %7361 = vmatpush1.bf16.msra.mxu0 0
        %7362 = vmatprep.subr.bf16.mxu0 0
        %7363 = vmatpush1.bf16.msra.mxu0 0
        %7364 = vmatprep.subr.bf16.mxu0 0
        %7365 = vmatpush1.bf16.msra.mxu0 0
        %7366 = vmatprep.subr.bf16.mxu0 0
        %7367 = vmatpush1.bf16.msra.mxu0 0
        %7368 = vmatprep.subr.bf16.mxu0 0
        %7369 = vmatpush1.bf16.msra.mxu0 0
        %7370 = vmatprep.subr.bf16.mxu0 0
        %7371 = vmatpush1.bf16.msra.mxu0 0
        %7372 = vmatprep.subr.bf16.mxu0 0
        %7373 = vmatpush1.bf16.msra.mxu0 0
        %7374 = vmatprep.subr.bf16.mxu0 0
        %7375 = vmatpush1.bf16.msra.mxu0 0
        %7376 = vmatprep.subr.bf16.mxu0 0
        %7377 = vmatpush1.bf16.msra.mxu0 0
        %7378 = vmatprep.subr.bf16.mxu0 0
        %7379 = vmatpush1.bf16.msra.mxu0 0
        %7380 = vmatprep.mubr.bf16.mxu0 0
        %7381 = vmatmul.mubr.bf16.gmra.mrb[0].mxu0 %v7343
        %v7382 = vpop.f32.mrb[0].mxu0
        %v7383 = vadd.f32 0.0, %v7382
        %v7384 = vpop.f32.mrb[0].mxu0
        %v7385 = vpop.f32.mrb[0].mxu0
        %v7386 = vpop.f32.mrb[0].mxu0
        %7387 = vdwg.mxu0
        %7388 = vrot.lane.b32.xlu0 %v5832, 72
        %v7389 = vpop.permute.xlu0 %7388
        %7390 = vrot.lane.b32.xlu0 %v5834, 72
        %v7391 = vpop.permute.xlu0 %7390
        %v7393 = vsel %vm3752, %v7389, 0
        %v7396 = vsel %vm3752, %v7391, 0
        %7398 = vmatprep.subr.bf16.mxu0 0
        %7399 = vmatpush1.bf16.xpose.msra.mxu0 %v7396
        %7400 = vmatprep.subr.bf16.mxu0 0
        %7401 = vmatpush1.bf16.xpose.msra.mxu0 0
        %7402 = vmatprep.subr.bf16.mxu0 0
        %7403 = vmatpush1.bf16.xpose.msra.mxu0 0
        %7404 = vmatprep.subr.bf16.mxu0 0
        %7405 = vmatpush1.bf16.xpose.msra.mxu0 0
        %7406 = vmatprep.subr.bf16.mxu0 0
        %7407 = vmatpush1.bf16.xpose.msra.mxu0 0
        %7408 = vmatprep.subr.bf16.mxu0 0
        %7409 = vmatpush1.bf16.xpose.msra.mxu0 0
        %7410 = vmatprep.subr.bf16.mxu0 0
        %7411 = vmatpush1.bf16.xpose.msra.mxu0 0
        %7412 = vmatprep.subr.bf16.mxu0 0
        %7413 = vmatpush1.bf16.xpose.msra.mxu0 0
        %7414 = vmatprep.subr.bf16.mxu0 0
        %7415 = vmatpush1.bf16.xpose.msra.mxu0 0
        %7416 = vmatprep.subr.bf16.mxu0 0
        %7417 = vmatpush1.bf16.xpose.msra.mxu0 0
        %7418 = vmatprep.subr.bf16.mxu0 0
        %7419 = vmatpush1.bf16.xpose.msra.mxu0 0
        %7420 = vmatprep.subr.bf16.mxu0 0
        %7421 = vmatpush1.bf16.xpose.msra.mxu0 0
        %7422 = vmatprep.subr.bf16.mxu0 0
        %7423 = vmatpush1.bf16.xpose.msra.mxu0 0
        %7424 = vmatprep.subr.bf16.mxu0 0
        %7425 = vmatpush1.bf16.xpose.msra.mxu0 0
        %7426 = vmatprep.subr.bf16.mxu0 0
        %7427 = vmatpush1.bf16.xpose.msra.mxu0 0
        %7428 = vmatprep.subr.bf16.mxu0 0
        %7429 = vmatpush1.bf16.xpose.msra.mxu0 0
        %7430 = vmatprep.mubr.bf16.mxu0 0
        %7431 = vmatmul.mubr.bf16.gmra.mrb[0].mxu0 %v7393
        %v7432 = vpop.f32.mrb[0].mxu0
        %v7433 = vadd.f32 0.0, %v7432
        %v7434 = vpop.f32.mrb[0].mxu0
        %v7435 = vpop.f32.mrb[0].mxu0
        %v7436 = vpop.f32.mrb[0].mxu0
        %7437 = vdwg.mxu0
        %7438 = vrot.lane.b32.xlu0 %v5833, 72
        %v7439 = vpop.permute.xlu0 %7438
        %7440 = vrot.lane.b32.xlu0 %v5835, 72
        %v7441 = vpop.permute.xlu0 %7440
        %v7443 = vsel %vm3752, %v7439, 0
        %v7446 = vsel %vm3752, %v7441, 0
        %7448 = vmatprep.subr.bf16.mxu0 0
        %7449 = vmatpush1.bf16.xpose.msra.mxu0 %v7446
        %7450 = vmatprep.subr.bf16.mxu0 0
        %7451 = vmatpush1.bf16.xpose.msra.mxu0 0
        %7452 = vmatprep.subr.bf16.mxu0 0
        %7453 = vmatpush1.bf16.xpose.msra.mxu0 0
        %7454 = vmatprep.subr.bf16.mxu0 0
        %7455 = vmatpush1.bf16.xpose.msra.mxu0 0
        %7456 = vmatprep.subr.bf16.mxu0 0
        %7457 = vmatpush1.bf16.xpose.msra.mxu0 0
        %7458 = vmatprep.subr.bf16.mxu0 0
        %7459 = vmatpush1.bf16.xpose.msra.mxu0 0
        %7460 = vmatprep.subr.bf16.mxu0 0
        %7461 = vmatpush1.bf16.xpose.msra.mxu0 0
        %7462 = vmatprep.subr.bf16.mxu0 0
        %7463 = vmatpush1.bf16.xpose.msra.mxu0 0
        %7464 = vmatprep.subr.bf16.mxu0 0
        %7465 = vmatpush1.bf16.xpose.msra.mxu0 0
        %7466 = vmatprep.subr.bf16.mxu0 0
        %7467 = vmatpush1.bf16.xpose.msra.mxu0 0
        %7468 = vmatprep.subr.bf16.mxu0 0
        %7469 = vmatpush1.bf16.xpose.msra.mxu0 0
        %7470 = vmatprep.subr.bf16.mxu0 0
        %7471 = vmatpush1.bf16.xpose.msra.mxu0 0
        %7472 = vmatprep.subr.bf16.mxu0 0
        %7473 = vmatpush1.bf16.xpose.msra.mxu0 0
        %7474 = vmatprep.subr.bf16.mxu0 0
        %7475 = vmatpush1.bf16.xpose.msra.mxu0 0
        %7476 = vmatprep.subr.bf16.mxu0 0
        %7477 = vmatpush1.bf16.xpose.msra.mxu0 0
        %7478 = vmatprep.subr.bf16.mxu0 0
        %7479 = vmatpush1.bf16.xpose.msra.mxu0 0
        %7480 = vmatprep.mubr.bf16.mxu0 0
        %7481 = vmatmul.mubr.bf16.gmra.mrb[0].mxu0 %v7443
        %v7482 = vpop.f32.mrb[0].mxu0
        %v7483 = vadd.f32 0.0, %v7482
        %v7484 = vpop.f32.mrb[0].mxu0
        %v7485 = vpop.f32.mrb[0].mxu0
        %v7486 = vpop.f32.mrb[0].mxu0
        %7487 = vdwg.mxu0
        %v7488 = vmul.f32 %v7433, 0.35355338
        %v7489 = vmul.f32 %v7483, 0.35355338
        %v7490 = vsel %vm5930, %v7488, -inf
        %7491 = vmax.xlane.f32.xlu0 %v7490
        %v7492 = vpop.xlane.xlu0 %7491
        %v7493 = vsel %vm5930, %v7489, -inf
        %7494 = vmax.xlane.f32.xlu0 %v7493
        %v7495 = vpop.xlane.xlu0 %7494
        %v7496 = vsub.f32 %v7488, %v7492
        %v7497 = vsub.f32 %v7489, %v7495
        %v7498 = vmul.f32 %v7496, 1.442695
        %v7499 = vpow.pop %v7498
        %v7500 = vmul.f32 %v7497, 1.442695
        %v7501 = vpow.pop %v7500
        %v7502 = vsel %vm5930, %v7499, 0.0
        %7503 = vadd.xlane.f32.xlu0 %v7502
        %v7504 = vpop.xlane.xlu0 %7503
        %v7505 = vsel %vm5930, %v7501, 0.0
        %7506 = vadd.xlane.f32.xlu0 %v7505
        %v7507 = vpop.xlane.xlu0 %7506
        %v7508 = vrcp.pop %v7504
        %v7509 = vrcp.pop %v7507
        %v7510 = vmul.f32 %v7499, %v7508
        %v7511 = vmul.f32 %v7501, %v7509
        %v7512 = vpack.c.bf16 %v7510, %v7510
        %v7513 = vpack.c.bf16 %v7511, %v7511
        %7514 = vrot.lane.b32.xlu0 %v5834, 8
        %v7515 = vpop.permute.xlu0 %7514
        %v7517 = vsel %vm3752, %v7512, 0
        %v7520 = vsel %vm5961, %v7515, 0
        %7522 = vmatprep.subr.bf16.mxu0 0
        %7523 = vmatpush1.bf16.msra.mxu0 %v7520
        %7524 = vmatprep.subr.bf16.mxu0 0
        %7525 = vmatpush1.bf16.msra.mxu0 0
        %7526 = vmatprep.subr.bf16.mxu0 0
        %7527 = vmatpush1.bf16.msra.mxu0 0
        %7528 = vmatprep.subr.bf16.mxu0 0
        %7529 = vmatpush1.bf16.msra.mxu0 0
        %7530 = vmatprep.subr.bf16.mxu0 0
        %7531 = vmatpush1.bf16.msra.mxu0 0
        %7532 = vmatprep.subr.bf16.mxu0 0
        %7533 = vmatpush1.bf16.msra.mxu0 0
        %7534 = vmatprep.subr.bf16.mxu0 0
        %7535 = vmatpush1.bf16.msra.mxu0 0
        %7536 = vmatprep.subr.bf16.mxu0 0
        %7537 = vmatpush1.bf16.msra.mxu0 0
        %7538 = vmatprep.subr.bf16.mxu0 0
        %7539 = vmatpush1.bf16.msra.mxu0 0
        %7540 = vmatprep.subr.bf16.mxu0 0
        %7541 = vmatpush1.bf16.msra.mxu0 0
        %7542 = vmatprep.subr.bf16.mxu0 0
        %7543 = vmatpush1.bf16.msra.mxu0 0
        %7544 = vmatprep.subr.bf16.mxu0 0
        %7545 = vmatpush1.bf16.msra.mxu0 0
        %7546 = vmatprep.subr.bf16.mxu0 0
        %7547 = vmatpush1.bf16.msra.mxu0 0
        %7548 = vmatprep.subr.bf16.mxu0 0
        %7549 = vmatpush1.bf16.msra.mxu0 0
        %7550 = vmatprep.subr.bf16.mxu0 0
        %7551 = vmatpush1.bf16.msra.mxu0 0
        %7552 = vmatprep.subr.bf16.mxu0 0
        %7553 = vmatpush1.bf16.msra.mxu0 0
        %7554 = vmatprep.mubr.bf16.mxu0 0
        %7555 = vmatmul.mubr.bf16.gmra.mrb[0].mxu0 %v7517
        %v7556 = vpop.f32.mrb[0].mxu0
        %v7557 = vadd.f32 0.0, %v7556
        %v7558 = vpop.f32.mrb[0].mxu0
        %v7559 = vpop.f32.mrb[0].mxu0
        %v7560 = vpop.f32.mrb[0].mxu0
        %7561 = vdwg.mxu0
        %7562 = vrot.lane.b32.xlu0 %v5835, 8
        %v7563 = vpop.permute.xlu0 %7562
        %v7565 = vsel %vm3752, %v7513, 0
        %v7568 = vsel %vm5961, %v7563, 0
        %7570 = vmatprep.subr.bf16.mxu0 0
        %7571 = vmatpush1.bf16.msra.mxu0 %v7568
        %7572 = vmatprep.subr.bf16.mxu0 0
        %7573 = vmatpush1.bf16.msra.mxu0 0
        %7574 = vmatprep.subr.bf16.mxu0 0
        %7575 = vmatpush1.bf16.msra.mxu0 0
        %7576 = vmatprep.subr.bf16.mxu0 0
        %7577 = vmatpush1.bf16.msra.mxu0 0
        %7578 = vmatprep.subr.bf16.mxu0 0
        %7579 = vmatpush1.bf16.msra.mxu0 0
        %7580 = vmatprep.subr.bf16.mxu0 0
        %7581 = vmatpush1.bf16.msra.mxu0 0
        %7582 = vmatprep.subr.bf16.mxu0 0
        %7583 = vmatpush1.bf16.msra.mxu0 0
        %7584 = vmatprep.subr.bf16.mxu0 0
        %7585 = vmatpush1.bf16.msra.mxu0 0
        %7586 = vmatprep.subr.bf16.mxu0 0
        %7587 = vmatpush1.bf16.msra.mxu0 0
        %7588 = vmatprep.subr.bf16.mxu0 0
        %7589 = vmatpush1.bf16.msra.mxu0 0
        %7590 = vmatprep.subr.bf16.mxu0 0
        %7591 = vmatpush1.bf16.msra.mxu0 0
        %7592 = vmatprep.subr.bf16.mxu0 0
        %7593 = vmatpush1.bf16.msra.mxu0 0
        %7594 = vmatprep.subr.bf16.mxu0 0
        %7595 = vmatpush1.bf16.msra.mxu0 0
        %7596 = vmatprep.subr.bf16.mxu0 0
        %7597 = vmatpush1.bf16.msra.mxu0 0
        %7598 = vmatprep.subr.bf16.mxu0 0
        %7599 = vmatpush1.bf16.msra.mxu0 0
        %7600 = vmatprep.subr.bf16.mxu0 0
        %7601 = vmatpush1.bf16.msra.mxu0 0
        %7602 = vmatprep.mubr.bf16.mxu0 0
        %7603 = vmatmul.mubr.bf16.gmra.mrb[0].mxu0 %v7565
        %v7604 = vpop.f32.mrb[0].mxu0
        %v7605 = vadd.f32 0.0, %v7604
        %v7606 = vpop.f32.mrb[0].mxu0
        %v7607 = vpop.f32.mrb[0].mxu0
        %v7608 = vpop.f32.mrb[0].mxu0
        %7609 = vdwg.mxu0
        %7612 = vrot.lane.b32.xlu0 %v6225, 8
        %v7613 = vpop.permute.xlu0 %7612
        %7614 = vrot.lane.b32.xlu0 %v6273, 8
        %v7615 = vpop.permute.xlu0 %7614
        %7620 = vrot.lane.b32.xlu0 %v6447, 16
        %v7621 = vpop.permute.xlu0 %7620
        %7622 = vrot.lane.b32.xlu0 %v6495, 16
        %v7623 = vpop.permute.xlu0 %7622
        %7628 = vrot.lane.b32.xlu0 %v6669, 24
        %v7629 = vpop.permute.xlu0 %7628
        %7630 = vrot.lane.b32.xlu0 %v6717, 24
        %v7631 = vpop.permute.xlu0 %7630
        %7636 = vrot.lane.b32.xlu0 %v6891, 32
        %v7637 = vpop.permute.xlu0 %7636
        %7638 = vrot.lane.b32.xlu0 %v6939, 32
        %v7639 = vpop.permute.xlu0 %7638
        %7644 = vrot.lane.b32.xlu0 %v7113, 40
        %v7645 = vpop.permute.xlu0 %7644
        %7646 = vrot.lane.b32.xlu0 %v7161, 40
        %v7647 = vpop.permute.xlu0 %7646
        %7652 = vrot.lane.b32.xlu0 %v7335, 48
        %v7653 = vpop.permute.xlu0 %7652
        %7654 = vrot.lane.b32.xlu0 %v7383, 48
        %v7655 = vpop.permute.xlu0 %7654
        %7660 = vrot.lane.b32.xlu0 %v7557, 56
        %v7661 = vpop.permute.xlu0 %7660
        %7662 = vrot.lane.b32.xlu0 %v7605, 56
        %v7663 = vpop.permute.xlu0 %7662
        %v7666 = vsel %vm3752, %v6000, %v7613
        %v7667 = vsel %vm3752, %v6049, %v7615
        %v7668 = vsel %vm5599, %v7666, %v7621
        %v7669 = vsel %vm5599, %v7667, %v7623
        %v7670 = vsel %vm5602, %v7668, %v7629
        %v7671 = vsel %vm5602, %v7669, %v7631
        %v7672 = vsel %vm3543, %v7670, %v7637
        %v7673 = vsel %vm3543, %v7671, %v7639
        %v7674 = vsel %vm5607, %v7672, %v7645
        %v7675 = vsel %vm5607, %v7673, %v7647
        %v7676 = vsel %vm5610, %v7674, %v7653
        %v7677 = vsel %vm5610, %v7675, %v7655
        %v7678 = vsel %vm5613, %v7676, %v7661
        %v7679 = vsel %vm5613, %v7677, %v7663
        %v7682 = vcombine.low %v7678, %v7679
        %v7684 = vpack.c.bf16 %v7682, %v7682
        %s7685 = smul.addr %s5621, 4
        %s7686 = scalar_lea.vmem [#allocation26], %s7685
        %v7687 = vld [vmem:[%s7686] sm:$0xf]
        %v7688 = vld [vmem:[%s7686 + $0x4] sm:$0xf]
        %v7689 = vld [vmem:[%s7686 + $0x8] sm:$0xf]
        %v7690 = vld [vmem:[%s7686 + $0xc] sm:$0xf]
        %v7691 = vld [vmem:[%s7686 + $0x10] sm:$0xf]
        %v7692 = vld [vmem:[%s7686 + $0x14] sm:$0xf]
        %v7693 = vld [vmem:[%s7686 + $0x18] sm:$0xf]
        %v7694 = vld [vmem:[%s7686 + $0x1c] sm:$0xf]
        %s7695 = scalar_lea.vmem [#allocation27], %s3623
        %v7696 = vld [vmem:[%s7695] sm:$0x1]
        %v7698 = vlaneseq
        %v7699 = vshrl.u32 %v7698, 7
        %v7700 = vsub.s32 0, %v7699
        %v7701 = vrot.slane %v7696, %v7700
        %v7711 = vunpack.c.l.b16 %v7687
        %v7712 = vunpack.c.l.b16 %v7688
        %v7713 = vunpack.c.l.b16 %v7689
        %v7714 = vunpack.c.l.b16 %v7690
        %v7715 = vunpack.c.l.b16 %v7691
        %v7716 = vunpack.c.l.b16 %v7692
        %v7717 = vunpack.c.l.b16 %v7693
        %v7718 = vunpack.c.l.b16 %v7694
        %v7719 = vpack.c.b16 %v7712, %v7711
        %v7720 = vpack.c.b16 %v7714, %v7713
        %v7721 = vpack.c.b16 %v7716, %v7715
        %v7722 = vpack.c.b16 %v7718, %v7717
        %v7728 = vsel %vm2878, %v7684, 0
        %7730 = vmatprep.subr.bf16.mxu0 0
        %7731 = vmatpush1.bf16.msra.mxu0 %v7719
        %7732 = vmatprep.subr.bf16.mxu0 0
        %7733 = vmatpush1.bf16.msra.mxu0 %v7720
        %7734 = vmatprep.subr.bf16.mxu0 0
        %7735 = vmatpush1.bf16.msra.mxu0 %v7721
        %7736 = vmatprep.subr.bf16.mxu0 0
        %7737 = vmatpush1.bf16.msra.mxu0 %v7722
        %7738 = vmatprep.subr.bf16.mxu0 0
        %7739 = vmatpush1.bf16.msra.mxu0 0
        %7740 = vmatprep.subr.bf16.mxu0 0
        %7741 = vmatpush1.bf16.msra.mxu0 0
        %7742 = vmatprep.subr.bf16.mxu0 0
        %7743 = vmatpush1.bf16.msra.mxu0 0
        %7744 = vmatprep.subr.bf16.mxu0 0
        %7745 = vmatpush1.bf16.msra.mxu0 0
        %7746 = vmatprep.subr.bf16.mxu0 0
        %7747 = vmatpush1.bf16.msra.mxu0 0
        %7748 = vmatprep.subr.bf16.mxu0 0
        %7749 = vmatpush1.bf16.msra.mxu0 0
        %7750 = vmatprep.subr.bf16.mxu0 0
        %7751 = vmatpush1.bf16.msra.mxu0 0
        %7752 = vmatprep.subr.bf16.mxu0 0
        %7753 = vmatpush1.bf16.msra.mxu0 0
        %7754 = vmatprep.subr.bf16.mxu0 0
        %7755 = vmatpush1.bf16.msra.mxu0 0
        %7756 = vmatprep.subr.bf16.mxu0 0
        %7757 = vmatpush1.bf16.msra.mxu0 0
        %7758 = vmatprep.subr.bf16.mxu0 0
        %7759 = vmatpush1.bf16.msra.mxu0 0
        %7760 = vmatprep.subr.bf16.mxu0 0
        %7761 = vmatpush1.bf16.msra.mxu0 0
        %7762 = vmatprep.mubr.bf16.mxu0 0
        %7763 = vmatmul.mubr.bf16.gmra.mrb[0].mxu0 %v7728
        %v7764 = vpop.f32.mrb[0].mxu0
        %v7765 = vadd.f32 %v7701, %v7764
        %v7766 = vpop.f32.mrb[0].mxu0
        %v7767 = vpop.f32.mrb[0].mxu0
        %v7768 = vpop.f32.mrb[0].mxu0
        %7769 = vdwg.mxu0
        %s7770 = scalar_lea.vmem [#allocation29], %s3623
        %v7771 = vld [vmem:[%s7770] sm:$0x1]
        %s7772 = scalar_lea.vmem [#allocation30], %s3623
        %v7773 = vld [vmem:[%s7772] sm:$0x1]
        %v7774 = vadd.f32 %v7765, %v5739
        %v7775 = vsel %vm2878, %v7774, 0.0
        %7776 = vadd.xlane.f32.xlu0 %v7775
        %v7777 = vpop.xlane.xlu0 %7776
        %v7778 = vmul.f32 %v7777, %v5715
        %v7779 = vsub.f32 %v7774, %v7778
        %v7780 = vmul.f32 %v7779, %v7779
        %v7781 = vsel %vm2878, %v7780, 0.0
        %7782 = vadd.xlane.f32.xlu0 %v7781
        %v7783 = vpop.xlane.xlu0 %7782
        %v7784 = vmul.f32 %v7783, %v5715
        %v7785 = vadd.f32 %v7784, 1e-05
        %v7786 = vrsqrt.pop %v7785
        %v7787 = vmul.f32 %v7779, %v7786
        %v7789 = vlaneseq
        %v7790 = vshrl.u32 %v7789, 7
        %v7791 = vsub.s32 0, %v7790
        %v7792 = vrot.slane %v7771, %v7791
        %v7794 = vmul.f32 %v7787, %v7792
        %v7796 = vlaneseq
        %v7797 = vshrl.u32 %v7796, 7
        %v7798 = vsub.s32 0, %v7797
        %v7799 = vrot.slane %v7773, %v7798
        %v7801 = vadd.f32 %v7794, %v7799
        %v7802 = vpack.c.bf16 %v7801, %v7801
        %s7803 = smul.addr %s5621, 4
        %s7804 = scalar_lea.vmem [#allocation32], %s7803
        %v7805 = vld [vmem:[%s7804] sm:$0xf]
        %v7806 = vld [vmem:[%s7804 + $0x4] sm:$0xf]
        %v7807 = vld [vmem:[%s7804 + $0x8] sm:$0xf]
        %v7808 = vld [vmem:[%s7804 + $0xc] sm:$0xf]
        %v7809 = vld [vmem:[%s7804 + $0x10] sm:$0xf]
        %v7810 = vld [vmem:[%s7804 + $0x14] sm:$0xf]
        %v7811 = vld [vmem:[%s7804 + $0x18] sm:$0xf]
        %v7812 = vld [vmem:[%s7804 + $0x1c] sm:$0xf]
        %s7813 = scalar_lea.vmem [#allocation33], %s3623
        %v7814 = vld [vmem:[%s7813] sm:$0x1]
        %v7816 = vlaneseq
        %v7817 = vshrl.u32 %v7816, 7
        %v7818 = vsub.s32 0, %v7817
        %v7819 = vrot.slane %v7814, %v7818
        %v7829 = vunpack.c.l.b16 %v7805
        %v7830 = vunpack.c.l.b16 %v7806
        %v7831 = vunpack.c.l.b16 %v7807
        %v7832 = vunpack.c.l.b16 %v7808
        %v7833 = vunpack.c.l.b16 %v7809
        %v7834 = vunpack.c.l.b16 %v7810
        %v7835 = vunpack.c.l.b16 %v7811
        %v7836 = vunpack.c.l.b16 %v7812
        %v7837 = vpack.c.b16 %v7830, %v7829
        %v7838 = vpack.c.b16 %v7832, %v7831
        %v7839 = vpack.c.b16 %v7834, %v7833
        %v7840 = vpack.c.b16 %v7836, %v7835
        %v7846 = vsel %vm2878, %v7802, 0
        %7848 = vmatprep.subr.bf16.mxu0 0
        %7849 = vmatpush1.bf16.msra.mxu0 %v7837
        %7850 = vmatprep.subr.bf16.mxu0 0
        %7851 = vmatpush1.bf16.msra.mxu0 %v7838
        %7852 = vmatprep.subr.bf16.mxu0 0
        %7853 = vmatpush1.bf16.msra.mxu0 %v7839
        %7854 = vmatprep.subr.bf16.mxu0 0
        %7855 = vmatpush1.bf16.msra.mxu0 %v7840
        %7856 = vmatprep.subr.bf16.mxu0 0
        %7857 = vmatpush1.bf16.msra.mxu0 0
        %7858 = vmatprep.subr.bf16.mxu0 0
        %7859 = vmatpush1.bf16.msra.mxu0 0
        %7860 = vmatprep.subr.bf16.mxu0 0
        %7861 = vmatpush1.bf16.msra.mxu0 0
        %7862 = vmatprep.subr.bf16.mxu0 0
        %7863 = vmatpush1.bf16.msra.mxu0 0
        %7864 = vmatprep.subr.bf16.mxu0 0
        %7865 = vmatpush1.bf16.msra.mxu0 0
        %7866 = vmatprep.subr.bf16.mxu0 0
        %7867 = vmatpush1.bf16.msra.mxu0 0
        %7868 = vmatprep.subr.bf16.mxu0 0
        %7869 = vmatpush1.bf16.msra.mxu0 0
        %7870 = vmatprep.subr.bf16.mxu0 0
        %7871 = vmatpush1.bf16.msra.mxu0 0
        %7872 = vmatprep.subr.bf16.mxu0 0
        %7873 = vmatpush1.bf16.msra.mxu0 0
        %7874 = vmatprep.subr.bf16.mxu0 0
        %7875 = vmatpush1.bf16.msra.mxu0 0
        %7876 = vmatprep.subr.bf16.mxu0 0
        %7877 = vmatpush1.bf16.msra.mxu0 0
        %7878 = vmatprep.subr.bf16.mxu0 0
        %7879 = vmatpush1.bf16.msra.mxu0 0
        %7880 = vmatprep.mubr.bf16.mxu0 0
        %7881 = vmatmul.mubr.bf16.gmra.mrb[0].mxu0 %v7846
        %v7882 = vpop.f32.mrb[0].mxu0
        %v7883 = vadd.f32 %v7819, %v7882
        %v7884 = vpop.f32.mrb[0].mxu0
        %v7885 = vpop.f32.mrb[0].mxu0
        %v7886 = vpop.f32.mrb[0].mxu0
        %7887 = vdwg.mxu0
        %v7888 = vmax.f32 %v7883, 0.0
        %v7889 = vpack.c.bf16 %v7888, %v7888
        %s7890 = smul.addr %s3630, 4
        %s7891 = scalar_lea.vmem %s69, %s7890
        %v7892 = vld [vmem:[%s7891] sm:$0xf]
        %v7893 = vld [vmem:[%s7891 + $0x4] sm:$0xf]
        %v7894 = vld [vmem:[%s7891 + $0x8] sm:$0xf]
        %v7895 = vld [vmem:[%s7891 + $0xc] sm:$0xf]
        %v7896 = vld [vmem:[%s7891 + $0x10] sm:$0xf]
        %v7897 = vld [vmem:[%s7891 + $0x14] sm:$0xf]
        %v7898 = vld [vmem:[%s7891 + $0x18] sm:$0xf]
        %v7899 = vld [vmem:[%s7891 + $0x1c] sm:$0xf]
        %v7900 = vld [vmem:[%s7891 + $0x20] sm:$0xf]
        %v7901 = vld [vmem:[%s7891 + $0x24] sm:$0xf]
        %v7902 = vld [vmem:[%s7891 + $0x28] sm:$0xf]
        %v7903 = vld [vmem:[%s7891 + $0x2c] sm:$0xf]
        %v7904 = vld [vmem:[%s7891 + $0x30] sm:$0xf]
        %v7905 = vld [vmem:[%s7891 + $0x34] sm:$0xf]
        %v7906 = vld [vmem:[%s7891 + $0x38] sm:$0xf]
        %v7907 = vld [vmem:[%s7891 + $0x3c] sm:$0xf]
        %s7908 = scalar_lea.vmem [#allocation35], %s3623
        %v7909 = vld [vmem:[%s7908] sm:$0x1]
        %v7911 = vlaneseq
        %v7912 = vshrl.u32 %v7911, 7
        %v7913 = vsub.s32 0, %v7912
        %v7914 = vrot.slane %v7909, %v7913
        %v7932 = vunpack.c.l.b16 %v7892
        %v7933 = vunpack.c.l.b16 %v7893
        %v7934 = vunpack.c.l.b16 %v7894
        %v7935 = vunpack.c.l.b16 %v7895
        %v7936 = vunpack.c.l.b16 %v7896
        %v7937 = vunpack.c.l.b16 %v7897
        %v7938 = vunpack.c.l.b16 %v7898
        %v7939 = vunpack.c.l.b16 %v7899
        %v7940 = vunpack.c.l.b16 %v7900
        %v7941 = vunpack.c.l.b16 %v7901
        %v7942 = vunpack.c.l.b16 %v7902
        %v7943 = vunpack.c.l.b16 %v7903
        %v7944 = vunpack.c.l.b16 %v7904
        %v7945 = vunpack.c.l.b16 %v7905
        %v7946 = vunpack.c.l.b16 %v7906
        %v7947 = vunpack.c.l.b16 %v7907
        %v7948 = vpack.c.b16 %v7933, %v7932
        %v7949 = vpack.c.b16 %v7935, %v7934
        %v7950 = vpack.c.b16 %v7937, %v7936
        %v7951 = vpack.c.b16 %v7939, %v7938
        %v7952 = vpack.c.b16 %v7941, %v7940
        %v7953 = vpack.c.b16 %v7943, %v7942
        %v7954 = vpack.c.b16 %v7945, %v7944
        %v7955 = vpack.c.b16 %v7947, %v7946
        %7964 = vmatprep.subr.bf16.mxu0 0
        %7965 = vmatpush1.bf16.msra.mxu0 %v7948
        %7966 = vmatprep.subr.bf16.mxu0 0
        %7967 = vmatpush1.bf16.msra.mxu0 %v7949
        %7968 = vmatprep.subr.bf16.mxu0 0
        %7969 = vmatpush1.bf16.msra.mxu0 %v7950
        %7970 = vmatprep.subr.bf16.mxu0 0
        %7971 = vmatpush1.bf16.msra.mxu0 %v7951
        %7972 = vmatprep.subr.bf16.mxu0 0
        %7973 = vmatpush1.bf16.msra.mxu0 %v7952
        %7974 = vmatprep.subr.bf16.mxu0 0
        %7975 = vmatpush1.bf16.msra.mxu0 %v7953
        %7976 = vmatprep.subr.bf16.mxu0 0
        %7977 = vmatpush1.bf16.msra.mxu0 %v7954
        %7978 = vmatprep.subr.bf16.mxu0 0
        %7979 = vmatpush1.bf16.msra.mxu0 %v7955
        %7980 = vmatprep.subr.bf16.mxu0 0
        %7981 = vmatpush1.bf16.msra.mxu0 0
        %7982 = vmatprep.subr.bf16.mxu0 0
        %7983 = vmatpush1.bf16.msra.mxu0 0
        %7984 = vmatprep.subr.bf16.mxu0 0
        %7985 = vmatpush1.bf16.msra.mxu0 0
        %7986 = vmatprep.subr.bf16.mxu0 0
        %7987 = vmatpush1.bf16.msra.mxu0 0
        %7988 = vmatprep.subr.bf16.mxu0 0
        %7989 = vmatpush1.bf16.msra.mxu0 0
        %7990 = vmatprep.subr.bf16.mxu0 0
        %7991 = vmatpush1.bf16.msra.mxu0 0
        %7992 = vmatprep.subr.bf16.mxu0 0
        %7993 = vmatpush1.bf16.msra.mxu0 0
        %7994 = vmatprep.subr.bf16.mxu0 0
        %7995 = vmatpush1.bf16.msra.mxu0 0
        %7996 = vmatprep.mubr.bf16.mxu0 0
        %7997 = vmatmul.mubr.bf16.gmra.mrb[0].mxu0 %v7889
        %v7998 = vpop.f32.mrb[0].mxu0
        %v7999 = vadd.f32 %v7914, %v7998
        %v8000 = vpop.f32.mrb[0].mxu0
        %v8001 = vpop.f32.mrb[0].mxu0
        %v8002 = vpop.f32.mrb[0].mxu0
        %8003 = vdwg.mxu0
        %s8004 = scalar_lea.vmem [#allocation36], %s3623
        %v8005 = vld [vmem:[%s8004] sm:$0x1]
        %s8006 = scalar_lea.vmem [#allocation38], %s3623
        %v8007 = vld [vmem:[%s8006] sm:$0x1]
        %v8008 = vadd.f32 %v7999, %v7801
        %v8009 = vsel %vm2878, %v8008, 0.0
        %8010 = vadd.xlane.f32.xlu0 %v8009
        %v8011 = vpop.xlane.xlu0 %8010
        %v8012 = vmul.f32 %v8011, %v5715
        %v8013 = vsub.f32 %v8008, %v8012
        %v8014 = vmul.f32 %v8013, %v8013
        %v8015 = vsel %vm2878, %v8014, 0.0
        %8016 = vadd.xlane.f32.xlu0 %v8015
        %v8017 = vpop.xlane.xlu0 %8016
        %v8018 = vmul.f32 %v8017, %v5715
        %v8019 = vadd.f32 %v8018, 1e-05
        %v8020 = vrsqrt.pop %v8019
        %v8021 = vmul.f32 %v8013, %v8020
        %v8023 = vlaneseq
        %v8024 = vshrl.u32 %v8023, 7
        %v8025 = vsub.s32 0, %v8024
        %v8026 = vrot.slane %v8005, %v8025
        %v8028 = vmul.f32 %v8021, %v8026
        %v8030 = vlaneseq
        %v8031 = vshrl.u32 %v8030, 7
        %v8032 = vsub.s32 0, %v8031
        %v8033 = vrot.slane %v8007, %v8032
        %v8035 = vadd.f32 %v8028, %v8033
      $region264: #{_forward.1} parent=256 // loop_footer
        %s3627 = sadd.s32 1, %s3623
      $region265: #{_forward.1} parent=256 // loop_footer_branch
        %3622 = sbr.rel target = $region261
      $region266: #{_forward.1} parent=256 // loop_exit
        _
      %v8036 = vlaneseq
      %v8037 = vshrl.u32 %v8036, 7
      %vm8038 = vcmp.eq.s32.totalorder %v8037, %v3619
      %v8040 = vcombine.high %v3628, %v3628
      %v8042 = vsel %vm8038, %v3628, 0.0
      %v8043 = vsel %vm8038, %v8040, 0.0
      %vm8044 = vcmask 519168
      %v8045 = vsel %vm8044, %v8042, 0.0
      %v8046 = vrot.slane %v8045, 4
      %v8047 = vadd.f32 %v8045, %v8046
      %v8048 = vrot.slane %v8047, 2
      %v8049 = vadd.f32 %v8047, %v8048
      %v8050 = vrot.slane %v8049, 1
      %v8051 = vadd.f32 %v8049, %v8050
      %v8052 = vsel %vm8044, %v8043, 0.0
      %v8053 = vrot.slane %v8052, 4
      %v8054 = vadd.f32 %v8052, %v8053
      %v8055 = vrot.slane %v8054, 2
      %v8056 = vadd.f32 %v8054, %v8055
      %v8057 = vrot.slane %v8056, 1
      %v8058 = vadd.f32 %v8056, %v8057
      %v8059 = vpack.c.bf16 %v8051, %v8051
      %v8060 = vpack.c.bf16 %v8058, %v8058
      %v8062 = vlaneseq
      %v8063 = vshrl.u32 %v8062, 7
      %v8064 = vsub.s32 0, %v8063
      %v8065 = vrot.slane %v3533, %v8064
      %v8069 = vunpack.c.l.b16 %v8059
      %v8070 = vunpack.c.l.b16 %v8060
      %vm8071 = vcmask 1041409
      %v8072 = vsel %vm8071, %v8070, %v8069
      %v8073 = vpack.c.b16 %v8072, %v8072
      %v8082 = vunpack.c.l.b16 %v3525
      %v8083 = vunpack.c.l.b16 %v3526
      %v8084 = vunpack.c.l.b16 %v3527
      %v8085 = vunpack.c.l.b16 %v3528
      %v8086 = vunpack.c.l.b16 %v3529
      %v8087 = vunpack.c.l.b16 %v3530
      %v8088 = vunpack.c.l.b16 %v3531
      %v8089 = vunpack.c.l.b16 %v3532
      %v8090 = vpack.c.b16 %v8083, %v8082
      %v8091 = vpack.c.b16 %v8085, %v8084
      %v8092 = vpack.c.b16 %v8087, %v8086
      %v8093 = vpack.c.b16 %v8089, %v8088
      %v8099 = vsel %vm2878, %v8073, 0
      %8101 = vmatprep.subr.bf16.mxu0 0
      %8102 = vmatpush1.bf16.msra.mxu0 %v8090
      %8103 = vmatprep.subr.bf16.mxu0 0
      %8104 = vmatpush1.bf16.msra.mxu0 %v8091
      %8105 = vmatprep.subr.bf16.mxu0 0
      %8106 = vmatpush1.bf16.msra.mxu0 %v8092
      %8107 = vmatprep.subr.bf16.mxu0 0
      %8108 = vmatpush1.bf16.msra.mxu0 %v8093
      %8109 = vmatprep.subr.bf16.mxu0 0
      %8110 = vmatpush1.bf16.msra.mxu0 0
      %8111 = vmatprep.subr.bf16.mxu0 0
      %8112 = vmatpush1.bf16.msra.mxu0 0
      %8113 = vmatprep.subr.bf16.mxu0 0
      %8114 = vmatpush1.bf16.msra.mxu0 0
      %8115 = vmatprep.subr.bf16.mxu0 0
      %8116 = vmatpush1.bf16.msra.mxu0 0
      %8117 = vmatprep.subr.bf16.mxu0 0
      %8118 = vmatpush1.bf16.msra.mxu0 0
      %8119 = vmatprep.subr.bf16.mxu0 0
      %8120 = vmatpush1.bf16.msra.mxu0 0
      %8121 = vmatprep.subr.bf16.mxu0 0
      %8122 = vmatpush1.bf16.msra.mxu0 0
      %8123 = vmatprep.subr.bf16.mxu0 0
      %8124 = vmatpush1.bf16.msra.mxu0 0
      %8125 = vmatprep.subr.bf16.mxu0 0
      %8126 = vmatpush1.bf16.msra.mxu0 0
      %8127 = vmatprep.subr.bf16.mxu0 0
      %8128 = vmatpush1.bf16.msra.mxu0 0
      %8129 = vmatprep.subr.bf16.mxu0 0
      %8130 = vmatpush1.bf16.msra.mxu0 0
      %8131 = vmatprep.subr.bf16.mxu0 0
      %8132 = vmatpush1.bf16.msra.mxu0 0
      %8133 = vmatprep.mubr.bf16.mxu0 0
      %8134 = vmatmul.mubr.bf16.gmra.mrb[0].mxu0 %v8099
      %v8135 = vpop.f32.mrb[0].mxu0
      %v8136 = vadd.f32 %v8065, %v8135
      %v8137 = vpop.f32.mrb[0].mxu0
      %v8138 = vpop.f32.mrb[0].mxu0
      %v8139 = vpop.f32.mrb[0].mxu0
      %8140 = vdwg.mxu0
      %v8141 = vcvt.s32.f32 %v3618
      %vm8142 = vcmask 254976
      %v8143 = vsel %vm8142, %v8136, -inf
      %8144 = vmax.xlane.f32.xlu0 %v8143
      %v8145 = vpop.xlane.xlu0 %8144
      %vm8146 = vcmp.ge.f32.partialorder %v8136, %v8145
      %v8147 = vsel %vm8146, %v8141, 32.0
      %v8148 = vsel %vm8142, %v8147, inf
      %8149 = vmin.xlane.f32.xlu0 %v8148
      %v8150 = vpop.xlane.xlu0 %8149
      %vm8151 = vcmp.eq.f32.partialorder %v8141, %v8150
      %v8152 = vsel %vm8151, 1, 0
      %v8153 = vcvt.s32.f32 %v8152
      %s8154 = sadd.s32 %s3536, 1
      %v8155 = vstv %s8154
      %vm8156 = vcmp.eq.s32.totalorder %v8037, %v8155
      %v8159 = vunpack.c.l.s4 1966171168
      %v8160 = vunpack.c.0.s8 %v8159
      %v8161 = vlaneseq
      %v8162 = vshrl.u32 %v8161, 7
      %v8163 = vsub.s32 %v8160, %v8162
      %v8164 = vrot.slane %v8153, %v8163
      %v8165 = vcombine.high %v8164, %v8164
      %v8167 = vunpack.c.l.s4 1966171168
      %v8168 = vunpack.c.0.s8 %v8167
      %v8169 = vlaneseq
      %v8170 = vshrl.u32 %v8169, 7
      %v8171 = vsub.s32 %v8168, %v8170
      %v8172 = vrot.slane %v8164, %v8171
      %v8174 = vunpack.c.l.s4 1966171168
      %v8175 = vunpack.c.0.s8 %v8174
      %v8176 = vlaneseq
      %v8177 = vshrl.u32 %v8176, 7
      %v8178 = vsub.s32 %v8175, %v8177
      %v8179 = vrot.slane %v8165, %v8178
      %v8180 = vcombine.high %v3541, %v3541
      %v8182 = vlaneseq
      %v8183 = vshrl.u32 %v8182, 7
      %v8184 = vsub.s32 0, %v8183
      %v8185 = vrot.slane %v8172, %v8184
      %v8186 = vlaneseq
      %v8187 = vshrl.u32 %v8186, 7
      %v8188 = vsub.s32 0, %v8187
      %v8189 = vrot.slane %v8179, %v8188
      %v8192 = vsel %vm8156, %v8185, %v3541
      %v8193 = vsel %vm8156, %v8189, %v8180
      %v8196 = vcombine.low %v8192, %v8193
    $region257: #{_forward.1} parent=1 // loop_footer
      %s3540 = sadd.s32 1, %s3536
    $region258: #{_forward.1} parent=1 // loop_footer_branch
      %3535 = sbr.rel target = $region254
    $region259: #{_forward.1} parent=1 // loop_exit
      _
    %8198 = vst.msk [vmem:[#allocation39] sm:$0xff] %vm2878, %v3542
    // Predicated region
    $region267: #{_forward.1} parent=1 // pred_check
      _
    $region268: #{_forward.1} parent=1 // pred_check_branch
      %8200 = sbr.rel (0) target = $region270
    $region269: #{_forward.1} parent=1 // pred_region
      %s8202 = ssub.s32 128, 128
      %8203 = vsyncadd [#allocation5], %s8202
      %s8205 = sshll.u32 [#allocation39], 4
      %s8206 = int_to_ptr.vmem [resolvable:$true] %s8205
      %8208 = dma.vmem_to_hbm [thread:$0]  %s8206, 128, %s77, [#allocation5]
    $region270: #{_forward.1} parent=1 // pred_fallthru
      _
    // Predicated region
    $region271: #{_forward.1} parent=1 // pred_check
      _
    $region272: #{_forward.1} parent=1 // pred_check_branch
      %8210 = sbr.rel (0) target = $region274
    $region273: #{_forward.1} parent=1 // pred_region
      %8211 = dma.done [#allocation5], 128
    $region274: #{_forward.1} parent=1 // pred_fallthru
      _
    %8212 = vsyncpa [#allocation4], 1
    %8213 = vsyncpa [#allocation7], 1
    %8214 = vsyncpa [#allocation10], 1
    %8215 = vsyncpa [#allocation13], 1
    %8216 = vsyncpa [#allocation16], 1
    %8217 = vsyncpa [#allocation19], 1
    %8218 = vsyncpa [#allocation22], 1
    %8219 = vsyncpa [#allocation25], 1
    %8220 = vsyncpa [#allocation28], 1
    %8221 = vsyncpa [#allocation31], 1
    %8222 = vsyncpa [#allocation34], 1
    %8223 = vsyncpa [#allocation37], 1
    %8224 = vsyncpa [#allocation5], 1

</llo_original>
